<compile_context>
chip_gen: v7x
topology: tpu7x:2x2x1
jax: 0.10.0
libtpu: 0.0.40
codegen_flags: <defaults>
</compile_context>

<pallas_src>
import jax
import jax.numpy as jnp
from jax import lax
from jax.experimental import pallas as pl
from jax.experimental.pallas import tpu as pltpu


def _boundary_masks(D, H, W):
    """(27, D*H*W) f32 masks: 1 where the tap's shifted source stays in-bounds."""
    d = jnp.arange(D).reshape(D, 1, 1)
    h = jnp.arange(H).reshape(1, H, 1)
    w = jnp.arange(W).reshape(1, 1, W)
    rows = []
    for kd in range(3):
        for kh in range(3):
            for kw in range(3):
                dd, dh, dw = kd - 1, kh - 1, kw - 1
                m = ((d + dd >= 0) & (d + dd < D) &
                     (h + dh >= 0) & (h + dh < H) &
                     (w + dw >= 0) & (w + dw < W))
                rows.append(m.reshape(-1))
    # f32 on purpose: mask multiply is elementwise and v5e's VPU has no bf16.
    return jnp.stack(rows).astype(jnp.float32)


def resconv_forward(x_ncdhw, w1, w2, ws, *, mxu_dtype=jnp.bfloat16):
    """x: [N,Cin,D,H,W]; w1: [3,3,3,Cin,Cout]; w2: [3,3,3,Cout,Cout];
    ws: [Cin,Cout]. Returns [N,Cout,D,H,W]."""
    N, Cin, D, H, W = x_ncdhw.shape
    Cout = w1.shape[-1]
    DHW = D * H * W

    # ---- wrapper-side layout plumbing (one-time, free relative to kernel) ----
    # Zero-pad Cin up to a multiple of 8 -> full-sublane K for every per-tap dot.
    Cin_p = ((Cin + 7) // 8) * 8
    x_flat = x_ncdhw.reshape(N, Cin, DHW)
    if Cin_p != Cin:
        x_flat = jnp.pad(x_flat, ((0, 0), (0, Cin_p - Cin), (0, 0)))
        w1 = jnp.pad(w1, ((0, 0), (0, 0), (0, 0), (0, Cin_p - Cin), (0, 0)))
        ws = jnp.pad(ws, ((0, Cin_p - Cin), (0, 0)))

    # Per-tap weight slabs in the MXU dtype; tap indexed on the leading axis.
    w1_taps = jnp.transpose(w1, (0, 1, 2, 4, 3)).reshape(27, Cout, Cin_p).astype(mxu_dtype)
    w2_taps = jnp.transpose(w2, (0, 1, 2, 4, 3)).reshape(27, Cout, Cout).astype(mxu_dtype)
    ws_t = ws.T.astype(mxu_dtype)                     # (Cout, Cin_p) fused 1x1 skip
    masks = _boundary_masks(D, H, W)                  # (27, DHW) f32

    # Flattened-lane shift per tap (d-major, then h, then w).
    shifts = [(kd - 1) * H * W + (kh - 1) * W + (kw - 1)
              for kd in range(3) for kh in range(3) for kw in range(3)]

    def kernel(x_ref, w1_ref, w2_ref, ws_ref, m_ref, o_ref):
        xf = x_ref[...]                               # (Cin_p, DHW) f32

        def tap_operand(base, t, delta):
            # shifted[c, p] = base[c, p + delta]; the mask zeroes exactly the
            # wrapped/aliased voxels, reproducing the conv's zero padding.
            s = (-delta) % DHW
            shifted = base if s == 0 else pltpu.roll(base, shift=s, axis=1)
            return (shifted * m_ref[t:t + 1, :]).astype(mxu_dtype)

        # ---- conv1: 27 per-tap MXU matmuls, f32 accumulation, then ReLU ----
        acc1 = jnp.zeros((Cout, DHW), jnp.float32)
        for t, delta in enumerate(shifts):
            acc1 = acc1 + jnp.dot(w1_ref[t], tap_operand(xf, t, delta),
                                  preferred_element_type=jnp.float32)
        h = jnp.maximum(acc1, 0.0)                    # f32; ~4 vregs at demo sizes

        # ---- conv2 (+ fused 1x1 skip seeding the accumulator), final ReLU ----
        acc2 = jnp.dot(ws_ref[...], xf.astype(mxu_dtype),
                       preferred_element_type=jnp.float32)
        for t, delta in enumerate(shifts):
            acc2 = acc2 + jnp.dot(w2_ref[t], tap_operand(h, t, delta),
                                  preferred_element_type=jnp.float32)
        o_ref[...] = jnp.maximum(acc2, 0.0).astype(o_ref.dtype)

    out_flat = pl.pallas_call(
        kernel,
        out_shape=jax.ShapeDtypeStruct((N, Cout, DHW), x_ncdhw.dtype),
        grid_spec=pltpu.PrefetchScalarGridSpec(
            num_scalar_prefetch=0,
            grid=(N,),
            in_specs=[
                pl.BlockSpec((None, Cin_p, DHW), lambda n: (n, 0, 0)),
                # weights / masks: constant index_map -> stay resident, no re-DMA
                pl.BlockSpec((27, Cout, Cin_p), lambda n: (0, 0, 0)),
                pl.BlockSpec((27, Cout, Cout), lambda n: (0, 0, 0)),
                pl.BlockSpec((Cout, Cin_p), lambda n: (0, 0)),
                pl.BlockSpec((27, DHW), lambda n: (0, 0)),
            ],
            out_specs=pl.BlockSpec((None, Cout, DHW), lambda n: (n, 0, 0)),
        ),
        compiler_params=pltpu.CompilerParams(
            dimension_semantics=("parallel",),
            # Leave headroom vs v7x's 64 MiB physical VMEM; actual per-step
            # footprint here is < 1 MiB now that the im2col patches are gone.
            vmem_limit_bytes=48 * 1024 * 1024),
    )(x_flat, w1_taps, w2_taps, ws_t, masks)

    return out_flat.reshape(N, Cout, D, H, W)


def resconv_reference(x_ncdhw, w1, w2, ws):
    """Pure-JAX reference (mirrors the PyTorch module)."""
    w1_oidhw = jnp.transpose(w1, (4, 3, 0, 1, 2))     # [Cout,Cin,3,3,3]
    w2_oidhw = jnp.transpose(w2, (4, 3, 0, 1, 2))
    Cin, Cout = ws.shape
    ws_oidhw = ws.T.reshape(Cout, Cin, 1, 1, 1)
    dn3 = lax.conv_dimension_numbers(x_ncdhw.shape, w1_oidhw.shape,
                                     ('NCDHW', 'OIDHW', 'NCDHW'))
    h = lax.conv_general_dilated(x_ncdhw, w1_oidhw, (1, 1, 1), 'SAME',
                                 dimension_numbers=dn3)
    h = jnp.maximum(h, 0.0)
    h = lax.conv_general_dilated(h, w2_oidhw, (1, 1, 1), 'SAME',
                                 dimension_numbers=dn3)
    dn1 = lax.conv_dimension_numbers(x_ncdhw.shape, ws_oidhw.shape,
                                     ('NCDHW', 'OIDHW', 'NCDHW'))
    skip = lax.conv_general_dilated(x_ncdhw, ws_oidhw, (1, 1, 1), 'SAME',
                                    dimension_numbers=dn1)
    return jnp.maximum(h + skip, 0.0)


if __name__ == "__main__":
    N, Cin, Cout = 2, 4, 8
    D = H = W = 8

    key = jax.random.PRNGKey(0)
    kx, k1, k2, k3 = jax.random.split(key, 4)

    x = jax.random.normal(kx, (N, Cin, D, H, W), dtype=jnp.float32)
    # Conv taps stored as [kd, kh, kw, Cin, Cout].
    w1 = jax.random.normal(k1, (3, 3, 3, Cin, Cout), dtype=jnp.float32) * 0.1
    w2 = jax.random.normal(k2, (3, 3, 3, Cout, Cout), dtype=jnp.float32) * 0.1
    ws = jax.random.normal(k3, (Cin, Cout), dtype=jnp.float32) * 0.1

    ref = jax.block_until_ready(resconv_reference(x, w1, w2, ws))

    # f32 MXU operands: tight check against the reference conv path.
    out_f32 = jax.block_until_ready(
        resconv_forward(x, w1, w2, ws, mxu_dtype=jnp.float32))
    assert out_f32.shape == (N, Cout, D, H, W)
    assert jnp.allclose(out_f32, ref, rtol=1e-4, atol=1e-4), (
        f"f32 max abs err {jnp.max(jnp.abs(out_f32 - ref))}")

    # bf16 MXU operands (default / performance config): f32 accumulation, so
    # only bf16 operand rounding (~2^-9 relative per operand) shows up.
    out_bf16 = jax.block_until_ready(resconv_forward(x, w1, w2, ws))
    assert out_bf16.shape == (N, Cout, D, H, W)
    bf16_err = jnp.max(jnp.abs(out_bf16 - ref))
    assert bf16_err < 1e-1, f"bf16 max abs err {bf16_err}"

    print("KERNEL_OK")
</pallas_src>

<mosaic_0001>
module attributes {stable_mosaic.version = 11 : i64} {
  func.func @kernel(%arg0: i32, %arg1: memref<1x8x512xf32, #tpu.memory_space<vmem>>, %arg2: memref<27x8x8xf32, #tpu.memory_space<vmem>>, %arg3: memref<27x8x8xf32, #tpu.memory_space<vmem>>, %arg4: memref<8x8xf32, #tpu.memory_space<vmem>>, %arg5: memref<27x512xf32, #tpu.memory_space<vmem>>, %arg6: memref<1x8x512xf32, #tpu.memory_space<vmem>>) attributes {dimension_semantics = [#tpu.dimension_semantics<parallel>], iteration_bounds = array<i64: 2>, scalar_prefetch = 0 : i64, scratch_operands = 0 : i64, tpu.core_type = #tpu.core_type<tc>, window_params = [{transform_indices = @transform_0, window_bounds = array<i64: 1, 8, 512>}, {pipeline_mode = #tpu.pipeline_mode<synchronous>, transform_indices = @transform_1, window_bounds = array<i64: 27, 8, 8>}, {pipeline_mode = #tpu.pipeline_mode<synchronous>, transform_indices = @transform_2, window_bounds = array<i64: 27, 8, 8>}, {pipeline_mode = #tpu.pipeline_mode<synchronous>, transform_indices = @transform_3, window_bounds = array<i64: 8, 8>}, {pipeline_mode = #tpu.pipeline_mode<synchronous>, transform_indices = @transform_4, window_bounds = array<i64: 27, 512>}, {transform_indices = @transform_5, window_bounds = array<i64: 1, 8, 512>}]} {
    %c0 = arith.constant 0 : index
    %c0_0 = arith.constant 0 : index
    %c0_1 = arith.constant 0 : index
    %0 = vector.load %arg1[%c0, %c0_0, %c0_1] : memref<1x8x512xf32, #tpu.memory_space<vmem>>, vector<1x8x512xf32>
    %1 = vector.shape_cast %0 : vector<1x8x512xf32> to vector<8x512xf32>
    %cst = arith.constant 0.000000e+00 : f32
    %2 = vector.broadcast %cst : f32 to vector<8x512xf32>
    %c0_2 = arith.constant 0 : index
    %c0_3 = arith.constant 0 : index
    %c0_4 = arith.constant 0 : index
    %3 = vector.load %arg2[%c0_2, %c0_3, %c0_4] : memref<27x8x8xf32, #tpu.memory_space<vmem>>, vector<1x8x8xf32>
    %4 = vector.shape_cast %3 : vector<1x8x8xf32> to vector<8x8xf32>
    %c73_i32 = arith.constant 73 : i32
    %5 = tpu.dynamic_rotate %1 by %c73_i32 dim 1 : vector<8x512xf32>, i32 -> vector<8x512xf32>
    %c0_5 = arith.constant 0 : index
    %c0_6 = arith.constant 0 : index
    %6 = vector.load %arg5[%c0_5, %c0_6] : memref<27x512xf32, #tpu.memory_space<vmem>>, vector<1x512xf32>
    %7 = vector.broadcast %6 : vector<1x512xf32> to vector<8x512xf32>
    %8 = arith.mulf %5, %7 : vector<8x512xf32>
    %cst_7 = arith.constant dense<0.000000e+00> : vector<8x512xf32>
    %9 = tpu.matmul %4, %8, %cst_7 {dimension_numbers = #tpu.dot_dimension_numbers<[1], [0], [0], [1], [0, 0, 1, 1], [], []>} : vector<8x8xf32>, vector<8x512xf32>, vector<8x512xf32> -> vector<8x512xf32>
    %10 = arith.addf %2, %9 : vector<8x512xf32>
    %c1 = arith.constant 1 : index
    %c0_8 = arith.constant 0 : index
    %c0_9 = arith.constant 0 : index
    %11 = vector.load %arg2[%c1, %c0_8, %c0_9] : memref<27x8x8xf32, #tpu.memory_space<vmem>>, vector<1x8x8xf32>
    %12 = vector.shape_cast %11 : vector<1x8x8xf32> to vector<8x8xf32>
    %c72_i32 = arith.constant 72 : i32
    %13 = tpu.dynamic_rotate %1 by %c72_i32 dim 1 : vector<8x512xf32>, i32 -> vector<8x512xf32>
    %c1_10 = arith.constant 1 : index
    %c0_11 = arith.constant 0 : index
    %14 = vector.load %arg5[%c1_10, %c0_11] : memref<27x512xf32, #tpu.memory_space<vmem>>, vector<1x512xf32>
    %15 = vector.broadcast %14 : vector<1x512xf32> to vector<8x512xf32>
    %16 = arith.mulf %13, %15 : vector<8x512xf32>
    %cst_12 = arith.constant dense<0.000000e+00> : vector<8x512xf32>
    %17 = tpu.matmul %12, %16, %cst_12 {dimension_numbers = #tpu.dot_dimension_numbers<[1], [0], [0], [1], [0, 0, 1, 1], [], []>} : vector<8x8xf32>, vector<8x512xf32>, vector<8x512xf32> -> vector<8x512xf32>
    %18 = arith.addf %10, %17 : vector<8x512xf32>
    %c2 = arith.constant 2 : index
    %c0_13 = arith.constant 0 : index
    %c0_14 = arith.constant 0 : index
    %19 = vector.load %arg2[%c2, %c0_13, %c0_14] : memref<27x8x8xf32, #tpu.memory_space<vmem>>, vector<1x8x8xf32>
    %20 = vector.shape_cast %19 : vector<1x8x8xf32> to vector<8x8xf32>
    %c71_i32 = arith.constant 71 : i32
    %21 = tpu.dynamic_rotate %1 by %c71_i32 dim 1 : vector<8x512xf32>, i32 -> vector<8x512xf32>
    %c2_15 = arith.constant 2 : index
    %c0_16 = arith.constant 0 : index
    %22 = vector.load %arg5[%c2_15, %c0_16] : memref<27x512xf32, #tpu.memory_space<vmem>>, vector<1x512xf32>
    %23 = vector.broadcast %22 : vector<1x512xf32> to vector<8x512xf32>
    %24 = arith.mulf %21, %23 : vector<8x512xf32>
    %cst_17 = arith.constant dense<0.000000e+00> : vector<8x512xf32>
    %25 = tpu.matmul %20, %24, %cst_17 {dimension_numbers = #tpu.dot_dimension_numbers<[1], [0], [0], [1], [0, 0, 1, 1], [], []>} : vector<8x8xf32>, vector<8x512xf32>, vector<8x512xf32> -> vector<8x512xf32>
    %26 = arith.addf %18, %25 : vector<8x512xf32>
    %c3 = arith.constant 3 : index
    %c0_18 = arith.constant 0 : index
    %c0_19 = arith.constant 0 : index
    %27 = vector.load %arg2[%c3, %c0_18, %c0_19] : memref<27x8x8xf32, #tpu.memory_space<vmem>>, vector<1x8x8xf32>
    %28 = vector.shape_cast %27 : vector<1x8x8xf32> to vector<8x8xf32>
    %c65_i32 = arith.constant 65 : i32
    %29 = tpu.dynamic_rotate %1 by %c65_i32 dim 1 : vector<8x512xf32>, i32 -> vector<8x512xf32>
    %c3_20 = arith.constant 3 : index
    %c0_21 = arith.constant 0 : index
    %30 = vector.load %arg5[%c3_20, %c0_21] : memref<27x512xf32, #tpu.memory_space<vmem>>, vector<1x512xf32>
    %31 = vector.broadcast %30 : vector<1x512xf32> to vector<8x512xf32>
    %32 = arith.mulf %29, %31 : vector<8x512xf32>
    %cst_22 = arith.constant dense<0.000000e+00> : vector<8x512xf32>
    %33 = tpu.matmul %28, %32, %cst_22 {dimension_numbers = #tpu.dot_dimension_numbers<[1], [0], [0], [1], [0, 0, 1, 1], [], []>} : vector<8x8xf32>, vector<8x512xf32>, vector<8x512xf32> -> vector<8x512xf32>
    %34 = arith.addf %26, %33 : vector<8x512xf32>
    %c4 = arith.constant 4 : index
    %c0_23 = arith.constant 0 : index
    %c0_24 = arith.constant 0 : index
    %35 = vector.load %arg2[%c4, %c0_23, %c0_24] : memref<27x8x8xf32, #tpu.memory_space<vmem>>, vector<1x8x8xf32>
    %36 = vector.shape_cast %35 : vector<1x8x8xf32> to vector<8x8xf32>
    %c64_i32 = arith.constant 64 : i32
    %37 = tpu.dynamic_rotate %1 by %c64_i32 dim 1 : vector<8x512xf32>, i32 -> vector<8x512xf32>
    %c4_25 = arith.constant 4 : index
    %c0_26 = arith.constant 0 : index
    %38 = vector.load %arg5[%c4_25, %c0_26] : memref<27x512xf32, #tpu.memory_space<vmem>>, vector<1x512xf32>
    %39 = vector.broadcast %38 : vector<1x512xf32> to vector<8x512xf32>
    %40 = arith.mulf %37, %39 : vector<8x512xf32>
    %cst_27 = arith.constant dense<0.000000e+00> : vector<8x512xf32>
    %41 = tpu.matmul %36, %40, %cst_27 {dimension_numbers = #tpu.dot_dimension_numbers<[1], [0], [0], [1], [0, 0, 1, 1], [], []>} : vector<8x8xf32>, vector<8x512xf32>, vector<8x512xf32> -> vector<8x512xf32>
    %42 = arith.addf %34, %41 : vector<8x512xf32>
    %c5 = arith.constant 5 : index
    %c0_28 = arith.constant 0 : index
    %c0_29 = arith.constant 0 : index
    %43 = vector.load %arg2[%c5, %c0_28, %c0_29] : memref<27x8x8xf32, #tpu.memory_space<vmem>>, vector<1x8x8xf32>
    %44 = vector.shape_cast %43 : vector<1x8x8xf32> to vector<8x8xf32>
    %c63_i32 = arith.constant 63 : i32
    %45 = tpu.dynamic_rotate %1 by %c63_i32 dim 1 : vector<8x512xf32>, i32 -> vector<8x512xf32>
    %c5_30 = arith.constant 5 : index
    %c0_31 = arith.constant 0 : index
    %46 = vector.load %arg5[%c5_30, %c0_31] : memref<27x512xf32, #tpu.memory_space<vmem>>, vector<1x512xf32>
    %47 = vector.broadcast %46 : vector<1x512xf32> to vector<8x512xf32>
    %48 = arith.mulf %45, %47 : vector<8x512xf32>
    %cst_32 = arith.constant dense<0.000000e+00> : vector<8x512xf32>
    %49 = tpu.matmul %44, %48, %cst_32 {dimension_numbers = #tpu.dot_dimension_numbers<[1], [0], [0], [1], [0, 0, 1, 1], [], []>} : vector<8x8xf32>, vector<8x512xf32>, vector<8x512xf32> -> vector<8x512xf32>
    %50 = arith.addf %42, %49 : vector<8x512xf32>
    %c6 = arith.constant 6 : index
    %c0_33 = arith.constant 0 : index
    %c0_34 = arith.constant 0 : index
    %51 = vector.load %arg2[%c6, %c0_33, %c0_34] : memref<27x8x8xf32, #tpu.memory_space<vmem>>, vector<1x8x8xf32>
    %52 = vector.shape_cast %51 : vector<1x8x8xf32> to vector<8x8xf32>
    %c57_i32 = arith.constant 57 : i32
    %53 = tpu.dynamic_rotate %1 by %c57_i32 dim 1 : vector<8x512xf32>, i32 -> vector<8x512xf32>
    %c6_35 = arith.constant 6 : index
    %c0_36 = arith.constant 0 : index
    %54 = vector.load %arg5[%c6_35, %c0_36] : memref<27x512xf32, #tpu.memory_space<vmem>>, vector<1x512xf32>
    %55 = vector.broadcast %54 : vector<1x512xf32> to vector<8x512xf32>
    %56 = arith.mulf %53, %55 : vector<8x512xf32>
    %cst_37 = arith.constant dense<0.000000e+00> : vector<8x512xf32>
    %57 = tpu.matmul %52, %56, %cst_37 {dimension_numbers = #tpu.dot_dimension_numbers<[1], [0], [0], [1], [0, 0, 1, 1], [], []>} : vector<8x8xf32>, vector<8x512xf32>, vector<8x512xf32> -> vector<8x512xf32>
    %58 = arith.addf %50, %57 : vector<8x512xf32>
    %c7 = arith.constant 7 : index
    %c0_38 = arith.constant 0 : index
    %c0_39 = arith.constant 0 : index
    %59 = vector.load %arg2[%c7, %c0_38, %c0_39] : memref<27x8x8xf32, #tpu.memory_space<vmem>>, vector<1x8x8xf32>
    %60 = vector.shape_cast %59 : vector<1x8x8xf32> to vector<8x8xf32>
    %c56_i32 = arith.constant 56 : i32
    %61 = tpu.dynamic_rotate %1 by %c56_i32 dim 1 : vector<8x512xf32>, i32 -> vector<8x512xf32>
    %c7_40 = arith.constant 7 : index
    %c0_41 = arith.constant 0 : index
    %62 = vector.load %arg5[%c7_40, %c0_41] : memref<27x512xf32, #tpu.memory_space<vmem>>, vector<1x512xf32>
    %63 = vector.broadcast %62 : vector<1x512xf32> to vector<8x512xf32>
    %64 = arith.mulf %61, %63 : vector<8x512xf32>
    %cst_42 = arith.constant dense<0.000000e+00> : vector<8x512xf32>
    %65 = tpu.matmul %60, %64, %cst_42 {dimension_numbers = #tpu.dot_dimension_numbers<[1], [0], [0], [1], [0, 0, 1, 1], [], []>} : vector<8x8xf32>, vector<8x512xf32>, vector<8x512xf32> -> vector<8x512xf32>
    %66 = arith.addf %58, %65 : vector<8x512xf32>
    %c8 = arith.constant 8 : index
    %c0_43 = arith.constant 0 : index
    %c0_44 = arith.constant 0 : index
    %67 = vector.load %arg2[%c8, %c0_43, %c0_44] : memref<27x8x8xf32, #tpu.memory_space<vmem>>, vector<1x8x8xf32>
    %68 = vector.shape_cast %67 : vector<1x8x8xf32> to vector<8x8xf32>
    %c55_i32 = arith.constant 55 : i32
    %69 = tpu.dynamic_rotate %1 by %c55_i32 dim 1 : vector<8x512xf32>, i32 -> vector<8x512xf32>
    %c8_45 = arith.constant 8 : index
    %c0_46 = arith.constant 0 : index
    %70 = vector.load %arg5[%c8_45, %c0_46] : memref<27x512xf32, #tpu.memory_space<vmem>>, vector<1x512xf32>
    %71 = vector.broadcast %70 : vector<1x512xf32> to vector<8x512xf32>
    %72 = arith.mulf %69, %71 : vector<8x512xf32>
    %cst_47 = arith.constant dense<0.000000e+00> : vector<8x512xf32>
    %73 = tpu.matmul %68, %72, %cst_47 {dimension_numbers = #tpu.dot_dimension_numbers<[1], [0], [0], [1], [0, 0, 1, 1], [], []>} : vector<8x8xf32>, vector<8x512xf32>, vector<8x512xf32> -> vector<8x512xf32>
    %74 = arith.addf %66, %73 : vector<8x512xf32>
    %c9 = arith.constant 9 : index
    %c0_48 = arith.constant 0 : index
    %c0_49 = arith.constant 0 : index
    %75 = vector.load %arg2[%c9, %c0_48, %c0_49] : memref<27x8x8xf32, #tpu.memory_space<vmem>>, vector<1x8x8xf32>
    %76 = vector.shape_cast %75 : vector<1x8x8xf32> to vector<8x8xf32>
    %c9_i32 = arith.constant 9 : i32
    %77 = tpu.dynamic_rotate %1 by %c9_i32 dim 1 : vector<8x512xf32>, i32 -> vector<8x512xf32>
    %c9_50 = arith.constant 9 : index
    %c0_51 = arith.constant 0 : index
    %78 = vector.load %arg5[%c9_50, %c0_51] : memref<27x512xf32, #tpu.memory_space<vmem>>, vector<1x512xf32>
    %79 = vector.broadcast %78 : vector<1x512xf32> to vector<8x512xf32>
    %80 = arith.mulf %77, %79 : vector<8x512xf32>
    %cst_52 = arith.constant dense<0.000000e+00> : vector<8x512xf32>
    %81 = tpu.matmul %76, %80, %cst_52 {dimension_numbers = #tpu.dot_dimension_numbers<[1], [0], [0], [1], [0, 0, 1, 1], [], []>} : vector<8x8xf32>, vector<8x512xf32>, vector<8x512xf32> -> vector<8x512xf32>
    %82 = arith.addf %74, %81 : vector<8x512xf32>
    %c10 = arith.constant 10 : index
    %c0_53 = arith.constant 0 : index
    %c0_54 = arith.constant 0 : index
    %83 = vector.load %arg2[%c10, %c0_53, %c0_54] : memref<27x8x8xf32, #tpu.memory_space<vmem>>, vector<1x8x8xf32>
    %84 = vector.shape_cast %83 : vector<1x8x8xf32> to vector<8x8xf32>
    %c8_i32 = arith.constant 8 : i32
    %85 = tpu.dynamic_rotate %1 by %c8_i32 dim 1 : vector<8x512xf32>, i32 -> vector<8x512xf32>
    %c10_55 = arith.constant 10 : index
    %c0_56 = arith.constant 0 : index
    %86 = vector.load %arg5[%c10_55, %c0_56] : memref<27x512xf32, #tpu.memory_space<vmem>>, vector<1x512xf32>
    %87 = vector.broadcast %86 : vector<1x512xf32> to vector<8x512xf32>
    %88 = arith.mulf %85, %87 : vector<8x512xf32>
    %cst_57 = arith.constant dense<0.000000e+00> : vector<8x512xf32>
    %89 = tpu.matmul %84, %88, %cst_57 {dimension_numbers = #tpu.dot_dimension_numbers<[1], [0], [0], [1], [0, 0, 1, 1], [], []>} : vector<8x8xf32>, vector<8x512xf32>, vector<8x512xf32> -> vector<8x512xf32>
    %90 = arith.addf %82, %89 : vector<8x512xf32>
    %c11 = arith.constant 11 : index
    %c0_58 = arith.constant 0 : index
    %c0_59 = arith.constant 0 : index
    %91 = vector.load %arg2[%c11, %c0_58, %c0_59] : memref<27x8x8xf32, #tpu.memory_space<vmem>>, vector<1x8x8xf32>
    %92 = vector.shape_cast %91 : vector<1x8x8xf32> to vector<8x8xf32>
    %c7_i32 = arith.constant 7 : i32
    %93 = tpu.dynamic_rotate %1 by %c7_i32 dim 1 : vector<8x512xf32>, i32 -> vector<8x512xf32>
    %c11_60 = arith.constant 11 : index
    %c0_61 = arith.constant 0 : index
    %94 = vector.load %arg5[%c11_60, %c0_61] : memref<27x512xf32, #tpu.memory_space<vmem>>, vector<1x512xf32>
    %95 = vector.broadcast %94 : vector<1x512xf32> to vector<8x512xf32>
    %96 = arith.mulf %93, %95 : vector<8x512xf32>
    %cst_62 = arith.constant dense<0.000000e+00> : vector<8x512xf32>
    %97 = tpu.matmul %92, %96, %cst_62 {dimension_numbers = #tpu.dot_dimension_numbers<[1], [0], [0], [1], [0, 0, 1, 1], [], []>} : vector<8x8xf32>, vector<8x512xf32>, vector<8x512xf32> -> vector<8x512xf32>
    %98 = arith.addf %90, %97 : vector<8x512xf32>
    %c12 = arith.constant 12 : index
    %c0_63 = arith.constant 0 : index
    %c0_64 = arith.constant 0 : index
    %99 = vector.load %arg2[%c12, %c0_63, %c0_64] : memref<27x8x8xf32, #tpu.memory_space<vmem>>, vector<1x8x8xf32>
    %100 = vector.shape_cast %99 : vector<1x8x8xf32> to vector<8x8xf32>
    %c1_i32 = arith.constant 1 : i32
    %101 = tpu.dynamic_rotate %1 by %c1_i32 dim 1 : vector<8x512xf32>, i32 -> vector<8x512xf32>
    %c12_65 = arith.constant 12 : index
    %c0_66 = arith.constant 0 : index
    %102 = vector.load %arg5[%c12_65, %c0_66] : memref<27x512xf32, #tpu.memory_space<vmem>>, vector<1x512xf32>
    %103 = vector.broadcast %102 : vector<1x512xf32> to vector<8x512xf32>
    %104 = arith.mulf %101, %103 : vector<8x512xf32>
    %cst_67 = arith.constant dense<0.000000e+00> : vector<8x512xf32>
    %105 = tpu.matmul %100, %104, %cst_67 {dimension_numbers = #tpu.dot_dimension_numbers<[1], [0], [0], [1], [0, 0, 1, 1], [], []>} : vector<8x8xf32>, vector<8x512xf32>, vector<8x512xf32> -> vector<8x512xf32>
    %106 = arith.addf %98, %105 : vector<8x512xf32>
    %c13 = arith.constant 13 : index
    %c0_68 = arith.constant 0 : index
    %c0_69 = arith.constant 0 : index
    %107 = vector.load %arg2[%c13, %c0_68, %c0_69] : memref<27x8x8xf32, #tpu.memory_space<vmem>>, vector<1x8x8xf32>
    %108 = vector.shape_cast %107 : vector<1x8x8xf32> to vector<8x8xf32>
    %c13_70 = arith.constant 13 : index
    %c0_71 = arith.constant 0 : index
    %109 = vector.load %arg5[%c13_70, %c0_71] : memref<27x512xf32, #tpu.memory_space<vmem>>, vector<1x512xf32>
    %110 = vector.broadcast %109 : vector<1x512xf32> to vector<8x512xf32>
    %111 = arith.mulf %1, %110 : vector<8x512xf32>
    %cst_72 = arith.constant dense<0.000000e+00> : vector<8x512xf32>
    %112 = tpu.matmul %108, %111, %cst_72 {dimension_numbers = #tpu.dot_dimension_numbers<[1], [0], [0], [1], [0, 0, 1, 1], [], []>} : vector<8x8xf32>, vector<8x512xf32>, vector<8x512xf32> -> vector<8x512xf32>
    %113 = arith.addf %106, %112 : vector<8x512xf32>
    %c14 = arith.constant 14 : index
    %c0_73 = arith.constant 0 : index
    %c0_74 = arith.constant 0 : index
    %114 = vector.load %arg2[%c14, %c0_73, %c0_74] : memref<27x8x8xf32, #tpu.memory_space<vmem>>, vector<1x8x8xf32>
    %115 = vector.shape_cast %114 : vector<1x8x8xf32> to vector<8x8xf32>
    %c511_i32 = arith.constant 511 : i32
    %116 = tpu.dynamic_rotate %1 by %c511_i32 dim 1 : vector<8x512xf32>, i32 -> vector<8x512xf32>
    %c14_75 = arith.constant 14 : index
    %c0_76 = arith.constant 0 : index
    %117 = vector.load %arg5[%c14_75, %c0_76] : memref<27x512xf32, #tpu.memory_space<vmem>>, vector<1x512xf32>
    %118 = vector.broadcast %117 : vector<1x512xf32> to vector<8x512xf32>
    %119 = arith.mulf %116, %118 : vector<8x512xf32>
    %cst_77 = arith.constant dense<0.000000e+00> : vector<8x512xf32>
    %120 = tpu.matmul %115, %119, %cst_77 {dimension_numbers = #tpu.dot_dimension_numbers<[1], [0], [0], [1], [0, 0, 1, 1], [], []>} : vector<8x8xf32>, vector<8x512xf32>, vector<8x512xf32> -> vector<8x512xf32>
    %121 = arith.addf %113, %120 : vector<8x512xf32>
    %c15 = arith.constant 15 : index
    %c0_78 = arith.constant 0 : index
    %c0_79 = arith.constant 0 : index
    %122 = vector.load %arg2[%c15, %c0_78, %c0_79] : memref<27x8x8xf32, #tpu.memory_space<vmem>>, vector<1x8x8xf32>
    %123 = vector.shape_cast %122 : vector<1x8x8xf32> to vector<8x8xf32>
    %c505_i32 = arith.constant 505 : i32
    %124 = tpu.dynamic_rotate %1 by %c505_i32 dim 1 : vector<8x512xf32>, i32 -> vector<8x512xf32>
    %c15_80 = arith.constant 15 : index
    %c0_81 = arith.constant 0 : index
    %125 = vector.load %arg5[%c15_80, %c0_81] : memref<27x512xf32, #tpu.memory_space<vmem>>, vector<1x512xf32>
    %126 = vector.broadcast %125 : vector<1x512xf32> to vector<8x512xf32>
    %127 = arith.mulf %124, %126 : vector<8x512xf32>
    %cst_82 = arith.constant dense<0.000000e+00> : vector<8x512xf32>
    %128 = tpu.matmul %123, %127, %cst_82 {dimension_numbers = #tpu.dot_dimension_numbers<[1], [0], [0], [1], [0, 0, 1, 1], [], []>} : vector<8x8xf32>, vector<8x512xf32>, vector<8x512xf32> -> vector<8x512xf32>
    %129 = arith.addf %121, %128 : vector<8x512xf32>
    %c16 = arith.constant 16 : index
    %c0_83 = arith.constant 0 : index
    %c0_84 = arith.constant 0 : index
    %130 = vector.load %arg2[%c16, %c0_83, %c0_84] : memref<27x8x8xf32, #tpu.memory_space<vmem>>, vector<1x8x8xf32>
    %131 = vector.shape_cast %130 : vector<1x8x8xf32> to vector<8x8xf32>
    %c504_i32 = arith.constant 504 : i32
    %132 = tpu.dynamic_rotate %1 by %c504_i32 dim 1 : vector<8x512xf32>, i32 -> vector<8x512xf32>
    %c16_85 = arith.constant 16 : index
    %c0_86 = arith.constant 0 : index
    %133 = vector.load %arg5[%c16_85, %c0_86] : memref<27x512xf32, #tpu.memory_space<vmem>>, vector<1x512xf32>
    %134 = vector.broadcast %133 : vector<1x512xf32> to vector<8x512xf32>
    %135 = arith.mulf %132, %134 : vector<8x512xf32>
    %cst_87 = arith.constant dense<0.000000e+00> : vector<8x512xf32>
    %136 = tpu.matmul %131, %135, %cst_87 {dimension_numbers = #tpu.dot_dimension_numbers<[1], [0], [0], [1], [0, 0, 1, 1], [], []>} : vector<8x8xf32>, vector<8x512xf32>, vector<8x512xf32> -> vector<8x512xf32>
    %137 = arith.addf %129, %136 : vector<8x512xf32>
    %c17 = arith.constant 17 : index
    %c0_88 = arith.constant 0 : index
    %c0_89 = arith.constant 0 : index
    %138 = vector.load %arg2[%c17, %c0_88, %c0_89] : memref<27x8x8xf32, #tpu.memory_space<vmem>>, vector<1x8x8xf32>
    %139 = vector.shape_cast %138 : vector<1x8x8xf32> to vector<8x8xf32>
    %c503_i32 = arith.constant 503 : i32
    %140 = tpu.dynamic_rotate %1 by %c503_i32 dim 1 : vector<8x512xf32>, i32 -> vector<8x512xf32>
    %c17_90 = arith.constant 17 : index
    %c0_91 = arith.constant 0 : index
    %141 = vector.load %arg5[%c17_90, %c0_91] : memref<27x512xf32, #tpu.memory_space<vmem>>, vector<1x512xf32>
    %142 = vector.broadcast %141 : vector<1x512xf32> to vector<8x512xf32>
    %143 = arith.mulf %140, %142 : vector<8x512xf32>
    %cst_92 = arith.constant dense<0.000000e+00> : vector<8x512xf32>
    %144 = tpu.matmul %139, %143, %cst_92 {dimension_numbers = #tpu.dot_dimension_numbers<[1], [0], [0], [1], [0, 0, 1, 1], [], []>} : vector<8x8xf32>, vector<8x512xf32>, vector<8x512xf32> -> vector<8x512xf32>
    %145 = arith.addf %137, %144 : vector<8x512xf32>
    %c18 = arith.constant 18 : index
    %c0_93 = arith.constant 0 : index
    %c0_94 = arith.constant 0 : index
    %146 = vector.load %arg2[%c18, %c0_93, %c0_94] : memref<27x8x8xf32, #tpu.memory_space<vmem>>, vector<1x8x8xf32>
    %147 = vector.shape_cast %146 : vector<1x8x8xf32> to vector<8x8xf32>
    %c457_i32 = arith.constant 457 : i32
    %148 = tpu.dynamic_rotate %1 by %c457_i32 dim 1 : vector<8x512xf32>, i32 -> vector<8x512xf32>
    %c18_95 = arith.constant 18 : index
    %c0_96 = arith.constant 0 : index
    %149 = vector.load %arg5[%c18_95, %c0_96] : memref<27x512xf32, #tpu.memory_space<vmem>>, vector<1x512xf32>
    %150 = vector.broadcast %149 : vector<1x512xf32> to vector<8x512xf32>
    %151 = arith.mulf %148, %150 : vector<8x512xf32>
    %cst_97 = arith.constant dense<0.000000e+00> : vector<8x512xf32>
    %152 = tpu.matmul %147, %151, %cst_97 {dimension_numbers = #tpu.dot_dimension_numbers<[1], [0], [0], [1], [0, 0, 1, 1], [], []>} : vector<8x8xf32>, vector<8x512xf32>, vector<8x512xf32> -> vector<8x512xf32>
    %153 = arith.addf %145, %152 : vector<8x512xf32>
    %c19 = arith.constant 19 : index
    %c0_98 = arith.constant 0 : index
    %c0_99 = arith.constant 0 : index
    %154 = vector.load %arg2[%c19, %c0_98, %c0_99] : memref<27x8x8xf32, #tpu.memory_space<vmem>>, vector<1x8x8xf32>
    %155 = vector.shape_cast %154 : vector<1x8x8xf32> to vector<8x8xf32>
    %c456_i32 = arith.constant 456 : i32
    %156 = tpu.dynamic_rotate %1 by %c456_i32 dim 1 : vector<8x512xf32>, i32 -> vector<8x512xf32>
    %c19_100 = arith.constant 19 : index
    %c0_101 = arith.constant 0 : index
    %157 = vector.load %arg5[%c19_100, %c0_101] : memref<27x512xf32, #tpu.memory_space<vmem>>, vector<1x512xf32>
    %158 = vector.broadcast %157 : vector<1x512xf32> to vector<8x512xf32>
    %159 = arith.mulf %156, %158 : vector<8x512xf32>
    %cst_102 = arith.constant dense<0.000000e+00> : vector<8x512xf32>
    %160 = tpu.matmul %155, %159, %cst_102 {dimension_numbers = #tpu.dot_dimension_numbers<[1], [0], [0], [1], [0, 0, 1, 1], [], []>} : vector<8x8xf32>, vector<8x512xf32>, vector<8x512xf32> -> vector<8x512xf32>
    %161 = arith.addf %153, %160 : vector<8x512xf32>
    %c20 = arith.constant 20 : index
    %c0_103 = arith.constant 0 : index
    %c0_104 = arith.constant 0 : index
    %162 = vector.load %arg2[%c20, %c0_103, %c0_104] : memref<27x8x8xf32, #tpu.memory_space<vmem>>, vector<1x8x8xf32>
    %163 = vector.shape_cast %162 : vector<1x8x8xf32> to vector<8x8xf32>
    %c455_i32 = arith.constant 455 : i32
    %164 = tpu.dynamic_rotate %1 by %c455_i32 dim 1 : vector<8x512xf32>, i32 -> vector<8x512xf32>
    %c20_105 = arith.constant 20 : index
    %c0_106 = arith.constant 0 : index
    %165 = vector.load %arg5[%c20_105, %c0_106] : memref<27x512xf32, #tpu.memory_space<vmem>>, vector<1x512xf32>
    %166 = vector.broadcast %165 : vector<1x512xf32> to vector<8x512xf32>
    %167 = arith.mulf %164, %166 : vector<8x512xf32>
    %cst_107 = arith.constant dense<0.000000e+00> : vector<8x512xf32>
    %168 = tpu.matmul %163, %167, %cst_107 {dimension_numbers = #tpu.dot_dimension_numbers<[1], [0], [0], [1], [0, 0, 1, 1], [], []>} : vector<8x8xf32>, vector<8x512xf32>, vector<8x512xf32> -> vector<8x512xf32>
    %169 = arith.addf %161, %168 : vector<8x512xf32>
    %c21 = arith.constant 21 : index
    %c0_108 = arith.constant 0 : index
    %c0_109 = arith.constant 0 : index
    %170 = vector.load %arg2[%c21, %c0_108, %c0_109] : memref<27x8x8xf32, #tpu.memory_space<vmem>>, vector<1x8x8xf32>
    %171 = vector.shape_cast %170 : vector<1x8x8xf32> to vector<8x8xf32>
    %c449_i32 = arith.constant 449 : i32
    %172 = tpu.dynamic_rotate %1 by %c449_i32 dim 1 : vector<8x512xf32>, i32 -> vector<8x512xf32>
    %c21_110 = arith.constant 21 : index
    %c0_111 = arith.constant 0 : index
    %173 = vector.load %arg5[%c21_110, %c0_111] : memref<27x512xf32, #tpu.memory_space<vmem>>, vector<1x512xf32>
    %174 = vector.broadcast %173 : vector<1x512xf32> to vector<8x512xf32>
    %175 = arith.mulf %172, %174 : vector<8x512xf32>
    %cst_112 = arith.constant dense<0.000000e+00> : vector<8x512xf32>
    %176 = tpu.matmul %171, %175, %cst_112 {dimension_numbers = #tpu.dot_dimension_numbers<[1], [0], [0], [1], [0, 0, 1, 1], [], []>} : vector<8x8xf32>, vector<8x512xf32>, vector<8x512xf32> -> vector<8x512xf32>
    %177 = arith.addf %169, %176 : vector<8x512xf32>
    %c22 = arith.constant 22 : index
    %c0_113 = arith.constant 0 : index
    %c0_114 = arith.constant 0 : index
    %178 = vector.load %arg2[%c22, %c0_113, %c0_114] : memref<27x8x8xf32, #tpu.memory_space<vmem>>, vector<1x8x8xf32>
    %179 = vector.shape_cast %178 : vector<1x8x8xf32> to vector<8x8xf32>
    %c448_i32 = arith.constant 448 : i32
    %180 = tpu.dynamic_rotate %1 by %c448_i32 dim 1 : vector<8x512xf32>, i32 -> vector<8x512xf32>
    %c22_115 = arith.constant 22 : index
    %c0_116 = arith.constant 0 : index
    %181 = vector.load %arg5[%c22_115, %c0_116] : memref<27x512xf32, #tpu.memory_space<vmem>>, vector<1x512xf32>
    %182 = vector.broadcast %181 : vector<1x512xf32> to vector<8x512xf32>
    %183 = arith.mulf %180, %182 : vector<8x512xf32>
    %cst_117 = arith.constant dense<0.000000e+00> : vector<8x512xf32>
    %184 = tpu.matmul %179, %183, %cst_117 {dimension_numbers = #tpu.dot_dimension_numbers<[1], [0], [0], [1], [0, 0, 1, 1], [], []>} : vector<8x8xf32>, vector<8x512xf32>, vector<8x512xf32> -> vector<8x512xf32>
    %185 = arith.addf %177, %184 : vector<8x512xf32>
    %c23 = arith.constant 23 : index
    %c0_118 = arith.constant 0 : index
    %c0_119 = arith.constant 0 : index
    %186 = vector.load %arg2[%c23, %c0_118, %c0_119] : memref<27x8x8xf32, #tpu.memory_space<vmem>>, vector<1x8x8xf32>
    %187 = vector.shape_cast %186 : vector<1x8x8xf32> to vector<8x8xf32>
    %c447_i32 = arith.constant 447 : i32
    %188 = tpu.dynamic_rotate %1 by %c447_i32 dim 1 : vector<8x512xf32>, i32 -> vector<8x512xf32>
    %c23_120 = arith.constant 23 : index
    %c0_121 = arith.constant 0 : index
    %189 = vector.load %arg5[%c23_120, %c0_121] : memref<27x512xf32, #tpu.memory_space<vmem>>, vector<1x512xf32>
    %190 = vector.broadcast %189 : vector<1x512xf32> to vector<8x512xf32>
    %191 = arith.mulf %188, %190 : vector<8x512xf32>
    %cst_122 = arith.constant dense<0.000000e+00> : vector<8x512xf32>
    %192 = tpu.matmul %187, %191, %cst_122 {dimension_numbers = #tpu.dot_dimension_numbers<[1], [0], [0], [1], [0, 0, 1, 1], [], []>} : vector<8x8xf32>, vector<8x512xf32>, vector<8x512xf32> -> vector<8x512xf32>
    %193 = arith.addf %185, %192 : vector<8x512xf32>
    %c24 = arith.constant 24 : index
    %c0_123 = arith.constant 0 : index
    %c0_124 = arith.constant 0 : index
    %194 = vector.load %arg2[%c24, %c0_123, %c0_124] : memref<27x8x8xf32, #tpu.memory_space<vmem>>, vector<1x8x8xf32>
    %195 = vector.shape_cast %194 : vector<1x8x8xf32> to vector<8x8xf32>
    %c441_i32 = arith.constant 441 : i32
    %196 = tpu.dynamic_rotate %1 by %c441_i32 dim 1 : vector<8x512xf32>, i32 -> vector<8x512xf32>
    %c24_125 = arith.constant 24 : index
    %c0_126 = arith.constant 0 : index
    %197 = vector.load %arg5[%c24_125, %c0_126] : memref<27x512xf32, #tpu.memory_space<vmem>>, vector<1x512xf32>
    %198 = vector.broadcast %197 : vector<1x512xf32> to vector<8x512xf32>
    %199 = arith.mulf %196, %198 : vector<8x512xf32>
    %cst_127 = arith.constant dense<0.000000e+00> : vector<8x512xf32>
    %200 = tpu.matmul %195, %199, %cst_127 {dimension_numbers = #tpu.dot_dimension_numbers<[1], [0], [0], [1], [0, 0, 1, 1], [], []>} : vector<8x8xf32>, vector<8x512xf32>, vector<8x512xf32> -> vector<8x512xf32>
    %201 = arith.addf %193, %200 : vector<8x512xf32>
    %c25 = arith.constant 25 : index
    %c0_128 = arith.constant 0 : index
    %c0_129 = arith.constant 0 : index
    %202 = vector.load %arg2[%c25, %c0_128, %c0_129] : memref<27x8x8xf32, #tpu.memory_space<vmem>>, vector<1x8x8xf32>
    %203 = vector.shape_cast %202 : vector<1x8x8xf32> to vector<8x8xf32>
    %c440_i32 = arith.constant 440 : i32
    %204 = tpu.dynamic_rotate %1 by %c440_i32 dim 1 : vector<8x512xf32>, i32 -> vector<8x512xf32>
    %c25_130 = arith.constant 25 : index
    %c0_131 = arith.constant 0 : index
    %205 = vector.load %arg5[%c25_130, %c0_131] : memref<27x512xf32, #tpu.memory_space<vmem>>, vector<1x512xf32>
    %206 = vector.broadcast %205 : vector<1x512xf32> to vector<8x512xf32>
    %207 = arith.mulf %204, %206 : vector<8x512xf32>
    %cst_132 = arith.constant dense<0.000000e+00> : vector<8x512xf32>
    %208 = tpu.matmul %203, %207, %cst_132 {dimension_numbers = #tpu.dot_dimension_numbers<[1], [0], [0], [1], [0, 0, 1, 1], [], []>} : vector<8x8xf32>, vector<8x512xf32>, vector<8x512xf32> -> vector<8x512xf32>
    %209 = arith.addf %201, %208 : vector<8x512xf32>
    %c26 = arith.constant 26 : index
    %c0_133 = arith.constant 0 : index
    %c0_134 = arith.constant 0 : index
    %210 = vector.load %arg2[%c26, %c0_133, %c0_134] : memref<27x8x8xf32, #tpu.memory_space<vmem>>, vector<1x8x8xf32>
    %211 = vector.shape_cast %210 : vector<1x8x8xf32> to vector<8x8xf32>
    %c439_i32 = arith.constant 439 : i32
    %212 = tpu.dynamic_rotate %1 by %c439_i32 dim 1 : vector<8x512xf32>, i32 -> vector<8x512xf32>
    %c26_135 = arith.constant 26 : index
    %c0_136 = arith.constant 0 : index
    %213 = vector.load %arg5[%c26_135, %c0_136] : memref<27x512xf32, #tpu.memory_space<vmem>>, vector<1x512xf32>
    %214 = vector.broadcast %213 : vector<1x512xf32> to vector<8x512xf32>
    %215 = arith.mulf %212, %214 : vector<8x512xf32>
    %cst_137 = arith.constant dense<0.000000e+00> : vector<8x512xf32>
    %216 = tpu.matmul %211, %215, %cst_137 {dimension_numbers = #tpu.dot_dimension_numbers<[1], [0], [0], [1], [0, 0, 1, 1], [], []>} : vector<8x8xf32>, vector<8x512xf32>, vector<8x512xf32> -> vector<8x512xf32>
    %217 = arith.addf %209, %216 : vector<8x512xf32>
    %cst_138 = arith.constant 0.000000e+00 : f32
    %218 = vector.broadcast %cst_138 : f32 to vector<8x512xf32>
    %219 = arith.maximumf %217, %218 : vector<8x512xf32>
    %c0_139 = arith.constant 0 : index
    %c0_140 = arith.constant 0 : index
    %220 = vector.load %arg4[%c0_139, %c0_140] : memref<8x8xf32, #tpu.memory_space<vmem>>, vector<8x8xf32>
    %cst_141 = arith.constant dense<0.000000e+00> : vector<8x512xf32>
    %221 = tpu.matmul %220, %1, %cst_141 {dimension_numbers = #tpu.dot_dimension_numbers<[1], [0], [0], [1], [0, 0, 1, 1], [], []>} : vector<8x8xf32>, vector<8x512xf32>, vector<8x512xf32> -> vector<8x512xf32>
    %c0_142 = arith.constant 0 : index
    %c0_143 = arith.constant 0 : index
    %c0_144 = arith.constant 0 : index
    %222 = vector.load %arg3[%c0_142, %c0_143, %c0_144] : memref<27x8x8xf32, #tpu.memory_space<vmem>>, vector<1x8x8xf32>
    %223 = vector.shape_cast %222 : vector<1x8x8xf32> to vector<8x8xf32>
    %c73_i32_145 = arith.constant 73 : i32
    %224 = tpu.dynamic_rotate %219 by %c73_i32_145 dim 1 : vector<8x512xf32>, i32 -> vector<8x512xf32>
    %c0_146 = arith.constant 0 : index
    %c0_147 = arith.constant 0 : index
    %225 = vector.load %arg5[%c0_146, %c0_147] : memref<27x512xf32, #tpu.memory_space<vmem>>, vector<1x512xf32>
    %226 = vector.broadcast %225 : vector<1x512xf32> to vector<8x512xf32>
    %227 = arith.mulf %224, %226 : vector<8x512xf32>
    %cst_148 = arith.constant dense<0.000000e+00> : vector<8x512xf32>
    %228 = tpu.matmul %223, %227, %cst_148 {dimension_numbers = #tpu.dot_dimension_numbers<[1], [0], [0], [1], [0, 0, 1, 1], [], []>} : vector<8x8xf32>, vector<8x512xf32>, vector<8x512xf32> -> vector<8x512xf32>
    %229 = arith.addf %221, %228 : vector<8x512xf32>
    %c1_149 = arith.constant 1 : index
    %c0_150 = arith.constant 0 : index
    %c0_151 = arith.constant 0 : index
    %230 = vector.load %arg3[%c1_149, %c0_150, %c0_151] : memref<27x8x8xf32, #tpu.memory_space<vmem>>, vector<1x8x8xf32>
    %231 = vector.shape_cast %230 : vector<1x8x8xf32> to vector<8x8xf32>
    %c72_i32_152 = arith.constant 72 : i32
    %232 = tpu.dynamic_rotate %219 by %c72_i32_152 dim 1 : vector<8x512xf32>, i32 -> vector<8x512xf32>
    %c1_153 = arith.constant 1 : index
    %c0_154 = arith.constant 0 : index
    %233 = vector.load %arg5[%c1_153, %c0_154] : memref<27x512xf32, #tpu.memory_space<vmem>>, vector<1x512xf32>
    %234 = vector.broadcast %233 : vector<1x512xf32> to vector<8x512xf32>
    %235 = arith.mulf %232, %234 : vector<8x512xf32>
    %cst_155 = arith.constant dense<0.000000e+00> : vector<8x512xf32>
    %236 = tpu.matmul %231, %235, %cst_155 {dimension_numbers = #tpu.dot_dimension_numbers<[1], [0], [0], [1], [0, 0, 1, 1], [], []>} : vector<8x8xf32>, vector<8x512xf32>, vector<8x512xf32> -> vector<8x512xf32>
    %237 = arith.addf %229, %236 : vector<8x512xf32>
    %c2_156 = arith.constant 2 : index
    %c0_157 = arith.constant 0 : index
    %c0_158 = arith.constant 0 : index
    %238 = vector.load %arg3[%c2_156, %c0_157, %c0_158] : memref<27x8x8xf32, #tpu.memory_space<vmem>>, vector<1x8x8xf32>
    %239 = vector.shape_cast %238 : vector<1x8x8xf32> to vector<8x8xf32>
    %c71_i32_159 = arith.constant 71 : i32
    %240 = tpu.dynamic_rotate %219 by %c71_i32_159 dim 1 : vector<8x512xf32>, i32 -> vector<8x512xf32>
    %c2_160 = arith.constant 2 : index
    %c0_161 = arith.constant 0 : index
    %241 = vector.load %arg5[%c2_160, %c0_161] : memref<27x512xf32, #tpu.memory_space<vmem>>, vector<1x512xf32>
    %242 = vector.broadcast %241 : vector<1x512xf32> to vector<8x512xf32>
    %243 = arith.mulf %240, %242 : vector<8x512xf32>
    %cst_162 = arith.constant dense<0.000000e+00> : vector<8x512xf32>
    %244 = tpu.matmul %239, %243, %cst_162 {dimension_numbers = #tpu.dot_dimension_numbers<[1], [0], [0], [1], [0, 0, 1, 1], [], []>} : vector<8x8xf32>, vector<8x512xf32>, vector<8x512xf32> -> vector<8x512xf32>
    %245 = arith.addf %237, %244 : vector<8x512xf32>
    %c3_163 = arith.constant 3 : index
    %c0_164 = arith.constant 0 : index
    %c0_165 = arith.constant 0 : index
    %246 = vector.load %arg3[%c3_163, %c0_164, %c0_165] : memref<27x8x8xf32, #tpu.memory_space<vmem>>, vector<1x8x8xf32>
    %247 = vector.shape_cast %246 : vector<1x8x8xf32> to vector<8x8xf32>
    %c65_i32_166 = arith.constant 65 : i32
    %248 = tpu.dynamic_rotate %219 by %c65_i32_166 dim 1 : vector<8x512xf32>, i32 -> vector<8x512xf32>
    %c3_167 = arith.constant 3 : index
    %c0_168 = arith.constant 0 : index
    %249 = vector.load %arg5[%c3_167, %c0_168] : memref<27x512xf32, #tpu.memory_space<vmem>>, vector<1x512xf32>
    %250 = vector.broadcast %249 : vector<1x512xf32> to vector<8x512xf32>
    %251 = arith.mulf %248, %250 : vector<8x512xf32>
    %cst_169 = arith.constant dense<0.000000e+00> : vector<8x512xf32>
    %252 = tpu.matmul %247, %251, %cst_169 {dimension_numbers = #tpu.dot_dimension_numbers<[1], [0], [0], [1], [0, 0, 1, 1], [], []>} : vector<8x8xf32>, vector<8x512xf32>, vector<8x512xf32> -> vector<8x512xf32>
    %253 = arith.addf %245, %252 : vector<8x512xf32>
    %c4_170 = arith.constant 4 : index
    %c0_171 = arith.constant 0 : index
    %c0_172 = arith.constant 0 : index
    %254 = vector.load %arg3[%c4_170, %c0_171, %c0_172] : memref<27x8x8xf32, #tpu.memory_space<vmem>>, vector<1x8x8xf32>
    %255 = vector.shape_cast %254 : vector<1x8x8xf32> to vector<8x8xf32>
    %c64_i32_173 = arith.constant 64 : i32
    %256 = tpu.dynamic_rotate %219 by %c64_i32_173 dim 1 : vector<8x512xf32>, i32 -> vector<8x512xf32>
    %c4_174 = arith.constant 4 : index
    %c0_175 = arith.constant 0 : index
    %257 = vector.load %arg5[%c4_174, %c0_175] : memref<27x512xf32, #tpu.memory_space<vmem>>, vector<1x512xf32>
    %258 = vector.broadcast %257 : vector<1x512xf32> to vector<8x512xf32>
    %259 = arith.mulf %256, %258 : vector<8x512xf32>
    %cst_176 = arith.constant dense<0.000000e+00> : vector<8x512xf32>
    %260 = tpu.matmul %255, %259, %cst_176 {dimension_numbers = #tpu.dot_dimension_numbers<[1], [0], [0], [1], [0, 0, 1, 1], [], []>} : vector<8x8xf32>, vector<8x512xf32>, vector<8x512xf32> -> vector<8x512xf32>
    %261 = arith.addf %253, %260 : vector<8x512xf32>
    %c5_177 = arith.constant 5 : index
    %c0_178 = arith.constant 0 : index
    %c0_179 = arith.constant 0 : index
    %262 = vector.load %arg3[%c5_177, %c0_178, %c0_179] : memref<27x8x8xf32, #tpu.memory_space<vmem>>, vector<1x8x8xf32>
    %263 = vector.shape_cast %262 : vector<1x8x8xf32> to vector<8x8xf32>
    %c63_i32_180 = arith.constant 63 : i32
    %264 = tpu.dynamic_rotate %219 by %c63_i32_180 dim 1 : vector<8x512xf32>, i32 -> vector<8x512xf32>
    %c5_181 = arith.constant 5 : index
    %c0_182 = arith.constant 0 : index
    %265 = vector.load %arg5[%c5_181, %c0_182] : memref<27x512xf32, #tpu.memory_space<vmem>>, vector<1x512xf32>
    %266 = vector.broadcast %265 : vector<1x512xf32> to vector<8x512xf32>
    %267 = arith.mulf %264, %266 : vector<8x512xf32>
    %cst_183 = arith.constant dense<0.000000e+00> : vector<8x512xf32>
    %268 = tpu.matmul %263, %267, %cst_183 {dimension_numbers = #tpu.dot_dimension_numbers<[1], [0], [0], [1], [0, 0, 1, 1], [], []>} : vector<8x8xf32>, vector<8x512xf32>, vector<8x512xf32> -> vector<8x512xf32>
    %269 = arith.addf %261, %268 : vector<8x512xf32>
    %c6_184 = arith.constant 6 : index
    %c0_185 = arith.constant 0 : index
    %c0_186 = arith.constant 0 : index
    %270 = vector.load %arg3[%c6_184, %c0_185, %c0_186] : memref<27x8x8xf32, #tpu.memory_space<vmem>>, vector<1x8x8xf32>
    %271 = vector.shape_cast %270 : vector<1x8x8xf32> to vector<8x8xf32>
    %c57_i32_187 = arith.constant 57 : i32
    %272 = tpu.dynamic_rotate %219 by %c57_i32_187 dim 1 : vector<8x512xf32>, i32 -> vector<8x512xf32>
    %c6_188 = arith.constant 6 : index
    %c0_189 = arith.constant 0 : index
    %273 = vector.load %arg5[%c6_188, %c0_189] : memref<27x512xf32, #tpu.memory_space<vmem>>, vector<1x512xf32>
    %274 = vector.broadcast %273 : vector<1x512xf32> to vector<8x512xf32>
    %275 = arith.mulf %272, %274 : vector<8x512xf32>
    %cst_190 = arith.constant dense<0.000000e+00> : vector<8x512xf32>
    %276 = tpu.matmul %271, %275, %cst_190 {dimension_numbers = #tpu.dot_dimension_numbers<[1], [0], [0], [1], [0, 0, 1, 1], [], []>} : vector<8x8xf32>, vector<8x512xf32>, vector<8x512xf32> -> vector<8x512xf32>
    %277 = arith.addf %269, %276 : vector<8x512xf32>
    %c7_191 = arith.constant 7 : index
    %c0_192 = arith.constant 0 : index
    %c0_193 = arith.constant 0 : index
    %278 = vector.load %arg3[%c7_191, %c0_192, %c0_193] : memref<27x8x8xf32, #tpu.memory_space<vmem>>, vector<1x8x8xf32>
    %279 = vector.shape_cast %278 : vector<1x8x8xf32> to vector<8x8xf32>
    %c56_i32_194 = arith.constant 56 : i32
    %280 = tpu.dynamic_rotate %219 by %c56_i32_194 dim 1 : vector<8x512xf32>, i32 -> vector<8x512xf32>
    %c7_195 = arith.constant 7 : index
    %c0_196 = arith.constant 0 : index
    %281 = vector.load %arg5[%c7_195, %c0_196] : memref<27x512xf32, #tpu.memory_space<vmem>>, vector<1x512xf32>
    %282 = vector.broadcast %281 : vector<1x512xf32> to vector<8x512xf32>
    %283 = arith.mulf %280, %282 : vector<8x512xf32>
    %cst_197 = arith.constant dense<0.000000e+00> : vector<8x512xf32>
    %284 = tpu.matmul %279, %283, %cst_197 {dimension_numbers = #tpu.dot_dimension_numbers<[1], [0], [0], [1], [0, 0, 1, 1], [], []>} : vector<8x8xf32>, vector<8x512xf32>, vector<8x512xf32> -> vector<8x512xf32>
    %285 = arith.addf %277, %284 : vector<8x512xf32>
    %c8_198 = arith.constant 8 : index
    %c0_199 = arith.constant 0 : index
    %c0_200 = arith.constant 0 : index
    %286 = vector.load %arg3[%c8_198, %c0_199, %c0_200] : memref<27x8x8xf32, #tpu.memory_space<vmem>>, vector<1x8x8xf32>
    %287 = vector.shape_cast %286 : vector<1x8x8xf32> to vector<8x8xf32>
    %c55_i32_201 = arith.constant 55 : i32
    %288 = tpu.dynamic_rotate %219 by %c55_i32_201 dim 1 : vector<8x512xf32>, i32 -> vector<8x512xf32>
    %c8_202 = arith.constant 8 : index
    %c0_203 = arith.constant 0 : index
    %289 = vector.load %arg5[%c8_202, %c0_203] : memref<27x512xf32, #tpu.memory_space<vmem>>, vector<1x512xf32>
    %290 = vector.broadcast %289 : vector<1x512xf32> to vector<8x512xf32>
    %291 = arith.mulf %288, %290 : vector<8x512xf32>
    %cst_204 = arith.constant dense<0.000000e+00> : vector<8x512xf32>
    %292 = tpu.matmul %287, %291, %cst_204 {dimension_numbers = #tpu.dot_dimension_numbers<[1], [0], [0], [1], [0, 0, 1, 1], [], []>} : vector<8x8xf32>, vector<8x512xf32>, vector<8x512xf32> -> vector<8x512xf32>
    %293 = arith.addf %285, %292 : vector<8x512xf32>
    %c9_205 = arith.constant 9 : index
    %c0_206 = arith.constant 0 : index
    %c0_207 = arith.constant 0 : index
    %294 = vector.load %arg3[%c9_205, %c0_206, %c0_207] : memref<27x8x8xf32, #tpu.memory_space<vmem>>, vector<1x8x8xf32>
    %295 = vector.shape_cast %294 : vector<1x8x8xf32> to vector<8x8xf32>
    %c9_i32_208 = arith.constant 9 : i32
    %296 = tpu.dynamic_rotate %219 by %c9_i32_208 dim 1 : vector<8x512xf32>, i32 -> vector<8x512xf32>
    %c9_209 = arith.constant 9 : index
    %c0_210 = arith.constant 0 : index
    %297 = vector.load %arg5[%c9_209, %c0_210] : memref<27x512xf32, #tpu.memory_space<vmem>>, vector<1x512xf32>
    %298 = vector.broadcast %297 : vector<1x512xf32> to vector<8x512xf32>
    %299 = arith.mulf %296, %298 : vector<8x512xf32>
    %cst_211 = arith.constant dense<0.000000e+00> : vector<8x512xf32>
    %300 = tpu.matmul %295, %299, %cst_211 {dimension_numbers = #tpu.dot_dimension_numbers<[1], [0], [0], [1], [0, 0, 1, 1], [], []>} : vector<8x8xf32>, vector<8x512xf32>, vector<8x512xf32> -> vector<8x512xf32>
    %301 = arith.addf %293, %300 : vector<8x512xf32>
    %c10_212 = arith.constant 10 : index
    %c0_213 = arith.constant 0 : index
    %c0_214 = arith.constant 0 : index
    %302 = vector.load %arg3[%c10_212, %c0_213, %c0_214] : memref<27x8x8xf32, #tpu.memory_space<vmem>>, vector<1x8x8xf32>
    %303 = vector.shape_cast %302 : vector<1x8x8xf32> to vector<8x8xf32>
    %c8_i32_215 = arith.constant 8 : i32
    %304 = tpu.dynamic_rotate %219 by %c8_i32_215 dim 1 : vector<8x512xf32>, i32 -> vector<8x512xf32>
    %c10_216 = arith.constant 10 : index
    %c0_217 = arith.constant 0 : index
    %305 = vector.load %arg5[%c10_216, %c0_217] : memref<27x512xf32, #tpu.memory_space<vmem>>, vector<1x512xf32>
    %306 = vector.broadcast %305 : vector<1x512xf32> to vector<8x512xf32>
    %307 = arith.mulf %304, %306 : vector<8x512xf32>
    %cst_218 = arith.constant dense<0.000000e+00> : vector<8x512xf32>
    %308 = tpu.matmul %303, %307, %cst_218 {dimension_numbers = #tpu.dot_dimension_numbers<[1], [0], [0], [1], [0, 0, 1, 1], [], []>} : vector<8x8xf32>, vector<8x512xf32>, vector<8x512xf32> -> vector<8x512xf32>
    %309 = arith.addf %301, %308 : vector<8x512xf32>
    %c11_219 = arith.constant 11 : index
    %c0_220 = arith.constant 0 : index
    %c0_221 = arith.constant 0 : index
    %310 = vector.load %arg3[%c11_219, %c0_220, %c0_221] : memref<27x8x8xf32, #tpu.memory_space<vmem>>, vector<1x8x8xf32>
    %311 = vector.shape_cast %310 : vector<1x8x8xf32> to vector<8x8xf32>
    %c7_i32_222 = arith.constant 7 : i32
    %312 = tpu.dynamic_rotate %219 by %c7_i32_222 dim 1 : vector<8x512xf32>, i32 -> vector<8x512xf32>
    %c11_223 = arith.constant 11 : index
    %c0_224 = arith.constant 0 : index
    %313 = vector.load %arg5[%c11_223, %c0_224] : memref<27x512xf32, #tpu.memory_space<vmem>>, vector<1x512xf32>
    %314 = vector.broadcast %313 : vector<1x512xf32> to vector<8x512xf32>
    %315 = arith.mulf %312, %314 : vector<8x512xf32>
    %cst_225 = arith.constant dense<0.000000e+00> : vector<8x512xf32>
    %316 = tpu.matmul %311, %315, %cst_225 {dimension_numbers = #tpu.dot_dimension_numbers<[1], [0], [0], [1], [0, 0, 1, 1], [], []>} : vector<8x8xf32>, vector<8x512xf32>, vector<8x512xf32> -> vector<8x512xf32>
    %317 = arith.addf %309, %316 : vector<8x512xf32>
    %c12_226 = arith.constant 12 : index
    %c0_227 = arith.constant 0 : index
    %c0_228 = arith.constant 0 : index
    %318 = vector.load %arg3[%c12_226, %c0_227, %c0_228] : memref<27x8x8xf32, #tpu.memory_space<vmem>>, vector<1x8x8xf32>
    %319 = vector.shape_cast %318 : vector<1x8x8xf32> to vector<8x8xf32>
    %c1_i32_229 = arith.constant 1 : i32
    %320 = tpu.dynamic_rotate %219 by %c1_i32_229 dim 1 : vector<8x512xf32>, i32 -> vector<8x512xf32>
    %c12_230 = arith.constant 12 : index
    %c0_231 = arith.constant 0 : index
    %321 = vector.load %arg5[%c12_230, %c0_231] : memref<27x512xf32, #tpu.memory_space<vmem>>, vector<1x512xf32>
    %322 = vector.broadcast %321 : vector<1x512xf32> to vector<8x512xf32>
    %323 = arith.mulf %320, %322 : vector<8x512xf32>
    %cst_232 = arith.constant dense<0.000000e+00> : vector<8x512xf32>
    %324 = tpu.matmul %319, %323, %cst_232 {dimension_numbers = #tpu.dot_dimension_numbers<[1], [0], [0], [1], [0, 0, 1, 1], [], []>} : vector<8x8xf32>, vector<8x512xf32>, vector<8x512xf32> -> vector<8x512xf32>
    %325 = arith.addf %317, %324 : vector<8x512xf32>
    %c13_233 = arith.constant 13 : index
    %c0_234 = arith.constant 0 : index
    %c0_235 = arith.constant 0 : index
    %326 = vector.load %arg3[%c13_233, %c0_234, %c0_235] : memref<27x8x8xf32, #tpu.memory_space<vmem>>, vector<1x8x8xf32>
    %327 = vector.shape_cast %326 : vector<1x8x8xf32> to vector<8x8xf32>
    %c13_236 = arith.constant 13 : index
    %c0_237 = arith.constant 0 : index
    %328 = vector.load %arg5[%c13_236, %c0_237] : memref<27x512xf32, #tpu.memory_space<vmem>>, vector<1x512xf32>
    %329 = vector.broadcast %328 : vector<1x512xf32> to vector<8x512xf32>
    %330 = arith.mulf %219, %329 : vector<8x512xf32>
    %cst_238 = arith.constant dense<0.000000e+00> : vector<8x512xf32>
    %331 = tpu.matmul %327, %330, %cst_238 {dimension_numbers = #tpu.dot_dimension_numbers<[1], [0], [0], [1], [0, 0, 1, 1], [], []>} : vector<8x8xf32>, vector<8x512xf32>, vector<8x512xf32> -> vector<8x512xf32>
    %332 = arith.addf %325, %331 : vector<8x512xf32>
    %c14_239 = arith.constant 14 : index
    %c0_240 = arith.constant 0 : index
    %c0_241 = arith.constant 0 : index
    %333 = vector.load %arg3[%c14_239, %c0_240, %c0_241] : memref<27x8x8xf32, #tpu.memory_space<vmem>>, vector<1x8x8xf32>
    %334 = vector.shape_cast %333 : vector<1x8x8xf32> to vector<8x8xf32>
    %c511_i32_242 = arith.constant 511 : i32
    %335 = tpu.dynamic_rotate %219 by %c511_i32_242 dim 1 : vector<8x512xf32>, i32 -> vector<8x512xf32>
    %c14_243 = arith.constant 14 : index
    %c0_244 = arith.constant 0 : index
    %336 = vector.load %arg5[%c14_243, %c0_244] : memref<27x512xf32, #tpu.memory_space<vmem>>, vector<1x512xf32>
    %337 = vector.broadcast %336 : vector<1x512xf32> to vector<8x512xf32>
    %338 = arith.mulf %335, %337 : vector<8x512xf32>
    %cst_245 = arith.constant dense<0.000000e+00> : vector<8x512xf32>
    %339 = tpu.matmul %334, %338, %cst_245 {dimension_numbers = #tpu.dot_dimension_numbers<[1], [0], [0], [1], [0, 0, 1, 1], [], []>} : vector<8x8xf32>, vector<8x512xf32>, vector<8x512xf32> -> vector<8x512xf32>
    %340 = arith.addf %332, %339 : vector<8x512xf32>
    %c15_246 = arith.constant 15 : index
    %c0_247 = arith.constant 0 : index
    %c0_248 = arith.constant 0 : index
    %341 = vector.load %arg3[%c15_246, %c0_247, %c0_248] : memref<27x8x8xf32, #tpu.memory_space<vmem>>, vector<1x8x8xf32>
    %342 = vector.shape_cast %341 : vector<1x8x8xf32> to vector<8x8xf32>
    %c505_i32_249 = arith.constant 505 : i32
    %343 = tpu.dynamic_rotate %219 by %c505_i32_249 dim 1 : vector<8x512xf32>, i32 -> vector<8x512xf32>
    %c15_250 = arith.constant 15 : index
    %c0_251 = arith.constant 0 : index
    %344 = vector.load %arg5[%c15_250, %c0_251] : memref<27x512xf32, #tpu.memory_space<vmem>>, vector<1x512xf32>
    %345 = vector.broadcast %344 : vector<1x512xf32> to vector<8x512xf32>
    %346 = arith.mulf %343, %345 : vector<8x512xf32>
    %cst_252 = arith.constant dense<0.000000e+00> : vector<8x512xf32>
    %347 = tpu.matmul %342, %346, %cst_252 {dimension_numbers = #tpu.dot_dimension_numbers<[1], [0], [0], [1], [0, 0, 1, 1], [], []>} : vector<8x8xf32>, vector<8x512xf32>, vector<8x512xf32> -> vector<8x512xf32>
    %348 = arith.addf %340, %347 : vector<8x512xf32>
    %c16_253 = arith.constant 16 : index
    %c0_254 = arith.constant 0 : index
    %c0_255 = arith.constant 0 : index
    %349 = vector.load %arg3[%c16_253, %c0_254, %c0_255] : memref<27x8x8xf32, #tpu.memory_space<vmem>>, vector<1x8x8xf32>
    %350 = vector.shape_cast %349 : vector<1x8x8xf32> to vector<8x8xf32>
    %c504_i32_256 = arith.constant 504 : i32
    %351 = tpu.dynamic_rotate %219 by %c504_i32_256 dim 1 : vector<8x512xf32>, i32 -> vector<8x512xf32>
    %c16_257 = arith.constant 16 : index
    %c0_258 = arith.constant 0 : index
    %352 = vector.load %arg5[%c16_257, %c0_258] : memref<27x512xf32, #tpu.memory_space<vmem>>, vector<1x512xf32>
    %353 = vector.broadcast %352 : vector<1x512xf32> to vector<8x512xf32>
    %354 = arith.mulf %351, %353 : vector<8x512xf32>
    %cst_259 = arith.constant dense<0.000000e+00> : vector<8x512xf32>
    %355 = tpu.matmul %350, %354, %cst_259 {dimension_numbers = #tpu.dot_dimension_numbers<[1], [0], [0], [1], [0, 0, 1, 1], [], []>} : vector<8x8xf32>, vector<8x512xf32>, vector<8x512xf32> -> vector<8x512xf32>
    %356 = arith.addf %348, %355 : vector<8x512xf32>
    %c17_260 = arith.constant 17 : index
    %c0_261 = arith.constant 0 : index
    %c0_262 = arith.constant 0 : index
    %357 = vector.load %arg3[%c17_260, %c0_261, %c0_262] : memref<27x8x8xf32, #tpu.memory_space<vmem>>, vector<1x8x8xf32>
    %358 = vector.shape_cast %357 : vector<1x8x8xf32> to vector<8x8xf32>
    %c503_i32_263 = arith.constant 503 : i32
    %359 = tpu.dynamic_rotate %219 by %c503_i32_263 dim 1 : vector<8x512xf32>, i32 -> vector<8x512xf32>
    %c17_264 = arith.constant 17 : index
    %c0_265 = arith.constant 0 : index
    %360 = vector.load %arg5[%c17_264, %c0_265] : memref<27x512xf32, #tpu.memory_space<vmem>>, vector<1x512xf32>
    %361 = vector.broadcast %360 : vector<1x512xf32> to vector<8x512xf32>
    %362 = arith.mulf %359, %361 : vector<8x512xf32>
    %cst_266 = arith.constant dense<0.000000e+00> : vector<8x512xf32>
    %363 = tpu.matmul %358, %362, %cst_266 {dimension_numbers = #tpu.dot_dimension_numbers<[1], [0], [0], [1], [0, 0, 1, 1], [], []>} : vector<8x8xf32>, vector<8x512xf32>, vector<8x512xf32> -> vector<8x512xf32>
    %364 = arith.addf %356, %363 : vector<8x512xf32>
    %c18_267 = arith.constant 18 : index
    %c0_268 = arith.constant 0 : index
    %c0_269 = arith.constant 0 : index
    %365 = vector.load %arg3[%c18_267, %c0_268, %c0_269] : memref<27x8x8xf32, #tpu.memory_space<vmem>>, vector<1x8x8xf32>
    %366 = vector.shape_cast %365 : vector<1x8x8xf32> to vector<8x8xf32>
    %c457_i32_270 = arith.constant 457 : i32
    %367 = tpu.dynamic_rotate %219 by %c457_i32_270 dim 1 : vector<8x512xf32>, i32 -> vector<8x512xf32>
    %c18_271 = arith.constant 18 : index
    %c0_272 = arith.constant 0 : index
    %368 = vector.load %arg5[%c18_271, %c0_272] : memref<27x512xf32, #tpu.memory_space<vmem>>, vector<1x512xf32>
    %369 = vector.broadcast %368 : vector<1x512xf32> to vector<8x512xf32>
    %370 = arith.mulf %367, %369 : vector<8x512xf32>
    %cst_273 = arith.constant dense<0.000000e+00> : vector<8x512xf32>
    %371 = tpu.matmul %366, %370, %cst_273 {dimension_numbers = #tpu.dot_dimension_numbers<[1], [0], [0], [1], [0, 0, 1, 1], [], []>} : vector<8x8xf32>, vector<8x512xf32>, vector<8x512xf32> -> vector<8x512xf32>
    %372 = arith.addf %364, %371 : vector<8x512xf32>
    %c19_274 = arith.constant 19 : index
    %c0_275 = arith.constant 0 : index
    %c0_276 = arith.constant 0 : index
    %373 = vector.load %arg3[%c19_274, %c0_275, %c0_276] : memref<27x8x8xf32, #tpu.memory_space<vmem>>, vector<1x8x8xf32>
    %374 = vector.shape_cast %373 : vector<1x8x8xf32> to vector<8x8xf32>
    %c456_i32_277 = arith.constant 456 : i32
    %375 = tpu.dynamic_rotate %219 by %c456_i32_277 dim 1 : vector<8x512xf32>, i32 -> vector<8x512xf32>
    %c19_278 = arith.constant 19 : index
    %c0_279 = arith.constant 0 : index
    %376 = vector.load %arg5[%c19_278, %c0_279] : memref<27x512xf32, #tpu.memory_space<vmem>>, vector<1x512xf32>
    %377 = vector.broadcast %376 : vector<1x512xf32> to vector<8x512xf32>
    %378 = arith.mulf %375, %377 : vector<8x512xf32>
    %cst_280 = arith.constant dense<0.000000e+00> : vector<8x512xf32>
    %379 = tpu.matmul %374, %378, %cst_280 {dimension_numbers = #tpu.dot_dimension_numbers<[1], [0], [0], [1], [0, 0, 1, 1], [], []>} : vector<8x8xf32>, vector<8x512xf32>, vector<8x512xf32> -> vector<8x512xf32>
    %380 = arith.addf %372, %379 : vector<8x512xf32>
    %c20_281 = arith.constant 20 : index
    %c0_282 = arith.constant 0 : index
    %c0_283 = arith.constant 0 : index
    %381 = vector.load %arg3[%c20_281, %c0_282, %c0_283] : memref<27x8x8xf32, #tpu.memory_space<vmem>>, vector<1x8x8xf32>
    %382 = vector.shape_cast %381 : vector<1x8x8xf32> to vector<8x8xf32>
    %c455_i32_284 = arith.constant 455 : i32
    %383 = tpu.dynamic_rotate %219 by %c455_i32_284 dim 1 : vector<8x512xf32>, i32 -> vector<8x512xf32>
    %c20_285 = arith.constant 20 : index
    %c0_286 = arith.constant 0 : index
    %384 = vector.load %arg5[%c20_285, %c0_286] : memref<27x512xf32, #tpu.memory_space<vmem>>, vector<1x512xf32>
    %385 = vector.broadcast %384 : vector<1x512xf32> to vector<8x512xf32>
    %386 = arith.mulf %383, %385 : vector<8x512xf32>
    %cst_287 = arith.constant dense<0.000000e+00> : vector<8x512xf32>
    %387 = tpu.matmul %382, %386, %cst_287 {dimension_numbers = #tpu.dot_dimension_numbers<[1], [0], [0], [1], [0, 0, 1, 1], [], []>} : vector<8x8xf32>, vector<8x512xf32>, vector<8x512xf32> -> vector<8x512xf32>
    %388 = arith.addf %380, %387 : vector<8x512xf32>
    %c21_288 = arith.constant 21 : index
    %c0_289 = arith.constant 0 : index
    %c0_290 = arith.constant 0 : index
    %389 = vector.load %arg3[%c21_288, %c0_289, %c0_290] : memref<27x8x8xf32, #tpu.memory_space<vmem>>, vector<1x8x8xf32>
    %390 = vector.shape_cast %389 : vector<1x8x8xf32> to vector<8x8xf32>
    %c449_i32_291 = arith.constant 449 : i32
    %391 = tpu.dynamic_rotate %219 by %c449_i32_291 dim 1 : vector<8x512xf32>, i32 -> vector<8x512xf32>
    %c21_292 = arith.constant 21 : index
    %c0_293 = arith.constant 0 : index
    %392 = vector.load %arg5[%c21_292, %c0_293] : memref<27x512xf32, #tpu.memory_space<vmem>>, vector<1x512xf32>
    %393 = vector.broadcast %392 : vector<1x512xf32> to vector<8x512xf32>
    %394 = arith.mulf %391, %393 : vector<8x512xf32>
    %cst_294 = arith.constant dense<0.000000e+00> : vector<8x512xf32>
    %395 = tpu.matmul %390, %394, %cst_294 {dimension_numbers = #tpu.dot_dimension_numbers<[1], [0], [0], [1], [0, 0, 1, 1], [], []>} : vector<8x8xf32>, vector<8x512xf32>, vector<8x512xf32> -> vector<8x512xf32>
    %396 = arith.addf %388, %395 : vector<8x512xf32>
    %c22_295 = arith.constant 22 : index
    %c0_296 = arith.constant 0 : index
    %c0_297 = arith.constant 0 : index
    %397 = vector.load %arg3[%c22_295, %c0_296, %c0_297] : memref<27x8x8xf32, #tpu.memory_space<vmem>>, vector<1x8x8xf32>
    %398 = vector.shape_cast %397 : vector<1x8x8xf32> to vector<8x8xf32>
    %c448_i32_298 = arith.constant 448 : i32
    %399 = tpu.dynamic_rotate %219 by %c448_i32_298 dim 1 : vector<8x512xf32>, i32 -> vector<8x512xf32>
    %c22_299 = arith.constant 22 : index
    %c0_300 = arith.constant 0 : index
    %400 = vector.load %arg5[%c22_299, %c0_300] : memref<27x512xf32, #tpu.memory_space<vmem>>, vector<1x512xf32>
    %401 = vector.broadcast %400 : vector<1x512xf32> to vector<8x512xf32>
    %402 = arith.mulf %399, %401 : vector<8x512xf32>
    %cst_301 = arith.constant dense<0.000000e+00> : vector<8x512xf32>
    %403 = tpu.matmul %398, %402, %cst_301 {dimension_numbers = #tpu.dot_dimension_numbers<[1], [0], [0], [1], [0, 0, 1, 1], [], []>} : vector<8x8xf32>, vector<8x512xf32>, vector<8x512xf32> -> vector<8x512xf32>
    %404 = arith.addf %396, %403 : vector<8x512xf32>
    %c23_302 = arith.constant 23 : index
    %c0_303 = arith.constant 0 : index
    %c0_304 = arith.constant 0 : index
    %405 = vector.load %arg3[%c23_302, %c0_303, %c0_304] : memref<27x8x8xf32, #tpu.memory_space<vmem>>, vector<1x8x8xf32>
    %406 = vector.shape_cast %405 : vector<1x8x8xf32> to vector<8x8xf32>
    %c447_i32_305 = arith.constant 447 : i32
    %407 = tpu.dynamic_rotate %219 by %c447_i32_305 dim 1 : vector<8x512xf32>, i32 -> vector<8x512xf32>
    %c23_306 = arith.constant 23 : index
    %c0_307 = arith.constant 0 : index
    %408 = vector.load %arg5[%c23_306, %c0_307] : memref<27x512xf32, #tpu.memory_space<vmem>>, vector<1x512xf32>
    %409 = vector.broadcast %408 : vector<1x512xf32> to vector<8x512xf32>
    %410 = arith.mulf %407, %409 : vector<8x512xf32>
    %cst_308 = arith.constant dense<0.000000e+00> : vector<8x512xf32>
    %411 = tpu.matmul %406, %410, %cst_308 {dimension_numbers = #tpu.dot_dimension_numbers<[1], [0], [0], [1], [0, 0, 1, 1], [], []>} : vector<8x8xf32>, vector<8x512xf32>, vector<8x512xf32> -> vector<8x512xf32>
    %412 = arith.addf %404, %411 : vector<8x512xf32>
    %c24_309 = arith.constant 24 : index
    %c0_310 = arith.constant 0 : index
    %c0_311 = arith.constant 0 : index
    %413 = vector.load %arg3[%c24_309, %c0_310, %c0_311] : memref<27x8x8xf32, #tpu.memory_space<vmem>>, vector<1x8x8xf32>
    %414 = vector.shape_cast %413 : vector<1x8x8xf32> to vector<8x8xf32>
    %c441_i32_312 = arith.constant 441 : i32
    %415 = tpu.dynamic_rotate %219 by %c441_i32_312 dim 1 : vector<8x512xf32>, i32 -> vector<8x512xf32>
    %c24_313 = arith.constant 24 : index
    %c0_314 = arith.constant 0 : index
    %416 = vector.load %arg5[%c24_313, %c0_314] : memref<27x512xf32, #tpu.memory_space<vmem>>, vector<1x512xf32>
    %417 = vector.broadcast %416 : vector<1x512xf32> to vector<8x512xf32>
    %418 = arith.mulf %415, %417 : vector<8x512xf32>
    %cst_315 = arith.constant dense<0.000000e+00> : vector<8x512xf32>
    %419 = tpu.matmul %414, %418, %cst_315 {dimension_numbers = #tpu.dot_dimension_numbers<[1], [0], [0], [1], [0, 0, 1, 1], [], []>} : vector<8x8xf32>, vector<8x512xf32>, vector<8x512xf32> -> vector<8x512xf32>
    %420 = arith.addf %412, %419 : vector<8x512xf32>
    %c25_316 = arith.constant 25 : index
    %c0_317 = arith.constant 0 : index
    %c0_318 = arith.constant 0 : index
    %421 = vector.load %arg3[%c25_316, %c0_317, %c0_318] : memref<27x8x8xf32, #tpu.memory_space<vmem>>, vector<1x8x8xf32>
    %422 = vector.shape_cast %421 : vector<1x8x8xf32> to vector<8x8xf32>
    %c440_i32_319 = arith.constant 440 : i32
    %423 = tpu.dynamic_rotate %219 by %c440_i32_319 dim 1 : vector<8x512xf32>, i32 -> vector<8x512xf32>
    %c25_320 = arith.constant 25 : index
    %c0_321 = arith.constant 0 : index
    %424 = vector.load %arg5[%c25_320, %c0_321] : memref<27x512xf32, #tpu.memory_space<vmem>>, vector<1x512xf32>
    %425 = vector.broadcast %424 : vector<1x512xf32> to vector<8x512xf32>
    %426 = arith.mulf %423, %425 : vector<8x512xf32>
    %cst_322 = arith.constant dense<0.000000e+00> : vector<8x512xf32>
    %427 = tpu.matmul %422, %426, %cst_322 {dimension_numbers = #tpu.dot_dimension_numbers<[1], [0], [0], [1], [0, 0, 1, 1], [], []>} : vector<8x8xf32>, vector<8x512xf32>, vector<8x512xf32> -> vector<8x512xf32>
    %428 = arith.addf %420, %427 : vector<8x512xf32>
    %c26_323 = arith.constant 26 : index
    %c0_324 = arith.constant 0 : index
    %c0_325 = arith.constant 0 : index
    %429 = vector.load %arg3[%c26_323, %c0_324, %c0_325] : memref<27x8x8xf32, #tpu.memory_space<vmem>>, vector<1x8x8xf32>
    %430 = vector.shape_cast %429 : vector<1x8x8xf32> to vector<8x8xf32>
    %c439_i32_326 = arith.constant 439 : i32
    %431 = tpu.dynamic_rotate %219 by %c439_i32_326 dim 1 : vector<8x512xf32>, i32 -> vector<8x512xf32>
    %c26_327 = arith.constant 26 : index
    %c0_328 = arith.constant 0 : index
    %432 = vector.load %arg5[%c26_327, %c0_328] : memref<27x512xf32, #tpu.memory_space<vmem>>, vector<1x512xf32>
    %433 = vector.broadcast %432 : vector<1x512xf32> to vector<8x512xf32>
    %434 = arith.mulf %431, %433 : vector<8x512xf32>
    %cst_329 = arith.constant dense<0.000000e+00> : vector<8x512xf32>
    %435 = tpu.matmul %430, %434, %cst_329 {dimension_numbers = #tpu.dot_dimension_numbers<[1], [0], [0], [1], [0, 0, 1, 1], [], []>} : vector<8x8xf32>, vector<8x512xf32>, vector<8x512xf32> -> vector<8x512xf32>
    %436 = arith.addf %428, %435 : vector<8x512xf32>
    %cst_330 = arith.constant 0.000000e+00 : f32
    %437 = vector.broadcast %cst_330 : f32 to vector<8x512xf32>
    %438 = arith.maximumf %436, %437 : vector<8x512xf32>
    %c0_331 = arith.constant 0 : index
    %c0_332 = arith.constant 0 : index
    %c0_333 = arith.constant 0 : index
    %439 = vector.load %arg6[%c0_331, %c0_332, %c0_333] : memref<1x8x512xf32, #tpu.memory_space<vmem>>, vector<1x8x512xf32>
    %440 = vector.shape_cast %439 : vector<1x8x512xf32> to vector<8x512xf32>
    %441 = vector.shape_cast %438 : vector<8x512xf32> to vector<1x8x512xf32>
    tpu.vector_store %arg6[%c0_331, %c0_332, %c0_333], %441 {strides = array<i32>} : memref<1x8x512xf32, #tpu.memory_space<vmem>>, vector<1x8x512xf32>,
    return
  }
  func.func @transform_0(%arg0: i32) -> (i32, i32, i32) {
    %c0_i32 = arith.constant 0 : i32
    %c0_i32_0 = arith.constant 0 : i32
    %c0_i32_1 = arith.constant 0 : i32
    return %arg0, %c0_i32, %c0_i32_0 : i32, i32, i32
  }
  func.func @transform_1(%arg0: i32) -> (i32, i32, i32) {
    %c0_i32 = arith.constant 0 : i32
    %c0_i32_0 = arith.constant 0 : i32
    %c0_i32_1 = arith.constant 0 : i32
    %c0_i32_2 = arith.constant 0 : i32
    return %c0_i32, %c0_i32_0, %c0_i32_1 : i32, i32, i32
  }
  func.func @transform_2(%arg0: i32) -> (i32, i32, i32) {
    %c0_i32 = arith.constant 0 : i32
    %c0_i32_0 = arith.constant 0 : i32
    %c0_i32_1 = arith.constant 0 : i32
    %c0_i32_2 = arith.constant 0 : i32
    return %c0_i32, %c0_i32_0, %c0_i32_1 : i32, i32, i32
  }
  func.func @transform_3(%arg0: i32) -> (i32, i32) {
    %c0_i32 = arith.constant 0 : i32
    %c0_i32_0 = arith.constant 0 : i32
    %c0_i32_1 = arith.constant 0 : i32
    return %c0_i32, %c0_i32_0 : i32, i32
  }
  func.func @transform_4(%arg0: i32) -> (i32, i32) {
    %c0_i32 = arith.constant 0 : i32
    %c0_i32_0 = arith.constant 0 : i32
    %c0_i32_1 = arith.constant 0 : i32
    return %c0_i32, %c0_i32_0 : i32, i32
  }
  func.func @transform_5(%arg0: i32) -> (i32, i32, i32) {
    %c0_i32 = arith.constant 0 : i32
    %c0_i32_0 = arith.constant 0 : i32
    %c0_i32_1 = arith.constant 0 : i32
    return %arg0, %c0_i32, %c0_i32_0 : i32, i32, i32
  }
}

</mosaic_0001>

<llo_original>
// kernel: tpu_custom_call.1
$region0: #{tpu_custom_call.1}
  #allocation0 [shape = 'u32[]', space=smem, size = 0x4, offset = 0x4, fixed_abs, tag = 'smem constant byte address 0x4 - core index']
  #allocation1 [shape = 'u32[144,128]{1,0:T(1,128)}', space=vmem, size = 0x12000, scoped, tag = 'internal scratch']
  %s0 = inlined_call_operand.vmem [shape: f32[2,8,512], index: 0, kind: input, shape index: {}]
  %s1 = inlined_call_operand.vmem [shape: f32[27,8,8], index: 1, kind: input, shape index: {}]
  %s2 = inlined_call_operand.vmem [shape: f32[27,8,8], index: 2, kind: input, shape index: {}]
  %s3 = inlined_call_operand.vmem [shape: f32[8,8], index: 3, kind: input, shape index: {}]
  %s4 = inlined_call_operand.vmem [shape: f32[27,512], index: 4, kind: input, shape index: {}]
  %s5 = inlined_call_operand.hbm [shape: f32[2,8,512], index: 5, kind: output, shape index: {}]
  %s6 = sld [smem:[#allocation0]]
  $region53: #{tpu_custom_call.1} parent=0
    _
  %s8 = ssub.s32 1, %s6
  %s9 = scalar_select 0, %s8, %s6
  $region1: #{tpu_custom_call.1} parent=0
    #allocation2 [shape = 'u8[32768]{0}', space=vmem, size = 0x8000, scoped, tag = 'output window, operand 0']
    #allocation3 [shape = 's32[2]{0}', space=sflag, size = 0x8, scoped, tag = 'scoped memory for tpu_custom_call.1']
    %10 = vsyncpa [#allocation3], 0
    %s11 = scalar_lea.sflag [#allocation3], 1
    %12 = vsyncpa %s11, 0
    loop: start=0, step=1, limit=4
    $region2: #{tpu_custom_call.1} parent=1 // loop_pre_header
      _
    $region3: #{tpu_custom_call.1} parent=1 // loop_header
      %s14 = sphi 0, %s18
      %p15 = scmp.ge.s32.totalorder %s14, 4
      %s24 = sphi 0, %s26
      %s27 = sphi 0, %s24
      %s28 = sphi 0, %s27
      %s44 = sphi 0, %s28
      %s48 = sphi 0, %s48
      %s50 = sphi 0, %s48
      %s51 = sphi 0, %s50
      %s65 = sphi 0, %s51
      %s69 = sphi 0, %s69
      %s71 = sphi 0, %s69
      %s72 = sphi 0, %s71
      %s86 = sphi 0, %s72
      %s90 = sphi 0, %s90
      %s92 = sphi 0, %s90
      %s93 = sphi 0, %s92
      %s107 = sphi 0, %s93
      %s111 = sphi 0, %s111
      %s113 = sphi 0, %s111
      %s114 = sphi 0, %s113
      %s128 = sphi 0, %s114
      %s134 = sphi 0, %s136
      %s137 = sphi 0, %s134
      %s138 = sphi 0, %s137
      %s154 = sphi 0, %s138
    $region4: #{tpu_custom_call.1} parent=1 // loop_header_branch
      %17 = sbr.rel (%p15) target = $region8
    $region5: #{tpu_custom_call.1} parent=1 // loop_body
      %s19 = ssub.s32 %s14, 1
      %s20 = ssub.s32 %s14, 2
      %s21 = sadd.s32 %s14, 1
      %s22 = ssub.s32 %s14, %s21
      %p23 = scmp.eq.s32.totalorder %s22, 0
      %s25 = sadd.s32 %s24, 1
      %s26 = scalar_select %p23, %s24, %s25
      %p29 = pneg %p23
      %p30 = scmp.eq.s32.totalorder %s14, 1
      %p31 = por %p29, %p30
      %p32 = scmp.ne.s32.totalorder %s24, %s27
      %p33 = scmp.eq.s32.totalorder %s14, 0
      %p34 = por %p32, %p33
      %p35 = scmp.ne.s32.totalorder %s24, %s27
      %p36 = scmp.eq.s32.totalorder %s19, 1
      %p37 = por %p35, %p36
      %p38 = scmp.ne.s32.totalorder %s27, %s28
      %p39 = scmp.eq.s32.totalorder %s19, 0
      %p40 = por %p38, %p39
      %p41 = scmp.ne.s32.totalorder %s27, %s28
      %p42 = scmp.eq.s32.totalorder %s20, 1
      %p43 = por %p41, %p42
      %p45 = scmp.ne.s32.totalorder %s28, %s44
      %p46 = scmp.eq.s32.totalorder %s20, 0
      %p47 = por %p45, %p46
      %s49 = sadd.s32 %s48, 1
      %p52 = scmp.eq.s32.totalorder %s14, 1
      %p53 = scmp.ne.s32.totalorder %s48, %s50
      %p54 = scmp.eq.s32.totalorder %s14, 0
      %p55 = por %p53, %p54
      %p56 = scmp.ne.s32.totalorder %s48, %s50
      %p57 = scmp.eq.s32.totalorder %s19, 1
      %p58 = por %p56, %p57
      %p59 = scmp.ne.s32.totalorder %s50, %s51
      %p60 = scmp.eq.s32.totalorder %s19, 0
      %p61 = por %p59, %p60
      %p62 = scmp.ne.s32.totalorder %s50, %s51
      %p63 = scmp.eq.s32.totalorder %s20, 1
      %p64 = por %p62, %p63
      %p66 = scmp.ne.s32.totalorder %s51, %s65
      %p67 = scmp.eq.s32.totalorder %s20, 0
      %p68 = por %p66, %p67
      %s70 = sadd.s32 %s69, 1
      %p73 = scmp.eq.s32.totalorder %s14, 1
      %p74 = scmp.ne.s32.totalorder %s69, %s71
      %p75 = scmp.eq.s32.totalorder %s14, 0
      %p76 = por %p74, %p75
      %p77 = scmp.ne.s32.totalorder %s69, %s71
      %p78 = scmp.eq.s32.totalorder %s19, 1
      %p79 = por %p77, %p78
      %p80 = scmp.ne.s32.totalorder %s71, %s72
      %p81 = scmp.eq.s32.totalorder %s19, 0
      %p82 = por %p80, %p81
      %p83 = scmp.ne.s32.totalorder %s71, %s72
      %p84 = scmp.eq.s32.totalorder %s20, 1
      %p85 = por %p83, %p84
      %p87 = scmp.ne.s32.totalorder %s72, %s86
      %p88 = scmp.eq.s32.totalorder %s20, 0
      %p89 = por %p87, %p88
      %s91 = sadd.s32 %s90, 1
      %p94 = scmp.eq.s32.totalorder %s14, 1
      %p95 = scmp.ne.s32.totalorder %s90, %s92
      %p96 = scmp.eq.s32.totalorder %s14, 0
      %p97 = por %p95, %p96
      %p98 = scmp.ne.s32.totalorder %s90, %s92
      %p99 = scmp.eq.s32.totalorder %s19, 1
      %p100 = por %p98, %p99
      %p101 = scmp.ne.s32.totalorder %s92, %s93
      %p102 = scmp.eq.s32.totalorder %s19, 0
      %p103 = por %p101, %p102
      %p104 = scmp.ne.s32.totalorder %s92, %s93
      %p105 = scmp.eq.s32.totalorder %s20, 1
      %p106 = por %p104, %p105
      %p108 = scmp.ne.s32.totalorder %s93, %s107
      %p109 = scmp.eq.s32.totalorder %s20, 0
      %p110 = por %p108, %p109
      %s112 = sadd.s32 %s111, 1
      %p115 = scmp.eq.s32.totalorder %s14, 1
      %p116 = scmp.ne.s32.totalorder %s111, %s113
      %p117 = scmp.eq.s32.totalorder %s14, 0
      %p118 = por %p116, %p117
      %p119 = scmp.ne.s32.totalorder %s111, %s113
      %p120 = scmp.eq.s32.totalorder %s19, 1
      %p121 = por %p119, %p120
      %p122 = scmp.ne.s32.totalorder %s113, %s114
      %p123 = scmp.eq.s32.totalorder %s19, 0
      %p124 = por %p122, %p123
      %p125 = scmp.ne.s32.totalorder %s113, %s114
      %p126 = scmp.eq.s32.totalorder %s20, 1
      %p127 = por %p125, %p126
      %p129 = scmp.ne.s32.totalorder %s114, %s128
      %p130 = scmp.eq.s32.totalorder %s20, 0
      %p131 = por %p129, %p130
      %s132 = ssub.s32 %s14, %s21
      %p133 = scmp.eq.s32.totalorder %s132, 0
      %s135 = sadd.s32 %s134, 1
      %s136 = scalar_select %p133, %s134, %s135
      %p139 = pneg %p133
      %p140 = scmp.eq.s32.totalorder %s14, 1
      %p141 = por %p139, %p140
      %p142 = scmp.ne.s32.totalorder %s134, %s137
      %p143 = scmp.eq.s32.totalorder %s14, 0
      %p144 = por %p142, %p143
      %p145 = scmp.ne.s32.totalorder %s134, %s137
      %p146 = scmp.eq.s32.totalorder %s19, 1
      %p147 = por %p145, %p146
      %p148 = scmp.ne.s32.totalorder %s137, %s138
      %p149 = scmp.eq.s32.totalorder %s19, 0
      %p150 = por %p148, %p149
      %p151 = scmp.ne.s32.totalorder %s137, %s138
      %p152 = scmp.eq.s32.totalorder %s20, 1
      %p153 = por %p151, %p152
      %p155 = scmp.ne.s32.totalorder %s138, %s154
      %p156 = scmp.eq.s32.totalorder %s20, 0
      %p157 = por %p155, %p156
      %p158 = scmp.le.s32.totalorder 1, %s14
      %p159 = scmp.lt.s32.totalorder %s14, 3
      %p160 = pnand %p158, %p159
      %p161 = pneg %p160
      // Predicated region
      $region9: #{tpu_custom_call.1} parent=5 // pred_check
        _
      $region10: #{tpu_custom_call.1} parent=5 // pred_check_branch
        %163 = sbr.rel (%p160) target = $region12
      $region11: #{tpu_custom_call.1} parent=5 // pred_region
        %s164 = ssub.s32 %s14, 1
        // Predicated region
        $region13: #{tpu_custom_call.1} parent=11 // pred_check
          %p165 = pneg %p61
        $region14: #{tpu_custom_call.1} parent=11 // pred_check_branch
          %167 = sbr.rel (%p165) target = $region16
        $region15: #{tpu_custom_call.1} parent=11 // pred_region
          _
        $region16: #{tpu_custom_call.1} parent=11 // pred_fallthru
          _
        // Predicated region
        $region17: #{tpu_custom_call.1} parent=11 // pred_check
          %p168 = pneg %p82
        $region18: #{tpu_custom_call.1} parent=11 // pred_check_branch
          %170 = sbr.rel (%p168) target = $region20
        $region19: #{tpu_custom_call.1} parent=11 // pred_region
          _
        $region20: #{tpu_custom_call.1} parent=11 // pred_fallthru
          _
        // Predicated region
        $region21: #{tpu_custom_call.1} parent=11 // pred_check
          %p171 = pneg %p103
        $region22: #{tpu_custom_call.1} parent=11 // pred_check_branch
          %173 = sbr.rel (%p171) target = $region24
        $region23: #{tpu_custom_call.1} parent=11 // pred_region
          _
        $region24: #{tpu_custom_call.1} parent=11 // pred_fallthru
          _
        // Predicated region
        $region25: #{tpu_custom_call.1} parent=11 // pred_check
          %p174 = pneg %p124
        $region26: #{tpu_custom_call.1} parent=11 // pred_check_branch
          %176 = sbr.rel (%p174) target = $region28
        $region27: #{tpu_custom_call.1} parent=11 // pred_region
          _
        $region28: #{tpu_custom_call.1} parent=11 // pred_fallthru
          _
      $region12: #{tpu_custom_call.1} parent=5 // pred_fallthru
        _
      %p177 = scmp.lt.s32.totalorder %s14, 2
      // Predicated region
      $region29: #{tpu_custom_call.1} parent=5 // pred_check
        %p178 = pneg %p177
      $region30: #{tpu_custom_call.1} parent=5 // pred_check_branch
        %180 = sbr.rel (%p178) target = $region32
      $region31: #{tpu_custom_call.1} parent=5 // pred_region
        // Predicated region
        $region33: #{tpu_custom_call.1} parent=31 // pred_check
          %p181 = pneg %p34
        $region34: #{tpu_custom_call.1} parent=31 // pred_check_branch
          %183 = sbr.rel (%p181) target = $region36
        $region35: #{tpu_custom_call.1} parent=31 // pred_region
          %p184 = scmp.lt.s32.totalorder %s14, 1
          %s185 = scalar_select %p184, %s14, 1
          %s186 = smul.addr %s185, 4
          %s187 = smul.addr %s186, 8
          %s188 = scalar_lea.vmem %s0, %s187
        $region36: #{tpu_custom_call.1} parent=31 // pred_fallthru
          _
      $region32: #{tpu_custom_call.1} parent=5 // pred_fallthru
        _
      %p189 = scmp.le.s32.totalorder 1, %s14
      %p190 = scmp.lt.s32.totalorder %s14, 3
      %p191 = pnand %p189, %p190
      %p192 = pneg %p191
      // Predicated region
      $region37: #{tpu_custom_call.1} parent=5 // pred_check
        _
      $region38: #{tpu_custom_call.1} parent=5 // pred_check_branch
        %194 = sbr.rel (%p191) target = $region40
      $region39: #{tpu_custom_call.1} parent=5 // pred_region
        %s195 = ssub.s32 %s14, 1
        %p196 = scmp.lt.s32.totalorder %s19, 1
        %s197 = scalar_select %p196, %s19, 1
        %s198 = smul.addr %s197, 4
        %s199 = smul.addr %s198, 8
        %s200 = scalar_lea.vmem %s0, %s199
        %p201 = pneg %p40
        %p202 = pneg %p37
        %p203 = pneg %p61
        %p204 = pneg %p58
        %p205 = pneg %p82
        %p206 = pneg %p79
        %p207 = pneg %p103
        %p208 = pneg %p100
        %p209 = pneg %p124
        %p210 = pneg %p121
        %p211 = pneg %p150
        %p212 = pneg %p147
        %s213 = sand.u32 %s137, 1
        %s214 = scalar_lea.sflag [#allocation3], %s213
        %s215 = sand.u32 %s137, 1
        %s216 = smul.addr %s215, 32
        %s217 = scalar_lea.vmem [#allocation2], %s216
        %p218 = scmp.lt.s32.totalorder %s19, 1
        %s219 = scalar_select %p218, %s19, 1
        %s220 = smul.addr %s219, 4
        %s221 = smul.addr %s220, 8
        %s222 = scalar_lea.vmem %s0, %s221
        %v223 = vld [vmem:[%s222] sm:$0xff]
        %v224 = vld [vmem:[%s222 + $0x8] sm:$0xff]
        %v225 = vld [vmem:[%s222 + $0x10] sm:$0xff]
        %v226 = vld [vmem:[%s222 + $0x18] sm:$0xff]
        %v227 = vld [vmem:[%s1] sm:$0xff]
        %228 = vrot.lane.b32.xlu0 %v223, 73
        %v229 = vpop.permute.xlu0 %228
        %230 = vrot.lane.b32.xlu0 %v224, 73
        %v231 = vpop.permute.xlu0 %230
        %232 = vrot.lane.b32.xlu0 %v225, 73
        %v233 = vpop.permute.xlu0 %232
        %234 = vrot.lane.b32.xlu0 %v226, 73
        %v235 = vpop.permute.xlu0 %234
        %v236 = vlaneseq
        %v237 = vand.u32 %v236, 127
        %vm238 = vcmp.lt.s32.totalorder %v237, 73
        %v239 = vsel %vm238, %v233, %v235
        %v240 = vsel %vm238, %v231, %v233
        %v241 = vsel %vm238, %v229, %v231
        %v242 = vsel %vm238, %v235, %v229
        %v243 = vld [vmem:[%s4] ss:$8 sm:$0xf]
        %v245 = vlaneseq
        %v246 = vshrl.u32 %v245, 7
        %v247 = vsub.s32 0, %v246
        %v248 = vrot.slane %v243, %v247
        %v249 = vlaneseq
        %v250 = vshrl.u32 %v249, 7
        %v251 = vsub.s32 1, %v250
        %v252 = vrot.slane %v243, %v251
        %v253 = vlaneseq
        %v254 = vshrl.u32 %v253, 7
        %v255 = vsub.s32 2, %v254
        %v256 = vrot.slane %v243, %v255
        %v257 = vlaneseq
        %v258 = vshrl.u32 %v257, 7
        %v259 = vsub.s32 3, %v258
        %v260 = vrot.slane %v243, %v259
        %v265 = vmul.f32 %v242, %v248
        %v266 = vmul.f32 %v241, %v252
        %v267 = vmul.f32 %v240, %v256
        %v268 = vmul.f32 %v239, %v260
        %s269 = scalar_lea.vmem %s1, 8
        %v270 = vld [vmem:[%s269] sm:$0xff]
        %271 = vrot.lane.b32.xlu0 %v223, 72
        %v272 = vpop.permute.xlu0 %271
        %273 = vrot.lane.b32.xlu0 %v224, 72
        %v274 = vpop.permute.xlu0 %273
        %275 = vrot.lane.b32.xlu0 %v225, 72
        %v276 = vpop.permute.xlu0 %275
        %277 = vrot.lane.b32.xlu0 %v226, 72
        %v278 = vpop.permute.xlu0 %277
        %vm279 = vcmp.lt.s32.totalorder %v237, 72
        %v280 = vsel %vm279, %v276, %v278
        %v281 = vsel %vm279, %v274, %v276
        %v282 = vsel %vm279, %v272, %v274
        %v283 = vsel %vm279, %v278, %v272
        %s284 = scalar_lea.vmem %s4, 1
        %v285 = vld [vmem:[%s284] ss:$8 sm:$0xf]
        %v287 = vlaneseq
        %v288 = vshrl.u32 %v287, 7
        %v289 = vsub.s32 0, %v288
        %v290 = vrot.slane %v285, %v289
        %v291 = vlaneseq
        %v292 = vshrl.u32 %v291, 7
        %v293 = vsub.s32 1, %v292
        %v294 = vrot.slane %v285, %v293
        %v295 = vlaneseq
        %v296 = vshrl.u32 %v295, 7
        %v297 = vsub.s32 2, %v296
        %v298 = vrot.slane %v285, %v297
        %v299 = vlaneseq
        %v300 = vshrl.u32 %v299, 7
        %v301 = vsub.s32 3, %v300
        %v302 = vrot.slane %v285, %v301
        %v307 = vmul.f32 %v283, %v290
        %v308 = vmul.f32 %v282, %v294
        %v309 = vmul.f32 %v281, %v298
        %v310 = vmul.f32 %v280, %v302
        %vm311 = vcmask 64512
        %v313 = vsel %vm311, %v270, 0
        %315 = vmatprep.subr.mxu0 %v308
        %316 = vmatpush1.msra.mxu0 %v307
        %317 = vmatprep.subr.mxu0 0.0
        %318 = vmatpush1.msra.mxu0 0.0
        %319 = vmatprep.subr.mxu0 0.0
        %320 = vmatpush1.msra.mxu0 0.0
        %321 = vmatprep.subr.mxu0 0.0
        %322 = vmatpush1.msra.mxu0 0.0
        %323 = vmatprep.subr.mxu0 0.0
        %324 = vmatpush1.msra.mxu0 0.0
        %325 = vmatprep.subr.mxu0 0.0
        %326 = vmatpush1.msra.mxu0 0.0
        %327 = vmatprep.subr.mxu0 0.0
        %328 = vmatpush1.msra.mxu0 0.0
        %329 = vmatprep.subr.mxu0 0.0
        %330 = vmatpush1.msra.mxu0 0.0
        %331 = vmatprep.subr.mxu0 0.0
        %332 = vmatpush1.msra.mxu0 0.0
        %333 = vmatprep.subr.mxu0 0.0
        %334 = vmatpush1.msra.mxu0 0.0
        %335 = vmatprep.subr.mxu0 0.0
        %336 = vmatpush1.msra.mxu0 0.0
        %337 = vmatprep.subr.mxu0 0.0
        %338 = vmatpush1.msra.mxu0 0.0
        %339 = vmatprep.subr.mxu0 0.0
        %340 = vmatpush1.msra.mxu0 0.0
        %341 = vmatprep.subr.mxu0 0.0
        %342 = vmatpush1.msra.mxu0 0.0
        %343 = vmatprep.subr.mxu0 0.0
        %344 = vmatpush1.msra.mxu0 0.0
        %345 = vmatprep.subr.mxu0 0.0
        %346 = vmatpush1.msra.mxu0 0.0
        %347 = vmatprep.subr.mxu0 0.0
        %348 = vmatpush1.msra.mxu0 0.0
        %349 = vmatprep.subr.mxu0 0.0
        %350 = vmatpush1.msra.mxu0 0.0
        %351 = vmatprep.subr.mxu0 0.0
        %352 = vmatpush1.msra.mxu0 0.0
        %353 = vmatprep.subr.mxu0 0.0
        %354 = vmatpush1.msra.mxu0 0.0
        %355 = vmatprep.subr.mxu0 0.0
        %356 = vmatpush1.msra.mxu0 0.0
        %357 = vmatprep.subr.mxu0 0.0
        %358 = vmatpush1.msra.mxu0 0.0
        %359 = vmatprep.subr.mxu0 0.0
        %360 = vmatpush1.msra.mxu0 0.0
        %361 = vmatprep.subr.mxu0 0.0
        %362 = vmatpush1.msra.mxu0 0.0
        %363 = vmatprep.subr.mxu0 0.0
        %364 = vmatpush1.msra.mxu0 0.0
        %365 = vmatprep.subr.mxu0 0.0
        %366 = vmatpush1.msra.mxu0 0.0
        %367 = vmatprep.subr.mxu0 0.0
        %368 = vmatpush1.msra.mxu0 0.0
        %369 = vmatprep.subr.mxu0 0.0
        %370 = vmatpush1.msra.mxu0 0.0
        %371 = vmatprep.subr.mxu0 0.0
        %372 = vmatpush1.msra.mxu0 0.0
        %373 = vmatprep.subr.mxu0 0.0
        %374 = vmatpush1.msra.mxu0 0.0
        %375 = vmatprep.subr.mxu0 0.0
        %376 = vmatpush1.msra.mxu0 0.0
        %377 = vmatprep.subr.mxu0 0.0
        %378 = vmatpush1.msra.mxu0 0.0
        %379 = vmatprep.mubr.f32.mxu0 0.0
        %380 = vmatmul.mubr.f32.gmra.mrb[0].mxu0 %v313
        %v381 = vpop.f32.mrb[0].mxu0
        %v382 = vadd.f32 0.0, %v381
        %v383 = vpop.f32.mrb[0].mxu0
        %v384 = vadd.f32 0.0, %v383
        %385 = vdwg.mxu0
        %386 = vmatprep.subr.mxu0 %v310
        %387 = vmatpush1.msra.mxu0 %v309
        %388 = vmatprep.subr.mxu0 0.0
        %389 = vmatpush1.msra.mxu0 0.0
        %390 = vmatprep.subr.mxu0 0.0
        %391 = vmatpush1.msra.mxu0 0.0
        %392 = vmatprep.subr.mxu0 0.0
        %393 = vmatpush1.msra.mxu0 0.0
        %394 = vmatprep.subr.mxu0 0.0
        %395 = vmatpush1.msra.mxu0 0.0
        %396 = vmatprep.subr.mxu0 0.0
        %397 = vmatpush1.msra.mxu0 0.0
        %398 = vmatprep.subr.mxu0 0.0
        %399 = vmatpush1.msra.mxu0 0.0
        %400 = vmatprep.subr.mxu0 0.0
        %401 = vmatpush1.msra.mxu0 0.0
        %402 = vmatprep.subr.mxu0 0.0
        %403 = vmatpush1.msra.mxu0 0.0
        %404 = vmatprep.subr.mxu0 0.0
        %405 = vmatpush1.msra.mxu0 0.0
        %406 = vmatprep.subr.mxu0 0.0
        %407 = vmatpush1.msra.mxu0 0.0
        %408 = vmatprep.subr.mxu0 0.0
        %409 = vmatpush1.msra.mxu0 0.0
        %410 = vmatprep.subr.mxu0 0.0
        %411 = vmatpush1.msra.mxu0 0.0
        %412 = vmatprep.subr.mxu0 0.0
        %413 = vmatpush1.msra.mxu0 0.0
        %414 = vmatprep.subr.mxu0 0.0
        %415 = vmatpush1.msra.mxu0 0.0
        %416 = vmatprep.subr.mxu0 0.0
        %417 = vmatpush1.msra.mxu0 0.0
        %418 = vmatprep.subr.mxu0 0.0
        %419 = vmatpush1.msra.mxu0 0.0
        %420 = vmatprep.subr.mxu0 0.0
        %421 = vmatpush1.msra.mxu0 0.0
        %422 = vmatprep.subr.mxu0 0.0
        %423 = vmatpush1.msra.mxu0 0.0
        %424 = vmatprep.subr.mxu0 0.0
        %425 = vmatpush1.msra.mxu0 0.0
        %426 = vmatprep.subr.mxu0 0.0
        %427 = vmatpush1.msra.mxu0 0.0
        %428 = vmatprep.subr.mxu0 0.0
        %429 = vmatpush1.msra.mxu0 0.0
        %430 = vmatprep.subr.mxu0 0.0
        %431 = vmatpush1.msra.mxu0 0.0
        %432 = vmatprep.subr.mxu0 0.0
        %433 = vmatpush1.msra.mxu0 0.0
        %434 = vmatprep.subr.mxu0 0.0
        %435 = vmatpush1.msra.mxu0 0.0
        %436 = vmatprep.subr.mxu0 0.0
        %437 = vmatpush1.msra.mxu0 0.0
        %438 = vmatprep.subr.mxu0 0.0
        %439 = vmatpush1.msra.mxu0 0.0
        %440 = vmatprep.subr.mxu0 0.0
        %441 = vmatpush1.msra.mxu0 0.0
        %442 = vmatprep.subr.mxu0 0.0
        %443 = vmatpush1.msra.mxu0 0.0
        %444 = vmatprep.subr.mxu0 0.0
        %445 = vmatpush1.msra.mxu0 0.0
        %446 = vmatprep.subr.mxu0 0.0
        %447 = vmatpush1.msra.mxu0 0.0
        %448 = vmatprep.subr.mxu0 0.0
        %449 = vmatpush1.msra.mxu0 0.0
        %450 = vmatprep.mubr.f32.mxu0 0.0
        %451 = vmatmul.mubr.f32.gmra.mrb[0].mxu0 %v313
        %v452 = vpop.f32.mrb[0].mxu0
        %v453 = vadd.f32 0.0, %v452
        %v454 = vpop.f32.mrb[0].mxu0
        %v455 = vadd.f32 0.0, %v454
        %456 = vdwg.mxu0
        %v458 = vsel %vm311, %v227, 0
        %460 = vmatprep.subr.mxu0 %v266
        %461 = vmatpush1.msra.mxu0 %v265
        %462 = vmatprep.subr.mxu0 0.0
        %463 = vmatpush1.msra.mxu0 0.0
        %464 = vmatprep.subr.mxu0 0.0
        %465 = vmatpush1.msra.mxu0 0.0
        %466 = vmatprep.subr.mxu0 0.0
        %467 = vmatpush1.msra.mxu0 0.0
        %468 = vmatprep.subr.mxu0 0.0
        %469 = vmatpush1.msra.mxu0 0.0
        %470 = vmatprep.subr.mxu0 0.0
        %471 = vmatpush1.msra.mxu0 0.0
        %472 = vmatprep.subr.mxu0 0.0
        %473 = vmatpush1.msra.mxu0 0.0
        %474 = vmatprep.subr.mxu0 0.0
        %475 = vmatpush1.msra.mxu0 0.0
        %476 = vmatprep.subr.mxu0 0.0
        %477 = vmatpush1.msra.mxu0 0.0
        %478 = vmatprep.subr.mxu0 0.0
        %479 = vmatpush1.msra.mxu0 0.0
        %480 = vmatprep.subr.mxu0 0.0
        %481 = vmatpush1.msra.mxu0 0.0
        %482 = vmatprep.subr.mxu0 0.0
        %483 = vmatpush1.msra.mxu0 0.0
        %484 = vmatprep.subr.mxu0 0.0
        %485 = vmatpush1.msra.mxu0 0.0
        %486 = vmatprep.subr.mxu0 0.0
        %487 = vmatpush1.msra.mxu0 0.0
        %488 = vmatprep.subr.mxu0 0.0
        %489 = vmatpush1.msra.mxu0 0.0
        %490 = vmatprep.subr.mxu0 0.0
        %491 = vmatpush1.msra.mxu0 0.0
        %492 = vmatprep.subr.mxu0 0.0
        %493 = vmatpush1.msra.mxu0 0.0
        %494 = vmatprep.subr.mxu0 0.0
        %495 = vmatpush1.msra.mxu0 0.0
        %496 = vmatprep.subr.mxu0 0.0
        %497 = vmatpush1.msra.mxu0 0.0
        %498 = vmatprep.subr.mxu0 0.0
        %499 = vmatpush1.msra.mxu0 0.0
        %500 = vmatprep.subr.mxu0 0.0
        %501 = vmatpush1.msra.mxu0 0.0
        %502 = vmatprep.subr.mxu0 0.0
        %503 = vmatpush1.msra.mxu0 0.0
        %504 = vmatprep.subr.mxu0 0.0
        %505 = vmatpush1.msra.mxu0 0.0
        %506 = vmatprep.subr.mxu0 0.0
        %507 = vmatpush1.msra.mxu0 0.0
        %508 = vmatprep.subr.mxu0 0.0
        %509 = vmatpush1.msra.mxu0 0.0
        %510 = vmatprep.subr.mxu0 0.0
        %511 = vmatpush1.msra.mxu0 0.0
        %512 = vmatprep.subr.mxu0 0.0
        %513 = vmatpush1.msra.mxu0 0.0
        %514 = vmatprep.subr.mxu0 0.0
        %515 = vmatpush1.msra.mxu0 0.0
        %516 = vmatprep.subr.mxu0 0.0
        %517 = vmatpush1.msra.mxu0 0.0
        %518 = vmatprep.subr.mxu0 0.0
        %519 = vmatpush1.msra.mxu0 0.0
        %520 = vmatprep.subr.mxu0 0.0
        %521 = vmatpush1.msra.mxu0 0.0
        %522 = vmatprep.subr.mxu0 0.0
        %523 = vmatpush1.msra.mxu0 0.0
        %524 = vmatprep.mubr.f32.mxu0 0.0
        %525 = vmatmul.mubr.f32.gmra.mrb[0].mxu0 %v458
        %v526 = vpop.f32.mrb[0].mxu0
        %v527 = vadd.f32 %v382, %v526
        %v528 = vpop.f32.mrb[0].mxu0
        %v529 = vadd.f32 %v384, %v528
        %530 = vdwg.mxu0
        %531 = vmatprep.subr.mxu0 %v268
        %532 = vmatpush1.msra.mxu0 %v267
        %533 = vmatprep.subr.mxu0 0.0
        %534 = vmatpush1.msra.mxu0 0.0
        %535 = vmatprep.subr.mxu0 0.0
        %536 = vmatpush1.msra.mxu0 0.0
        %537 = vmatprep.subr.mxu0 0.0
        %538 = vmatpush1.msra.mxu0 0.0
        %539 = vmatprep.subr.mxu0 0.0
        %540 = vmatpush1.msra.mxu0 0.0
        %541 = vmatprep.subr.mxu0 0.0
        %542 = vmatpush1.msra.mxu0 0.0
        %543 = vmatprep.subr.mxu0 0.0
        %544 = vmatpush1.msra.mxu0 0.0
        %545 = vmatprep.subr.mxu0 0.0
        %546 = vmatpush1.msra.mxu0 0.0
        %547 = vmatprep.subr.mxu0 0.0
        %548 = vmatpush1.msra.mxu0 0.0
        %549 = vmatprep.subr.mxu0 0.0
        %550 = vmatpush1.msra.mxu0 0.0
        %551 = vmatprep.subr.mxu0 0.0
        %552 = vmatpush1.msra.mxu0 0.0
        %553 = vmatprep.subr.mxu0 0.0
        %554 = vmatpush1.msra.mxu0 0.0
        %555 = vmatprep.subr.mxu0 0.0
        %556 = vmatpush1.msra.mxu0 0.0
        %557 = vmatprep.subr.mxu0 0.0
        %558 = vmatpush1.msra.mxu0 0.0
        %559 = vmatprep.subr.mxu0 0.0
        %560 = vmatpush1.msra.mxu0 0.0
        %561 = vmatprep.subr.mxu0 0.0
        %562 = vmatpush1.msra.mxu0 0.0
        %563 = vmatprep.subr.mxu0 0.0
        %564 = vmatpush1.msra.mxu0 0.0
        %565 = vmatprep.subr.mxu0 0.0
        %566 = vmatpush1.msra.mxu0 0.0
        %567 = vmatprep.subr.mxu0 0.0
        %568 = vmatpush1.msra.mxu0 0.0
        %569 = vmatprep.subr.mxu0 0.0
        %570 = vmatpush1.msra.mxu0 0.0
        %571 = vmatprep.subr.mxu0 0.0
        %572 = vmatpush1.msra.mxu0 0.0
        %573 = vmatprep.subr.mxu0 0.0
        %574 = vmatpush1.msra.mxu0 0.0
        %575 = vmatprep.subr.mxu0 0.0
        %576 = vmatpush1.msra.mxu0 0.0
        %577 = vmatprep.subr.mxu0 0.0
        %578 = vmatpush1.msra.mxu0 0.0
        %579 = vmatprep.subr.mxu0 0.0
        %580 = vmatpush1.msra.mxu0 0.0
        %581 = vmatprep.subr.mxu0 0.0
        %582 = vmatpush1.msra.mxu0 0.0
        %583 = vmatprep.subr.mxu0 0.0
        %584 = vmatpush1.msra.mxu0 0.0
        %585 = vmatprep.subr.mxu0 0.0
        %586 = vmatpush1.msra.mxu0 0.0
        %587 = vmatprep.subr.mxu0 0.0
        %588 = vmatpush1.msra.mxu0 0.0
        %589 = vmatprep.subr.mxu0 0.0
        %590 = vmatpush1.msra.mxu0 0.0
        %591 = vmatprep.subr.mxu0 0.0
        %592 = vmatpush1.msra.mxu0 0.0
        %593 = vmatprep.subr.mxu0 0.0
        %594 = vmatpush1.msra.mxu0 0.0
        %595 = vmatprep.mubr.f32.mxu0 0.0
        %596 = vmatmul.mubr.f32.gmra.mrb[0].mxu0 %v458
        %v597 = vpop.f32.mrb[0].mxu0
        %v598 = vadd.f32 %v453, %v597
        %v599 = vpop.f32.mrb[0].mxu0
        %v600 = vadd.f32 %v455, %v599
        %601 = vdwg.mxu0
        %s602 = scalar_lea.vmem %s1, 16
        %v603 = vld [vmem:[%s602] sm:$0xff]
        %604 = vrot.lane.b32.xlu0 %v223, 71
        %v605 = vpop.permute.xlu0 %604
        %606 = vrot.lane.b32.xlu0 %v224, 71
        %v607 = vpop.permute.xlu0 %606
        %608 = vrot.lane.b32.xlu0 %v225, 71
        %v609 = vpop.permute.xlu0 %608
        %610 = vrot.lane.b32.xlu0 %v226, 71
        %v611 = vpop.permute.xlu0 %610
        %vm612 = vcmp.lt.s32.totalorder %v237, 71
        %v613 = vsel %vm612, %v609, %v611
        %v614 = vsel %vm612, %v607, %v609
        %v615 = vsel %vm612, %v605, %v607
        %v616 = vsel %vm612, %v611, %v605
        %s617 = scalar_lea.vmem %s4, 2
        %v618 = vld [vmem:[%s617] ss:$8 sm:$0xf]
        %v620 = vlaneseq
        %v621 = vshrl.u32 %v620, 7
        %v622 = vsub.s32 0, %v621
        %v623 = vrot.slane %v618, %v622
        %v624 = vlaneseq
        %v625 = vshrl.u32 %v624, 7
        %v626 = vsub.s32 1, %v625
        %v627 = vrot.slane %v618, %v626
        %v628 = vlaneseq
        %v629 = vshrl.u32 %v628, 7
        %v630 = vsub.s32 2, %v629
        %v631 = vrot.slane %v618, %v630
        %v632 = vlaneseq
        %v633 = vshrl.u32 %v632, 7
        %v634 = vsub.s32 3, %v633
        %v635 = vrot.slane %v618, %v634
        %v640 = vmul.f32 %v616, %v623
        %v641 = vmul.f32 %v615, %v627
        %v642 = vmul.f32 %v614, %v631
        %v643 = vmul.f32 %v613, %v635
        %v645 = vsel %vm311, %v603, 0
        %647 = vmatprep.subr.mxu0 %v641
        %648 = vmatpush1.msra.mxu0 %v640
        %649 = vmatprep.subr.mxu0 0.0
        %650 = vmatpush1.msra.mxu0 0.0
        %651 = vmatprep.subr.mxu0 0.0
        %652 = vmatpush1.msra.mxu0 0.0
        %653 = vmatprep.subr.mxu0 0.0
        %654 = vmatpush1.msra.mxu0 0.0
        %655 = vmatprep.subr.mxu0 0.0
        %656 = vmatpush1.msra.mxu0 0.0
        %657 = vmatprep.subr.mxu0 0.0
        %658 = vmatpush1.msra.mxu0 0.0
        %659 = vmatprep.subr.mxu0 0.0
        %660 = vmatpush1.msra.mxu0 0.0
        %661 = vmatprep.subr.mxu0 0.0
        %662 = vmatpush1.msra.mxu0 0.0
        %663 = vmatprep.subr.mxu0 0.0
        %664 = vmatpush1.msra.mxu0 0.0
        %665 = vmatprep.subr.mxu0 0.0
        %666 = vmatpush1.msra.mxu0 0.0
        %667 = vmatprep.subr.mxu0 0.0
        %668 = vmatpush1.msra.mxu0 0.0
        %669 = vmatprep.subr.mxu0 0.0
        %670 = vmatpush1.msra.mxu0 0.0
        %671 = vmatprep.subr.mxu0 0.0
        %672 = vmatpush1.msra.mxu0 0.0
        %673 = vmatprep.subr.mxu0 0.0
        %674 = vmatpush1.msra.mxu0 0.0
        %675 = vmatprep.subr.mxu0 0.0
        %676 = vmatpush1.msra.mxu0 0.0
        %677 = vmatprep.subr.mxu0 0.0
        %678 = vmatpush1.msra.mxu0 0.0
        %679 = vmatprep.subr.mxu0 0.0
        %680 = vmatpush1.msra.mxu0 0.0
        %681 = vmatprep.subr.mxu0 0.0
        %682 = vmatpush1.msra.mxu0 0.0
        %683 = vmatprep.subr.mxu0 0.0
        %684 = vmatpush1.msra.mxu0 0.0
        %685 = vmatprep.subr.mxu0 0.0
        %686 = vmatpush1.msra.mxu0 0.0
        %687 = vmatprep.subr.mxu0 0.0
        %688 = vmatpush1.msra.mxu0 0.0
        %689 = vmatprep.subr.mxu0 0.0
        %690 = vmatpush1.msra.mxu0 0.0
        %691 = vmatprep.subr.mxu0 0.0
        %692 = vmatpush1.msra.mxu0 0.0
        %693 = vmatprep.subr.mxu0 0.0
        %694 = vmatpush1.msra.mxu0 0.0
        %695 = vmatprep.subr.mxu0 0.0
        %696 = vmatpush1.msra.mxu0 0.0
        %697 = vmatprep.subr.mxu0 0.0
        %698 = vmatpush1.msra.mxu0 0.0
        %699 = vmatprep.subr.mxu0 0.0
        %700 = vmatpush1.msra.mxu0 0.0
        %701 = vmatprep.subr.mxu0 0.0
        %702 = vmatpush1.msra.mxu0 0.0
        %703 = vmatprep.subr.mxu0 0.0
        %704 = vmatpush1.msra.mxu0 0.0
        %705 = vmatprep.subr.mxu0 0.0
        %706 = vmatpush1.msra.mxu0 0.0
        %707 = vmatprep.subr.mxu0 0.0
        %708 = vmatpush1.msra.mxu0 0.0
        %709 = vmatprep.subr.mxu0 0.0
        %710 = vmatpush1.msra.mxu0 0.0
        %711 = vmatprep.mubr.f32.mxu0 0.0
        %712 = vmatmul.mubr.f32.gmra.mrb[0].mxu0 %v645
        %v713 = vpop.f32.mrb[0].mxu0
        %v714 = vadd.f32 0.0, %v713
        %v715 = vpop.f32.mrb[0].mxu0
        %v716 = vadd.f32 0.0, %v715
        %717 = vdwg.mxu0
        %718 = vmatprep.subr.mxu0 %v643
        %719 = vmatpush1.msra.mxu0 %v642
        %720 = vmatprep.subr.mxu0 0.0
        %721 = vmatpush1.msra.mxu0 0.0
        %722 = vmatprep.subr.mxu0 0.0
        %723 = vmatpush1.msra.mxu0 0.0
        %724 = vmatprep.subr.mxu0 0.0
        %725 = vmatpush1.msra.mxu0 0.0
        %726 = vmatprep.subr.mxu0 0.0
        %727 = vmatpush1.msra.mxu0 0.0
        %728 = vmatprep.subr.mxu0 0.0
        %729 = vmatpush1.msra.mxu0 0.0
        %730 = vmatprep.subr.mxu0 0.0
        %731 = vmatpush1.msra.mxu0 0.0
        %732 = vmatprep.subr.mxu0 0.0
        %733 = vmatpush1.msra.mxu0 0.0
        %734 = vmatprep.subr.mxu0 0.0
        %735 = vmatpush1.msra.mxu0 0.0
        %736 = vmatprep.subr.mxu0 0.0
        %737 = vmatpush1.msra.mxu0 0.0
        %738 = vmatprep.subr.mxu0 0.0
        %739 = vmatpush1.msra.mxu0 0.0
        %740 = vmatprep.subr.mxu0 0.0
        %741 = vmatpush1.msra.mxu0 0.0
        %742 = vmatprep.subr.mxu0 0.0
        %743 = vmatpush1.msra.mxu0 0.0
        %744 = vmatprep.subr.mxu0 0.0
        %745 = vmatpush1.msra.mxu0 0.0
        %746 = vmatprep.subr.mxu0 0.0
        %747 = vmatpush1.msra.mxu0 0.0
        %748 = vmatprep.subr.mxu0 0.0
        %749 = vmatpush1.msra.mxu0 0.0
        %750 = vmatprep.subr.mxu0 0.0
        %751 = vmatpush1.msra.mxu0 0.0
        %752 = vmatprep.subr.mxu0 0.0
        %753 = vmatpush1.msra.mxu0 0.0
        %754 = vmatprep.subr.mxu0 0.0
        %755 = vmatpush1.msra.mxu0 0.0
        %756 = vmatprep.subr.mxu0 0.0
        %757 = vmatpush1.msra.mxu0 0.0
        %758 = vmatprep.subr.mxu0 0.0
        %759 = vmatpush1.msra.mxu0 0.0
        %760 = vmatprep.subr.mxu0 0.0
        %761 = vmatpush1.msra.mxu0 0.0
        %762 = vmatprep.subr.mxu0 0.0
        %763 = vmatpush1.msra.mxu0 0.0
        %764 = vmatprep.subr.mxu0 0.0
        %765 = vmatpush1.msra.mxu0 0.0
        %766 = vmatprep.subr.mxu0 0.0
        %767 = vmatpush1.msra.mxu0 0.0
        %768 = vmatprep.subr.mxu0 0.0
        %769 = vmatpush1.msra.mxu0 0.0
        %770 = vmatprep.subr.mxu0 0.0
        %771 = vmatpush1.msra.mxu0 0.0
        %772 = vmatprep.subr.mxu0 0.0
        %773 = vmatpush1.msra.mxu0 0.0
        %774 = vmatprep.subr.mxu0 0.0
        %775 = vmatpush1.msra.mxu0 0.0
        %776 = vmatprep.subr.mxu0 0.0
        %777 = vmatpush1.msra.mxu0 0.0
        %778 = vmatprep.subr.mxu0 0.0
        %779 = vmatpush1.msra.mxu0 0.0
        %780 = vmatprep.subr.mxu0 0.0
        %781 = vmatpush1.msra.mxu0 0.0
        %782 = vmatprep.mubr.f32.mxu0 0.0
        %783 = vmatmul.mubr.f32.gmra.mrb[0].mxu0 %v645
        %v784 = vpop.f32.mrb[0].mxu0
        %v785 = vadd.f32 0.0, %v784
        %v786 = vpop.f32.mrb[0].mxu0
        %v787 = vadd.f32 0.0, %v786
        %788 = vdwg.mxu0
        %v789 = vadd.f32 %v527, %v714
        %v790 = vadd.f32 %v529, %v716
        %v791 = vadd.f32 %v598, %v785
        %v792 = vadd.f32 %v600, %v787
        %s793 = scalar_lea.vmem %s1, 24
        %v794 = vld [vmem:[%s793] sm:$0xff]
        %795 = vrot.lane.b32.xlu0 %v223, 65
        %v796 = vpop.permute.xlu0 %795
        %797 = vrot.lane.b32.xlu0 %v224, 65
        %v798 = vpop.permute.xlu0 %797
        %799 = vrot.lane.b32.xlu0 %v225, 65
        %v800 = vpop.permute.xlu0 %799
        %801 = vrot.lane.b32.xlu0 %v226, 65
        %v802 = vpop.permute.xlu0 %801
        %vm803 = vcmp.lt.s32.totalorder %v237, 65
        %v804 = vsel %vm803, %v800, %v802
        %v805 = vsel %vm803, %v798, %v800
        %v806 = vsel %vm803, %v796, %v798
        %v807 = vsel %vm803, %v802, %v796
        %s808 = scalar_lea.vmem %s4, 3
        %v809 = vld [vmem:[%s808] ss:$8 sm:$0xf]
        %v811 = vlaneseq
        %v812 = vshrl.u32 %v811, 7
        %v813 = vsub.s32 0, %v812
        %v814 = vrot.slane %v809, %v813
        %v815 = vlaneseq
        %v816 = vshrl.u32 %v815, 7
        %v817 = vsub.s32 1, %v816
        %v818 = vrot.slane %v809, %v817
        %v819 = vlaneseq
        %v820 = vshrl.u32 %v819, 7
        %v821 = vsub.s32 2, %v820
        %v822 = vrot.slane %v809, %v821
        %v823 = vlaneseq
        %v824 = vshrl.u32 %v823, 7
        %v825 = vsub.s32 3, %v824
        %v826 = vrot.slane %v809, %v825
        %v831 = vmul.f32 %v807, %v814
        %v832 = vmul.f32 %v806, %v818
        %v833 = vmul.f32 %v805, %v822
        %v834 = vmul.f32 %v804, %v826
        %v836 = vsel %vm311, %v794, 0
        %838 = vmatprep.subr.mxu0 %v832
        %839 = vmatpush1.msra.mxu0 %v831
        %840 = vmatprep.subr.mxu0 0.0
        %841 = vmatpush1.msra.mxu0 0.0
        %842 = vmatprep.subr.mxu0 0.0
        %843 = vmatpush1.msra.mxu0 0.0
        %844 = vmatprep.subr.mxu0 0.0
        %845 = vmatpush1.msra.mxu0 0.0
        %846 = vmatprep.subr.mxu0 0.0
        %847 = vmatpush1.msra.mxu0 0.0
        %848 = vmatprep.subr.mxu0 0.0
        %849 = vmatpush1.msra.mxu0 0.0
        %850 = vmatprep.subr.mxu0 0.0
        %851 = vmatpush1.msra.mxu0 0.0
        %852 = vmatprep.subr.mxu0 0.0
        %853 = vmatpush1.msra.mxu0 0.0
        %854 = vmatprep.subr.mxu0 0.0
        %855 = vmatpush1.msra.mxu0 0.0
        %856 = vmatprep.subr.mxu0 0.0
        %857 = vmatpush1.msra.mxu0 0.0
        %858 = vmatprep.subr.mxu0 0.0
        %859 = vmatpush1.msra.mxu0 0.0
        %860 = vmatprep.subr.mxu0 0.0
        %861 = vmatpush1.msra.mxu0 0.0
        %862 = vmatprep.subr.mxu0 0.0
        %863 = vmatpush1.msra.mxu0 0.0
        %864 = vmatprep.subr.mxu0 0.0
        %865 = vmatpush1.msra.mxu0 0.0
        %866 = vmatprep.subr.mxu0 0.0
        %867 = vmatpush1.msra.mxu0 0.0
        %868 = vmatprep.subr.mxu0 0.0
        %869 = vmatpush1.msra.mxu0 0.0
        %870 = vmatprep.subr.mxu0 0.0
        %871 = vmatpush1.msra.mxu0 0.0
        %872 = vmatprep.subr.mxu0 0.0
        %873 = vmatpush1.msra.mxu0 0.0
        %874 = vmatprep.subr.mxu0 0.0
        %875 = vmatpush1.msra.mxu0 0.0
        %876 = vmatprep.subr.mxu0 0.0
        %877 = vmatpush1.msra.mxu0 0.0
        %878 = vmatprep.subr.mxu0 0.0
        %879 = vmatpush1.msra.mxu0 0.0
        %880 = vmatprep.subr.mxu0 0.0
        %881 = vmatpush1.msra.mxu0 0.0
        %882 = vmatprep.subr.mxu0 0.0
        %883 = vmatpush1.msra.mxu0 0.0
        %884 = vmatprep.subr.mxu0 0.0
        %885 = vmatpush1.msra.mxu0 0.0
        %886 = vmatprep.subr.mxu0 0.0
        %887 = vmatpush1.msra.mxu0 0.0
        %888 = vmatprep.subr.mxu0 0.0
        %889 = vmatpush1.msra.mxu0 0.0
        %890 = vmatprep.subr.mxu0 0.0
        %891 = vmatpush1.msra.mxu0 0.0
        %892 = vmatprep.subr.mxu0 0.0
        %893 = vmatpush1.msra.mxu0 0.0
        %894 = vmatprep.subr.mxu0 0.0
        %895 = vmatpush1.msra.mxu0 0.0
        %896 = vmatprep.subr.mxu0 0.0
        %897 = vmatpush1.msra.mxu0 0.0
        %898 = vmatprep.subr.mxu0 0.0
        %899 = vmatpush1.msra.mxu0 0.0
        %900 = vmatprep.subr.mxu0 0.0
        %901 = vmatpush1.msra.mxu0 0.0
        %902 = vmatprep.mubr.f32.mxu0 0.0
        %903 = vmatmul.mubr.f32.gmra.mrb[0].mxu0 %v836
        %v904 = vpop.f32.mrb[0].mxu0
        %v905 = vadd.f32 0.0, %v904
        %v906 = vpop.f32.mrb[0].mxu0
        %v907 = vadd.f32 0.0, %v906
        %908 = vdwg.mxu0
        %909 = vmatprep.subr.mxu0 %v834
        %910 = vmatpush1.msra.mxu0 %v833
        %911 = vmatprep.subr.mxu0 0.0
        %912 = vmatpush1.msra.mxu0 0.0
        %913 = vmatprep.subr.mxu0 0.0
        %914 = vmatpush1.msra.mxu0 0.0
        %915 = vmatprep.subr.mxu0 0.0
        %916 = vmatpush1.msra.mxu0 0.0
        %917 = vmatprep.subr.mxu0 0.0
        %918 = vmatpush1.msra.mxu0 0.0
        %919 = vmatprep.subr.mxu0 0.0
        %920 = vmatpush1.msra.mxu0 0.0
        %921 = vmatprep.subr.mxu0 0.0
        %922 = vmatpush1.msra.mxu0 0.0
        %923 = vmatprep.subr.mxu0 0.0
        %924 = vmatpush1.msra.mxu0 0.0
        %925 = vmatprep.subr.mxu0 0.0
        %926 = vmatpush1.msra.mxu0 0.0
        %927 = vmatprep.subr.mxu0 0.0
        %928 = vmatpush1.msra.mxu0 0.0
        %929 = vmatprep.subr.mxu0 0.0
        %930 = vmatpush1.msra.mxu0 0.0
        %931 = vmatprep.subr.mxu0 0.0
        %932 = vmatpush1.msra.mxu0 0.0
        %933 = vmatprep.subr.mxu0 0.0
        %934 = vmatpush1.msra.mxu0 0.0
        %935 = vmatprep.subr.mxu0 0.0
        %936 = vmatpush1.msra.mxu0 0.0
        %937 = vmatprep.subr.mxu0 0.0
        %938 = vmatpush1.msra.mxu0 0.0
        %939 = vmatprep.subr.mxu0 0.0
        %940 = vmatpush1.msra.mxu0 0.0
        %941 = vmatprep.subr.mxu0 0.0
        %942 = vmatpush1.msra.mxu0 0.0
        %943 = vmatprep.subr.mxu0 0.0
        %944 = vmatpush1.msra.mxu0 0.0
        %945 = vmatprep.subr.mxu0 0.0
        %946 = vmatpush1.msra.mxu0 0.0
        %947 = vmatprep.subr.mxu0 0.0
        %948 = vmatpush1.msra.mxu0 0.0
        %949 = vmatprep.subr.mxu0 0.0
        %950 = vmatpush1.msra.mxu0 0.0
        %951 = vmatprep.subr.mxu0 0.0
        %952 = vmatpush1.msra.mxu0 0.0
        %953 = vmatprep.subr.mxu0 0.0
        %954 = vmatpush1.msra.mxu0 0.0
        %955 = vmatprep.subr.mxu0 0.0
        %956 = vmatpush1.msra.mxu0 0.0
        %957 = vmatprep.subr.mxu0 0.0
        %958 = vmatpush1.msra.mxu0 0.0
        %959 = vmatprep.subr.mxu0 0.0
        %960 = vmatpush1.msra.mxu0 0.0
        %961 = vmatprep.subr.mxu0 0.0
        %962 = vmatpush1.msra.mxu0 0.0
        %963 = vmatprep.subr.mxu0 0.0
        %964 = vmatpush1.msra.mxu0 0.0
        %965 = vmatprep.subr.mxu0 0.0
        %966 = vmatpush1.msra.mxu0 0.0
        %967 = vmatprep.subr.mxu0 0.0
        %968 = vmatpush1.msra.mxu0 0.0
        %969 = vmatprep.subr.mxu0 0.0
        %970 = vmatpush1.msra.mxu0 0.0
        %971 = vmatprep.subr.mxu0 0.0
        %972 = vmatpush1.msra.mxu0 0.0
        %973 = vmatprep.mubr.f32.mxu0 0.0
        %974 = vmatmul.mubr.f32.gmra.mrb[0].mxu0 %v836
        %v975 = vpop.f32.mrb[0].mxu0
        %v976 = vadd.f32 0.0, %v975
        %v977 = vpop.f32.mrb[0].mxu0
        %v978 = vadd.f32 0.0, %v977
        %979 = vdwg.mxu0
        %v980 = vadd.f32 %v789, %v905
        %v981 = vadd.f32 %v790, %v907
        %v982 = vadd.f32 %v791, %v976
        %v983 = vadd.f32 %v792, %v978
        %s984 = scalar_lea.vmem %s1, 32
        %v985 = vld [vmem:[%s984] sm:$0xff]
        %986 = vrot.lane.b32.xlu0 %v223, 64
        %v987 = vpop.permute.xlu0 %986
        %988 = vrot.lane.b32.xlu0 %v224, 64
        %v989 = vpop.permute.xlu0 %988
        %990 = vrot.lane.b32.xlu0 %v225, 64
        %v991 = vpop.permute.xlu0 %990
        %992 = vrot.lane.b32.xlu0 %v226, 64
        %v993 = vpop.permute.xlu0 %992
        %vm994 = vcmp.lt.s32.totalorder %v237, 64
        %v995 = vsel %vm994, %v991, %v993
        %v996 = vsel %vm994, %v989, %v991
        %v997 = vsel %vm994, %v987, %v989
        %v998 = vsel %vm994, %v993, %v987
        %s999 = scalar_lea.vmem %s4, 4
        %v1000 = vld [vmem:[%s999] ss:$8 sm:$0xf]
        %v1002 = vlaneseq
        %v1003 = vshrl.u32 %v1002, 7
        %v1004 = vsub.s32 0, %v1003
        %v1005 = vrot.slane %v1000, %v1004
        %v1006 = vlaneseq
        %v1007 = vshrl.u32 %v1006, 7
        %v1008 = vsub.s32 1, %v1007
        %v1009 = vrot.slane %v1000, %v1008
        %v1010 = vlaneseq
        %v1011 = vshrl.u32 %v1010, 7
        %v1012 = vsub.s32 2, %v1011
        %v1013 = vrot.slane %v1000, %v1012
        %v1014 = vlaneseq
        %v1015 = vshrl.u32 %v1014, 7
        %v1016 = vsub.s32 3, %v1015
        %v1017 = vrot.slane %v1000, %v1016
        %v1022 = vmul.f32 %v998, %v1005
        %v1023 = vmul.f32 %v997, %v1009
        %v1024 = vmul.f32 %v996, %v1013
        %v1025 = vmul.f32 %v995, %v1017
        %v1027 = vsel %vm311, %v985, 0
        %1029 = vmatprep.subr.mxu0 %v1023
        %1030 = vmatpush1.msra.mxu0 %v1022
        %1031 = vmatprep.subr.mxu0 0.0
        %1032 = vmatpush1.msra.mxu0 0.0
        %1033 = vmatprep.subr.mxu0 0.0
        %1034 = vmatpush1.msra.mxu0 0.0
        %1035 = vmatprep.subr.mxu0 0.0
        %1036 = vmatpush1.msra.mxu0 0.0
        %1037 = vmatprep.subr.mxu0 0.0
        %1038 = vmatpush1.msra.mxu0 0.0
        %1039 = vmatprep.subr.mxu0 0.0
        %1040 = vmatpush1.msra.mxu0 0.0
        %1041 = vmatprep.subr.mxu0 0.0
        %1042 = vmatpush1.msra.mxu0 0.0
        %1043 = vmatprep.subr.mxu0 0.0
        %1044 = vmatpush1.msra.mxu0 0.0
        %1045 = vmatprep.subr.mxu0 0.0
        %1046 = vmatpush1.msra.mxu0 0.0
        %1047 = vmatprep.subr.mxu0 0.0
        %1048 = vmatpush1.msra.mxu0 0.0
        %1049 = vmatprep.subr.mxu0 0.0
        %1050 = vmatpush1.msra.mxu0 0.0
        %1051 = vmatprep.subr.mxu0 0.0
        %1052 = vmatpush1.msra.mxu0 0.0
        %1053 = vmatprep.subr.mxu0 0.0
        %1054 = vmatpush1.msra.mxu0 0.0
        %1055 = vmatprep.subr.mxu0 0.0
        %1056 = vmatpush1.msra.mxu0 0.0
        %1057 = vmatprep.subr.mxu0 0.0
        %1058 = vmatpush1.msra.mxu0 0.0
        %1059 = vmatprep.subr.mxu0 0.0
        %1060 = vmatpush1.msra.mxu0 0.0
        %1061 = vmatprep.subr.mxu0 0.0
        %1062 = vmatpush1.msra.mxu0 0.0
        %1063 = vmatprep.subr.mxu0 0.0
        %1064 = vmatpush1.msra.mxu0 0.0
        %1065 = vmatprep.subr.mxu0 0.0
        %1066 = vmatpush1.msra.mxu0 0.0
        %1067 = vmatprep.subr.mxu0 0.0
        %1068 = vmatpush1.msra.mxu0 0.0
        %1069 = vmatprep.subr.mxu0 0.0
        %1070 = vmatpush1.msra.mxu0 0.0
        %1071 = vmatprep.subr.mxu0 0.0
        %1072 = vmatpush1.msra.mxu0 0.0
        %1073 = vmatprep.subr.mxu0 0.0
        %1074 = vmatpush1.msra.mxu0 0.0
        %1075 = vmatprep.subr.mxu0 0.0
        %1076 = vmatpush1.msra.mxu0 0.0
        %1077 = vmatprep.subr.mxu0 0.0
        %1078 = vmatpush1.msra.mxu0 0.0
        %1079 = vmatprep.subr.mxu0 0.0
        %1080 = vmatpush1.msra.mxu0 0.0
        %1081 = vmatprep.subr.mxu0 0.0
        %1082 = vmatpush1.msra.mxu0 0.0
        %1083 = vmatprep.subr.mxu0 0.0
        %1084 = vmatpush1.msra.mxu0 0.0
        %1085 = vmatprep.subr.mxu0 0.0
        %1086 = vmatpush1.msra.mxu0 0.0
        %1087 = vmatprep.subr.mxu0 0.0
        %1088 = vmatpush1.msra.mxu0 0.0
        %1089 = vmatprep.subr.mxu0 0.0
        %1090 = vmatpush1.msra.mxu0 0.0
        %1091 = vmatprep.subr.mxu0 0.0
        %1092 = vmatpush1.msra.mxu0 0.0
        %1093 = vmatprep.mubr.f32.mxu0 0.0
        %1094 = vmatmul.mubr.f32.gmra.mrb[0].mxu0 %v1027
        %v1095 = vpop.f32.mrb[0].mxu0
        %v1096 = vadd.f32 0.0, %v1095
        %v1097 = vpop.f32.mrb[0].mxu0
        %v1098 = vadd.f32 0.0, %v1097
        %1099 = vdwg.mxu0
        %1100 = vmatprep.subr.mxu0 %v1025
        %1101 = vmatpush1.msra.mxu0 %v1024
        %1102 = vmatprep.subr.mxu0 0.0
        %1103 = vmatpush1.msra.mxu0 0.0
        %1104 = vmatprep.subr.mxu0 0.0
        %1105 = vmatpush1.msra.mxu0 0.0
        %1106 = vmatprep.subr.mxu0 0.0
        %1107 = vmatpush1.msra.mxu0 0.0
        %1108 = vmatprep.subr.mxu0 0.0
        %1109 = vmatpush1.msra.mxu0 0.0
        %1110 = vmatprep.subr.mxu0 0.0
        %1111 = vmatpush1.msra.mxu0 0.0
        %1112 = vmatprep.subr.mxu0 0.0
        %1113 = vmatpush1.msra.mxu0 0.0
        %1114 = vmatprep.subr.mxu0 0.0
        %1115 = vmatpush1.msra.mxu0 0.0
        %1116 = vmatprep.subr.mxu0 0.0
        %1117 = vmatpush1.msra.mxu0 0.0
        %1118 = vmatprep.subr.mxu0 0.0
        %1119 = vmatpush1.msra.mxu0 0.0
        %1120 = vmatprep.subr.mxu0 0.0
        %1121 = vmatpush1.msra.mxu0 0.0
        %1122 = vmatprep.subr.mxu0 0.0
        %1123 = vmatpush1.msra.mxu0 0.0
        %1124 = vmatprep.subr.mxu0 0.0
        %1125 = vmatpush1.msra.mxu0 0.0
        %1126 = vmatprep.subr.mxu0 0.0
        %1127 = vmatpush1.msra.mxu0 0.0
        %1128 = vmatprep.subr.mxu0 0.0
        %1129 = vmatpush1.msra.mxu0 0.0
        %1130 = vmatprep.subr.mxu0 0.0
        %1131 = vmatpush1.msra.mxu0 0.0
        %1132 = vmatprep.subr.mxu0 0.0
        %1133 = vmatpush1.msra.mxu0 0.0
        %1134 = vmatprep.subr.mxu0 0.0
        %1135 = vmatpush1.msra.mxu0 0.0
        %1136 = vmatprep.subr.mxu0 0.0
        %1137 = vmatpush1.msra.mxu0 0.0
        %1138 = vmatprep.subr.mxu0 0.0
        %1139 = vmatpush1.msra.mxu0 0.0
        %1140 = vmatprep.subr.mxu0 0.0
        %1141 = vmatpush1.msra.mxu0 0.0
        %1142 = vmatprep.subr.mxu0 0.0
        %1143 = vmatpush1.msra.mxu0 0.0
        %1144 = vmatprep.subr.mxu0 0.0
        %1145 = vmatpush1.msra.mxu0 0.0
        %1146 = vmatprep.subr.mxu0 0.0
        %1147 = vmatpush1.msra.mxu0 0.0
        %1148 = vmatprep.subr.mxu0 0.0
        %1149 = vmatpush1.msra.mxu0 0.0
        %1150 = vmatprep.subr.mxu0 0.0
        %1151 = vmatpush1.msra.mxu0 0.0
        %1152 = vmatprep.subr.mxu0 0.0
        %1153 = vmatpush1.msra.mxu0 0.0
        %1154 = vmatprep.subr.mxu0 0.0
        %1155 = vmatpush1.msra.mxu0 0.0
        %1156 = vmatprep.subr.mxu0 0.0
        %1157 = vmatpush1.msra.mxu0 0.0
        %1158 = vmatprep.subr.mxu0 0.0
        %1159 = vmatpush1.msra.mxu0 0.0
        %1160 = vmatprep.subr.mxu0 0.0
        %1161 = vmatpush1.msra.mxu0 0.0
        %1162 = vmatprep.subr.mxu0 0.0
        %1163 = vmatpush1.msra.mxu0 0.0
        %1164 = vmatprep.mubr.f32.mxu0 0.0
        %1165 = vmatmul.mubr.f32.gmra.mrb[0].mxu0 %v1027
        %v1166 = vpop.f32.mrb[0].mxu0
        %v1167 = vadd.f32 0.0, %v1166
        %v1168 = vpop.f32.mrb[0].mxu0
        %v1169 = vadd.f32 0.0, %v1168
        %1170 = vdwg.mxu0
        %v1171 = vadd.f32 %v980, %v1096
        %v1172 = vadd.f32 %v981, %v1098
        %v1173 = vadd.f32 %v982, %v1167
        %v1174 = vadd.f32 %v983, %v1169
        %s1175 = scalar_lea.vmem %s1, 40
        %v1176 = vld [vmem:[%s1175] sm:$0xff]
        %1177 = vrot.lane.b32.xlu0 %v223, 63
        %v1178 = vpop.permute.xlu0 %1177
        %1179 = vrot.lane.b32.xlu0 %v224, 63
        %v1180 = vpop.permute.xlu0 %1179
        %1181 = vrot.lane.b32.xlu0 %v225, 63
        %v1182 = vpop.permute.xlu0 %1181
        %1183 = vrot.lane.b32.xlu0 %v226, 63
        %v1184 = vpop.permute.xlu0 %1183
        %vm1185 = vcmp.lt.s32.totalorder %v237, 63
        %v1186 = vsel %vm1185, %v1182, %v1184
        %v1187 = vsel %vm1185, %v1180, %v1182
        %v1188 = vsel %vm1185, %v1178, %v1180
        %v1189 = vsel %vm1185, %v1184, %v1178
        %s1190 = scalar_lea.vmem %s4, 5
        %v1191 = vld [vmem:[%s1190] ss:$8 sm:$0xf]
        %v1193 = vlaneseq
        %v1194 = vshrl.u32 %v1193, 7
        %v1195 = vsub.s32 0, %v1194
        %v1196 = vrot.slane %v1191, %v1195
        %v1197 = vlaneseq
        %v1198 = vshrl.u32 %v1197, 7
        %v1199 = vsub.s32 1, %v1198
        %v1200 = vrot.slane %v1191, %v1199
        %v1201 = vlaneseq
        %v1202 = vshrl.u32 %v1201, 7
        %v1203 = vsub.s32 2, %v1202
        %v1204 = vrot.slane %v1191, %v1203
        %v1205 = vlaneseq
        %v1206 = vshrl.u32 %v1205, 7
        %v1207 = vsub.s32 3, %v1206
        %v1208 = vrot.slane %v1191, %v1207
        %v1213 = vmul.f32 %v1189, %v1196
        %v1214 = vmul.f32 %v1188, %v1200
        %v1215 = vmul.f32 %v1187, %v1204
        %v1216 = vmul.f32 %v1186, %v1208
        %v1218 = vsel %vm311, %v1176, 0
        %1220 = vmatprep.subr.mxu0 %v1214
        %1221 = vmatpush1.msra.mxu0 %v1213
        %1222 = vmatprep.subr.mxu0 0.0
        %1223 = vmatpush1.msra.mxu0 0.0
        %1224 = vmatprep.subr.mxu0 0.0
        %1225 = vmatpush1.msra.mxu0 0.0
        %1226 = vmatprep.subr.mxu0 0.0
        %1227 = vmatpush1.msra.mxu0 0.0
        %1228 = vmatprep.subr.mxu0 0.0
        %1229 = vmatpush1.msra.mxu0 0.0
        %1230 = vmatprep.subr.mxu0 0.0
        %1231 = vmatpush1.msra.mxu0 0.0
        %1232 = vmatprep.subr.mxu0 0.0
        %1233 = vmatpush1.msra.mxu0 0.0
        %1234 = vmatprep.subr.mxu0 0.0
        %1235 = vmatpush1.msra.mxu0 0.0
        %1236 = vmatprep.subr.mxu0 0.0
        %1237 = vmatpush1.msra.mxu0 0.0
        %1238 = vmatprep.subr.mxu0 0.0
        %1239 = vmatpush1.msra.mxu0 0.0
        %1240 = vmatprep.subr.mxu0 0.0
        %1241 = vmatpush1.msra.mxu0 0.0
        %1242 = vmatprep.subr.mxu0 0.0
        %1243 = vmatpush1.msra.mxu0 0.0
        %1244 = vmatprep.subr.mxu0 0.0
        %1245 = vmatpush1.msra.mxu0 0.0
        %1246 = vmatprep.subr.mxu0 0.0
        %1247 = vmatpush1.msra.mxu0 0.0
        %1248 = vmatprep.subr.mxu0 0.0
        %1249 = vmatpush1.msra.mxu0 0.0
        %1250 = vmatprep.subr.mxu0 0.0
        %1251 = vmatpush1.msra.mxu0 0.0
        %1252 = vmatprep.subr.mxu0 0.0
        %1253 = vmatpush1.msra.mxu0 0.0
        %1254 = vmatprep.subr.mxu0 0.0
        %1255 = vmatpush1.msra.mxu0 0.0
        %1256 = vmatprep.subr.mxu0 0.0
        %1257 = vmatpush1.msra.mxu0 0.0
        %1258 = vmatprep.subr.mxu0 0.0
        %1259 = vmatpush1.msra.mxu0 0.0
        %1260 = vmatprep.subr.mxu0 0.0
        %1261 = vmatpush1.msra.mxu0 0.0
        %1262 = vmatprep.subr.mxu0 0.0
        %1263 = vmatpush1.msra.mxu0 0.0
        %1264 = vmatprep.subr.mxu0 0.0
        %1265 = vmatpush1.msra.mxu0 0.0
        %1266 = vmatprep.subr.mxu0 0.0
        %1267 = vmatpush1.msra.mxu0 0.0
        %1268 = vmatprep.subr.mxu0 0.0
        %1269 = vmatpush1.msra.mxu0 0.0
        %1270 = vmatprep.subr.mxu0 0.0
        %1271 = vmatpush1.msra.mxu0 0.0
        %1272 = vmatprep.subr.mxu0 0.0
        %1273 = vmatpush1.msra.mxu0 0.0
        %1274 = vmatprep.subr.mxu0 0.0
        %1275 = vmatpush1.msra.mxu0 0.0
        %1276 = vmatprep.subr.mxu0 0.0
        %1277 = vmatpush1.msra.mxu0 0.0
        %1278 = vmatprep.subr.mxu0 0.0
        %1279 = vmatpush1.msra.mxu0 0.0
        %1280 = vmatprep.subr.mxu0 0.0
        %1281 = vmatpush1.msra.mxu0 0.0
        %1282 = vmatprep.subr.mxu0 0.0
        %1283 = vmatpush1.msra.mxu0 0.0
        %1284 = vmatprep.mubr.f32.mxu0 0.0
        %1285 = vmatmul.mubr.f32.gmra.mrb[0].mxu0 %v1218
        %v1286 = vpop.f32.mrb[0].mxu0
        %v1287 = vadd.f32 0.0, %v1286
        %v1288 = vpop.f32.mrb[0].mxu0
        %v1289 = vadd.f32 0.0, %v1288
        %1290 = vdwg.mxu0
        %1291 = vmatprep.subr.mxu0 %v1216
        %1292 = vmatpush1.msra.mxu0 %v1215
        %1293 = vmatprep.subr.mxu0 0.0
        %1294 = vmatpush1.msra.mxu0 0.0
        %1295 = vmatprep.subr.mxu0 0.0
        %1296 = vmatpush1.msra.mxu0 0.0
        %1297 = vmatprep.subr.mxu0 0.0
        %1298 = vmatpush1.msra.mxu0 0.0
        %1299 = vmatprep.subr.mxu0 0.0
        %1300 = vmatpush1.msra.mxu0 0.0
        %1301 = vmatprep.subr.mxu0 0.0
        %1302 = vmatpush1.msra.mxu0 0.0
        %1303 = vmatprep.subr.mxu0 0.0
        %1304 = vmatpush1.msra.mxu0 0.0
        %1305 = vmatprep.subr.mxu0 0.0
        %1306 = vmatpush1.msra.mxu0 0.0
        %1307 = vmatprep.subr.mxu0 0.0
        %1308 = vmatpush1.msra.mxu0 0.0
        %1309 = vmatprep.subr.mxu0 0.0
        %1310 = vmatpush1.msra.mxu0 0.0
        %1311 = vmatprep.subr.mxu0 0.0
        %1312 = vmatpush1.msra.mxu0 0.0
        %1313 = vmatprep.subr.mxu0 0.0
        %1314 = vmatpush1.msra.mxu0 0.0
        %1315 = vmatprep.subr.mxu0 0.0
        %1316 = vmatpush1.msra.mxu0 0.0
        %1317 = vmatprep.subr.mxu0 0.0
        %1318 = vmatpush1.msra.mxu0 0.0
        %1319 = vmatprep.subr.mxu0 0.0
        %1320 = vmatpush1.msra.mxu0 0.0
        %1321 = vmatprep.subr.mxu0 0.0
        %1322 = vmatpush1.msra.mxu0 0.0
        %1323 = vmatprep.subr.mxu0 0.0
        %1324 = vmatpush1.msra.mxu0 0.0
        %1325 = vmatprep.subr.mxu0 0.0
        %1326 = vmatpush1.msra.mxu0 0.0
        %1327 = vmatprep.subr.mxu0 0.0
        %1328 = vmatpush1.msra.mxu0 0.0
        %1329 = vmatprep.subr.mxu0 0.0
        %1330 = vmatpush1.msra.mxu0 0.0
        %1331 = vmatprep.subr.mxu0 0.0
        %1332 = vmatpush1.msra.mxu0 0.0
        %1333 = vmatprep.subr.mxu0 0.0
        %1334 = vmatpush1.msra.mxu0 0.0
        %1335 = vmatprep.subr.mxu0 0.0
        %1336 = vmatpush1.msra.mxu0 0.0
        %1337 = vmatprep.subr.mxu0 0.0
        %1338 = vmatpush1.msra.mxu0 0.0
        %1339 = vmatprep.subr.mxu0 0.0
        %1340 = vmatpush1.msra.mxu0 0.0
        %1341 = vmatprep.subr.mxu0 0.0
        %1342 = vmatpush1.msra.mxu0 0.0
        %1343 = vmatprep.subr.mxu0 0.0
        %1344 = vmatpush1.msra.mxu0 0.0
        %1345 = vmatprep.subr.mxu0 0.0
        %1346 = vmatpush1.msra.mxu0 0.0
        %1347 = vmatprep.subr.mxu0 0.0
        %1348 = vmatpush1.msra.mxu0 0.0
        %1349 = vmatprep.subr.mxu0 0.0
        %1350 = vmatpush1.msra.mxu0 0.0
        %1351 = vmatprep.subr.mxu0 0.0
        %1352 = vmatpush1.msra.mxu0 0.0
        %1353 = vmatprep.subr.mxu0 0.0
        %1354 = vmatpush1.msra.mxu0 0.0
        %1355 = vmatprep.mubr.f32.mxu0 0.0
        %1356 = vmatmul.mubr.f32.gmra.mrb[0].mxu0 %v1218
        %v1357 = vpop.f32.mrb[0].mxu0
        %v1358 = vadd.f32 0.0, %v1357
        %v1359 = vpop.f32.mrb[0].mxu0
        %v1360 = vadd.f32 0.0, %v1359
        %1361 = vdwg.mxu0
        %v1362 = vadd.f32 %v1171, %v1287
        %v1363 = vadd.f32 %v1172, %v1289
        %v1364 = vadd.f32 %v1173, %v1358
        %v1365 = vadd.f32 %v1174, %v1360
        %s1366 = scalar_lea.vmem %s1, 48
        %v1367 = vld [vmem:[%s1366] sm:$0xff]
        %1368 = vrot.lane.b32.xlu0 %v223, 57
        %v1369 = vpop.permute.xlu0 %1368
        %1370 = vrot.lane.b32.xlu0 %v224, 57
        %v1371 = vpop.permute.xlu0 %1370
        %1372 = vrot.lane.b32.xlu0 %v225, 57
        %v1373 = vpop.permute.xlu0 %1372
        %1374 = vrot.lane.b32.xlu0 %v226, 57
        %v1375 = vpop.permute.xlu0 %1374
        %vm1376 = vcmp.lt.s32.totalorder %v237, 57
        %v1377 = vsel %vm1376, %v1373, %v1375
        %v1378 = vsel %vm1376, %v1371, %v1373
        %v1379 = vsel %vm1376, %v1369, %v1371
        %v1380 = vsel %vm1376, %v1375, %v1369
        %s1381 = scalar_lea.vmem %s4, 6
        %v1382 = vld [vmem:[%s1381] ss:$8 sm:$0xf]
        %v1384 = vlaneseq
        %v1385 = vshrl.u32 %v1384, 7
        %v1386 = vsub.s32 0, %v1385
        %v1387 = vrot.slane %v1382, %v1386
        %v1388 = vlaneseq
        %v1389 = vshrl.u32 %v1388, 7
        %v1390 = vsub.s32 1, %v1389
        %v1391 = vrot.slane %v1382, %v1390
        %v1392 = vlaneseq
        %v1393 = vshrl.u32 %v1392, 7
        %v1394 = vsub.s32 2, %v1393
        %v1395 = vrot.slane %v1382, %v1394
        %v1396 = vlaneseq
        %v1397 = vshrl.u32 %v1396, 7
        %v1398 = vsub.s32 3, %v1397
        %v1399 = vrot.slane %v1382, %v1398
        %v1404 = vmul.f32 %v1380, %v1387
        %v1405 = vmul.f32 %v1379, %v1391
        %v1406 = vmul.f32 %v1378, %v1395
        %v1407 = vmul.f32 %v1377, %v1399
        %v1409 = vsel %vm311, %v1367, 0
        %1411 = vmatprep.subr.mxu0 %v1405
        %1412 = vmatpush1.msra.mxu0 %v1404
        %1413 = vmatprep.subr.mxu0 0.0
        %1414 = vmatpush1.msra.mxu0 0.0
        %1415 = vmatprep.subr.mxu0 0.0
        %1416 = vmatpush1.msra.mxu0 0.0
        %1417 = vmatprep.subr.mxu0 0.0
        %1418 = vmatpush1.msra.mxu0 0.0
        %1419 = vmatprep.subr.mxu0 0.0
        %1420 = vmatpush1.msra.mxu0 0.0
        %1421 = vmatprep.subr.mxu0 0.0
        %1422 = vmatpush1.msra.mxu0 0.0
        %1423 = vmatprep.subr.mxu0 0.0
        %1424 = vmatpush1.msra.mxu0 0.0
        %1425 = vmatprep.subr.mxu0 0.0
        %1426 = vmatpush1.msra.mxu0 0.0
        %1427 = vmatprep.subr.mxu0 0.0
        %1428 = vmatpush1.msra.mxu0 0.0
        %1429 = vmatprep.subr.mxu0 0.0
        %1430 = vmatpush1.msra.mxu0 0.0
        %1431 = vmatprep.subr.mxu0 0.0
        %1432 = vmatpush1.msra.mxu0 0.0
        %1433 = vmatprep.subr.mxu0 0.0
        %1434 = vmatpush1.msra.mxu0 0.0
        %1435 = vmatprep.subr.mxu0 0.0
        %1436 = vmatpush1.msra.mxu0 0.0
        %1437 = vmatprep.subr.mxu0 0.0
        %1438 = vmatpush1.msra.mxu0 0.0
        %1439 = vmatprep.subr.mxu0 0.0
        %1440 = vmatpush1.msra.mxu0 0.0
        %1441 = vmatprep.subr.mxu0 0.0
        %1442 = vmatpush1.msra.mxu0 0.0
        %1443 = vmatprep.subr.mxu0 0.0
        %1444 = vmatpush1.msra.mxu0 0.0
        %1445 = vmatprep.subr.mxu0 0.0
        %1446 = vmatpush1.msra.mxu0 0.0
        %1447 = vmatprep.subr.mxu0 0.0
        %1448 = vmatpush1.msra.mxu0 0.0
        %1449 = vmatprep.subr.mxu0 0.0
        %1450 = vmatpush1.msra.mxu0 0.0
        %1451 = vmatprep.subr.mxu0 0.0
        %1452 = vmatpush1.msra.mxu0 0.0
        %1453 = vmatprep.subr.mxu0 0.0
        %1454 = vmatpush1.msra.mxu0 0.0
        %1455 = vmatprep.subr.mxu0 0.0
        %1456 = vmatpush1.msra.mxu0 0.0
        %1457 = vmatprep.subr.mxu0 0.0
        %1458 = vmatpush1.msra.mxu0 0.0
        %1459 = vmatprep.subr.mxu0 0.0
        %1460 = vmatpush1.msra.mxu0 0.0
        %1461 = vmatprep.subr.mxu0 0.0
        %1462 = vmatpush1.msra.mxu0 0.0
        %1463 = vmatprep.subr.mxu0 0.0
        %1464 = vmatpush1.msra.mxu0 0.0
        %1465 = vmatprep.subr.mxu0 0.0
        %1466 = vmatpush1.msra.mxu0 0.0
        %1467 = vmatprep.subr.mxu0 0.0
        %1468 = vmatpush1.msra.mxu0 0.0
        %1469 = vmatprep.subr.mxu0 0.0
        %1470 = vmatpush1.msra.mxu0 0.0
        %1471 = vmatprep.subr.mxu0 0.0
        %1472 = vmatpush1.msra.mxu0 0.0
        %1473 = vmatprep.subr.mxu0 0.0
        %1474 = vmatpush1.msra.mxu0 0.0
        %1475 = vmatprep.mubr.f32.mxu0 0.0
        %1476 = vmatmul.mubr.f32.gmra.mrb[0].mxu0 %v1409
        %v1477 = vpop.f32.mrb[0].mxu0
        %v1478 = vadd.f32 0.0, %v1477
        %v1479 = vpop.f32.mrb[0].mxu0
        %v1480 = vadd.f32 0.0, %v1479
        %1481 = vdwg.mxu0
        %1482 = vmatprep.subr.mxu0 %v1407
        %1483 = vmatpush1.msra.mxu0 %v1406
        %1484 = vmatprep.subr.mxu0 0.0
        %1485 = vmatpush1.msra.mxu0 0.0
        %1486 = vmatprep.subr.mxu0 0.0
        %1487 = vmatpush1.msra.mxu0 0.0
        %1488 = vmatprep.subr.mxu0 0.0
        %1489 = vmatpush1.msra.mxu0 0.0
        %1490 = vmatprep.subr.mxu0 0.0
        %1491 = vmatpush1.msra.mxu0 0.0
        %1492 = vmatprep.subr.mxu0 0.0
        %1493 = vmatpush1.msra.mxu0 0.0
        %1494 = vmatprep.subr.mxu0 0.0
        %1495 = vmatpush1.msra.mxu0 0.0
        %1496 = vmatprep.subr.mxu0 0.0
        %1497 = vmatpush1.msra.mxu0 0.0
        %1498 = vmatprep.subr.mxu0 0.0
        %1499 = vmatpush1.msra.mxu0 0.0
        %1500 = vmatprep.subr.mxu0 0.0
        %1501 = vmatpush1.msra.mxu0 0.0
        %1502 = vmatprep.subr.mxu0 0.0
        %1503 = vmatpush1.msra.mxu0 0.0
        %1504 = vmatprep.subr.mxu0 0.0
        %1505 = vmatpush1.msra.mxu0 0.0
        %1506 = vmatprep.subr.mxu0 0.0
        %1507 = vmatpush1.msra.mxu0 0.0
        %1508 = vmatprep.subr.mxu0 0.0
        %1509 = vmatpush1.msra.mxu0 0.0
        %1510 = vmatprep.subr.mxu0 0.0
        %1511 = vmatpush1.msra.mxu0 0.0
        %1512 = vmatprep.subr.mxu0 0.0
        %1513 = vmatpush1.msra.mxu0 0.0
        %1514 = vmatprep.subr.mxu0 0.0
        %1515 = vmatpush1.msra.mxu0 0.0
        %1516 = vmatprep.subr.mxu0 0.0
        %1517 = vmatpush1.msra.mxu0 0.0
        %1518 = vmatprep.subr.mxu0 0.0
        %1519 = vmatpush1.msra.mxu0 0.0
        %1520 = vmatprep.subr.mxu0 0.0
        %1521 = vmatpush1.msra.mxu0 0.0
        %1522 = vmatprep.subr.mxu0 0.0
        %1523 = vmatpush1.msra.mxu0 0.0
        %1524 = vmatprep.subr.mxu0 0.0
        %1525 = vmatpush1.msra.mxu0 0.0
        %1526 = vmatprep.subr.mxu0 0.0
        %1527 = vmatpush1.msra.mxu0 0.0
        %1528 = vmatprep.subr.mxu0 0.0
        %1529 = vmatpush1.msra.mxu0 0.0
        %1530 = vmatprep.subr.mxu0 0.0
        %1531 = vmatpush1.msra.mxu0 0.0
        %1532 = vmatprep.subr.mxu0 0.0
        %1533 = vmatpush1.msra.mxu0 0.0
        %1534 = vmatprep.subr.mxu0 0.0
        %1535 = vmatpush1.msra.mxu0 0.0
        %1536 = vmatprep.subr.mxu0 0.0
        %1537 = vmatpush1.msra.mxu0 0.0
        %1538 = vmatprep.subr.mxu0 0.0
        %1539 = vmatpush1.msra.mxu0 0.0
        %1540 = vmatprep.subr.mxu0 0.0
        %1541 = vmatpush1.msra.mxu0 0.0
        %1542 = vmatprep.subr.mxu0 0.0
        %1543 = vmatpush1.msra.mxu0 0.0
        %1544 = vmatprep.subr.mxu0 0.0
        %1545 = vmatpush1.msra.mxu0 0.0
        %1546 = vmatprep.mubr.f32.mxu0 0.0
        %1547 = vmatmul.mubr.f32.gmra.mrb[0].mxu0 %v1409
        %v1548 = vpop.f32.mrb[0].mxu0
        %v1549 = vadd.f32 0.0, %v1548
        %v1550 = vpop.f32.mrb[0].mxu0
        %v1551 = vadd.f32 0.0, %v1550
        %1552 = vdwg.mxu0
        %v1553 = vadd.f32 %v1362, %v1478
        %v1554 = vadd.f32 %v1363, %v1480
        %v1555 = vadd.f32 %v1364, %v1549
        %v1556 = vadd.f32 %v1365, %v1551
        %s1557 = scalar_lea.vmem %s1, 56
        %v1558 = vld [vmem:[%s1557] sm:$0xff]
        %1559 = vrot.lane.b32.xlu0 %v223, 56
        %v1560 = vpop.permute.xlu0 %1559
        %1561 = vrot.lane.b32.xlu0 %v224, 56
        %v1562 = vpop.permute.xlu0 %1561
        %1563 = vrot.lane.b32.xlu0 %v225, 56
        %v1564 = vpop.permute.xlu0 %1563
        %1565 = vrot.lane.b32.xlu0 %v226, 56
        %v1566 = vpop.permute.xlu0 %1565
        %vm1567 = vcmp.lt.s32.totalorder %v237, 56
        %v1568 = vsel %vm1567, %v1564, %v1566
        %v1569 = vsel %vm1567, %v1562, %v1564
        %v1570 = vsel %vm1567, %v1560, %v1562
        %v1571 = vsel %vm1567, %v1566, %v1560
        %s1572 = scalar_lea.vmem %s4, 7
        %v1573 = vld [vmem:[%s1572] ss:$8 sm:$0xf]
        %v1575 = vlaneseq
        %v1576 = vshrl.u32 %v1575, 7
        %v1577 = vsub.s32 0, %v1576
        %v1578 = vrot.slane %v1573, %v1577
        %v1579 = vlaneseq
        %v1580 = vshrl.u32 %v1579, 7
        %v1581 = vsub.s32 1, %v1580
        %v1582 = vrot.slane %v1573, %v1581
        %v1583 = vlaneseq
        %v1584 = vshrl.u32 %v1583, 7
        %v1585 = vsub.s32 2, %v1584
        %v1586 = vrot.slane %v1573, %v1585
        %v1587 = vlaneseq
        %v1588 = vshrl.u32 %v1587, 7
        %v1589 = vsub.s32 3, %v1588
        %v1590 = vrot.slane %v1573, %v1589
        %v1595 = vmul.f32 %v1571, %v1578
        %v1596 = vmul.f32 %v1570, %v1582
        %v1597 = vmul.f32 %v1569, %v1586
        %v1598 = vmul.f32 %v1568, %v1590
        %v1600 = vsel %vm311, %v1558, 0
        %1602 = vmatprep.subr.mxu0 %v1596
        %1603 = vmatpush1.msra.mxu0 %v1595
        %1604 = vmatprep.subr.mxu0 0.0
        %1605 = vmatpush1.msra.mxu0 0.0
        %1606 = vmatprep.subr.mxu0 0.0
        %1607 = vmatpush1.msra.mxu0 0.0
        %1608 = vmatprep.subr.mxu0 0.0
        %1609 = vmatpush1.msra.mxu0 0.0
        %1610 = vmatprep.subr.mxu0 0.0
        %1611 = vmatpush1.msra.mxu0 0.0
        %1612 = vmatprep.subr.mxu0 0.0
        %1613 = vmatpush1.msra.mxu0 0.0
        %1614 = vmatprep.subr.mxu0 0.0
        %1615 = vmatpush1.msra.mxu0 0.0
        %1616 = vmatprep.subr.mxu0 0.0
        %1617 = vmatpush1.msra.mxu0 0.0
        %1618 = vmatprep.subr.mxu0 0.0
        %1619 = vmatpush1.msra.mxu0 0.0
        %1620 = vmatprep.subr.mxu0 0.0
        %1621 = vmatpush1.msra.mxu0 0.0
        %1622 = vmatprep.subr.mxu0 0.0
        %1623 = vmatpush1.msra.mxu0 0.0
        %1624 = vmatprep.subr.mxu0 0.0
        %1625 = vmatpush1.msra.mxu0 0.0
        %1626 = vmatprep.subr.mxu0 0.0
        %1627 = vmatpush1.msra.mxu0 0.0
        %1628 = vmatprep.subr.mxu0 0.0
        %1629 = vmatpush1.msra.mxu0 0.0
        %1630 = vmatprep.subr.mxu0 0.0
        %1631 = vmatpush1.msra.mxu0 0.0
        %1632 = vmatprep.subr.mxu0 0.0
        %1633 = vmatpush1.msra.mxu0 0.0
        %1634 = vmatprep.subr.mxu0 0.0
        %1635 = vmatpush1.msra.mxu0 0.0
        %1636 = vmatprep.subr.mxu0 0.0
        %1637 = vmatpush1.msra.mxu0 0.0
        %1638 = vmatprep.subr.mxu0 0.0
        %1639 = vmatpush1.msra.mxu0 0.0
        %1640 = vmatprep.subr.mxu0 0.0
        %1641 = vmatpush1.msra.mxu0 0.0
        %1642 = vmatprep.subr.mxu0 0.0
        %1643 = vmatpush1.msra.mxu0 0.0
        %1644 = vmatprep.subr.mxu0 0.0
        %1645 = vmatpush1.msra.mxu0 0.0
        %1646 = vmatprep.subr.mxu0 0.0
        %1647 = vmatpush1.msra.mxu0 0.0
        %1648 = vmatprep.subr.mxu0 0.0
        %1649 = vmatpush1.msra.mxu0 0.0
        %1650 = vmatprep.subr.mxu0 0.0
        %1651 = vmatpush1.msra.mxu0 0.0
        %1652 = vmatprep.subr.mxu0 0.0
        %1653 = vmatpush1.msra.mxu0 0.0
        %1654 = vmatprep.subr.mxu0 0.0
        %1655 = vmatpush1.msra.mxu0 0.0
        %1656 = vmatprep.subr.mxu0 0.0
        %1657 = vmatpush1.msra.mxu0 0.0
        %1658 = vmatprep.subr.mxu0 0.0
        %1659 = vmatpush1.msra.mxu0 0.0
        %1660 = vmatprep.subr.mxu0 0.0
        %1661 = vmatpush1.msra.mxu0 0.0
        %1662 = vmatprep.subr.mxu0 0.0
        %1663 = vmatpush1.msra.mxu0 0.0
        %1664 = vmatprep.subr.mxu0 0.0
        %1665 = vmatpush1.msra.mxu0 0.0
        %1666 = vmatprep.mubr.f32.mxu0 0.0
        %1667 = vmatmul.mubr.f32.gmra.mrb[0].mxu0 %v1600
        %v1668 = vpop.f32.mrb[0].mxu0
        %v1669 = vadd.f32 0.0, %v1668
        %v1670 = vpop.f32.mrb[0].mxu0
        %v1671 = vadd.f32 0.0, %v1670
        %1672 = vdwg.mxu0
        %1673 = vmatprep.subr.mxu0 %v1598
        %1674 = vmatpush1.msra.mxu0 %v1597
        %1675 = vmatprep.subr.mxu0 0.0
        %1676 = vmatpush1.msra.mxu0 0.0
        %1677 = vmatprep.subr.mxu0 0.0
        %1678 = vmatpush1.msra.mxu0 0.0
        %1679 = vmatprep.subr.mxu0 0.0
        %1680 = vmatpush1.msra.mxu0 0.0
        %1681 = vmatprep.subr.mxu0 0.0
        %1682 = vmatpush1.msra.mxu0 0.0
        %1683 = vmatprep.subr.mxu0 0.0
        %1684 = vmatpush1.msra.mxu0 0.0
        %1685 = vmatprep.subr.mxu0 0.0
        %1686 = vmatpush1.msra.mxu0 0.0
        %1687 = vmatprep.subr.mxu0 0.0
        %1688 = vmatpush1.msra.mxu0 0.0
        %1689 = vmatprep.subr.mxu0 0.0
        %1690 = vmatpush1.msra.mxu0 0.0
        %1691 = vmatprep.subr.mxu0 0.0
        %1692 = vmatpush1.msra.mxu0 0.0
        %1693 = vmatprep.subr.mxu0 0.0
        %1694 = vmatpush1.msra.mxu0 0.0
        %1695 = vmatprep.subr.mxu0 0.0
        %1696 = vmatpush1.msra.mxu0 0.0
        %1697 = vmatprep.subr.mxu0 0.0
        %1698 = vmatpush1.msra.mxu0 0.0
        %1699 = vmatprep.subr.mxu0 0.0
        %1700 = vmatpush1.msra.mxu0 0.0
        %1701 = vmatprep.subr.mxu0 0.0
        %1702 = vmatpush1.msra.mxu0 0.0
        %1703 = vmatprep.subr.mxu0 0.0
        %1704 = vmatpush1.msra.mxu0 0.0
        %1705 = vmatprep.subr.mxu0 0.0
        %1706 = vmatpush1.msra.mxu0 0.0
        %1707 = vmatprep.subr.mxu0 0.0
        %1708 = vmatpush1.msra.mxu0 0.0
        %1709 = vmatprep.subr.mxu0 0.0
        %1710 = vmatpush1.msra.mxu0 0.0
        %1711 = vmatprep.subr.mxu0 0.0
        %1712 = vmatpush1.msra.mxu0 0.0
        %1713 = vmatprep.subr.mxu0 0.0
        %1714 = vmatpush1.msra.mxu0 0.0
        %1715 = vmatprep.subr.mxu0 0.0
        %1716 = vmatpush1.msra.mxu0 0.0
        %1717 = vmatprep.subr.mxu0 0.0
        %1718 = vmatpush1.msra.mxu0 0.0
        %1719 = vmatprep.subr.mxu0 0.0
        %1720 = vmatpush1.msra.mxu0 0.0
        %1721 = vmatprep.subr.mxu0 0.0
        %1722 = vmatpush1.msra.mxu0 0.0
        %1723 = vmatprep.subr.mxu0 0.0
        %1724 = vmatpush1.msra.mxu0 0.0
        %1725 = vmatprep.subr.mxu0 0.0
        %1726 = vmatpush1.msra.mxu0 0.0
        %1727 = vmatprep.subr.mxu0 0.0
        %1728 = vmatpush1.msra.mxu0 0.0
        %1729 = vmatprep.subr.mxu0 0.0
        %1730 = vmatpush1.msra.mxu0 0.0
        %1731 = vmatprep.subr.mxu0 0.0
        %1732 = vmatpush1.msra.mxu0 0.0
        %1733 = vmatprep.subr.mxu0 0.0
        %1734 = vmatpush1.msra.mxu0 0.0
        %1735 = vmatprep.subr.mxu0 0.0
        %1736 = vmatpush1.msra.mxu0 0.0
        %1737 = vmatprep.mubr.f32.mxu0 0.0
        %1738 = vmatmul.mubr.f32.gmra.mrb[0].mxu0 %v1600
        %v1739 = vpop.f32.mrb[0].mxu0
        %v1740 = vadd.f32 0.0, %v1739
        %v1741 = vpop.f32.mrb[0].mxu0
        %v1742 = vadd.f32 0.0, %v1741
        %1743 = vdwg.mxu0
        %v1744 = vadd.f32 %v1553, %v1669
        %v1745 = vadd.f32 %v1554, %v1671
        %v1746 = vadd.f32 %v1555, %v1740
        %v1747 = vadd.f32 %v1556, %v1742
        %s1748 = scalar_lea.vmem %s1, 64
        %v1749 = vld [vmem:[%s1748] sm:$0xff]
        %1750 = vrot.lane.b32.xlu0 %v223, 55
        %v1751 = vpop.permute.xlu0 %1750
        %1752 = vrot.lane.b32.xlu0 %v224, 55
        %v1753 = vpop.permute.xlu0 %1752
        %1754 = vrot.lane.b32.xlu0 %v225, 55
        %v1755 = vpop.permute.xlu0 %1754
        %1756 = vrot.lane.b32.xlu0 %v226, 55
        %v1757 = vpop.permute.xlu0 %1756
        %vm1758 = vcmp.lt.s32.totalorder %v237, 55
        %v1759 = vsel %vm1758, %v1755, %v1757
        %v1760 = vsel %vm1758, %v1753, %v1755
        %v1761 = vsel %vm1758, %v1751, %v1753
        %v1762 = vsel %vm1758, %v1757, %v1751
        %s1763 = scalar_lea.vmem %s4, 32
        %v1764 = vld [vmem:[%s1763] ss:$8 sm:$0xf]
        %v1766 = vlaneseq
        %v1767 = vshrl.u32 %v1766, 7
        %v1768 = vsub.s32 0, %v1767
        %v1769 = vrot.slane %v1764, %v1768
        %v1770 = vlaneseq
        %v1771 = vshrl.u32 %v1770, 7
        %v1772 = vsub.s32 1, %v1771
        %v1773 = vrot.slane %v1764, %v1772
        %v1774 = vlaneseq
        %v1775 = vshrl.u32 %v1774, 7
        %v1776 = vsub.s32 2, %v1775
        %v1777 = vrot.slane %v1764, %v1776
        %v1778 = vlaneseq
        %v1779 = vshrl.u32 %v1778, 7
        %v1780 = vsub.s32 3, %v1779
        %v1781 = vrot.slane %v1764, %v1780
        %v1786 = vmul.f32 %v1762, %v1769
        %v1787 = vmul.f32 %v1761, %v1773
        %v1788 = vmul.f32 %v1760, %v1777
        %v1789 = vmul.f32 %v1759, %v1781
        %v1791 = vsel %vm311, %v1749, 0
        %1793 = vmatprep.subr.mxu0 %v1787
        %1794 = vmatpush1.msra.mxu0 %v1786
        %1795 = vmatprep.subr.mxu0 0.0
        %1796 = vmatpush1.msra.mxu0 0.0
        %1797 = vmatprep.subr.mxu0 0.0
        %1798 = vmatpush1.msra.mxu0 0.0
        %1799 = vmatprep.subr.mxu0 0.0
        %1800 = vmatpush1.msra.mxu0 0.0
        %1801 = vmatprep.subr.mxu0 0.0
        %1802 = vmatpush1.msra.mxu0 0.0
        %1803 = vmatprep.subr.mxu0 0.0
        %1804 = vmatpush1.msra.mxu0 0.0
        %1805 = vmatprep.subr.mxu0 0.0
        %1806 = vmatpush1.msra.mxu0 0.0
        %1807 = vmatprep.subr.mxu0 0.0
        %1808 = vmatpush1.msra.mxu0 0.0
        %1809 = vmatprep.subr.mxu0 0.0
        %1810 = vmatpush1.msra.mxu0 0.0
        %1811 = vmatprep.subr.mxu0 0.0
        %1812 = vmatpush1.msra.mxu0 0.0
        %1813 = vmatprep.subr.mxu0 0.0
        %1814 = vmatpush1.msra.mxu0 0.0
        %1815 = vmatprep.subr.mxu0 0.0
        %1816 = vmatpush1.msra.mxu0 0.0
        %1817 = vmatprep.subr.mxu0 0.0
        %1818 = vmatpush1.msra.mxu0 0.0
        %1819 = vmatprep.subr.mxu0 0.0
        %1820 = vmatpush1.msra.mxu0 0.0
        %1821 = vmatprep.subr.mxu0 0.0
        %1822 = vmatpush1.msra.mxu0 0.0
        %1823 = vmatprep.subr.mxu0 0.0
        %1824 = vmatpush1.msra.mxu0 0.0
        %1825 = vmatprep.subr.mxu0 0.0
        %1826 = vmatpush1.msra.mxu0 0.0
        %1827 = vmatprep.subr.mxu0 0.0
        %1828 = vmatpush1.msra.mxu0 0.0
        %1829 = vmatprep.subr.mxu0 0.0
        %1830 = vmatpush1.msra.mxu0 0.0
        %1831 = vmatprep.subr.mxu0 0.0
        %1832 = vmatpush1.msra.mxu0 0.0
        %1833 = vmatprep.subr.mxu0 0.0
        %1834 = vmatpush1.msra.mxu0 0.0
        %1835 = vmatprep.subr.mxu0 0.0
        %1836 = vmatpush1.msra.mxu0 0.0
        %1837 = vmatprep.subr.mxu0 0.0
        %1838 = vmatpush1.msra.mxu0 0.0
        %1839 = vmatprep.subr.mxu0 0.0
        %1840 = vmatpush1.msra.mxu0 0.0
        %1841 = vmatprep.subr.mxu0 0.0
        %1842 = vmatpush1.msra.mxu0 0.0
        %1843 = vmatprep.subr.mxu0 0.0
        %1844 = vmatpush1.msra.mxu0 0.0
        %1845 = vmatprep.subr.mxu0 0.0
        %1846 = vmatpush1.msra.mxu0 0.0
        %1847 = vmatprep.subr.mxu0 0.0
        %1848 = vmatpush1.msra.mxu0 0.0
        %1849 = vmatprep.subr.mxu0 0.0
        %1850 = vmatpush1.msra.mxu0 0.0
        %1851 = vmatprep.subr.mxu0 0.0
        %1852 = vmatpush1.msra.mxu0 0.0
        %1853 = vmatprep.subr.mxu0 0.0
        %1854 = vmatpush1.msra.mxu0 0.0
        %1855 = vmatprep.subr.mxu0 0.0
        %1856 = vmatpush1.msra.mxu0 0.0
        %1857 = vmatprep.mubr.f32.mxu0 0.0
        %1858 = vmatmul.mubr.f32.gmra.mrb[0].mxu0 %v1791
        %v1859 = vpop.f32.mrb[0].mxu0
        %v1860 = vadd.f32 0.0, %v1859
        %v1861 = vpop.f32.mrb[0].mxu0
        %v1862 = vadd.f32 0.0, %v1861
        %1863 = vdwg.mxu0
        %1864 = vmatprep.subr.mxu0 %v1789
        %1865 = vmatpush1.msra.mxu0 %v1788
        %1866 = vmatprep.subr.mxu0 0.0
        %1867 = vmatpush1.msra.mxu0 0.0
        %1868 = vmatprep.subr.mxu0 0.0
        %1869 = vmatpush1.msra.mxu0 0.0
        %1870 = vmatprep.subr.mxu0 0.0
        %1871 = vmatpush1.msra.mxu0 0.0
        %1872 = vmatprep.subr.mxu0 0.0
        %1873 = vmatpush1.msra.mxu0 0.0
        %1874 = vmatprep.subr.mxu0 0.0
        %1875 = vmatpush1.msra.mxu0 0.0
        %1876 = vmatprep.subr.mxu0 0.0
        %1877 = vmatpush1.msra.mxu0 0.0
        %1878 = vmatprep.subr.mxu0 0.0
        %1879 = vmatpush1.msra.mxu0 0.0
        %1880 = vmatprep.subr.mxu0 0.0
        %1881 = vmatpush1.msra.mxu0 0.0
        %1882 = vmatprep.subr.mxu0 0.0
        %1883 = vmatpush1.msra.mxu0 0.0
        %1884 = vmatprep.subr.mxu0 0.0
        %1885 = vmatpush1.msra.mxu0 0.0
        %1886 = vmatprep.subr.mxu0 0.0
        %1887 = vmatpush1.msra.mxu0 0.0
        %1888 = vmatprep.subr.mxu0 0.0
        %1889 = vmatpush1.msra.mxu0 0.0
        %1890 = vmatprep.subr.mxu0 0.0
        %1891 = vmatpush1.msra.mxu0 0.0
        %1892 = vmatprep.subr.mxu0 0.0
        %1893 = vmatpush1.msra.mxu0 0.0
        %1894 = vmatprep.subr.mxu0 0.0
        %1895 = vmatpush1.msra.mxu0 0.0
        %1896 = vmatprep.subr.mxu0 0.0
        %1897 = vmatpush1.msra.mxu0 0.0
        %1898 = vmatprep.subr.mxu0 0.0
        %1899 = vmatpush1.msra.mxu0 0.0
        %1900 = vmatprep.subr.mxu0 0.0
        %1901 = vmatpush1.msra.mxu0 0.0
        %1902 = vmatprep.subr.mxu0 0.0
        %1903 = vmatpush1.msra.mxu0 0.0
        %1904 = vmatprep.subr.mxu0 0.0
        %1905 = vmatpush1.msra.mxu0 0.0
        %1906 = vmatprep.subr.mxu0 0.0
        %1907 = vmatpush1.msra.mxu0 0.0
        %1908 = vmatprep.subr.mxu0 0.0
        %1909 = vmatpush1.msra.mxu0 0.0
        %1910 = vmatprep.subr.mxu0 0.0
        %1911 = vmatpush1.msra.mxu0 0.0
        %1912 = vmatprep.subr.mxu0 0.0
        %1913 = vmatpush1.msra.mxu0 0.0
        %1914 = vmatprep.subr.mxu0 0.0
        %1915 = vmatpush1.msra.mxu0 0.0
        %1916 = vmatprep.subr.mxu0 0.0
        %1917 = vmatpush1.msra.mxu0 0.0
        %1918 = vmatprep.subr.mxu0 0.0
        %1919 = vmatpush1.msra.mxu0 0.0
        %1920 = vmatprep.subr.mxu0 0.0
        %1921 = vmatpush1.msra.mxu0 0.0
        %1922 = vmatprep.subr.mxu0 0.0
        %1923 = vmatpush1.msra.mxu0 0.0
        %1924 = vmatprep.subr.mxu0 0.0
        %1925 = vmatpush1.msra.mxu0 0.0
        %1926 = vmatprep.subr.mxu0 0.0
        %1927 = vmatpush1.msra.mxu0 0.0
        %1928 = vmatprep.mubr.f32.mxu0 0.0
        %1929 = vmatmul.mubr.f32.gmra.mrb[0].mxu0 %v1791
        %v1930 = vpop.f32.mrb[0].mxu0
        %v1931 = vadd.f32 0.0, %v1930
        %v1932 = vpop.f32.mrb[0].mxu0
        %v1933 = vadd.f32 0.0, %v1932
        %1934 = vdwg.mxu0
        %v1935 = vadd.f32 %v1744, %v1860
        %v1936 = vadd.f32 %v1745, %v1862
        %v1937 = vadd.f32 %v1746, %v1931
        %v1938 = vadd.f32 %v1747, %v1933
        %s1939 = scalar_lea.vmem %s1, 72
        %v1940 = vld [vmem:[%s1939] sm:$0xff]
        %1941 = vrot.lane.b32.xlu0 %v223, 9
        %v1942 = vpop.permute.xlu0 %1941
        %1943 = vrot.lane.b32.xlu0 %v224, 9
        %v1944 = vpop.permute.xlu0 %1943
        %1945 = vrot.lane.b32.xlu0 %v225, 9
        %v1946 = vpop.permute.xlu0 %1945
        %1947 = vrot.lane.b32.xlu0 %v226, 9
        %v1948 = vpop.permute.xlu0 %1947
        %vm1949 = vcmp.lt.s32.totalorder %v237, 9
        %v1950 = vsel %vm1949, %v1946, %v1948
        %v1951 = vsel %vm1949, %v1944, %v1946
        %v1952 = vsel %vm1949, %v1942, %v1944
        %v1953 = vsel %vm1949, %v1948, %v1942
        %s1954 = scalar_lea.vmem %s4, 33
        %v1955 = vld [vmem:[%s1954] ss:$8 sm:$0xf]
        %v1957 = vlaneseq
        %v1958 = vshrl.u32 %v1957, 7
        %v1959 = vsub.s32 0, %v1958
        %v1960 = vrot.slane %v1955, %v1959
        %v1961 = vlaneseq
        %v1962 = vshrl.u32 %v1961, 7
        %v1963 = vsub.s32 1, %v1962
        %v1964 = vrot.slane %v1955, %v1963
        %v1965 = vlaneseq
        %v1966 = vshrl.u32 %v1965, 7
        %v1967 = vsub.s32 2, %v1966
        %v1968 = vrot.slane %v1955, %v1967
        %v1969 = vlaneseq
        %v1970 = vshrl.u32 %v1969, 7
        %v1971 = vsub.s32 3, %v1970
        %v1972 = vrot.slane %v1955, %v1971
        %v1977 = vmul.f32 %v1953, %v1960
        %v1978 = vmul.f32 %v1952, %v1964
        %v1979 = vmul.f32 %v1951, %v1968
        %v1980 = vmul.f32 %v1950, %v1972
        %v1982 = vsel %vm311, %v1940, 0
        %1984 = vmatprep.subr.mxu0 %v1978
        %1985 = vmatpush1.msra.mxu0 %v1977
        %1986 = vmatprep.subr.mxu0 0.0
        %1987 = vmatpush1.msra.mxu0 0.0
        %1988 = vmatprep.subr.mxu0 0.0
        %1989 = vmatpush1.msra.mxu0 0.0
        %1990 = vmatprep.subr.mxu0 0.0
        %1991 = vmatpush1.msra.mxu0 0.0
        %1992 = vmatprep.subr.mxu0 0.0
        %1993 = vmatpush1.msra.mxu0 0.0
        %1994 = vmatprep.subr.mxu0 0.0
        %1995 = vmatpush1.msra.mxu0 0.0
        %1996 = vmatprep.subr.mxu0 0.0
        %1997 = vmatpush1.msra.mxu0 0.0
        %1998 = vmatprep.subr.mxu0 0.0
        %1999 = vmatpush1.msra.mxu0 0.0
        %2000 = vmatprep.subr.mxu0 0.0
        %2001 = vmatpush1.msra.mxu0 0.0
        %2002 = vmatprep.subr.mxu0 0.0
        %2003 = vmatpush1.msra.mxu0 0.0
        %2004 = vmatprep.subr.mxu0 0.0
        %2005 = vmatpush1.msra.mxu0 0.0
        %2006 = vmatprep.subr.mxu0 0.0
        %2007 = vmatpush1.msra.mxu0 0.0
        %2008 = vmatprep.subr.mxu0 0.0
        %2009 = vmatpush1.msra.mxu0 0.0
        %2010 = vmatprep.subr.mxu0 0.0
        %2011 = vmatpush1.msra.mxu0 0.0
        %2012 = vmatprep.subr.mxu0 0.0
        %2013 = vmatpush1.msra.mxu0 0.0
        %2014 = vmatprep.subr.mxu0 0.0
        %2015 = vmatpush1.msra.mxu0 0.0
        %2016 = vmatprep.subr.mxu0 0.0
        %2017 = vmatpush1.msra.mxu0 0.0
        %2018 = vmatprep.subr.mxu0 0.0
        %2019 = vmatpush1.msra.mxu0 0.0
        %2020 = vmatprep.subr.mxu0 0.0
        %2021 = vmatpush1.msra.mxu0 0.0
        %2022 = vmatprep.subr.mxu0 0.0
        %2023 = vmatpush1.msra.mxu0 0.0
        %2024 = vmatprep.subr.mxu0 0.0
        %2025 = vmatpush1.msra.mxu0 0.0
        %2026 = vmatprep.subr.mxu0 0.0
        %2027 = vmatpush1.msra.mxu0 0.0
        %2028 = vmatprep.subr.mxu0 0.0
        %2029 = vmatpush1.msra.mxu0 0.0
        %2030 = vmatprep.subr.mxu0 0.0
        %2031 = vmatpush1.msra.mxu0 0.0
        %2032 = vmatprep.subr.mxu0 0.0
        %2033 = vmatpush1.msra.mxu0 0.0
        %2034 = vmatprep.subr.mxu0 0.0
        %2035 = vmatpush1.msra.mxu0 0.0
        %2036 = vmatprep.subr.mxu0 0.0
        %2037 = vmatpush1.msra.mxu0 0.0
        %2038 = vmatprep.subr.mxu0 0.0
        %2039 = vmatpush1.msra.mxu0 0.0
        %2040 = vmatprep.subr.mxu0 0.0
        %2041 = vmatpush1.msra.mxu0 0.0
        %2042 = vmatprep.subr.mxu0 0.0
        %2043 = vmatpush1.msra.mxu0 0.0
        %2044 = vmatprep.subr.mxu0 0.0
        %2045 = vmatpush1.msra.mxu0 0.0
        %2046 = vmatprep.subr.mxu0 0.0
        %2047 = vmatpush1.msra.mxu0 0.0
        %2048 = vmatprep.mubr.f32.mxu0 0.0
        %2049 = vmatmul.mubr.f32.gmra.mrb[0].mxu0 %v1982
        %v2050 = vpop.f32.mrb[0].mxu0
        %v2051 = vadd.f32 0.0, %v2050
        %v2052 = vpop.f32.mrb[0].mxu0
        %v2053 = vadd.f32 0.0, %v2052
        %2054 = vdwg.mxu0
        %2055 = vmatprep.subr.mxu0 %v1980
        %2056 = vmatpush1.msra.mxu0 %v1979
        %2057 = vmatprep.subr.mxu0 0.0
        %2058 = vmatpush1.msra.mxu0 0.0
        %2059 = vmatprep.subr.mxu0 0.0
        %2060 = vmatpush1.msra.mxu0 0.0
        %2061 = vmatprep.subr.mxu0 0.0
        %2062 = vmatpush1.msra.mxu0 0.0
        %2063 = vmatprep.subr.mxu0 0.0
        %2064 = vmatpush1.msra.mxu0 0.0
        %2065 = vmatprep.subr.mxu0 0.0
        %2066 = vmatpush1.msra.mxu0 0.0
        %2067 = vmatprep.subr.mxu0 0.0
        %2068 = vmatpush1.msra.mxu0 0.0
        %2069 = vmatprep.subr.mxu0 0.0
        %2070 = vmatpush1.msra.mxu0 0.0
        %2071 = vmatprep.subr.mxu0 0.0
        %2072 = vmatpush1.msra.mxu0 0.0
        %2073 = vmatprep.subr.mxu0 0.0
        %2074 = vmatpush1.msra.mxu0 0.0
        %2075 = vmatprep.subr.mxu0 0.0
        %2076 = vmatpush1.msra.mxu0 0.0
        %2077 = vmatprep.subr.mxu0 0.0
        %2078 = vmatpush1.msra.mxu0 0.0
        %2079 = vmatprep.subr.mxu0 0.0
        %2080 = vmatpush1.msra.mxu0 0.0
        %2081 = vmatprep.subr.mxu0 0.0
        %2082 = vmatpush1.msra.mxu0 0.0
        %2083 = vmatprep.subr.mxu0 0.0
        %2084 = vmatpush1.msra.mxu0 0.0
        %2085 = vmatprep.subr.mxu0 0.0
        %2086 = vmatpush1.msra.mxu0 0.0
        %2087 = vmatprep.subr.mxu0 0.0
        %2088 = vmatpush1.msra.mxu0 0.0
        %2089 = vmatprep.subr.mxu0 0.0
        %2090 = vmatpush1.msra.mxu0 0.0
        %2091 = vmatprep.subr.mxu0 0.0
        %2092 = vmatpush1.msra.mxu0 0.0
        %2093 = vmatprep.subr.mxu0 0.0
        %2094 = vmatpush1.msra.mxu0 0.0
        %2095 = vmatprep.subr.mxu0 0.0
        %2096 = vmatpush1.msra.mxu0 0.0
        %2097 = vmatprep.subr.mxu0 0.0
        %2098 = vmatpush1.msra.mxu0 0.0
        %2099 = vmatprep.subr.mxu0 0.0
        %2100 = vmatpush1.msra.mxu0 0.0
        %2101 = vmatprep.subr.mxu0 0.0
        %2102 = vmatpush1.msra.mxu0 0.0
        %2103 = vmatprep.subr.mxu0 0.0
        %2104 = vmatpush1.msra.mxu0 0.0
        %2105 = vmatprep.subr.mxu0 0.0
        %2106 = vmatpush1.msra.mxu0 0.0
        %2107 = vmatprep.subr.mxu0 0.0
        %2108 = vmatpush1.msra.mxu0 0.0
        %2109 = vmatprep.subr.mxu0 0.0
        %2110 = vmatpush1.msra.mxu0 0.0
        %2111 = vmatprep.subr.mxu0 0.0
        %2112 = vmatpush1.msra.mxu0 0.0
        %2113 = vmatprep.subr.mxu0 0.0
        %2114 = vmatpush1.msra.mxu0 0.0
        %2115 = vmatprep.subr.mxu0 0.0
        %2116 = vmatpush1.msra.mxu0 0.0
        %2117 = vmatprep.subr.mxu0 0.0
        %2118 = vmatpush1.msra.mxu0 0.0
        %2119 = vmatprep.mubr.f32.mxu0 0.0
        %2120 = vmatmul.mubr.f32.gmra.mrb[0].mxu0 %v1982
        %v2121 = vpop.f32.mrb[0].mxu0
        %v2122 = vadd.f32 0.0, %v2121
        %v2123 = vpop.f32.mrb[0].mxu0
        %v2124 = vadd.f32 0.0, %v2123
        %2125 = vdwg.mxu0
        %v2126 = vadd.f32 %v1935, %v2051
        %v2127 = vadd.f32 %v1936, %v2053
        %v2128 = vadd.f32 %v1937, %v2122
        %v2129 = vadd.f32 %v1938, %v2124
        %s2130 = scalar_lea.vmem %s1, 80
        %v2131 = vld [vmem:[%s2130] sm:$0xff]
        %2132 = vrot.lane.b32.xlu0 %v223, 8
        %v2133 = vpop.permute.xlu0 %2132
        %2134 = vrot.lane.b32.xlu0 %v224, 8
        %v2135 = vpop.permute.xlu0 %2134
        %2136 = vrot.lane.b32.xlu0 %v225, 8
        %v2137 = vpop.permute.xlu0 %2136
        %2138 = vrot.lane.b32.xlu0 %v226, 8
        %v2139 = vpop.permute.xlu0 %2138
        %vm2140 = vcmp.lt.s32.totalorder %v237, 8
        %v2141 = vsel %vm2140, %v2137, %v2139
        %v2142 = vsel %vm2140, %v2135, %v2137
        %v2143 = vsel %vm2140, %v2133, %v2135
        %v2144 = vsel %vm2140, %v2139, %v2133
        %s2145 = scalar_lea.vmem %s4, 34
        %v2146 = vld [vmem:[%s2145] ss:$8 sm:$0xf]
        %v2148 = vlaneseq
        %v2149 = vshrl.u32 %v2148, 7
        %v2150 = vsub.s32 0, %v2149
        %v2151 = vrot.slane %v2146, %v2150
        %v2152 = vlaneseq
        %v2153 = vshrl.u32 %v2152, 7
        %v2154 = vsub.s32 1, %v2153
        %v2155 = vrot.slane %v2146, %v2154
        %v2156 = vlaneseq
        %v2157 = vshrl.u32 %v2156, 7
        %v2158 = vsub.s32 2, %v2157
        %v2159 = vrot.slane %v2146, %v2158
        %v2160 = vlaneseq
        %v2161 = vshrl.u32 %v2160, 7
        %v2162 = vsub.s32 3, %v2161
        %v2163 = vrot.slane %v2146, %v2162
        %v2168 = vmul.f32 %v2144, %v2151
        %v2169 = vmul.f32 %v2143, %v2155
        %v2170 = vmul.f32 %v2142, %v2159
        %v2171 = vmul.f32 %v2141, %v2163
        %v2173 = vsel %vm311, %v2131, 0
        %2175 = vmatprep.subr.mxu0 %v2169
        %2176 = vmatpush1.msra.mxu0 %v2168
        %2177 = vmatprep.subr.mxu0 0.0
        %2178 = vmatpush1.msra.mxu0 0.0
        %2179 = vmatprep.subr.mxu0 0.0
        %2180 = vmatpush1.msra.mxu0 0.0
        %2181 = vmatprep.subr.mxu0 0.0
        %2182 = vmatpush1.msra.mxu0 0.0
        %2183 = vmatprep.subr.mxu0 0.0
        %2184 = vmatpush1.msra.mxu0 0.0
        %2185 = vmatprep.subr.mxu0 0.0
        %2186 = vmatpush1.msra.mxu0 0.0
        %2187 = vmatprep.subr.mxu0 0.0
        %2188 = vmatpush1.msra.mxu0 0.0
        %2189 = vmatprep.subr.mxu0 0.0
        %2190 = vmatpush1.msra.mxu0 0.0
        %2191 = vmatprep.subr.mxu0 0.0
        %2192 = vmatpush1.msra.mxu0 0.0
        %2193 = vmatprep.subr.mxu0 0.0
        %2194 = vmatpush1.msra.mxu0 0.0
        %2195 = vmatprep.subr.mxu0 0.0
        %2196 = vmatpush1.msra.mxu0 0.0
        %2197 = vmatprep.subr.mxu0 0.0
        %2198 = vmatpush1.msra.mxu0 0.0
        %2199 = vmatprep.subr.mxu0 0.0
        %2200 = vmatpush1.msra.mxu0 0.0
        %2201 = vmatprep.subr.mxu0 0.0
        %2202 = vmatpush1.msra.mxu0 0.0
        %2203 = vmatprep.subr.mxu0 0.0
        %2204 = vmatpush1.msra.mxu0 0.0
        %2205 = vmatprep.subr.mxu0 0.0
        %2206 = vmatpush1.msra.mxu0 0.0
        %2207 = vmatprep.subr.mxu0 0.0
        %2208 = vmatpush1.msra.mxu0 0.0
        %2209 = vmatprep.subr.mxu0 0.0
        %2210 = vmatpush1.msra.mxu0 0.0
        %2211 = vmatprep.subr.mxu0 0.0
        %2212 = vmatpush1.msra.mxu0 0.0
        %2213 = vmatprep.subr.mxu0 0.0
        %2214 = vmatpush1.msra.mxu0 0.0
        %2215 = vmatprep.subr.mxu0 0.0
        %2216 = vmatpush1.msra.mxu0 0.0
        %2217 = vmatprep.subr.mxu0 0.0
        %2218 = vmatpush1.msra.mxu0 0.0
        %2219 = vmatprep.subr.mxu0 0.0
        %2220 = vmatpush1.msra.mxu0 0.0
        %2221 = vmatprep.subr.mxu0 0.0
        %2222 = vmatpush1.msra.mxu0 0.0
        %2223 = vmatprep.subr.mxu0 0.0
        %2224 = vmatpush1.msra.mxu0 0.0
        %2225 = vmatprep.subr.mxu0 0.0
        %2226 = vmatpush1.msra.mxu0 0.0
        %2227 = vmatprep.subr.mxu0 0.0
        %2228 = vmatpush1.msra.mxu0 0.0
        %2229 = vmatprep.subr.mxu0 0.0
        %2230 = vmatpush1.msra.mxu0 0.0
        %2231 = vmatprep.subr.mxu0 0.0
        %2232 = vmatpush1.msra.mxu0 0.0
        %2233 = vmatprep.subr.mxu0 0.0
        %2234 = vmatpush1.msra.mxu0 0.0
        %2235 = vmatprep.subr.mxu0 0.0
        %2236 = vmatpush1.msra.mxu0 0.0
        %2237 = vmatprep.subr.mxu0 0.0
        %2238 = vmatpush1.msra.mxu0 0.0
        %2239 = vmatprep.mubr.f32.mxu0 0.0
        %2240 = vmatmul.mubr.f32.gmra.mrb[0].mxu0 %v2173
        %v2241 = vpop.f32.mrb[0].mxu0
        %v2242 = vadd.f32 0.0, %v2241
        %v2243 = vpop.f32.mrb[0].mxu0
        %v2244 = vadd.f32 0.0, %v2243
        %2245 = vdwg.mxu0
        %2246 = vmatprep.subr.mxu0 %v2171
        %2247 = vmatpush1.msra.mxu0 %v2170
        %2248 = vmatprep.subr.mxu0 0.0
        %2249 = vmatpush1.msra.mxu0 0.0
        %2250 = vmatprep.subr.mxu0 0.0
        %2251 = vmatpush1.msra.mxu0 0.0
        %2252 = vmatprep.subr.mxu0 0.0
        %2253 = vmatpush1.msra.mxu0 0.0
        %2254 = vmatprep.subr.mxu0 0.0
        %2255 = vmatpush1.msra.mxu0 0.0
        %2256 = vmatprep.subr.mxu0 0.0
        %2257 = vmatpush1.msra.mxu0 0.0
        %2258 = vmatprep.subr.mxu0 0.0
        %2259 = vmatpush1.msra.mxu0 0.0
        %2260 = vmatprep.subr.mxu0 0.0
        %2261 = vmatpush1.msra.mxu0 0.0
        %2262 = vmatprep.subr.mxu0 0.0
        %2263 = vmatpush1.msra.mxu0 0.0
        %2264 = vmatprep.subr.mxu0 0.0
        %2265 = vmatpush1.msra.mxu0 0.0
        %2266 = vmatprep.subr.mxu0 0.0
        %2267 = vmatpush1.msra.mxu0 0.0
        %2268 = vmatprep.subr.mxu0 0.0
        %2269 = vmatpush1.msra.mxu0 0.0
        %2270 = vmatprep.subr.mxu0 0.0
        %2271 = vmatpush1.msra.mxu0 0.0
        %2272 = vmatprep.subr.mxu0 0.0
        %2273 = vmatpush1.msra.mxu0 0.0
        %2274 = vmatprep.subr.mxu0 0.0
        %2275 = vmatpush1.msra.mxu0 0.0
        %2276 = vmatprep.subr.mxu0 0.0
        %2277 = vmatpush1.msra.mxu0 0.0
        %2278 = vmatprep.subr.mxu0 0.0
        %2279 = vmatpush1.msra.mxu0 0.0
        %2280 = vmatprep.subr.mxu0 0.0
        %2281 = vmatpush1.msra.mxu0 0.0
        %2282 = vmatprep.subr.mxu0 0.0
        %2283 = vmatpush1.msra.mxu0 0.0
        %2284 = vmatprep.subr.mxu0 0.0
        %2285 = vmatpush1.msra.mxu0 0.0
        %2286 = vmatprep.subr.mxu0 0.0
        %2287 = vmatpush1.msra.mxu0 0.0
        %2288 = vmatprep.subr.mxu0 0.0
        %2289 = vmatpush1.msra.mxu0 0.0
        %2290 = vmatprep.subr.mxu0 0.0
        %2291 = vmatpush1.msra.mxu0 0.0
        %2292 = vmatprep.subr.mxu0 0.0
        %2293 = vmatpush1.msra.mxu0 0.0
        %2294 = vmatprep.subr.mxu0 0.0
        %2295 = vmatpush1.msra.mxu0 0.0
        %2296 = vmatprep.subr.mxu0 0.0
        %2297 = vmatpush1.msra.mxu0 0.0
        %2298 = vmatprep.subr.mxu0 0.0
        %2299 = vmatpush1.msra.mxu0 0.0
        %2300 = vmatprep.subr.mxu0 0.0
        %2301 = vmatpush1.msra.mxu0 0.0
        %2302 = vmatprep.subr.mxu0 0.0
        %2303 = vmatpush1.msra.mxu0 0.0
        %2304 = vmatprep.subr.mxu0 0.0
        %2305 = vmatpush1.msra.mxu0 0.0
        %2306 = vmatprep.subr.mxu0 0.0
        %2307 = vmatpush1.msra.mxu0 0.0
        %2308 = vmatprep.subr.mxu0 0.0
        %2309 = vmatpush1.msra.mxu0 0.0
        %2310 = vmatprep.mubr.f32.mxu0 0.0
        %2311 = vmatmul.mubr.f32.gmra.mrb[0].mxu0 %v2173
        %v2312 = vpop.f32.mrb[0].mxu0
        %v2313 = vadd.f32 0.0, %v2312
        %v2314 = vpop.f32.mrb[0].mxu0
        %v2315 = vadd.f32 0.0, %v2314
        %2316 = vdwg.mxu0
        %v2317 = vadd.f32 %v2126, %v2242
        %v2318 = vadd.f32 %v2127, %v2244
        %v2319 = vadd.f32 %v2128, %v2313
        %v2320 = vadd.f32 %v2129, %v2315
        %s2321 = scalar_lea.vmem %s1, 88
        %v2322 = vld [vmem:[%s2321] sm:$0xff]
        %2323 = vrot.lane.b32.xlu0 %v223, 7
        %v2324 = vpop.permute.xlu0 %2323
        %2325 = vrot.lane.b32.xlu0 %v224, 7
        %v2326 = vpop.permute.xlu0 %2325
        %2327 = vrot.lane.b32.xlu0 %v225, 7
        %v2328 = vpop.permute.xlu0 %2327
        %2329 = vrot.lane.b32.xlu0 %v226, 7
        %v2330 = vpop.permute.xlu0 %2329
        %vm2331 = vcmp.lt.s32.totalorder %v237, 7
        %v2332 = vsel %vm2331, %v2328, %v2330
        %v2333 = vsel %vm2331, %v2326, %v2328
        %v2334 = vsel %vm2331, %v2324, %v2326
        %v2335 = vsel %vm2331, %v2330, %v2324
        %s2336 = scalar_lea.vmem %s4, 35
        %v2337 = vld [vmem:[%s2336] ss:$8 sm:$0xf]
        %v2339 = vlaneseq
        %v2340 = vshrl.u32 %v2339, 7
        %v2341 = vsub.s32 0, %v2340
        %v2342 = vrot.slane %v2337, %v2341
        %v2343 = vlaneseq
        %v2344 = vshrl.u32 %v2343, 7
        %v2345 = vsub.s32 1, %v2344
        %v2346 = vrot.slane %v2337, %v2345
        %v2347 = vlaneseq
        %v2348 = vshrl.u32 %v2347, 7
        %v2349 = vsub.s32 2, %v2348
        %v2350 = vrot.slane %v2337, %v2349
        %v2351 = vlaneseq
        %v2352 = vshrl.u32 %v2351, 7
        %v2353 = vsub.s32 3, %v2352
        %v2354 = vrot.slane %v2337, %v2353
        %v2359 = vmul.f32 %v2335, %v2342
        %v2360 = vmul.f32 %v2334, %v2346
        %v2361 = vmul.f32 %v2333, %v2350
        %v2362 = vmul.f32 %v2332, %v2354
        %v2364 = vsel %vm311, %v2322, 0
        %2366 = vmatprep.subr.mxu0 %v2360
        %2367 = vmatpush1.msra.mxu0 %v2359
        %2368 = vmatprep.subr.mxu0 0.0
        %2369 = vmatpush1.msra.mxu0 0.0
        %2370 = vmatprep.subr.mxu0 0.0
        %2371 = vmatpush1.msra.mxu0 0.0
        %2372 = vmatprep.subr.mxu0 0.0
        %2373 = vmatpush1.msra.mxu0 0.0
        %2374 = vmatprep.subr.mxu0 0.0
        %2375 = vmatpush1.msra.mxu0 0.0
        %2376 = vmatprep.subr.mxu0 0.0
        %2377 = vmatpush1.msra.mxu0 0.0
        %2378 = vmatprep.subr.mxu0 0.0
        %2379 = vmatpush1.msra.mxu0 0.0
        %2380 = vmatprep.subr.mxu0 0.0
        %2381 = vmatpush1.msra.mxu0 0.0
        %2382 = vmatprep.subr.mxu0 0.0
        %2383 = vmatpush1.msra.mxu0 0.0
        %2384 = vmatprep.subr.mxu0 0.0
        %2385 = vmatpush1.msra.mxu0 0.0
        %2386 = vmatprep.subr.mxu0 0.0
        %2387 = vmatpush1.msra.mxu0 0.0
        %2388 = vmatprep.subr.mxu0 0.0
        %2389 = vmatpush1.msra.mxu0 0.0
        %2390 = vmatprep.subr.mxu0 0.0
        %2391 = vmatpush1.msra.mxu0 0.0
        %2392 = vmatprep.subr.mxu0 0.0
        %2393 = vmatpush1.msra.mxu0 0.0
        %2394 = vmatprep.subr.mxu0 0.0
        %2395 = vmatpush1.msra.mxu0 0.0
        %2396 = vmatprep.subr.mxu0 0.0
        %2397 = vmatpush1.msra.mxu0 0.0
        %2398 = vmatprep.subr.mxu0 0.0
        %2399 = vmatpush1.msra.mxu0 0.0
        %2400 = vmatprep.subr.mxu0 0.0
        %2401 = vmatpush1.msra.mxu0 0.0
        %2402 = vmatprep.subr.mxu0 0.0
        %2403 = vmatpush1.msra.mxu0 0.0
        %2404 = vmatprep.subr.mxu0 0.0
        %2405 = vmatpush1.msra.mxu0 0.0
        %2406 = vmatprep.subr.mxu0 0.0
        %2407 = vmatpush1.msra.mxu0 0.0
        %2408 = vmatprep.subr.mxu0 0.0
        %2409 = vmatpush1.msra.mxu0 0.0
        %2410 = vmatprep.subr.mxu0 0.0
        %2411 = vmatpush1.msra.mxu0 0.0
        %2412 = vmatprep.subr.mxu0 0.0
        %2413 = vmatpush1.msra.mxu0 0.0
        %2414 = vmatprep.subr.mxu0 0.0
        %2415 = vmatpush1.msra.mxu0 0.0
        %2416 = vmatprep.subr.mxu0 0.0
        %2417 = vmatpush1.msra.mxu0 0.0
        %2418 = vmatprep.subr.mxu0 0.0
        %2419 = vmatpush1.msra.mxu0 0.0
        %2420 = vmatprep.subr.mxu0 0.0
        %2421 = vmatpush1.msra.mxu0 0.0
        %2422 = vmatprep.subr.mxu0 0.0
        %2423 = vmatpush1.msra.mxu0 0.0
        %2424 = vmatprep.subr.mxu0 0.0
        %2425 = vmatpush1.msra.mxu0 0.0
        %2426 = vmatprep.subr.mxu0 0.0
        %2427 = vmatpush1.msra.mxu0 0.0
        %2428 = vmatprep.subr.mxu0 0.0
        %2429 = vmatpush1.msra.mxu0 0.0
        %2430 = vmatprep.mubr.f32.mxu0 0.0
        %2431 = vmatmul.mubr.f32.gmra.mrb[0].mxu0 %v2364
        %v2432 = vpop.f32.mrb[0].mxu0
        %v2433 = vadd.f32 0.0, %v2432
        %v2434 = vpop.f32.mrb[0].mxu0
        %v2435 = vadd.f32 0.0, %v2434
        %2436 = vdwg.mxu0
        %2437 = vmatprep.subr.mxu0 %v2362
        %2438 = vmatpush1.msra.mxu0 %v2361
        %2439 = vmatprep.subr.mxu0 0.0
        %2440 = vmatpush1.msra.mxu0 0.0
        %2441 = vmatprep.subr.mxu0 0.0
        %2442 = vmatpush1.msra.mxu0 0.0
        %2443 = vmatprep.subr.mxu0 0.0
        %2444 = vmatpush1.msra.mxu0 0.0
        %2445 = vmatprep.subr.mxu0 0.0
        %2446 = vmatpush1.msra.mxu0 0.0
        %2447 = vmatprep.subr.mxu0 0.0
        %2448 = vmatpush1.msra.mxu0 0.0
        %2449 = vmatprep.subr.mxu0 0.0
        %2450 = vmatpush1.msra.mxu0 0.0
        %2451 = vmatprep.subr.mxu0 0.0
        %2452 = vmatpush1.msra.mxu0 0.0
        %2453 = vmatprep.subr.mxu0 0.0
        %2454 = vmatpush1.msra.mxu0 0.0
        %2455 = vmatprep.subr.mxu0 0.0
        %2456 = vmatpush1.msra.mxu0 0.0
        %2457 = vmatprep.subr.mxu0 0.0
        %2458 = vmatpush1.msra.mxu0 0.0
        %2459 = vmatprep.subr.mxu0 0.0
        %2460 = vmatpush1.msra.mxu0 0.0
        %2461 = vmatprep.subr.mxu0 0.0
        %2462 = vmatpush1.msra.mxu0 0.0
        %2463 = vmatprep.subr.mxu0 0.0
        %2464 = vmatpush1.msra.mxu0 0.0
        %2465 = vmatprep.subr.mxu0 0.0
        %2466 = vmatpush1.msra.mxu0 0.0
        %2467 = vmatprep.subr.mxu0 0.0
        %2468 = vmatpush1.msra.mxu0 0.0
        %2469 = vmatprep.subr.mxu0 0.0
        %2470 = vmatpush1.msra.mxu0 0.0
        %2471 = vmatprep.subr.mxu0 0.0
        %2472 = vmatpush1.msra.mxu0 0.0
        %2473 = vmatprep.subr.mxu0 0.0
        %2474 = vmatpush1.msra.mxu0 0.0
        %2475 = vmatprep.subr.mxu0 0.0
        %2476 = vmatpush1.msra.mxu0 0.0
        %2477 = vmatprep.subr.mxu0 0.0
        %2478 = vmatpush1.msra.mxu0 0.0
        %2479 = vmatprep.subr.mxu0 0.0
        %2480 = vmatpush1.msra.mxu0 0.0
        %2481 = vmatprep.subr.mxu0 0.0
        %2482 = vmatpush1.msra.mxu0 0.0
        %2483 = vmatprep.subr.mxu0 0.0
        %2484 = vmatpush1.msra.mxu0 0.0
        %2485 = vmatprep.subr.mxu0 0.0
        %2486 = vmatpush1.msra.mxu0 0.0
        %2487 = vmatprep.subr.mxu0 0.0
        %2488 = vmatpush1.msra.mxu0 0.0
        %2489 = vmatprep.subr.mxu0 0.0
        %2490 = vmatpush1.msra.mxu0 0.0
        %2491 = vmatprep.subr.mxu0 0.0
        %2492 = vmatpush1.msra.mxu0 0.0
        %2493 = vmatprep.subr.mxu0 0.0
        %2494 = vmatpush1.msra.mxu0 0.0
        %2495 = vmatprep.subr.mxu0 0.0
        %2496 = vmatpush1.msra.mxu0 0.0
        %2497 = vmatprep.subr.mxu0 0.0
        %2498 = vmatpush1.msra.mxu0 0.0
        %2499 = vmatprep.subr.mxu0 0.0
        %2500 = vmatpush1.msra.mxu0 0.0
        %2501 = vmatprep.mubr.f32.mxu0 0.0
        %2502 = vmatmul.mubr.f32.gmra.mrb[0].mxu0 %v2364
        %v2503 = vpop.f32.mrb[0].mxu0
        %v2504 = vadd.f32 0.0, %v2503
        %v2505 = vpop.f32.mrb[0].mxu0
        %v2506 = vadd.f32 0.0, %v2505
        %2507 = vdwg.mxu0
        %v2508 = vadd.f32 %v2317, %v2433
        %v2509 = vadd.f32 %v2318, %v2435
        %v2510 = vadd.f32 %v2319, %v2504
        %v2511 = vadd.f32 %v2320, %v2506
        %s2512 = scalar_lea.vmem %s1, 96
        %v2513 = vld [vmem:[%s2512] sm:$0xff]
        %2514 = vrot.lane.b32.xlu0 %v223, 1
        %v2515 = vpop.permute.xlu0 %2514
        %2516 = vrot.lane.b32.xlu0 %v224, 1
        %v2517 = vpop.permute.xlu0 %2516
        %2518 = vrot.lane.b32.xlu0 %v225, 1
        %v2519 = vpop.permute.xlu0 %2518
        %2520 = vrot.lane.b32.xlu0 %v226, 1
        %v2521 = vpop.permute.xlu0 %2520
        %vm2522 = vcmp.lt.s32.totalorder %v237, 1
        %v2523 = vsel %vm2522, %v2519, %v2521
        %v2524 = vsel %vm2522, %v2517, %v2519
        %v2525 = vsel %vm2522, %v2515, %v2517
        %v2526 = vsel %vm2522, %v2521, %v2515
        %s2527 = scalar_lea.vmem %s4, 36
        %v2528 = vld [vmem:[%s2527] ss:$8 sm:$0xf]
        %v2530 = vlaneseq
        %v2531 = vshrl.u32 %v2530, 7
        %v2532 = vsub.s32 0, %v2531
        %v2533 = vrot.slane %v2528, %v2532
        %v2534 = vlaneseq
        %v2535 = vshrl.u32 %v2534, 7
        %v2536 = vsub.s32 1, %v2535
        %v2537 = vrot.slane %v2528, %v2536
        %v2538 = vlaneseq
        %v2539 = vshrl.u32 %v2538, 7
        %v2540 = vsub.s32 2, %v2539
        %v2541 = vrot.slane %v2528, %v2540
        %v2542 = vlaneseq
        %v2543 = vshrl.u32 %v2542, 7
        %v2544 = vsub.s32 3, %v2543
        %v2545 = vrot.slane %v2528, %v2544
        %v2550 = vmul.f32 %v2526, %v2533
        %v2551 = vmul.f32 %v2525, %v2537
        %v2552 = vmul.f32 %v2524, %v2541
        %v2553 = vmul.f32 %v2523, %v2545
        %v2555 = vsel %vm311, %v2513, 0
        %2557 = vmatprep.subr.mxu0 %v2551
        %2558 = vmatpush1.msra.mxu0 %v2550
        %2559 = vmatprep.subr.mxu0 0.0
        %2560 = vmatpush1.msra.mxu0 0.0
        %2561 = vmatprep.subr.mxu0 0.0
        %2562 = vmatpush1.msra.mxu0 0.0
        %2563 = vmatprep.subr.mxu0 0.0
        %2564 = vmatpush1.msra.mxu0 0.0
        %2565 = vmatprep.subr.mxu0 0.0
        %2566 = vmatpush1.msra.mxu0 0.0
        %2567 = vmatprep.subr.mxu0 0.0
        %2568 = vmatpush1.msra.mxu0 0.0
        %2569 = vmatprep.subr.mxu0 0.0
        %2570 = vmatpush1.msra.mxu0 0.0
        %2571 = vmatprep.subr.mxu0 0.0
        %2572 = vmatpush1.msra.mxu0 0.0
        %2573 = vmatprep.subr.mxu0 0.0
        %2574 = vmatpush1.msra.mxu0 0.0
        %2575 = vmatprep.subr.mxu0 0.0
        %2576 = vmatpush1.msra.mxu0 0.0
        %2577 = vmatprep.subr.mxu0 0.0
        %2578 = vmatpush1.msra.mxu0 0.0
        %2579 = vmatprep.subr.mxu0 0.0
        %2580 = vmatpush1.msra.mxu0 0.0
        %2581 = vmatprep.subr.mxu0 0.0
        %2582 = vmatpush1.msra.mxu0 0.0
        %2583 = vmatprep.subr.mxu0 0.0
        %2584 = vmatpush1.msra.mxu0 0.0
        %2585 = vmatprep.subr.mxu0 0.0
        %2586 = vmatpush1.msra.mxu0 0.0
        %2587 = vmatprep.subr.mxu0 0.0
        %2588 = vmatpush1.msra.mxu0 0.0
        %2589 = vmatprep.subr.mxu0 0.0
        %2590 = vmatpush1.msra.mxu0 0.0
        %2591 = vmatprep.subr.mxu0 0.0
        %2592 = vmatpush1.msra.mxu0 0.0
        %2593 = vmatprep.subr.mxu0 0.0
        %2594 = vmatpush1.msra.mxu0 0.0
        %2595 = vmatprep.subr.mxu0 0.0
        %2596 = vmatpush1.msra.mxu0 0.0
        %2597 = vmatprep.subr.mxu0 0.0
        %2598 = vmatpush1.msra.mxu0 0.0
        %2599 = vmatprep.subr.mxu0 0.0
        %2600 = vmatpush1.msra.mxu0 0.0
        %2601 = vmatprep.subr.mxu0 0.0
        %2602 = vmatpush1.msra.mxu0 0.0
        %2603 = vmatprep.subr.mxu0 0.0
        %2604 = vmatpush1.msra.mxu0 0.0
        %2605 = vmatprep.subr.mxu0 0.0
        %2606 = vmatpush1.msra.mxu0 0.0
        %2607 = vmatprep.subr.mxu0 0.0
        %2608 = vmatpush1.msra.mxu0 0.0
        %2609 = vmatprep.subr.mxu0 0.0
        %2610 = vmatpush1.msra.mxu0 0.0
        %2611 = vmatprep.subr.mxu0 0.0
        %2612 = vmatpush1.msra.mxu0 0.0
        %2613 = vmatprep.subr.mxu0 0.0
        %2614 = vmatpush1.msra.mxu0 0.0
        %2615 = vmatprep.subr.mxu0 0.0
        %2616 = vmatpush1.msra.mxu0 0.0
        %2617 = vmatprep.subr.mxu0 0.0
        %2618 = vmatpush1.msra.mxu0 0.0
        %2619 = vmatprep.subr.mxu0 0.0
        %2620 = vmatpush1.msra.mxu0 0.0
        %2621 = vmatprep.mubr.f32.mxu0 0.0
        %2622 = vmatmul.mubr.f32.gmra.mrb[0].mxu0 %v2555
        %v2623 = vpop.f32.mrb[0].mxu0
        %v2624 = vadd.f32 0.0, %v2623
        %v2625 = vpop.f32.mrb[0].mxu0
        %v2626 = vadd.f32 0.0, %v2625
        %2627 = vdwg.mxu0
        %2628 = vmatprep.subr.mxu0 %v2553
        %2629 = vmatpush1.msra.mxu0 %v2552
        %2630 = vmatprep.subr.mxu0 0.0
        %2631 = vmatpush1.msra.mxu0 0.0
        %2632 = vmatprep.subr.mxu0 0.0
        %2633 = vmatpush1.msra.mxu0 0.0
        %2634 = vmatprep.subr.mxu0 0.0
        %2635 = vmatpush1.msra.mxu0 0.0
        %2636 = vmatprep.subr.mxu0 0.0
        %2637 = vmatpush1.msra.mxu0 0.0
        %2638 = vmatprep.subr.mxu0 0.0
        %2639 = vmatpush1.msra.mxu0 0.0
        %2640 = vmatprep.subr.mxu0 0.0
        %2641 = vmatpush1.msra.mxu0 0.0
        %2642 = vmatprep.subr.mxu0 0.0
        %2643 = vmatpush1.msra.mxu0 0.0
        %2644 = vmatprep.subr.mxu0 0.0
        %2645 = vmatpush1.msra.mxu0 0.0
        %2646 = vmatprep.subr.mxu0 0.0
        %2647 = vmatpush1.msra.mxu0 0.0
        %2648 = vmatprep.subr.mxu0 0.0
        %2649 = vmatpush1.msra.mxu0 0.0
        %2650 = vmatprep.subr.mxu0 0.0
        %2651 = vmatpush1.msra.mxu0 0.0
        %2652 = vmatprep.subr.mxu0 0.0
        %2653 = vmatpush1.msra.mxu0 0.0
        %2654 = vmatprep.subr.mxu0 0.0
        %2655 = vmatpush1.msra.mxu0 0.0
        %2656 = vmatprep.subr.mxu0 0.0
        %2657 = vmatpush1.msra.mxu0 0.0
        %2658 = vmatprep.subr.mxu0 0.0
        %2659 = vmatpush1.msra.mxu0 0.0
        %2660 = vmatprep.subr.mxu0 0.0
        %2661 = vmatpush1.msra.mxu0 0.0
        %2662 = vmatprep.subr.mxu0 0.0
        %2663 = vmatpush1.msra.mxu0 0.0
        %2664 = vmatprep.subr.mxu0 0.0
        %2665 = vmatpush1.msra.mxu0 0.0
        %2666 = vmatprep.subr.mxu0 0.0
        %2667 = vmatpush1.msra.mxu0 0.0
        %2668 = vmatprep.subr.mxu0 0.0
        %2669 = vmatpush1.msra.mxu0 0.0
        %2670 = vmatprep.subr.mxu0 0.0
        %2671 = vmatpush1.msra.mxu0 0.0
        %2672 = vmatprep.subr.mxu0 0.0
        %2673 = vmatpush1.msra.mxu0 0.0
        %2674 = vmatprep.subr.mxu0 0.0
        %2675 = vmatpush1.msra.mxu0 0.0
        %2676 = vmatprep.subr.mxu0 0.0
        %2677 = vmatpush1.msra.mxu0 0.0
        %2678 = vmatprep.subr.mxu0 0.0
        %2679 = vmatpush1.msra.mxu0 0.0
        %2680 = vmatprep.subr.mxu0 0.0
        %2681 = vmatpush1.msra.mxu0 0.0
        %2682 = vmatprep.subr.mxu0 0.0
        %2683 = vmatpush1.msra.mxu0 0.0
        %2684 = vmatprep.subr.mxu0 0.0
        %2685 = vmatpush1.msra.mxu0 0.0
        %2686 = vmatprep.subr.mxu0 0.0
        %2687 = vmatpush1.msra.mxu0 0.0
        %2688 = vmatprep.subr.mxu0 0.0
        %2689 = vmatpush1.msra.mxu0 0.0
        %2690 = vmatprep.subr.mxu0 0.0
        %2691 = vmatpush1.msra.mxu0 0.0
        %2692 = vmatprep.mubr.f32.mxu0 0.0
        %2693 = vmatmul.mubr.f32.gmra.mrb[0].mxu0 %v2555
        %v2694 = vpop.f32.mrb[0].mxu0
        %v2695 = vadd.f32 0.0, %v2694
        %v2696 = vpop.f32.mrb[0].mxu0
        %v2697 = vadd.f32 0.0, %v2696
        %2698 = vdwg.mxu0
        %v2699 = vadd.f32 %v2508, %v2624
        %v2700 = vadd.f32 %v2509, %v2626
        %v2701 = vadd.f32 %v2510, %v2695
        %v2702 = vadd.f32 %v2511, %v2697
        %s2703 = scalar_lea.vmem %s1, 104
        %v2704 = vld [vmem:[%s2703] sm:$0xff]
        %s2705 = scalar_lea.vmem %s4, 37
        %v2706 = vld [vmem:[%s2705] ss:$8 sm:$0xf]
        %v2708 = vlaneseq
        %v2709 = vshrl.u32 %v2708, 7
        %v2710 = vsub.s32 0, %v2709
        %v2711 = vrot.slane %v2706, %v2710
        %v2712 = vlaneseq
        %v2713 = vshrl.u32 %v2712, 7
        %v2714 = vsub.s32 1, %v2713
        %v2715 = vrot.slane %v2706, %v2714
        %v2716 = vlaneseq
        %v2717 = vshrl.u32 %v2716, 7
        %v2718 = vsub.s32 2, %v2717
        %v2719 = vrot.slane %v2706, %v2718
        %v2720 = vlaneseq
        %v2721 = vshrl.u32 %v2720, 7
        %v2722 = vsub.s32 3, %v2721
        %v2723 = vrot.slane %v2706, %v2722
        %v2728 = vmul.f32 %v223, %v2711
        %v2729 = vmul.f32 %v224, %v2715
        %v2730 = vmul.f32 %v225, %v2719
        %v2731 = vmul.f32 %v226, %v2723
        %v2733 = vsel %vm311, %v2704, 0
        %2735 = vmatprep.subr.mxu0 %v2729
        %2736 = vmatpush1.msra.mxu0 %v2728
        %2737 = vmatprep.subr.mxu0 0.0
        %2738 = vmatpush1.msra.mxu0 0.0
        %2739 = vmatprep.subr.mxu0 0.0
        %2740 = vmatpush1.msra.mxu0 0.0
        %2741 = vmatprep.subr.mxu0 0.0
        %2742 = vmatpush1.msra.mxu0 0.0
        %2743 = vmatprep.subr.mxu0 0.0
        %2744 = vmatpush1.msra.mxu0 0.0
        %2745 = vmatprep.subr.mxu0 0.0
        %2746 = vmatpush1.msra.mxu0 0.0
        %2747 = vmatprep.subr.mxu0 0.0
        %2748 = vmatpush1.msra.mxu0 0.0
        %2749 = vmatprep.subr.mxu0 0.0
        %2750 = vmatpush1.msra.mxu0 0.0
        %2751 = vmatprep.subr.mxu0 0.0
        %2752 = vmatpush1.msra.mxu0 0.0
        %2753 = vmatprep.subr.mxu0 0.0
        %2754 = vmatpush1.msra.mxu0 0.0
        %2755 = vmatprep.subr.mxu0 0.0
        %2756 = vmatpush1.msra.mxu0 0.0
        %2757 = vmatprep.subr.mxu0 0.0
        %2758 = vmatpush1.msra.mxu0 0.0
        %2759 = vmatprep.subr.mxu0 0.0
        %2760 = vmatpush1.msra.mxu0 0.0
        %2761 = vmatprep.subr.mxu0 0.0
        %2762 = vmatpush1.msra.mxu0 0.0
        %2763 = vmatprep.subr.mxu0 0.0
        %2764 = vmatpush1.msra.mxu0 0.0
        %2765 = vmatprep.subr.mxu0 0.0
        %2766 = vmatpush1.msra.mxu0 0.0
        %2767 = vmatprep.subr.mxu0 0.0
        %2768 = vmatpush1.msra.mxu0 0.0
        %2769 = vmatprep.subr.mxu0 0.0
        %2770 = vmatpush1.msra.mxu0 0.0
        %2771 = vmatprep.subr.mxu0 0.0
        %2772 = vmatpush1.msra.mxu0 0.0
        %2773 = vmatprep.subr.mxu0 0.0
        %2774 = vmatpush1.msra.mxu0 0.0
        %2775 = vmatprep.subr.mxu0 0.0
        %2776 = vmatpush1.msra.mxu0 0.0
        %2777 = vmatprep.subr.mxu0 0.0
        %2778 = vmatpush1.msra.mxu0 0.0
        %2779 = vmatprep.subr.mxu0 0.0
        %2780 = vmatpush1.msra.mxu0 0.0
        %2781 = vmatprep.subr.mxu0 0.0
        %2782 = vmatpush1.msra.mxu0 0.0
        %2783 = vmatprep.subr.mxu0 0.0
        %2784 = vmatpush1.msra.mxu0 0.0
        %2785 = vmatprep.subr.mxu0 0.0
        %2786 = vmatpush1.msra.mxu0 0.0
        %2787 = vmatprep.subr.mxu0 0.0
        %2788 = vmatpush1.msra.mxu0 0.0
        %2789 = vmatprep.subr.mxu0 0.0
        %2790 = vmatpush1.msra.mxu0 0.0
        %2791 = vmatprep.subr.mxu0 0.0
        %2792 = vmatpush1.msra.mxu0 0.0
        %2793 = vmatprep.subr.mxu0 0.0
        %2794 = vmatpush1.msra.mxu0 0.0
        %2795 = vmatprep.subr.mxu0 0.0
        %2796 = vmatpush1.msra.mxu0 0.0
        %2797 = vmatprep.subr.mxu0 0.0
        %2798 = vmatpush1.msra.mxu0 0.0
        %2799 = vmatprep.mubr.f32.mxu0 0.0
        %2800 = vmatmul.mubr.f32.gmra.mrb[0].mxu0 %v2733
        %v2801 = vpop.f32.mrb[0].mxu0
        %v2802 = vadd.f32 0.0, %v2801
        %v2803 = vpop.f32.mrb[0].mxu0
        %v2804 = vadd.f32 0.0, %v2803
        %2805 = vdwg.mxu0
        %2806 = vmatprep.subr.mxu0 %v2731
        %2807 = vmatpush1.msra.mxu0 %v2730
        %2808 = vmatprep.subr.mxu0 0.0
        %2809 = vmatpush1.msra.mxu0 0.0
        %2810 = vmatprep.subr.mxu0 0.0
        %2811 = vmatpush1.msra.mxu0 0.0
        %2812 = vmatprep.subr.mxu0 0.0
        %2813 = vmatpush1.msra.mxu0 0.0
        %2814 = vmatprep.subr.mxu0 0.0
        %2815 = vmatpush1.msra.mxu0 0.0
        %2816 = vmatprep.subr.mxu0 0.0
        %2817 = vmatpush1.msra.mxu0 0.0
        %2818 = vmatprep.subr.mxu0 0.0
        %2819 = vmatpush1.msra.mxu0 0.0
        %2820 = vmatprep.subr.mxu0 0.0
        %2821 = vmatpush1.msra.mxu0 0.0
        %2822 = vmatprep.subr.mxu0 0.0
        %2823 = vmatpush1.msra.mxu0 0.0
        %2824 = vmatprep.subr.mxu0 0.0
        %2825 = vmatpush1.msra.mxu0 0.0
        %2826 = vmatprep.subr.mxu0 0.0
        %2827 = vmatpush1.msra.mxu0 0.0
        %2828 = vmatprep.subr.mxu0 0.0
        %2829 = vmatpush1.msra.mxu0 0.0
        %2830 = vmatprep.subr.mxu0 0.0
        %2831 = vmatpush1.msra.mxu0 0.0
        %2832 = vmatprep.subr.mxu0 0.0
        %2833 = vmatpush1.msra.mxu0 0.0
        %2834 = vmatprep.subr.mxu0 0.0
        %2835 = vmatpush1.msra.mxu0 0.0
        %2836 = vmatprep.subr.mxu0 0.0
        %2837 = vmatpush1.msra.mxu0 0.0
        %2838 = vmatprep.subr.mxu0 0.0
        %2839 = vmatpush1.msra.mxu0 0.0
        %2840 = vmatprep.subr.mxu0 0.0
        %2841 = vmatpush1.msra.mxu0 0.0
        %2842 = vmatprep.subr.mxu0 0.0
        %2843 = vmatpush1.msra.mxu0 0.0
        %2844 = vmatprep.subr.mxu0 0.0
        %2845 = vmatpush1.msra.mxu0 0.0
        %2846 = vmatprep.subr.mxu0 0.0
        %2847 = vmatpush1.msra.mxu0 0.0
        %2848 = vmatprep.subr.mxu0 0.0
        %2849 = vmatpush1.msra.mxu0 0.0
        %2850 = vmatprep.subr.mxu0 0.0
        %2851 = vmatpush1.msra.mxu0 0.0
        %2852 = vmatprep.subr.mxu0 0.0
        %2853 = vmatpush1.msra.mxu0 0.0
        %2854 = vmatprep.subr.mxu0 0.0
        %2855 = vmatpush1.msra.mxu0 0.0
        %2856 = vmatprep.subr.mxu0 0.0
        %2857 = vmatpush1.msra.mxu0 0.0
        %2858 = vmatprep.subr.mxu0 0.0
        %2859 = vmatpush1.msra.mxu0 0.0
        %2860 = vmatprep.subr.mxu0 0.0
        %2861 = vmatpush1.msra.mxu0 0.0
        %2862 = vmatprep.subr.mxu0 0.0
        %2863 = vmatpush1.msra.mxu0 0.0
        %2864 = vmatprep.subr.mxu0 0.0
        %2865 = vmatpush1.msra.mxu0 0.0
        %2866 = vmatprep.subr.mxu0 0.0
        %2867 = vmatpush1.msra.mxu0 0.0
        %2868 = vmatprep.subr.mxu0 0.0
        %2869 = vmatpush1.msra.mxu0 0.0
        %2870 = vmatprep.mubr.f32.mxu0 0.0
        %2871 = vmatmul.mubr.f32.gmra.mrb[0].mxu0 %v2733
        %v2872 = vpop.f32.mrb[0].mxu0
        %v2873 = vadd.f32 0.0, %v2872
        %v2874 = vpop.f32.mrb[0].mxu0
        %v2875 = vadd.f32 0.0, %v2874
        %2876 = vdwg.mxu0
        %v2877 = vadd.f32 %v2699, %v2802
        %v2878 = vadd.f32 %v2700, %v2804
        %v2879 = vadd.f32 %v2701, %v2873
        %v2880 = vadd.f32 %v2702, %v2875
        %s2881 = scalar_lea.vmem %s1, 112
        %v2882 = vld [vmem:[%s2881] sm:$0xff]
        %2883 = vrot.lane.b32.xlu0 %v223, 127
        %v2884 = vpop.permute.xlu0 %2883
        %2885 = vrot.lane.b32.xlu0 %v224, 127
        %v2886 = vpop.permute.xlu0 %2885
        %2887 = vrot.lane.b32.xlu0 %v225, 127
        %v2888 = vpop.permute.xlu0 %2887
        %2889 = vrot.lane.b32.xlu0 %v226, 127
        %v2890 = vpop.permute.xlu0 %2889
        %vm2891 = vcmp.lt.s32.totalorder %v237, 127
        %v2892 = vsel %vm2891, %v2888, %v2890
        %v2893 = vsel %vm2891, %v2886, %v2888
        %v2894 = vsel %vm2891, %v2884, %v2886
        %v2895 = vsel %vm2891, %v2890, %v2884
        %s2896 = scalar_lea.vmem %s4, 38
        %v2897 = vld [vmem:[%s2896] ss:$8 sm:$0xf]
        %v2899 = vlaneseq
        %v2900 = vshrl.u32 %v2899, 7
        %v2901 = vsub.s32 0, %v2900
        %v2902 = vrot.slane %v2897, %v2901
        %v2903 = vlaneseq
        %v2904 = vshrl.u32 %v2903, 7
        %v2905 = vsub.s32 1, %v2904
        %v2906 = vrot.slane %v2897, %v2905
        %v2907 = vlaneseq
        %v2908 = vshrl.u32 %v2907, 7
        %v2909 = vsub.s32 2, %v2908
        %v2910 = vrot.slane %v2897, %v2909
        %v2911 = vlaneseq
        %v2912 = vshrl.u32 %v2911, 7
        %v2913 = vsub.s32 3, %v2912
        %v2914 = vrot.slane %v2897, %v2913
        %v2919 = vmul.f32 %v2894, %v2902
        %v2920 = vmul.f32 %v2893, %v2906
        %v2921 = vmul.f32 %v2892, %v2910
        %v2922 = vmul.f32 %v2895, %v2914
        %v2924 = vsel %vm311, %v2882, 0
        %2926 = vmatprep.subr.mxu0 %v2920
        %2927 = vmatpush1.msra.mxu0 %v2919
        %2928 = vmatprep.subr.mxu0 0.0
        %2929 = vmatpush1.msra.mxu0 0.0
        %2930 = vmatprep.subr.mxu0 0.0
        %2931 = vmatpush1.msra.mxu0 0.0
        %2932 = vmatprep.subr.mxu0 0.0
        %2933 = vmatpush1.msra.mxu0 0.0
        %2934 = vmatprep.subr.mxu0 0.0
        %2935 = vmatpush1.msra.mxu0 0.0
        %2936 = vmatprep.subr.mxu0 0.0
        %2937 = vmatpush1.msra.mxu0 0.0
        %2938 = vmatprep.subr.mxu0 0.0
        %2939 = vmatpush1.msra.mxu0 0.0
        %2940 = vmatprep.subr.mxu0 0.0
        %2941 = vmatpush1.msra.mxu0 0.0
        %2942 = vmatprep.subr.mxu0 0.0
        %2943 = vmatpush1.msra.mxu0 0.0
        %2944 = vmatprep.subr.mxu0 0.0
        %2945 = vmatpush1.msra.mxu0 0.0
        %2946 = vmatprep.subr.mxu0 0.0
        %2947 = vmatpush1.msra.mxu0 0.0
        %2948 = vmatprep.subr.mxu0 0.0
        %2949 = vmatpush1.msra.mxu0 0.0
        %2950 = vmatprep.subr.mxu0 0.0
        %2951 = vmatpush1.msra.mxu0 0.0
        %2952 = vmatprep.subr.mxu0 0.0
        %2953 = vmatpush1.msra.mxu0 0.0
        %2954 = vmatprep.subr.mxu0 0.0
        %2955 = vmatpush1.msra.mxu0 0.0
        %2956 = vmatprep.subr.mxu0 0.0
        %2957 = vmatpush1.msra.mxu0 0.0
        %2958 = vmatprep.subr.mxu0 0.0
        %2959 = vmatpush1.msra.mxu0 0.0
        %2960 = vmatprep.subr.mxu0 0.0
        %2961 = vmatpush1.msra.mxu0 0.0
        %2962 = vmatprep.subr.mxu0 0.0
        %2963 = vmatpush1.msra.mxu0 0.0
        %2964 = vmatprep.subr.mxu0 0.0
        %2965 = vmatpush1.msra.mxu0 0.0
        %2966 = vmatprep.subr.mxu0 0.0
        %2967 = vmatpush1.msra.mxu0 0.0
        %2968 = vmatprep.subr.mxu0 0.0
        %2969 = vmatpush1.msra.mxu0 0.0
        %2970 = vmatprep.subr.mxu0 0.0
        %2971 = vmatpush1.msra.mxu0 0.0
        %2972 = vmatprep.subr.mxu0 0.0
        %2973 = vmatpush1.msra.mxu0 0.0
        %2974 = vmatprep.subr.mxu0 0.0
        %2975 = vmatpush1.msra.mxu0 0.0
        %2976 = vmatprep.subr.mxu0 0.0
        %2977 = vmatpush1.msra.mxu0 0.0
        %2978 = vmatprep.subr.mxu0 0.0
        %2979 = vmatpush1.msra.mxu0 0.0
        %2980 = vmatprep.subr.mxu0 0.0
        %2981 = vmatpush1.msra.mxu0 0.0
        %2982 = vmatprep.subr.mxu0 0.0
        %2983 = vmatpush1.msra.mxu0 0.0
        %2984 = vmatprep.subr.mxu0 0.0
        %2985 = vmatpush1.msra.mxu0 0.0
        %2986 = vmatprep.subr.mxu0 0.0
        %2987 = vmatpush1.msra.mxu0 0.0
        %2988 = vmatprep.subr.mxu0 0.0
        %2989 = vmatpush1.msra.mxu0 0.0
        %2990 = vmatprep.mubr.f32.mxu0 0.0
        %2991 = vmatmul.mubr.f32.gmra.mrb[0].mxu0 %v2924
        %v2992 = vpop.f32.mrb[0].mxu0
        %v2993 = vadd.f32 0.0, %v2992
        %v2994 = vpop.f32.mrb[0].mxu0
        %v2995 = vadd.f32 0.0, %v2994
        %2996 = vdwg.mxu0
        %2997 = vmatprep.subr.mxu0 %v2922
        %2998 = vmatpush1.msra.mxu0 %v2921
        %2999 = vmatprep.subr.mxu0 0.0
        %3000 = vmatpush1.msra.mxu0 0.0
        %3001 = vmatprep.subr.mxu0 0.0
        %3002 = vmatpush1.msra.mxu0 0.0
        %3003 = vmatprep.subr.mxu0 0.0
        %3004 = vmatpush1.msra.mxu0 0.0
        %3005 = vmatprep.subr.mxu0 0.0
        %3006 = vmatpush1.msra.mxu0 0.0
        %3007 = vmatprep.subr.mxu0 0.0
        %3008 = vmatpush1.msra.mxu0 0.0
        %3009 = vmatprep.subr.mxu0 0.0
        %3010 = vmatpush1.msra.mxu0 0.0
        %3011 = vmatprep.subr.mxu0 0.0
        %3012 = vmatpush1.msra.mxu0 0.0
        %3013 = vmatprep.subr.mxu0 0.0
        %3014 = vmatpush1.msra.mxu0 0.0
        %3015 = vmatprep.subr.mxu0 0.0
        %3016 = vmatpush1.msra.mxu0 0.0
        %3017 = vmatprep.subr.mxu0 0.0
        %3018 = vmatpush1.msra.mxu0 0.0
        %3019 = vmatprep.subr.mxu0 0.0
        %3020 = vmatpush1.msra.mxu0 0.0
        %3021 = vmatprep.subr.mxu0 0.0
        %3022 = vmatpush1.msra.mxu0 0.0
        %3023 = vmatprep.subr.mxu0 0.0
        %3024 = vmatpush1.msra.mxu0 0.0
        %3025 = vmatprep.subr.mxu0 0.0
        %3026 = vmatpush1.msra.mxu0 0.0
        %3027 = vmatprep.subr.mxu0 0.0
        %3028 = vmatpush1.msra.mxu0 0.0
        %3029 = vmatprep.subr.mxu0 0.0
        %3030 = vmatpush1.msra.mxu0 0.0
        %3031 = vmatprep.subr.mxu0 0.0
        %3032 = vmatpush1.msra.mxu0 0.0
        %3033 = vmatprep.subr.mxu0 0.0
        %3034 = vmatpush1.msra.mxu0 0.0
        %3035 = vmatprep.subr.mxu0 0.0
        %3036 = vmatpush1.msra.mxu0 0.0
        %3037 = vmatprep.subr.mxu0 0.0
        %3038 = vmatpush1.msra.mxu0 0.0
        %3039 = vmatprep.subr.mxu0 0.0
        %3040 = vmatpush1.msra.mxu0 0.0
        %3041 = vmatprep.subr.mxu0 0.0
        %3042 = vmatpush1.msra.mxu0 0.0
        %3043 = vmatprep.subr.mxu0 0.0
        %3044 = vmatpush1.msra.mxu0 0.0
        %3045 = vmatprep.subr.mxu0 0.0
        %3046 = vmatpush1.msra.mxu0 0.0
        %3047 = vmatprep.subr.mxu0 0.0
        %3048 = vmatpush1.msra.mxu0 0.0
        %3049 = vmatprep.subr.mxu0 0.0
        %3050 = vmatpush1.msra.mxu0 0.0
        %3051 = vmatprep.subr.mxu0 0.0
        %3052 = vmatpush1.msra.mxu0 0.0
        %3053 = vmatprep.subr.mxu0 0.0
        %3054 = vmatpush1.msra.mxu0 0.0
        %3055 = vmatprep.subr.mxu0 0.0
        %3056 = vmatpush1.msra.mxu0 0.0
        %3057 = vmatprep.subr.mxu0 0.0
        %3058 = vmatpush1.msra.mxu0 0.0
        %3059 = vmatprep.subr.mxu0 0.0
        %3060 = vmatpush1.msra.mxu0 0.0
        %3061 = vmatprep.mubr.f32.mxu0 0.0
        %3062 = vmatmul.mubr.f32.gmra.mrb[0].mxu0 %v2924
        %v3063 = vpop.f32.mrb[0].mxu0
        %v3064 = vadd.f32 0.0, %v3063
        %v3065 = vpop.f32.mrb[0].mxu0
        %v3066 = vadd.f32 0.0, %v3065
        %3067 = vdwg.mxu0
        %v3068 = vadd.f32 %v2877, %v2993
        %v3069 = vadd.f32 %v2878, %v2995
        %v3070 = vadd.f32 %v2879, %v3064
        %v3071 = vadd.f32 %v2880, %v3066
        %s3072 = scalar_lea.vmem %s1, 120
        %v3073 = vld [vmem:[%s3072] sm:$0xff]
        %3074 = vrot.lane.b32.xlu0 %v223, 121
        %v3075 = vpop.permute.xlu0 %3074
        %3076 = vrot.lane.b32.xlu0 %v224, 121
        %v3077 = vpop.permute.xlu0 %3076
        %3078 = vrot.lane.b32.xlu0 %v225, 121
        %v3079 = vpop.permute.xlu0 %3078
        %3080 = vrot.lane.b32.xlu0 %v226, 121
        %v3081 = vpop.permute.xlu0 %3080
        %vm3082 = vcmp.lt.s32.totalorder %v237, 121
        %v3083 = vsel %vm3082, %v3079, %v3081
        %v3084 = vsel %vm3082, %v3077, %v3079
        %v3085 = vsel %vm3082, %v3075, %v3077
        %v3086 = vsel %vm3082, %v3081, %v3075
        %s3087 = scalar_lea.vmem %s4, 39
        %v3088 = vld [vmem:[%s3087] ss:$8 sm:$0xf]
        %v3090 = vlaneseq
        %v3091 = vshrl.u32 %v3090, 7
        %v3092 = vsub.s32 0, %v3091
        %v3093 = vrot.slane %v3088, %v3092
        %v3094 = vlaneseq
        %v3095 = vshrl.u32 %v3094, 7
        %v3096 = vsub.s32 1, %v3095
        %v3097 = vrot.slane %v3088, %v3096
        %v3098 = vlaneseq
        %v3099 = vshrl.u32 %v3098, 7
        %v3100 = vsub.s32 2, %v3099
        %v3101 = vrot.slane %v3088, %v3100
        %v3102 = vlaneseq
        %v3103 = vshrl.u32 %v3102, 7
        %v3104 = vsub.s32 3, %v3103
        %v3105 = vrot.slane %v3088, %v3104
        %v3110 = vmul.f32 %v3085, %v3093
        %v3111 = vmul.f32 %v3084, %v3097
        %v3112 = vmul.f32 %v3083, %v3101
        %v3113 = vmul.f32 %v3086, %v3105
        %v3115 = vsel %vm311, %v3073, 0
        %3117 = vmatprep.subr.mxu0 %v3111
        %3118 = vmatpush1.msra.mxu0 %v3110
        %3119 = vmatprep.subr.mxu0 0.0
        %3120 = vmatpush1.msra.mxu0 0.0
        %3121 = vmatprep.subr.mxu0 0.0
        %3122 = vmatpush1.msra.mxu0 0.0
        %3123 = vmatprep.subr.mxu0 0.0
        %3124 = vmatpush1.msra.mxu0 0.0
        %3125 = vmatprep.subr.mxu0 0.0
        %3126 = vmatpush1.msra.mxu0 0.0
        %3127 = vmatprep.subr.mxu0 0.0
        %3128 = vmatpush1.msra.mxu0 0.0
        %3129 = vmatprep.subr.mxu0 0.0
        %3130 = vmatpush1.msra.mxu0 0.0
        %3131 = vmatprep.subr.mxu0 0.0
        %3132 = vmatpush1.msra.mxu0 0.0
        %3133 = vmatprep.subr.mxu0 0.0
        %3134 = vmatpush1.msra.mxu0 0.0
        %3135 = vmatprep.subr.mxu0 0.0
        %3136 = vmatpush1.msra.mxu0 0.0
        %3137 = vmatprep.subr.mxu0 0.0
        %3138 = vmatpush1.msra.mxu0 0.0
        %3139 = vmatprep.subr.mxu0 0.0
        %3140 = vmatpush1.msra.mxu0 0.0
        %3141 = vmatprep.subr.mxu0 0.0
        %3142 = vmatpush1.msra.mxu0 0.0
        %3143 = vmatprep.subr.mxu0 0.0
        %3144 = vmatpush1.msra.mxu0 0.0
        %3145 = vmatprep.subr.mxu0 0.0
        %3146 = vmatpush1.msra.mxu0 0.0
        %3147 = vmatprep.subr.mxu0 0.0
        %3148 = vmatpush1.msra.mxu0 0.0
        %3149 = vmatprep.subr.mxu0 0.0
        %3150 = vmatpush1.msra.mxu0 0.0
        %3151 = vmatprep.subr.mxu0 0.0
        %3152 = vmatpush1.msra.mxu0 0.0
        %3153 = vmatprep.subr.mxu0 0.0
        %3154 = vmatpush1.msra.mxu0 0.0
        %3155 = vmatprep.subr.mxu0 0.0
        %3156 = vmatpush1.msra.mxu0 0.0
        %3157 = vmatprep.subr.mxu0 0.0
        %3158 = vmatpush1.msra.mxu0 0.0
        %3159 = vmatprep.subr.mxu0 0.0
        %3160 = vmatpush1.msra.mxu0 0.0
        %3161 = vmatprep.subr.mxu0 0.0
        %3162 = vmatpush1.msra.mxu0 0.0
        %3163 = vmatprep.subr.mxu0 0.0
        %3164 = vmatpush1.msra.mxu0 0.0
        %3165 = vmatprep.subr.mxu0 0.0
        %3166 = vmatpush1.msra.mxu0 0.0
        %3167 = vmatprep.subr.mxu0 0.0
        %3168 = vmatpush1.msra.mxu0 0.0
        %3169 = vmatprep.subr.mxu0 0.0
        %3170 = vmatpush1.msra.mxu0 0.0
        %3171 = vmatprep.subr.mxu0 0.0
        %3172 = vmatpush1.msra.mxu0 0.0
        %3173 = vmatprep.subr.mxu0 0.0
        %3174 = vmatpush1.msra.mxu0 0.0
        %3175 = vmatprep.subr.mxu0 0.0
        %3176 = vmatpush1.msra.mxu0 0.0
        %3177 = vmatprep.subr.mxu0 0.0
        %3178 = vmatpush1.msra.mxu0 0.0
        %3179 = vmatprep.subr.mxu0 0.0
        %3180 = vmatpush1.msra.mxu0 0.0
        %3181 = vmatprep.mubr.f32.mxu0 0.0
        %3182 = vmatmul.mubr.f32.gmra.mrb[0].mxu0 %v3115
        %v3183 = vpop.f32.mrb[0].mxu0
        %v3184 = vadd.f32 0.0, %v3183
        %v3185 = vpop.f32.mrb[0].mxu0
        %v3186 = vadd.f32 0.0, %v3185
        %3187 = vdwg.mxu0
        %3188 = vmatprep.subr.mxu0 %v3113
        %3189 = vmatpush1.msra.mxu0 %v3112
        %3190 = vmatprep.subr.mxu0 0.0
        %3191 = vmatpush1.msra.mxu0 0.0
        %3192 = vmatprep.subr.mxu0 0.0
        %3193 = vmatpush1.msra.mxu0 0.0
        %3194 = vmatprep.subr.mxu0 0.0
        %3195 = vmatpush1.msra.mxu0 0.0
        %3196 = vmatprep.subr.mxu0 0.0
        %3197 = vmatpush1.msra.mxu0 0.0
        %3198 = vmatprep.subr.mxu0 0.0
        %3199 = vmatpush1.msra.mxu0 0.0
        %3200 = vmatprep.subr.mxu0 0.0
        %3201 = vmatpush1.msra.mxu0 0.0
        %3202 = vmatprep.subr.mxu0 0.0
        %3203 = vmatpush1.msra.mxu0 0.0
        %3204 = vmatprep.subr.mxu0 0.0
        %3205 = vmatpush1.msra.mxu0 0.0
        %3206 = vmatprep.subr.mxu0 0.0
        %3207 = vmatpush1.msra.mxu0 0.0
        %3208 = vmatprep.subr.mxu0 0.0
        %3209 = vmatpush1.msra.mxu0 0.0
        %3210 = vmatprep.subr.mxu0 0.0
        %3211 = vmatpush1.msra.mxu0 0.0
        %3212 = vmatprep.subr.mxu0 0.0
        %3213 = vmatpush1.msra.mxu0 0.0
        %3214 = vmatprep.subr.mxu0 0.0
        %3215 = vmatpush1.msra.mxu0 0.0
        %3216 = vmatprep.subr.mxu0 0.0
        %3217 = vmatpush1.msra.mxu0 0.0
        %3218 = vmatprep.subr.mxu0 0.0
        %3219 = vmatpush1.msra.mxu0 0.0
        %3220 = vmatprep.subr.mxu0 0.0
        %3221 = vmatpush1.msra.mxu0 0.0
        %3222 = vmatprep.subr.mxu0 0.0
        %3223 = vmatpush1.msra.mxu0 0.0
        %3224 = vmatprep.subr.mxu0 0.0
        %3225 = vmatpush1.msra.mxu0 0.0
        %3226 = vmatprep.subr.mxu0 0.0
        %3227 = vmatpush1.msra.mxu0 0.0
        %3228 = vmatprep.subr.mxu0 0.0
        %3229 = vmatpush1.msra.mxu0 0.0
        %3230 = vmatprep.subr.mxu0 0.0
        %3231 = vmatpush1.msra.mxu0 0.0
        %3232 = vmatprep.subr.mxu0 0.0
        %3233 = vmatpush1.msra.mxu0 0.0
        %3234 = vmatprep.subr.mxu0 0.0
        %3235 = vmatpush1.msra.mxu0 0.0
        %3236 = vmatprep.subr.mxu0 0.0
        %3237 = vmatpush1.msra.mxu0 0.0
        %3238 = vmatprep.subr.mxu0 0.0
        %3239 = vmatpush1.msra.mxu0 0.0
        %3240 = vmatprep.subr.mxu0 0.0
        %3241 = vmatpush1.msra.mxu0 0.0
        %3242 = vmatprep.subr.mxu0 0.0
        %3243 = vmatpush1.msra.mxu0 0.0
        %3244 = vmatprep.subr.mxu0 0.0
        %3245 = vmatpush1.msra.mxu0 0.0
        %3246 = vmatprep.subr.mxu0 0.0
        %3247 = vmatpush1.msra.mxu0 0.0
        %3248 = vmatprep.subr.mxu0 0.0
        %3249 = vmatpush1.msra.mxu0 0.0
        %3250 = vmatprep.subr.mxu0 0.0
        %3251 = vmatpush1.msra.mxu0 0.0
        %3252 = vmatprep.mubr.f32.mxu0 0.0
        %3253 = vmatmul.mubr.f32.gmra.mrb[0].mxu0 %v3115
        %v3254 = vpop.f32.mrb[0].mxu0
        %v3255 = vadd.f32 0.0, %v3254
        %v3256 = vpop.f32.mrb[0].mxu0
        %v3257 = vadd.f32 0.0, %v3256
        %3258 = vdwg.mxu0
        %v3259 = vadd.f32 %v3068, %v3184
        %v3260 = vadd.f32 %v3069, %v3186
        %v3261 = vadd.f32 %v3070, %v3255
        %v3262 = vadd.f32 %v3071, %v3257
        %s3263 = scalar_lea.vmem %s1, 128
        %v3264 = vld [vmem:[%s3263] sm:$0xff]
        %3265 = vrot.lane.b32.xlu0 %v223, 120
        %v3266 = vpop.permute.xlu0 %3265
        %3267 = vrot.lane.b32.xlu0 %v224, 120
        %v3268 = vpop.permute.xlu0 %3267
        %3269 = vrot.lane.b32.xlu0 %v225, 120
        %v3270 = vpop.permute.xlu0 %3269
        %3271 = vrot.lane.b32.xlu0 %v226, 120
        %v3272 = vpop.permute.xlu0 %3271
        %vm3273 = vcmp.lt.s32.totalorder %v237, 120
        %v3274 = vsel %vm3273, %v3270, %v3272
        %v3275 = vsel %vm3273, %v3268, %v3270
        %v3276 = vsel %vm3273, %v3266, %v3268
        %v3277 = vsel %vm3273, %v3272, %v3266
        %s3278 = scalar_lea.vmem %s4, 64
        %v3279 = vld [vmem:[%s3278] ss:$8 sm:$0xf]
        %v3281 = vlaneseq
        %v3282 = vshrl.u32 %v3281, 7
        %v3283 = vsub.s32 0, %v3282
        %v3284 = vrot.slane %v3279, %v3283
        %v3285 = vlaneseq
        %v3286 = vshrl.u32 %v3285, 7
        %v3287 = vsub.s32 1, %v3286
        %v3288 = vrot.slane %v3279, %v3287
        %v3289 = vlaneseq
        %v3290 = vshrl.u32 %v3289, 7
        %v3291 = vsub.s32 2, %v3290
        %v3292 = vrot.slane %v3279, %v3291
        %v3293 = vlaneseq
        %v3294 = vshrl.u32 %v3293, 7
        %v3295 = vsub.s32 3, %v3294
        %v3296 = vrot.slane %v3279, %v3295
        %v3301 = vmul.f32 %v3276, %v3284
        %v3302 = vmul.f32 %v3275, %v3288
        %v3303 = vmul.f32 %v3274, %v3292
        %v3304 = vmul.f32 %v3277, %v3296
        %v3306 = vsel %vm311, %v3264, 0
        %3308 = vmatprep.subr.mxu0 %v3302
        %3309 = vmatpush1.msra.mxu0 %v3301
        %3310 = vmatprep.subr.mxu0 0.0
        %3311 = vmatpush1.msra.mxu0 0.0
        %3312 = vmatprep.subr.mxu0 0.0
        %3313 = vmatpush1.msra.mxu0 0.0
        %3314 = vmatprep.subr.mxu0 0.0
        %3315 = vmatpush1.msra.mxu0 0.0
        %3316 = vmatprep.subr.mxu0 0.0
        %3317 = vmatpush1.msra.mxu0 0.0
        %3318 = vmatprep.subr.mxu0 0.0
        %3319 = vmatpush1.msra.mxu0 0.0
        %3320 = vmatprep.subr.mxu0 0.0
        %3321 = vmatpush1.msra.mxu0 0.0
        %3322 = vmatprep.subr.mxu0 0.0
        %3323 = vmatpush1.msra.mxu0 0.0
        %3324 = vmatprep.subr.mxu0 0.0
        %3325 = vmatpush1.msra.mxu0 0.0
        %3326 = vmatprep.subr.mxu0 0.0
        %3327 = vmatpush1.msra.mxu0 0.0
        %3328 = vmatprep.subr.mxu0 0.0
        %3329 = vmatpush1.msra.mxu0 0.0
        %3330 = vmatprep.subr.mxu0 0.0
        %3331 = vmatpush1.msra.mxu0 0.0
        %3332 = vmatprep.subr.mxu0 0.0
        %3333 = vmatpush1.msra.mxu0 0.0
        %3334 = vmatprep.subr.mxu0 0.0
        %3335 = vmatpush1.msra.mxu0 0.0
        %3336 = vmatprep.subr.mxu0 0.0
        %3337 = vmatpush1.msra.mxu0 0.0
        %3338 = vmatprep.subr.mxu0 0.0
        %3339 = vmatpush1.msra.mxu0 0.0
        %3340 = vmatprep.subr.mxu0 0.0
        %3341 = vmatpush1.msra.mxu0 0.0
        %3342 = vmatprep.subr.mxu0 0.0
        %3343 = vmatpush1.msra.mxu0 0.0
        %3344 = vmatprep.subr.mxu0 0.0
        %3345 = vmatpush1.msra.mxu0 0.0
        %3346 = vmatprep.subr.mxu0 0.0
        %3347 = vmatpush1.msra.mxu0 0.0
        %3348 = vmatprep.subr.mxu0 0.0
        %3349 = vmatpush1.msra.mxu0 0.0
        %3350 = vmatprep.subr.mxu0 0.0
        %3351 = vmatpush1.msra.mxu0 0.0
        %3352 = vmatprep.subr.mxu0 0.0
        %3353 = vmatpush1.msra.mxu0 0.0
        %3354 = vmatprep.subr.mxu0 0.0
        %3355 = vmatpush1.msra.mxu0 0.0
        %3356 = vmatprep.subr.mxu0 0.0
        %3357 = vmatpush1.msra.mxu0 0.0
        %3358 = vmatprep.subr.mxu0 0.0
        %3359 = vmatpush1.msra.mxu0 0.0
        %3360 = vmatprep.subr.mxu0 0.0
        %3361 = vmatpush1.msra.mxu0 0.0
        %3362 = vmatprep.subr.mxu0 0.0
        %3363 = vmatpush1.msra.mxu0 0.0
        %3364 = vmatprep.subr.mxu0 0.0
        %3365 = vmatpush1.msra.mxu0 0.0
        %3366 = vmatprep.subr.mxu0 0.0
        %3367 = vmatpush1.msra.mxu0 0.0
        %3368 = vmatprep.subr.mxu0 0.0
        %3369 = vmatpush1.msra.mxu0 0.0
        %3370 = vmatprep.subr.mxu0 0.0
        %3371 = vmatpush1.msra.mxu0 0.0
        %3372 = vmatprep.mubr.f32.mxu0 0.0
        %3373 = vmatmul.mubr.f32.gmra.mrb[0].mxu0 %v3306
        %v3374 = vpop.f32.mrb[0].mxu0
        %v3375 = vadd.f32 0.0, %v3374
        %v3376 = vpop.f32.mrb[0].mxu0
        %v3377 = vadd.f32 0.0, %v3376
        %3378 = vdwg.mxu0
        %3379 = vmatprep.subr.mxu0 %v3304
        %3380 = vmatpush1.msra.mxu0 %v3303
        %3381 = vmatprep.subr.mxu0 0.0
        %3382 = vmatpush1.msra.mxu0 0.0
        %3383 = vmatprep.subr.mxu0 0.0
        %3384 = vmatpush1.msra.mxu0 0.0
        %3385 = vmatprep.subr.mxu0 0.0
        %3386 = vmatpush1.msra.mxu0 0.0
        %3387 = vmatprep.subr.mxu0 0.0
        %3388 = vmatpush1.msra.mxu0 0.0
        %3389 = vmatprep.subr.mxu0 0.0
        %3390 = vmatpush1.msra.mxu0 0.0
        %3391 = vmatprep.subr.mxu0 0.0
        %3392 = vmatpush1.msra.mxu0 0.0
        %3393 = vmatprep.subr.mxu0 0.0
        %3394 = vmatpush1.msra.mxu0 0.0
        %3395 = vmatprep.subr.mxu0 0.0
        %3396 = vmatpush1.msra.mxu0 0.0
        %3397 = vmatprep.subr.mxu0 0.0
        %3398 = vmatpush1.msra.mxu0 0.0
        %3399 = vmatprep.subr.mxu0 0.0
        %3400 = vmatpush1.msra.mxu0 0.0
        %3401 = vmatprep.subr.mxu0 0.0
        %3402 = vmatpush1.msra.mxu0 0.0
        %3403 = vmatprep.subr.mxu0 0.0
        %3404 = vmatpush1.msra.mxu0 0.0
        %3405 = vmatprep.subr.mxu0 0.0
        %3406 = vmatpush1.msra.mxu0 0.0
        %3407 = vmatprep.subr.mxu0 0.0
        %3408 = vmatpush1.msra.mxu0 0.0
        %3409 = vmatprep.subr.mxu0 0.0
        %3410 = vmatpush1.msra.mxu0 0.0
        %3411 = vmatprep.subr.mxu0 0.0
        %3412 = vmatpush1.msra.mxu0 0.0
        %3413 = vmatprep.subr.mxu0 0.0
        %3414 = vmatpush1.msra.mxu0 0.0
        %3415 = vmatprep.subr.mxu0 0.0
        %3416 = vmatpush1.msra.mxu0 0.0
        %3417 = vmatprep.subr.mxu0 0.0
        %3418 = vmatpush1.msra.mxu0 0.0
        %3419 = vmatprep.subr.mxu0 0.0
        %3420 = vmatpush1.msra.mxu0 0.0
        %3421 = vmatprep.subr.mxu0 0.0
        %3422 = vmatpush1.msra.mxu0 0.0
        %3423 = vmatprep.subr.mxu0 0.0
        %3424 = vmatpush1.msra.mxu0 0.0
        %3425 = vmatprep.subr.mxu0 0.0
        %3426 = vmatpush1.msra.mxu0 0.0
        %3427 = vmatprep.subr.mxu0 0.0
        %3428 = vmatpush1.msra.mxu0 0.0
        %3429 = vmatprep.subr.mxu0 0.0
        %3430 = vmatpush1.msra.mxu0 0.0
        %3431 = vmatprep.subr.mxu0 0.0
        %3432 = vmatpush1.msra.mxu0 0.0
        %3433 = vmatprep.subr.mxu0 0.0
        %3434 = vmatpush1.msra.mxu0 0.0
        %3435 = vmatprep.subr.mxu0 0.0
        %3436 = vmatpush1.msra.mxu0 0.0
        %3437 = vmatprep.subr.mxu0 0.0
        %3438 = vmatpush1.msra.mxu0 0.0
        %3439 = vmatprep.subr.mxu0 0.0
        %3440 = vmatpush1.msra.mxu0 0.0
        %3441 = vmatprep.subr.mxu0 0.0
        %3442 = vmatpush1.msra.mxu0 0.0
        %3443 = vmatprep.mubr.f32.mxu0 0.0
        %3444 = vmatmul.mubr.f32.gmra.mrb[0].mxu0 %v3306
        %v3445 = vpop.f32.mrb[0].mxu0
        %v3446 = vadd.f32 0.0, %v3445
        %v3447 = vpop.f32.mrb[0].mxu0
        %v3448 = vadd.f32 0.0, %v3447
        %3449 = vdwg.mxu0
        %v3450 = vadd.f32 %v3259, %v3375
        %v3451 = vadd.f32 %v3260, %v3377
        %v3452 = vadd.f32 %v3261, %v3446
        %v3453 = vadd.f32 %v3262, %v3448
        %s3454 = scalar_lea.vmem %s1, 136
        %v3455 = vld [vmem:[%s3454] sm:$0xff]
        %3456 = vrot.lane.b32.xlu0 %v223, 119
        %v3457 = vpop.permute.xlu0 %3456
        %3458 = vrot.lane.b32.xlu0 %v224, 119
        %v3459 = vpop.permute.xlu0 %3458
        %3460 = vrot.lane.b32.xlu0 %v225, 119
        %v3461 = vpop.permute.xlu0 %3460
        %3462 = vrot.lane.b32.xlu0 %v226, 119
        %v3463 = vpop.permute.xlu0 %3462
        %vm3464 = vcmp.lt.s32.totalorder %v237, 119
        %v3465 = vsel %vm3464, %v3461, %v3463
        %v3466 = vsel %vm3464, %v3459, %v3461
        %v3467 = vsel %vm3464, %v3457, %v3459
        %v3468 = vsel %vm3464, %v3463, %v3457
        %s3469 = scalar_lea.vmem %s4, 65
        %v3470 = vld [vmem:[%s3469] ss:$8 sm:$0xf]
        %v3472 = vlaneseq
        %v3473 = vshrl.u32 %v3472, 7
        %v3474 = vsub.s32 0, %v3473
        %v3475 = vrot.slane %v3470, %v3474
        %v3476 = vlaneseq
        %v3477 = vshrl.u32 %v3476, 7
        %v3478 = vsub.s32 1, %v3477
        %v3479 = vrot.slane %v3470, %v3478
        %v3480 = vlaneseq
        %v3481 = vshrl.u32 %v3480, 7
        %v3482 = vsub.s32 2, %v3481
        %v3483 = vrot.slane %v3470, %v3482
        %v3484 = vlaneseq
        %v3485 = vshrl.u32 %v3484, 7
        %v3486 = vsub.s32 3, %v3485
        %v3487 = vrot.slane %v3470, %v3486
        %v3492 = vmul.f32 %v3467, %v3475
        %v3493 = vmul.f32 %v3466, %v3479
        %v3494 = vmul.f32 %v3465, %v3483
        %v3495 = vmul.f32 %v3468, %v3487
        %v3497 = vsel %vm311, %v3455, 0
        %3499 = vmatprep.subr.mxu0 %v3493
        %3500 = vmatpush1.msra.mxu0 %v3492
        %3501 = vmatprep.subr.mxu0 0.0
        %3502 = vmatpush1.msra.mxu0 0.0
        %3503 = vmatprep.subr.mxu0 0.0
        %3504 = vmatpush1.msra.mxu0 0.0
        %3505 = vmatprep.subr.mxu0 0.0
        %3506 = vmatpush1.msra.mxu0 0.0
        %3507 = vmatprep.subr.mxu0 0.0
        %3508 = vmatpush1.msra.mxu0 0.0
        %3509 = vmatprep.subr.mxu0 0.0
        %3510 = vmatpush1.msra.mxu0 0.0
        %3511 = vmatprep.subr.mxu0 0.0
        %3512 = vmatpush1.msra.mxu0 0.0
        %3513 = vmatprep.subr.mxu0 0.0
        %3514 = vmatpush1.msra.mxu0 0.0
        %3515 = vmatprep.subr.mxu0 0.0
        %3516 = vmatpush1.msra.mxu0 0.0
        %3517 = vmatprep.subr.mxu0 0.0
        %3518 = vmatpush1.msra.mxu0 0.0
        %3519 = vmatprep.subr.mxu0 0.0
        %3520 = vmatpush1.msra.mxu0 0.0
        %3521 = vmatprep.subr.mxu0 0.0
        %3522 = vmatpush1.msra.mxu0 0.0
        %3523 = vmatprep.subr.mxu0 0.0
        %3524 = vmatpush1.msra.mxu0 0.0
        %3525 = vmatprep.subr.mxu0 0.0
        %3526 = vmatpush1.msra.mxu0 0.0
        %3527 = vmatprep.subr.mxu0 0.0
        %3528 = vmatpush1.msra.mxu0 0.0
        %3529 = vmatprep.subr.mxu0 0.0
        %3530 = vmatpush1.msra.mxu0 0.0
        %3531 = vmatprep.subr.mxu0 0.0
        %3532 = vmatpush1.msra.mxu0 0.0
        %3533 = vmatprep.subr.mxu0 0.0
        %3534 = vmatpush1.msra.mxu0 0.0
        %3535 = vmatprep.subr.mxu0 0.0
        %3536 = vmatpush1.msra.mxu0 0.0
        %3537 = vmatprep.subr.mxu0 0.0
        %3538 = vmatpush1.msra.mxu0 0.0
        %3539 = vmatprep.subr.mxu0 0.0
        %3540 = vmatpush1.msra.mxu0 0.0
        %3541 = vmatprep.subr.mxu0 0.0
        %3542 = vmatpush1.msra.mxu0 0.0
        %3543 = vmatprep.subr.mxu0 0.0
        %3544 = vmatpush1.msra.mxu0 0.0
        %3545 = vmatprep.subr.mxu0 0.0
        %3546 = vmatpush1.msra.mxu0 0.0
        %3547 = vmatprep.subr.mxu0 0.0
        %3548 = vmatpush1.msra.mxu0 0.0
        %3549 = vmatprep.subr.mxu0 0.0
        %3550 = vmatpush1.msra.mxu0 0.0
        %3551 = vmatprep.subr.mxu0 0.0
        %3552 = vmatpush1.msra.mxu0 0.0
        %3553 = vmatprep.subr.mxu0 0.0
        %3554 = vmatpush1.msra.mxu0 0.0
        %3555 = vmatprep.subr.mxu0 0.0
        %3556 = vmatpush1.msra.mxu0 0.0
        %3557 = vmatprep.subr.mxu0 0.0
        %3558 = vmatpush1.msra.mxu0 0.0
        %3559 = vmatprep.subr.mxu0 0.0
        %3560 = vmatpush1.msra.mxu0 0.0
        %3561 = vmatprep.subr.mxu0 0.0
        %3562 = vmatpush1.msra.mxu0 0.0
        %3563 = vmatprep.mubr.f32.mxu0 0.0
        %3564 = vmatmul.mubr.f32.gmra.mrb[0].mxu0 %v3497
        %v3565 = vpop.f32.mrb[0].mxu0
        %v3566 = vadd.f32 0.0, %v3565
        %v3567 = vpop.f32.mrb[0].mxu0
        %v3568 = vadd.f32 0.0, %v3567
        %3569 = vdwg.mxu0
        %3570 = vmatprep.subr.mxu0 %v3495
        %3571 = vmatpush1.msra.mxu0 %v3494
        %3572 = vmatprep.subr.mxu0 0.0
        %3573 = vmatpush1.msra.mxu0 0.0
        %3574 = vmatprep.subr.mxu0 0.0
        %3575 = vmatpush1.msra.mxu0 0.0
        %3576 = vmatprep.subr.mxu0 0.0
        %3577 = vmatpush1.msra.mxu0 0.0
        %3578 = vmatprep.subr.mxu0 0.0
        %3579 = vmatpush1.msra.mxu0 0.0
        %3580 = vmatprep.subr.mxu0 0.0
        %3581 = vmatpush1.msra.mxu0 0.0
        %3582 = vmatprep.subr.mxu0 0.0
        %3583 = vmatpush1.msra.mxu0 0.0
        %3584 = vmatprep.subr.mxu0 0.0
        %3585 = vmatpush1.msra.mxu0 0.0
        %3586 = vmatprep.subr.mxu0 0.0
        %3587 = vmatpush1.msra.mxu0 0.0
        %3588 = vmatprep.subr.mxu0 0.0
        %3589 = vmatpush1.msra.mxu0 0.0
        %3590 = vmatprep.subr.mxu0 0.0
        %3591 = vmatpush1.msra.mxu0 0.0
        %3592 = vmatprep.subr.mxu0 0.0
        %3593 = vmatpush1.msra.mxu0 0.0
        %3594 = vmatprep.subr.mxu0 0.0
        %3595 = vmatpush1.msra.mxu0 0.0
        %3596 = vmatprep.subr.mxu0 0.0
        %3597 = vmatpush1.msra.mxu0 0.0
        %3598 = vmatprep.subr.mxu0 0.0
        %3599 = vmatpush1.msra.mxu0 0.0
        %3600 = vmatprep.subr.mxu0 0.0
        %3601 = vmatpush1.msra.mxu0 0.0
        %3602 = vmatprep.subr.mxu0 0.0
        %3603 = vmatpush1.msra.mxu0 0.0
        %3604 = vmatprep.subr.mxu0 0.0
        %3605 = vmatpush1.msra.mxu0 0.0
        %3606 = vmatprep.subr.mxu0 0.0
        %3607 = vmatpush1.msra.mxu0 0.0
        %3608 = vmatprep.subr.mxu0 0.0
        %3609 = vmatpush1.msra.mxu0 0.0
        %3610 = vmatprep.subr.mxu0 0.0
        %3611 = vmatpush1.msra.mxu0 0.0
        %3612 = vmatprep.subr.mxu0 0.0
        %3613 = vmatpush1.msra.mxu0 0.0
        %3614 = vmatprep.subr.mxu0 0.0
        %3615 = vmatpush1.msra.mxu0 0.0
        %3616 = vmatprep.subr.mxu0 0.0
        %3617 = vmatpush1.msra.mxu0 0.0
        %3618 = vmatprep.subr.mxu0 0.0
        %3619 = vmatpush1.msra.mxu0 0.0
        %3620 = vmatprep.subr.mxu0 0.0
        %3621 = vmatpush1.msra.mxu0 0.0
        %3622 = vmatprep.subr.mxu0 0.0
        %3623 = vmatpush1.msra.mxu0 0.0
        %3624 = vmatprep.subr.mxu0 0.0
        %3625 = vmatpush1.msra.mxu0 0.0
        %3626 = vmatprep.subr.mxu0 0.0
        %3627 = vmatpush1.msra.mxu0 0.0
        %3628 = vmatprep.subr.mxu0 0.0
        %3629 = vmatpush1.msra.mxu0 0.0
        %3630 = vmatprep.subr.mxu0 0.0
        %3631 = vmatpush1.msra.mxu0 0.0
        %3632 = vmatprep.subr.mxu0 0.0
        %3633 = vmatpush1.msra.mxu0 0.0
        %3634 = vmatprep.mubr.f32.mxu0 0.0
        %3635 = vmatmul.mubr.f32.gmra.mrb[0].mxu0 %v3497
        %v3636 = vpop.f32.mrb[0].mxu0
        %v3637 = vadd.f32 0.0, %v3636
        %v3638 = vpop.f32.mrb[0].mxu0
        %v3639 = vadd.f32 0.0, %v3638
        %3640 = vdwg.mxu0
        %v3641 = vadd.f32 %v3450, %v3566
        %v3642 = vadd.f32 %v3451, %v3568
        %v3643 = vadd.f32 %v3452, %v3637
        %v3644 = vadd.f32 %v3453, %v3639
        %s3645 = scalar_lea.vmem %s1, 144
        %v3646 = vld [vmem:[%s3645] sm:$0xff]
        %s3647 = scalar_lea.vmem %s4, 66
        %v3648 = vld [vmem:[%s3647] ss:$8 sm:$0xf]
        %v3650 = vlaneseq
        %v3651 = vshrl.u32 %v3650, 7
        %v3652 = vsub.s32 0, %v3651
        %v3653 = vrot.slane %v3648, %v3652
        %v3654 = vlaneseq
        %v3655 = vshrl.u32 %v3654, 7
        %v3656 = vsub.s32 1, %v3655
        %v3657 = vrot.slane %v3648, %v3656
        %v3658 = vlaneseq
        %v3659 = vshrl.u32 %v3658, 7
        %v3660 = vsub.s32 2, %v3659
        %v3661 = vrot.slane %v3648, %v3660
        %v3662 = vlaneseq
        %v3663 = vshrl.u32 %v3662, 7
        %v3664 = vsub.s32 3, %v3663
        %v3665 = vrot.slane %v3648, %v3664
        %v3670 = vmul.f32 %v241, %v3653
        %v3671 = vmul.f32 %v240, %v3657
        %v3672 = vmul.f32 %v239, %v3661
        %v3673 = vmul.f32 %v242, %v3665
        %v3675 = vsel %vm311, %v3646, 0
        %3677 = vmatprep.subr.mxu0 %v3671
        %3678 = vmatpush1.msra.mxu0 %v3670
        %3679 = vmatprep.subr.mxu0 0.0
        %3680 = vmatpush1.msra.mxu0 0.0
        %3681 = vmatprep.subr.mxu0 0.0
        %3682 = vmatpush1.msra.mxu0 0.0
        %3683 = vmatprep.subr.mxu0 0.0
        %3684 = vmatpush1.msra.mxu0 0.0
        %3685 = vmatprep.subr.mxu0 0.0
        %3686 = vmatpush1.msra.mxu0 0.0
        %3687 = vmatprep.subr.mxu0 0.0
        %3688 = vmatpush1.msra.mxu0 0.0
        %3689 = vmatprep.subr.mxu0 0.0
        %3690 = vmatpush1.msra.mxu0 0.0
        %3691 = vmatprep.subr.mxu0 0.0
        %3692 = vmatpush1.msra.mxu0 0.0
        %3693 = vmatprep.subr.mxu0 0.0
        %3694 = vmatpush1.msra.mxu0 0.0
        %3695 = vmatprep.subr.mxu0 0.0
        %3696 = vmatpush1.msra.mxu0 0.0
        %3697 = vmatprep.subr.mxu0 0.0
        %3698 = vmatpush1.msra.mxu0 0.0
        %3699 = vmatprep.subr.mxu0 0.0
        %3700 = vmatpush1.msra.mxu0 0.0
        %3701 = vmatprep.subr.mxu0 0.0
        %3702 = vmatpush1.msra.mxu0 0.0
        %3703 = vmatprep.subr.mxu0 0.0
        %3704 = vmatpush1.msra.mxu0 0.0
        %3705 = vmatprep.subr.mxu0 0.0
        %3706 = vmatpush1.msra.mxu0 0.0
        %3707 = vmatprep.subr.mxu0 0.0
        %3708 = vmatpush1.msra.mxu0 0.0
        %3709 = vmatprep.subr.mxu0 0.0
        %3710 = vmatpush1.msra.mxu0 0.0
        %3711 = vmatprep.subr.mxu0 0.0
        %3712 = vmatpush1.msra.mxu0 0.0
        %3713 = vmatprep.subr.mxu0 0.0
        %3714 = vmatpush1.msra.mxu0 0.0
        %3715 = vmatprep.subr.mxu0 0.0
        %3716 = vmatpush1.msra.mxu0 0.0
        %3717 = vmatprep.subr.mxu0 0.0
        %3718 = vmatpush1.msra.mxu0 0.0
        %3719 = vmatprep.subr.mxu0 0.0
        %3720 = vmatpush1.msra.mxu0 0.0
        %3721 = vmatprep.subr.mxu0 0.0
        %3722 = vmatpush1.msra.mxu0 0.0
        %3723 = vmatprep.subr.mxu0 0.0
        %3724 = vmatpush1.msra.mxu0 0.0
        %3725 = vmatprep.subr.mxu0 0.0
        %3726 = vmatpush1.msra.mxu0 0.0
        %3727 = vmatprep.subr.mxu0 0.0
        %3728 = vmatpush1.msra.mxu0 0.0
        %3729 = vmatprep.subr.mxu0 0.0
        %3730 = vmatpush1.msra.mxu0 0.0
        %3731 = vmatprep.subr.mxu0 0.0
        %3732 = vmatpush1.msra.mxu0 0.0
        %3733 = vmatprep.subr.mxu0 0.0
        %3734 = vmatpush1.msra.mxu0 0.0
        %3735 = vmatprep.subr.mxu0 0.0
        %3736 = vmatpush1.msra.mxu0 0.0
        %3737 = vmatprep.subr.mxu0 0.0
        %3738 = vmatpush1.msra.mxu0 0.0
        %3739 = vmatprep.subr.mxu0 0.0
        %3740 = vmatpush1.msra.mxu0 0.0
        %3741 = vmatprep.mubr.f32.mxu0 0.0
        %3742 = vmatmul.mubr.f32.gmra.mrb[0].mxu0 %v3675
        %v3743 = vpop.f32.mrb[0].mxu0
        %v3744 = vadd.f32 0.0, %v3743
        %v3745 = vpop.f32.mrb[0].mxu0
        %v3746 = vadd.f32 0.0, %v3745
        %3747 = vdwg.mxu0
        %3748 = vmatprep.subr.mxu0 %v3673
        %3749 = vmatpush1.msra.mxu0 %v3672
        %3750 = vmatprep.subr.mxu0 0.0
        %3751 = vmatpush1.msra.mxu0 0.0
        %3752 = vmatprep.subr.mxu0 0.0
        %3753 = vmatpush1.msra.mxu0 0.0
        %3754 = vmatprep.subr.mxu0 0.0
        %3755 = vmatpush1.msra.mxu0 0.0
        %3756 = vmatprep.subr.mxu0 0.0
        %3757 = vmatpush1.msra.mxu0 0.0
        %3758 = vmatprep.subr.mxu0 0.0
        %3759 = vmatpush1.msra.mxu0 0.0
        %3760 = vmatprep.subr.mxu0 0.0
        %3761 = vmatpush1.msra.mxu0 0.0
        %3762 = vmatprep.subr.mxu0 0.0
        %3763 = vmatpush1.msra.mxu0 0.0
        %3764 = vmatprep.subr.mxu0 0.0
        %3765 = vmatpush1.msra.mxu0 0.0
        %3766 = vmatprep.subr.mxu0 0.0
        %3767 = vmatpush1.msra.mxu0 0.0
        %3768 = vmatprep.subr.mxu0 0.0
        %3769 = vmatpush1.msra.mxu0 0.0
        %3770 = vmatprep.subr.mxu0 0.0
        %3771 = vmatpush1.msra.mxu0 0.0
        %3772 = vmatprep.subr.mxu0 0.0
        %3773 = vmatpush1.msra.mxu0 0.0
        %3774 = vmatprep.subr.mxu0 0.0
        %3775 = vmatpush1.msra.mxu0 0.0
        %3776 = vmatprep.subr.mxu0 0.0
        %3777 = vmatpush1.msra.mxu0 0.0
        %3778 = vmatprep.subr.mxu0 0.0
        %3779 = vmatpush1.msra.mxu0 0.0
        %3780 = vmatprep.subr.mxu0 0.0
        %3781 = vmatpush1.msra.mxu0 0.0
        %3782 = vmatprep.subr.mxu0 0.0
        %3783 = vmatpush1.msra.mxu0 0.0
        %3784 = vmatprep.subr.mxu0 0.0
        %3785 = vmatpush1.msra.mxu0 0.0
        %3786 = vmatprep.subr.mxu0 0.0
        %3787 = vmatpush1.msra.mxu0 0.0
        %3788 = vmatprep.subr.mxu0 0.0
        %3789 = vmatpush1.msra.mxu0 0.0
        %3790 = vmatprep.subr.mxu0 0.0
        %3791 = vmatpush1.msra.mxu0 0.0
        %3792 = vmatprep.subr.mxu0 0.0
        %3793 = vmatpush1.msra.mxu0 0.0
        %3794 = vmatprep.subr.mxu0 0.0
        %3795 = vmatpush1.msra.mxu0 0.0
        %3796 = vmatprep.subr.mxu0 0.0
        %3797 = vmatpush1.msra.mxu0 0.0
        %3798 = vmatprep.subr.mxu0 0.0
        %3799 = vmatpush1.msra.mxu0 0.0
        %3800 = vmatprep.subr.mxu0 0.0
        %3801 = vmatpush1.msra.mxu0 0.0
        %3802 = vmatprep.subr.mxu0 0.0
        %3803 = vmatpush1.msra.mxu0 0.0
        %3804 = vmatprep.subr.mxu0 0.0
        %3805 = vmatpush1.msra.mxu0 0.0
        %3806 = vmatprep.subr.mxu0 0.0
        %3807 = vmatpush1.msra.mxu0 0.0
        %3808 = vmatprep.subr.mxu0 0.0
        %3809 = vmatpush1.msra.mxu0 0.0
        %3810 = vmatprep.subr.mxu0 0.0
        %3811 = vmatpush1.msra.mxu0 0.0
        %3812 = vmatprep.mubr.f32.mxu0 0.0
        %3813 = vmatmul.mubr.f32.gmra.mrb[0].mxu0 %v3675
        %v3814 = vpop.f32.mrb[0].mxu0
        %v3815 = vadd.f32 0.0, %v3814
        %v3816 = vpop.f32.mrb[0].mxu0
        %v3817 = vadd.f32 0.0, %v3816
        %3818 = vdwg.mxu0
        %v3819 = vadd.f32 %v3641, %v3744
        %v3820 = vadd.f32 %v3642, %v3746
        %v3821 = vadd.f32 %v3643, %v3815
        %v3822 = vadd.f32 %v3644, %v3817
        %s3823 = scalar_lea.vmem %s1, 152
        %v3824 = vld [vmem:[%s3823] sm:$0xff]
        %s3825 = scalar_lea.vmem %s4, 67
        %v3826 = vld [vmem:[%s3825] ss:$8 sm:$0xf]
        %v3828 = vlaneseq
        %v3829 = vshrl.u32 %v3828, 7
        %v3830 = vsub.s32 0, %v3829
        %v3831 = vrot.slane %v3826, %v3830
        %v3832 = vlaneseq
        %v3833 = vshrl.u32 %v3832, 7
        %v3834 = vsub.s32 1, %v3833
        %v3835 = vrot.slane %v3826, %v3834
        %v3836 = vlaneseq
        %v3837 = vshrl.u32 %v3836, 7
        %v3838 = vsub.s32 2, %v3837
        %v3839 = vrot.slane %v3826, %v3838
        %v3840 = vlaneseq
        %v3841 = vshrl.u32 %v3840, 7
        %v3842 = vsub.s32 3, %v3841
        %v3843 = vrot.slane %v3826, %v3842
        %v3848 = vmul.f32 %v282, %v3831
        %v3849 = vmul.f32 %v281, %v3835
        %v3850 = vmul.f32 %v280, %v3839
        %v3851 = vmul.f32 %v283, %v3843
        %v3853 = vsel %vm311, %v3824, 0
        %3855 = vmatprep.subr.mxu0 %v3849
        %3856 = vmatpush1.msra.mxu0 %v3848
        %3857 = vmatprep.subr.mxu0 0.0
        %3858 = vmatpush1.msra.mxu0 0.0
        %3859 = vmatprep.subr.mxu0 0.0
        %3860 = vmatpush1.msra.mxu0 0.0
        %3861 = vmatprep.subr.mxu0 0.0
        %3862 = vmatpush1.msra.mxu0 0.0
        %3863 = vmatprep.subr.mxu0 0.0
        %3864 = vmatpush1.msra.mxu0 0.0
        %3865 = vmatprep.subr.mxu0 0.0
        %3866 = vmatpush1.msra.mxu0 0.0
        %3867 = vmatprep.subr.mxu0 0.0
        %3868 = vmatpush1.msra.mxu0 0.0
        %3869 = vmatprep.subr.mxu0 0.0
        %3870 = vmatpush1.msra.mxu0 0.0
        %3871 = vmatprep.subr.mxu0 0.0
        %3872 = vmatpush1.msra.mxu0 0.0
        %3873 = vmatprep.subr.mxu0 0.0
        %3874 = vmatpush1.msra.mxu0 0.0
        %3875 = vmatprep.subr.mxu0 0.0
        %3876 = vmatpush1.msra.mxu0 0.0
        %3877 = vmatprep.subr.mxu0 0.0
        %3878 = vmatpush1.msra.mxu0 0.0
        %3879 = vmatprep.subr.mxu0 0.0
        %3880 = vmatpush1.msra.mxu0 0.0
        %3881 = vmatprep.subr.mxu0 0.0
        %3882 = vmatpush1.msra.mxu0 0.0
        %3883 = vmatprep.subr.mxu0 0.0
        %3884 = vmatpush1.msra.mxu0 0.0
        %3885 = vmatprep.subr.mxu0 0.0
        %3886 = vmatpush1.msra.mxu0 0.0
        %3887 = vmatprep.subr.mxu0 0.0
        %3888 = vmatpush1.msra.mxu0 0.0
        %3889 = vmatprep.subr.mxu0 0.0
        %3890 = vmatpush1.msra.mxu0 0.0
        %3891 = vmatprep.subr.mxu0 0.0
        %3892 = vmatpush1.msra.mxu0 0.0
        %3893 = vmatprep.subr.mxu0 0.0
        %3894 = vmatpush1.msra.mxu0 0.0
        %3895 = vmatprep.subr.mxu0 0.0
        %3896 = vmatpush1.msra.mxu0 0.0
        %3897 = vmatprep.subr.mxu0 0.0
        %3898 = vmatpush1.msra.mxu0 0.0
        %3899 = vmatprep.subr.mxu0 0.0
        %3900 = vmatpush1.msra.mxu0 0.0
        %3901 = vmatprep.subr.mxu0 0.0
        %3902 = vmatpush1.msra.mxu0 0.0
        %3903 = vmatprep.subr.mxu0 0.0
        %3904 = vmatpush1.msra.mxu0 0.0
        %3905 = vmatprep.subr.mxu0 0.0
        %3906 = vmatpush1.msra.mxu0 0.0
        %3907 = vmatprep.subr.mxu0 0.0
        %3908 = vmatpush1.msra.mxu0 0.0
        %3909 = vmatprep.subr.mxu0 0.0
        %3910 = vmatpush1.msra.mxu0 0.0
        %3911 = vmatprep.subr.mxu0 0.0
        %3912 = vmatpush1.msra.mxu0 0.0
        %3913 = vmatprep.subr.mxu0 0.0
        %3914 = vmatpush1.msra.mxu0 0.0
        %3915 = vmatprep.subr.mxu0 0.0
        %3916 = vmatpush1.msra.mxu0 0.0
        %3917 = vmatprep.subr.mxu0 0.0
        %3918 = vmatpush1.msra.mxu0 0.0
        %3919 = vmatprep.mubr.f32.mxu0 0.0
        %3920 = vmatmul.mubr.f32.gmra.mrb[0].mxu0 %v3853
        %v3921 = vpop.f32.mrb[0].mxu0
        %v3922 = vadd.f32 0.0, %v3921
        %v3923 = vpop.f32.mrb[0].mxu0
        %v3924 = vadd.f32 0.0, %v3923
        %3925 = vdwg.mxu0
        %3926 = vmatprep.subr.mxu0 %v3851
        %3927 = vmatpush1.msra.mxu0 %v3850
        %3928 = vmatprep.subr.mxu0 0.0
        %3929 = vmatpush1.msra.mxu0 0.0
        %3930 = vmatprep.subr.mxu0 0.0
        %3931 = vmatpush1.msra.mxu0 0.0
        %3932 = vmatprep.subr.mxu0 0.0
        %3933 = vmatpush1.msra.mxu0 0.0
        %3934 = vmatprep.subr.mxu0 0.0
        %3935 = vmatpush1.msra.mxu0 0.0
        %3936 = vmatprep.subr.mxu0 0.0
        %3937 = vmatpush1.msra.mxu0 0.0
        %3938 = vmatprep.subr.mxu0 0.0
        %3939 = vmatpush1.msra.mxu0 0.0
        %3940 = vmatprep.subr.mxu0 0.0
        %3941 = vmatpush1.msra.mxu0 0.0
        %3942 = vmatprep.subr.mxu0 0.0
        %3943 = vmatpush1.msra.mxu0 0.0
        %3944 = vmatprep.subr.mxu0 0.0
        %3945 = vmatpush1.msra.mxu0 0.0
        %3946 = vmatprep.subr.mxu0 0.0
        %3947 = vmatpush1.msra.mxu0 0.0
        %3948 = vmatprep.subr.mxu0 0.0
        %3949 = vmatpush1.msra.mxu0 0.0
        %3950 = vmatprep.subr.mxu0 0.0
        %3951 = vmatpush1.msra.mxu0 0.0
        %3952 = vmatprep.subr.mxu0 0.0
        %3953 = vmatpush1.msra.mxu0 0.0
        %3954 = vmatprep.subr.mxu0 0.0
        %3955 = vmatpush1.msra.mxu0 0.0
        %3956 = vmatprep.subr.mxu0 0.0
        %3957 = vmatpush1.msra.mxu0 0.0
        %3958 = vmatprep.subr.mxu0 0.0
        %3959 = vmatpush1.msra.mxu0 0.0
        %3960 = vmatprep.subr.mxu0 0.0
        %3961 = vmatpush1.msra.mxu0 0.0
        %3962 = vmatprep.subr.mxu0 0.0
        %3963 = vmatpush1.msra.mxu0 0.0
        %3964 = vmatprep.subr.mxu0 0.0
        %3965 = vmatpush1.msra.mxu0 0.0
        %3966 = vmatprep.subr.mxu0 0.0
        %3967 = vmatpush1.msra.mxu0 0.0
        %3968 = vmatprep.subr.mxu0 0.0
        %3969 = vmatpush1.msra.mxu0 0.0
        %3970 = vmatprep.subr.mxu0 0.0
        %3971 = vmatpush1.msra.mxu0 0.0
        %3972 = vmatprep.subr.mxu0 0.0
        %3973 = vmatpush1.msra.mxu0 0.0
        %3974 = vmatprep.subr.mxu0 0.0
        %3975 = vmatpush1.msra.mxu0 0.0
        %3976 = vmatprep.subr.mxu0 0.0
        %3977 = vmatpush1.msra.mxu0 0.0
        %3978 = vmatprep.subr.mxu0 0.0
        %3979 = vmatpush1.msra.mxu0 0.0
        %3980 = vmatprep.subr.mxu0 0.0
        %3981 = vmatpush1.msra.mxu0 0.0
        %3982 = vmatprep.subr.mxu0 0.0
        %3983 = vmatpush1.msra.mxu0 0.0
        %3984 = vmatprep.subr.mxu0 0.0
        %3985 = vmatpush1.msra.mxu0 0.0
        %3986 = vmatprep.subr.mxu0 0.0
        %3987 = vmatpush1.msra.mxu0 0.0
        %3988 = vmatprep.subr.mxu0 0.0
        %3989 = vmatpush1.msra.mxu0 0.0
        %3990 = vmatprep.mubr.f32.mxu0 0.0
        %3991 = vmatmul.mubr.f32.gmra.mrb[0].mxu0 %v3853
        %v3992 = vpop.f32.mrb[0].mxu0
        %v3993 = vadd.f32 0.0, %v3992
        %v3994 = vpop.f32.mrb[0].mxu0
        %v3995 = vadd.f32 0.0, %v3994
        %3996 = vdwg.mxu0
        %v3997 = vadd.f32 %v3819, %v3922
        %v3998 = vadd.f32 %v3820, %v3924
        %v3999 = vadd.f32 %v3821, %v3993
        %v4000 = vadd.f32 %v3822, %v3995
        %s4001 = scalar_lea.vmem %s1, 160
        %v4002 = vld [vmem:[%s4001] sm:$0xff]
        %s4003 = scalar_lea.vmem %s4, 68
        %v4004 = vld [vmem:[%s4003] ss:$8 sm:$0xf]
        %v4006 = vlaneseq
        %v4007 = vshrl.u32 %v4006, 7
        %v4008 = vsub.s32 0, %v4007
        %v4009 = vrot.slane %v4004, %v4008
        %v4010 = vlaneseq
        %v4011 = vshrl.u32 %v4010, 7
        %v4012 = vsub.s32 1, %v4011
        %v4013 = vrot.slane %v4004, %v4012
        %v4014 = vlaneseq
        %v4015 = vshrl.u32 %v4014, 7
        %v4016 = vsub.s32 2, %v4015
        %v4017 = vrot.slane %v4004, %v4016
        %v4018 = vlaneseq
        %v4019 = vshrl.u32 %v4018, 7
        %v4020 = vsub.s32 3, %v4019
        %v4021 = vrot.slane %v4004, %v4020
        %v4026 = vmul.f32 %v615, %v4009
        %v4027 = vmul.f32 %v614, %v4013
        %v4028 = vmul.f32 %v613, %v4017
        %v4029 = vmul.f32 %v616, %v4021
        %v4031 = vsel %vm311, %v4002, 0
        %4033 = vmatprep.subr.mxu0 %v4027
        %4034 = vmatpush1.msra.mxu0 %v4026
        %4035 = vmatprep.subr.mxu0 0.0
        %4036 = vmatpush1.msra.mxu0 0.0
        %4037 = vmatprep.subr.mxu0 0.0
        %4038 = vmatpush1.msra.mxu0 0.0
        %4039 = vmatprep.subr.mxu0 0.0
        %4040 = vmatpush1.msra.mxu0 0.0
        %4041 = vmatprep.subr.mxu0 0.0
        %4042 = vmatpush1.msra.mxu0 0.0
        %4043 = vmatprep.subr.mxu0 0.0
        %4044 = vmatpush1.msra.mxu0 0.0
        %4045 = vmatprep.subr.mxu0 0.0
        %4046 = vmatpush1.msra.mxu0 0.0
        %4047 = vmatprep.subr.mxu0 0.0
        %4048 = vmatpush1.msra.mxu0 0.0
        %4049 = vmatprep.subr.mxu0 0.0
        %4050 = vmatpush1.msra.mxu0 0.0
        %4051 = vmatprep.subr.mxu0 0.0
        %4052 = vmatpush1.msra.mxu0 0.0
        %4053 = vmatprep.subr.mxu0 0.0
        %4054 = vmatpush1.msra.mxu0 0.0
        %4055 = vmatprep.subr.mxu0 0.0
        %4056 = vmatpush1.msra.mxu0 0.0
        %4057 = vmatprep.subr.mxu0 0.0
        %4058 = vmatpush1.msra.mxu0 0.0
        %4059 = vmatprep.subr.mxu0 0.0
        %4060 = vmatpush1.msra.mxu0 0.0
        %4061 = vmatprep.subr.mxu0 0.0
        %4062 = vmatpush1.msra.mxu0 0.0
        %4063 = vmatprep.subr.mxu0 0.0
        %4064 = vmatpush1.msra.mxu0 0.0
        %4065 = vmatprep.subr.mxu0 0.0
        %4066 = vmatpush1.msra.mxu0 0.0
        %4067 = vmatprep.subr.mxu0 0.0
        %4068 = vmatpush1.msra.mxu0 0.0
        %4069 = vmatprep.subr.mxu0 0.0
        %4070 = vmatpush1.msra.mxu0 0.0
        %4071 = vmatprep.subr.mxu0 0.0
        %4072 = vmatpush1.msra.mxu0 0.0
        %4073 = vmatprep.subr.mxu0 0.0
        %4074 = vmatpush1.msra.mxu0 0.0
        %4075 = vmatprep.subr.mxu0 0.0
        %4076 = vmatpush1.msra.mxu0 0.0
        %4077 = vmatprep.subr.mxu0 0.0
        %4078 = vmatpush1.msra.mxu0 0.0
        %4079 = vmatprep.subr.mxu0 0.0
        %4080 = vmatpush1.msra.mxu0 0.0
        %4081 = vmatprep.subr.mxu0 0.0
        %4082 = vmatpush1.msra.mxu0 0.0
        %4083 = vmatprep.subr.mxu0 0.0
        %4084 = vmatpush1.msra.mxu0 0.0
        %4085 = vmatprep.subr.mxu0 0.0
        %4086 = vmatpush1.msra.mxu0 0.0
        %4087 = vmatprep.subr.mxu0 0.0
        %4088 = vmatpush1.msra.mxu0 0.0
        %4089 = vmatprep.subr.mxu0 0.0
        %4090 = vmatpush1.msra.mxu0 0.0
        %4091 = vmatprep.subr.mxu0 0.0
        %4092 = vmatpush1.msra.mxu0 0.0
        %4093 = vmatprep.subr.mxu0 0.0
        %4094 = vmatpush1.msra.mxu0 0.0
        %4095 = vmatprep.subr.mxu0 0.0
        %4096 = vmatpush1.msra.mxu0 0.0
        %4097 = vmatprep.mubr.f32.mxu0 0.0
        %4098 = vmatmul.mubr.f32.gmra.mrb[0].mxu0 %v4031
        %v4099 = vpop.f32.mrb[0].mxu0
        %v4100 = vadd.f32 0.0, %v4099
        %v4101 = vpop.f32.mrb[0].mxu0
        %v4102 = vadd.f32 0.0, %v4101
        %4103 = vdwg.mxu0
        %4104 = vmatprep.subr.mxu0 %v4029
        %4105 = vmatpush1.msra.mxu0 %v4028
        %4106 = vmatprep.subr.mxu0 0.0
        %4107 = vmatpush1.msra.mxu0 0.0
        %4108 = vmatprep.subr.mxu0 0.0
        %4109 = vmatpush1.msra.mxu0 0.0
        %4110 = vmatprep.subr.mxu0 0.0
        %4111 = vmatpush1.msra.mxu0 0.0
        %4112 = vmatprep.subr.mxu0 0.0
        %4113 = vmatpush1.msra.mxu0 0.0
        %4114 = vmatprep.subr.mxu0 0.0
        %4115 = vmatpush1.msra.mxu0 0.0
        %4116 = vmatprep.subr.mxu0 0.0
        %4117 = vmatpush1.msra.mxu0 0.0
        %4118 = vmatprep.subr.mxu0 0.0
        %4119 = vmatpush1.msra.mxu0 0.0
        %4120 = vmatprep.subr.mxu0 0.0
        %4121 = vmatpush1.msra.mxu0 0.0
        %4122 = vmatprep.subr.mxu0 0.0
        %4123 = vmatpush1.msra.mxu0 0.0
        %4124 = vmatprep.subr.mxu0 0.0
        %4125 = vmatpush1.msra.mxu0 0.0
        %4126 = vmatprep.subr.mxu0 0.0
        %4127 = vmatpush1.msra.mxu0 0.0
        %4128 = vmatprep.subr.mxu0 0.0
        %4129 = vmatpush1.msra.mxu0 0.0
        %4130 = vmatprep.subr.mxu0 0.0
        %4131 = vmatpush1.msra.mxu0 0.0
        %4132 = vmatprep.subr.mxu0 0.0
        %4133 = vmatpush1.msra.mxu0 0.0
        %4134 = vmatprep.subr.mxu0 0.0
        %4135 = vmatpush1.msra.mxu0 0.0
        %4136 = vmatprep.subr.mxu0 0.0
        %4137 = vmatpush1.msra.mxu0 0.0
        %4138 = vmatprep.subr.mxu0 0.0
        %4139 = vmatpush1.msra.mxu0 0.0
        %4140 = vmatprep.subr.mxu0 0.0
        %4141 = vmatpush1.msra.mxu0 0.0
        %4142 = vmatprep.subr.mxu0 0.0
        %4143 = vmatpush1.msra.mxu0 0.0
        %4144 = vmatprep.subr.mxu0 0.0
        %4145 = vmatpush1.msra.mxu0 0.0
        %4146 = vmatprep.subr.mxu0 0.0
        %4147 = vmatpush1.msra.mxu0 0.0
        %4148 = vmatprep.subr.mxu0 0.0
        %4149 = vmatpush1.msra.mxu0 0.0
        %4150 = vmatprep.subr.mxu0 0.0
        %4151 = vmatpush1.msra.mxu0 0.0
        %4152 = vmatprep.subr.mxu0 0.0
        %4153 = vmatpush1.msra.mxu0 0.0
        %4154 = vmatprep.subr.mxu0 0.0
        %4155 = vmatpush1.msra.mxu0 0.0
        %4156 = vmatprep.subr.mxu0 0.0
        %4157 = vmatpush1.msra.mxu0 0.0
        %4158 = vmatprep.subr.mxu0 0.0
        %4159 = vmatpush1.msra.mxu0 0.0
        %4160 = vmatprep.subr.mxu0 0.0
        %4161 = vmatpush1.msra.mxu0 0.0
        %4162 = vmatprep.subr.mxu0 0.0
        %4163 = vmatpush1.msra.mxu0 0.0
        %4164 = vmatprep.subr.mxu0 0.0
        %4165 = vmatpush1.msra.mxu0 0.0
        %4166 = vmatprep.subr.mxu0 0.0
        %4167 = vmatpush1.msra.mxu0 0.0
        %4168 = vmatprep.mubr.f32.mxu0 0.0
        %4169 = vmatmul.mubr.f32.gmra.mrb[0].mxu0 %v4031
        %v4170 = vpop.f32.mrb[0].mxu0
        %v4171 = vadd.f32 0.0, %v4170
        %v4172 = vpop.f32.mrb[0].mxu0
        %v4173 = vadd.f32 0.0, %v4172
        %4174 = vdwg.mxu0
        %v4175 = vadd.f32 %v3997, %v4100
        %v4176 = vadd.f32 %v3998, %v4102
        %v4177 = vadd.f32 %v3999, %v4171
        %v4178 = vadd.f32 %v4000, %v4173
        %s4179 = scalar_lea.vmem %s1, 168
        %v4180 = vld [vmem:[%s4179] sm:$0xff]
        %s4181 = scalar_lea.vmem %s4, 69
        %v4182 = vld [vmem:[%s4181] ss:$8 sm:$0xf]
        %v4184 = vlaneseq
        %v4185 = vshrl.u32 %v4184, 7
        %v4186 = vsub.s32 0, %v4185
        %v4187 = vrot.slane %v4182, %v4186
        %v4188 = vlaneseq
        %v4189 = vshrl.u32 %v4188, 7
        %v4190 = vsub.s32 1, %v4189
        %v4191 = vrot.slane %v4182, %v4190
        %v4192 = vlaneseq
        %v4193 = vshrl.u32 %v4192, 7
        %v4194 = vsub.s32 2, %v4193
        %v4195 = vrot.slane %v4182, %v4194
        %v4196 = vlaneseq
        %v4197 = vshrl.u32 %v4196, 7
        %v4198 = vsub.s32 3, %v4197
        %v4199 = vrot.slane %v4182, %v4198
        %v4204 = vmul.f32 %v806, %v4187
        %v4205 = vmul.f32 %v805, %v4191
        %v4206 = vmul.f32 %v804, %v4195
        %v4207 = vmul.f32 %v807, %v4199
        %v4209 = vsel %vm311, %v4180, 0
        %4211 = vmatprep.subr.mxu0 %v4205
        %4212 = vmatpush1.msra.mxu0 %v4204
        %4213 = vmatprep.subr.mxu0 0.0
        %4214 = vmatpush1.msra.mxu0 0.0
        %4215 = vmatprep.subr.mxu0 0.0
        %4216 = vmatpush1.msra.mxu0 0.0
        %4217 = vmatprep.subr.mxu0 0.0
        %4218 = vmatpush1.msra.mxu0 0.0
        %4219 = vmatprep.subr.mxu0 0.0
        %4220 = vmatpush1.msra.mxu0 0.0
        %4221 = vmatprep.subr.mxu0 0.0
        %4222 = vmatpush1.msra.mxu0 0.0
        %4223 = vmatprep.subr.mxu0 0.0
        %4224 = vmatpush1.msra.mxu0 0.0
        %4225 = vmatprep.subr.mxu0 0.0
        %4226 = vmatpush1.msra.mxu0 0.0
        %4227 = vmatprep.subr.mxu0 0.0
        %4228 = vmatpush1.msra.mxu0 0.0
        %4229 = vmatprep.subr.mxu0 0.0
        %4230 = vmatpush1.msra.mxu0 0.0
        %4231 = vmatprep.subr.mxu0 0.0
        %4232 = vmatpush1.msra.mxu0 0.0
        %4233 = vmatprep.subr.mxu0 0.0
        %4234 = vmatpush1.msra.mxu0 0.0
        %4235 = vmatprep.subr.mxu0 0.0
        %4236 = vmatpush1.msra.mxu0 0.0
        %4237 = vmatprep.subr.mxu0 0.0
        %4238 = vmatpush1.msra.mxu0 0.0
        %4239 = vmatprep.subr.mxu0 0.0
        %4240 = vmatpush1.msra.mxu0 0.0
        %4241 = vmatprep.subr.mxu0 0.0
        %4242 = vmatpush1.msra.mxu0 0.0
        %4243 = vmatprep.subr.mxu0 0.0
        %4244 = vmatpush1.msra.mxu0 0.0
        %4245 = vmatprep.subr.mxu0 0.0
        %4246 = vmatpush1.msra.mxu0 0.0
        %4247 = vmatprep.subr.mxu0 0.0
        %4248 = vmatpush1.msra.mxu0 0.0
        %4249 = vmatprep.subr.mxu0 0.0
        %4250 = vmatpush1.msra.mxu0 0.0
        %4251 = vmatprep.subr.mxu0 0.0
        %4252 = vmatpush1.msra.mxu0 0.0
        %4253 = vmatprep.subr.mxu0 0.0
        %4254 = vmatpush1.msra.mxu0 0.0
        %4255 = vmatprep.subr.mxu0 0.0
        %4256 = vmatpush1.msra.mxu0 0.0
        %4257 = vmatprep.subr.mxu0 0.0
        %4258 = vmatpush1.msra.mxu0 0.0
        %4259 = vmatprep.subr.mxu0 0.0
        %4260 = vmatpush1.msra.mxu0 0.0
        %4261 = vmatprep.subr.mxu0 0.0
        %4262 = vmatpush1.msra.mxu0 0.0
        %4263 = vmatprep.subr.mxu0 0.0
        %4264 = vmatpush1.msra.mxu0 0.0
        %4265 = vmatprep.subr.mxu0 0.0
        %4266 = vmatpush1.msra.mxu0 0.0
        %4267 = vmatprep.subr.mxu0 0.0
        %4268 = vmatpush1.msra.mxu0 0.0
        %4269 = vmatprep.subr.mxu0 0.0
        %4270 = vmatpush1.msra.mxu0 0.0
        %4271 = vmatprep.subr.mxu0 0.0
        %4272 = vmatpush1.msra.mxu0 0.0
        %4273 = vmatprep.subr.mxu0 0.0
        %4274 = vmatpush1.msra.mxu0 0.0
        %4275 = vmatprep.mubr.f32.mxu0 0.0
        %4276 = vmatmul.mubr.f32.gmra.mrb[0].mxu0 %v4209
        %v4277 = vpop.f32.mrb[0].mxu0
        %v4278 = vadd.f32 0.0, %v4277
        %v4279 = vpop.f32.mrb[0].mxu0
        %v4280 = vadd.f32 0.0, %v4279
        %4281 = vdwg.mxu0
        %4282 = vmatprep.subr.mxu0 %v4207
        %4283 = vmatpush1.msra.mxu0 %v4206
        %4284 = vmatprep.subr.mxu0 0.0
        %4285 = vmatpush1.msra.mxu0 0.0
        %4286 = vmatprep.subr.mxu0 0.0
        %4287 = vmatpush1.msra.mxu0 0.0
        %4288 = vmatprep.subr.mxu0 0.0
        %4289 = vmatpush1.msra.mxu0 0.0
        %4290 = vmatprep.subr.mxu0 0.0
        %4291 = vmatpush1.msra.mxu0 0.0
        %4292 = vmatprep.subr.mxu0 0.0
        %4293 = vmatpush1.msra.mxu0 0.0
        %4294 = vmatprep.subr.mxu0 0.0
        %4295 = vmatpush1.msra.mxu0 0.0
        %4296 = vmatprep.subr.mxu0 0.0
        %4297 = vmatpush1.msra.mxu0 0.0
        %4298 = vmatprep.subr.mxu0 0.0
        %4299 = vmatpush1.msra.mxu0 0.0
        %4300 = vmatprep.subr.mxu0 0.0
        %4301 = vmatpush1.msra.mxu0 0.0
        %4302 = vmatprep.subr.mxu0 0.0
        %4303 = vmatpush1.msra.mxu0 0.0
        %4304 = vmatprep.subr.mxu0 0.0
        %4305 = vmatpush1.msra.mxu0 0.0
        %4306 = vmatprep.subr.mxu0 0.0
        %4307 = vmatpush1.msra.mxu0 0.0
        %4308 = vmatprep.subr.mxu0 0.0
        %4309 = vmatpush1.msra.mxu0 0.0
        %4310 = vmatprep.subr.mxu0 0.0
        %4311 = vmatpush1.msra.mxu0 0.0
        %4312 = vmatprep.subr.mxu0 0.0
        %4313 = vmatpush1.msra.mxu0 0.0
        %4314 = vmatprep.subr.mxu0 0.0
        %4315 = vmatpush1.msra.mxu0 0.0
        %4316 = vmatprep.subr.mxu0 0.0
        %4317 = vmatpush1.msra.mxu0 0.0
        %4318 = vmatprep.subr.mxu0 0.0
        %4319 = vmatpush1.msra.mxu0 0.0
        %4320 = vmatprep.subr.mxu0 0.0
        %4321 = vmatpush1.msra.mxu0 0.0
        %4322 = vmatprep.subr.mxu0 0.0
        %4323 = vmatpush1.msra.mxu0 0.0
        %4324 = vmatprep.subr.mxu0 0.0
        %4325 = vmatpush1.msra.mxu0 0.0
        %4326 = vmatprep.subr.mxu0 0.0
        %4327 = vmatpush1.msra.mxu0 0.0
        %4328 = vmatprep.subr.mxu0 0.0
        %4329 = vmatpush1.msra.mxu0 0.0
        %4330 = vmatprep.subr.mxu0 0.0
        %4331 = vmatpush1.msra.mxu0 0.0
        %4332 = vmatprep.subr.mxu0 0.0
        %4333 = vmatpush1.msra.mxu0 0.0
        %4334 = vmatprep.subr.mxu0 0.0
        %4335 = vmatpush1.msra.mxu0 0.0
        %4336 = vmatprep.subr.mxu0 0.0
        %4337 = vmatpush1.msra.mxu0 0.0
        %4338 = vmatprep.subr.mxu0 0.0
        %4339 = vmatpush1.msra.mxu0 0.0
        %4340 = vmatprep.subr.mxu0 0.0
        %4341 = vmatpush1.msra.mxu0 0.0
        %4342 = vmatprep.subr.mxu0 0.0
        %4343 = vmatpush1.msra.mxu0 0.0
        %4344 = vmatprep.subr.mxu0 0.0
        %4345 = vmatpush1.msra.mxu0 0.0
        %4346 = vmatprep.mubr.f32.mxu0 0.0
        %4347 = vmatmul.mubr.f32.gmra.mrb[0].mxu0 %v4209
        %v4348 = vpop.f32.mrb[0].mxu0
        %v4349 = vadd.f32 0.0, %v4348
        %v4350 = vpop.f32.mrb[0].mxu0
        %v4351 = vadd.f32 0.0, %v4350
        %4352 = vdwg.mxu0
        %v4353 = vadd.f32 %v4175, %v4278
        %v4354 = vadd.f32 %v4176, %v4280
        %v4355 = vadd.f32 %v4177, %v4349
        %v4356 = vadd.f32 %v4178, %v4351
        %s4357 = scalar_lea.vmem %s1, 176
        %v4358 = vld [vmem:[%s4357] sm:$0xff]
        %s4359 = scalar_lea.vmem %s4, 70
        %v4360 = vld [vmem:[%s4359] ss:$8 sm:$0xf]
        %v4362 = vlaneseq
        %v4363 = vshrl.u32 %v4362, 7
        %v4364 = vsub.s32 0, %v4363
        %v4365 = vrot.slane %v4360, %v4364
        %v4366 = vlaneseq
        %v4367 = vshrl.u32 %v4366, 7
        %v4368 = vsub.s32 1, %v4367
        %v4369 = vrot.slane %v4360, %v4368
        %v4370 = vlaneseq
        %v4371 = vshrl.u32 %v4370, 7
        %v4372 = vsub.s32 2, %v4371
        %v4373 = vrot.slane %v4360, %v4372
        %v4374 = vlaneseq
        %v4375 = vshrl.u32 %v4374, 7
        %v4376 = vsub.s32 3, %v4375
        %v4377 = vrot.slane %v4360, %v4376
        %v4382 = vmul.f32 %v997, %v4365
        %v4383 = vmul.f32 %v996, %v4369
        %v4384 = vmul.f32 %v995, %v4373
        %v4385 = vmul.f32 %v998, %v4377
        %v4387 = vsel %vm311, %v4358, 0
        %4389 = vmatprep.subr.mxu0 %v4383
        %4390 = vmatpush1.msra.mxu0 %v4382
        %4391 = vmatprep.subr.mxu0 0.0
        %4392 = vmatpush1.msra.mxu0 0.0
        %4393 = vmatprep.subr.mxu0 0.0
        %4394 = vmatpush1.msra.mxu0 0.0
        %4395 = vmatprep.subr.mxu0 0.0
        %4396 = vmatpush1.msra.mxu0 0.0
        %4397 = vmatprep.subr.mxu0 0.0
        %4398 = vmatpush1.msra.mxu0 0.0
        %4399 = vmatprep.subr.mxu0 0.0
        %4400 = vmatpush1.msra.mxu0 0.0
        %4401 = vmatprep.subr.mxu0 0.0
        %4402 = vmatpush1.msra.mxu0 0.0
        %4403 = vmatprep.subr.mxu0 0.0
        %4404 = vmatpush1.msra.mxu0 0.0
        %4405 = vmatprep.subr.mxu0 0.0
        %4406 = vmatpush1.msra.mxu0 0.0
        %4407 = vmatprep.subr.mxu0 0.0
        %4408 = vmatpush1.msra.mxu0 0.0
        %4409 = vmatprep.subr.mxu0 0.0
        %4410 = vmatpush1.msra.mxu0 0.0
        %4411 = vmatprep.subr.mxu0 0.0
        %4412 = vmatpush1.msra.mxu0 0.0
        %4413 = vmatprep.subr.mxu0 0.0
        %4414 = vmatpush1.msra.mxu0 0.0
        %4415 = vmatprep.subr.mxu0 0.0
        %4416 = vmatpush1.msra.mxu0 0.0
        %4417 = vmatprep.subr.mxu0 0.0
        %4418 = vmatpush1.msra.mxu0 0.0
        %4419 = vmatprep.subr.mxu0 0.0
        %4420 = vmatpush1.msra.mxu0 0.0
        %4421 = vmatprep.subr.mxu0 0.0
        %4422 = vmatpush1.msra.mxu0 0.0
        %4423 = vmatprep.subr.mxu0 0.0
        %4424 = vmatpush1.msra.mxu0 0.0
        %4425 = vmatprep.subr.mxu0 0.0
        %4426 = vmatpush1.msra.mxu0 0.0
        %4427 = vmatprep.subr.mxu0 0.0
        %4428 = vmatpush1.msra.mxu0 0.0
        %4429 = vmatprep.subr.mxu0 0.0
        %4430 = vmatpush1.msra.mxu0 0.0
        %4431 = vmatprep.subr.mxu0 0.0
        %4432 = vmatpush1.msra.mxu0 0.0
        %4433 = vmatprep.subr.mxu0 0.0
        %4434 = vmatpush1.msra.mxu0 0.0
        %4435 = vmatprep.subr.mxu0 0.0
        %4436 = vmatpush1.msra.mxu0 0.0
        %4437 = vmatprep.subr.mxu0 0.0
        %4438 = vmatpush1.msra.mxu0 0.0
        %4439 = vmatprep.subr.mxu0 0.0
        %4440 = vmatpush1.msra.mxu0 0.0
        %4441 = vmatprep.subr.mxu0 0.0
        %4442 = vmatpush1.msra.mxu0 0.0
        %4443 = vmatprep.subr.mxu0 0.0
        %4444 = vmatpush1.msra.mxu0 0.0
        %4445 = vmatprep.subr.mxu0 0.0
        %4446 = vmatpush1.msra.mxu0 0.0
        %4447 = vmatprep.subr.mxu0 0.0
        %4448 = vmatpush1.msra.mxu0 0.0
        %4449 = vmatprep.subr.mxu0 0.0
        %4450 = vmatpush1.msra.mxu0 0.0
        %4451 = vmatprep.subr.mxu0 0.0
        %4452 = vmatpush1.msra.mxu0 0.0
        %4453 = vmatprep.mubr.f32.mxu0 0.0
        %4454 = vmatmul.mubr.f32.gmra.mrb[0].mxu0 %v4387
        %v4455 = vpop.f32.mrb[0].mxu0
        %v4456 = vadd.f32 0.0, %v4455
        %v4457 = vpop.f32.mrb[0].mxu0
        %v4458 = vadd.f32 0.0, %v4457
        %4459 = vdwg.mxu0
        %4460 = vmatprep.subr.mxu0 %v4385
        %4461 = vmatpush1.msra.mxu0 %v4384
        %4462 = vmatprep.subr.mxu0 0.0
        %4463 = vmatpush1.msra.mxu0 0.0
        %4464 = vmatprep.subr.mxu0 0.0
        %4465 = vmatpush1.msra.mxu0 0.0
        %4466 = vmatprep.subr.mxu0 0.0
        %4467 = vmatpush1.msra.mxu0 0.0
        %4468 = vmatprep.subr.mxu0 0.0
        %4469 = vmatpush1.msra.mxu0 0.0
        %4470 = vmatprep.subr.mxu0 0.0
        %4471 = vmatpush1.msra.mxu0 0.0
        %4472 = vmatprep.subr.mxu0 0.0
        %4473 = vmatpush1.msra.mxu0 0.0
        %4474 = vmatprep.subr.mxu0 0.0
        %4475 = vmatpush1.msra.mxu0 0.0
        %4476 = vmatprep.subr.mxu0 0.0
        %4477 = vmatpush1.msra.mxu0 0.0
        %4478 = vmatprep.subr.mxu0 0.0
        %4479 = vmatpush1.msra.mxu0 0.0
        %4480 = vmatprep.subr.mxu0 0.0
        %4481 = vmatpush1.msra.mxu0 0.0
        %4482 = vmatprep.subr.mxu0 0.0
        %4483 = vmatpush1.msra.mxu0 0.0
        %4484 = vmatprep.subr.mxu0 0.0
        %4485 = vmatpush1.msra.mxu0 0.0
        %4486 = vmatprep.subr.mxu0 0.0
        %4487 = vmatpush1.msra.mxu0 0.0
        %4488 = vmatprep.subr.mxu0 0.0
        %4489 = vmatpush1.msra.mxu0 0.0
        %4490 = vmatprep.subr.mxu0 0.0
        %4491 = vmatpush1.msra.mxu0 0.0
        %4492 = vmatprep.subr.mxu0 0.0
        %4493 = vmatpush1.msra.mxu0 0.0
        %4494 = vmatprep.subr.mxu0 0.0
        %4495 = vmatpush1.msra.mxu0 0.0
        %4496 = vmatprep.subr.mxu0 0.0
        %4497 = vmatpush1.msra.mxu0 0.0
        %4498 = vmatprep.subr.mxu0 0.0
        %4499 = vmatpush1.msra.mxu0 0.0
        %4500 = vmatprep.subr.mxu0 0.0
        %4501 = vmatpush1.msra.mxu0 0.0
        %4502 = vmatprep.subr.mxu0 0.0
        %4503 = vmatpush1.msra.mxu0 0.0
        %4504 = vmatprep.subr.mxu0 0.0
        %4505 = vmatpush1.msra.mxu0 0.0
        %4506 = vmatprep.subr.mxu0 0.0
        %4507 = vmatpush1.msra.mxu0 0.0
        %4508 = vmatprep.subr.mxu0 0.0
        %4509 = vmatpush1.msra.mxu0 0.0
        %4510 = vmatprep.subr.mxu0 0.0
        %4511 = vmatpush1.msra.mxu0 0.0
        %4512 = vmatprep.subr.mxu0 0.0
        %4513 = vmatpush1.msra.mxu0 0.0
        %4514 = vmatprep.subr.mxu0 0.0
        %4515 = vmatpush1.msra.mxu0 0.0
        %4516 = vmatprep.subr.mxu0 0.0
        %4517 = vmatpush1.msra.mxu0 0.0
        %4518 = vmatprep.subr.mxu0 0.0
        %4519 = vmatpush1.msra.mxu0 0.0
        %4520 = vmatprep.subr.mxu0 0.0
        %4521 = vmatpush1.msra.mxu0 0.0
        %4522 = vmatprep.subr.mxu0 0.0
        %4523 = vmatpush1.msra.mxu0 0.0
        %4524 = vmatprep.mubr.f32.mxu0 0.0
        %4525 = vmatmul.mubr.f32.gmra.mrb[0].mxu0 %v4387
        %v4526 = vpop.f32.mrb[0].mxu0
        %v4527 = vadd.f32 0.0, %v4526
        %v4528 = vpop.f32.mrb[0].mxu0
        %v4529 = vadd.f32 0.0, %v4528
        %4530 = vdwg.mxu0
        %v4531 = vadd.f32 %v4353, %v4456
        %v4532 = vadd.f32 %v4354, %v4458
        %v4533 = vadd.f32 %v4355, %v4527
        %v4534 = vadd.f32 %v4356, %v4529
        %s4535 = scalar_lea.vmem %s1, 184
        %v4536 = vld [vmem:[%s4535] sm:$0xff]
        %s4537 = scalar_lea.vmem %s4, 71
        %v4538 = vld [vmem:[%s4537] ss:$8 sm:$0xf]
        %v4540 = vlaneseq
        %v4541 = vshrl.u32 %v4540, 7
        %v4542 = vsub.s32 0, %v4541
        %v4543 = vrot.slane %v4538, %v4542
        %v4544 = vlaneseq
        %v4545 = vshrl.u32 %v4544, 7
        %v4546 = vsub.s32 1, %v4545
        %v4547 = vrot.slane %v4538, %v4546
        %v4548 = vlaneseq
        %v4549 = vshrl.u32 %v4548, 7
        %v4550 = vsub.s32 2, %v4549
        %v4551 = vrot.slane %v4538, %v4550
        %v4552 = vlaneseq
        %v4553 = vshrl.u32 %v4552, 7
        %v4554 = vsub.s32 3, %v4553
        %v4555 = vrot.slane %v4538, %v4554
        %v4560 = vmul.f32 %v1188, %v4543
        %v4561 = vmul.f32 %v1187, %v4547
        %v4562 = vmul.f32 %v1186, %v4551
        %v4563 = vmul.f32 %v1189, %v4555
        %v4565 = vsel %vm311, %v4536, 0
        %4567 = vmatprep.subr.mxu0 %v4561
        %4568 = vmatpush1.msra.mxu0 %v4560
        %4569 = vmatprep.subr.mxu0 0.0
        %4570 = vmatpush1.msra.mxu0 0.0
        %4571 = vmatprep.subr.mxu0 0.0
        %4572 = vmatpush1.msra.mxu0 0.0
        %4573 = vmatprep.subr.mxu0 0.0
        %4574 = vmatpush1.msra.mxu0 0.0
        %4575 = vmatprep.subr.mxu0 0.0
        %4576 = vmatpush1.msra.mxu0 0.0
        %4577 = vmatprep.subr.mxu0 0.0
        %4578 = vmatpush1.msra.mxu0 0.0
        %4579 = vmatprep.subr.mxu0 0.0
        %4580 = vmatpush1.msra.mxu0 0.0
        %4581 = vmatprep.subr.mxu0 0.0
        %4582 = vmatpush1.msra.mxu0 0.0
        %4583 = vmatprep.subr.mxu0 0.0
        %4584 = vmatpush1.msra.mxu0 0.0
        %4585 = vmatprep.subr.mxu0 0.0
        %4586 = vmatpush1.msra.mxu0 0.0
        %4587 = vmatprep.subr.mxu0 0.0
        %4588 = vmatpush1.msra.mxu0 0.0
        %4589 = vmatprep.subr.mxu0 0.0
        %4590 = vmatpush1.msra.mxu0 0.0
        %4591 = vmatprep.subr.mxu0 0.0
        %4592 = vmatpush1.msra.mxu0 0.0
        %4593 = vmatprep.subr.mxu0 0.0
        %4594 = vmatpush1.msra.mxu0 0.0
        %4595 = vmatprep.subr.mxu0 0.0
        %4596 = vmatpush1.msra.mxu0 0.0
        %4597 = vmatprep.subr.mxu0 0.0
        %4598 = vmatpush1.msra.mxu0 0.0
        %4599 = vmatprep.subr.mxu0 0.0
        %4600 = vmatpush1.msra.mxu0 0.0
        %4601 = vmatprep.subr.mxu0 0.0
        %4602 = vmatpush1.msra.mxu0 0.0
        %4603 = vmatprep.subr.mxu0 0.0
        %4604 = vmatpush1.msra.mxu0 0.0
        %4605 = vmatprep.subr.mxu0 0.0
        %4606 = vmatpush1.msra.mxu0 0.0
        %4607 = vmatprep.subr.mxu0 0.0
        %4608 = vmatpush1.msra.mxu0 0.0
        %4609 = vmatprep.subr.mxu0 0.0
        %4610 = vmatpush1.msra.mxu0 0.0
        %4611 = vmatprep.subr.mxu0 0.0
        %4612 = vmatpush1.msra.mxu0 0.0
        %4613 = vmatprep.subr.mxu0 0.0
        %4614 = vmatpush1.msra.mxu0 0.0
        %4615 = vmatprep.subr.mxu0 0.0
        %4616 = vmatpush1.msra.mxu0 0.0
        %4617 = vmatprep.subr.mxu0 0.0
        %4618 = vmatpush1.msra.mxu0 0.0
        %4619 = vmatprep.subr.mxu0 0.0
        %4620 = vmatpush1.msra.mxu0 0.0
        %4621 = vmatprep.subr.mxu0 0.0
        %4622 = vmatpush1.msra.mxu0 0.0
        %4623 = vmatprep.subr.mxu0 0.0
        %4624 = vmatpush1.msra.mxu0 0.0
        %4625 = vmatprep.subr.mxu0 0.0
        %4626 = vmatpush1.msra.mxu0 0.0
        %4627 = vmatprep.subr.mxu0 0.0
        %4628 = vmatpush1.msra.mxu0 0.0
        %4629 = vmatprep.subr.mxu0 0.0
        %4630 = vmatpush1.msra.mxu0 0.0
        %4631 = vmatprep.mubr.f32.mxu0 0.0
        %4632 = vmatmul.mubr.f32.gmra.mrb[0].mxu0 %v4565
        %v4633 = vpop.f32.mrb[0].mxu0
        %v4634 = vadd.f32 0.0, %v4633
        %v4635 = vpop.f32.mrb[0].mxu0
        %v4636 = vadd.f32 0.0, %v4635
        %4637 = vdwg.mxu0
        %4638 = vmatprep.subr.mxu0 %v4563
        %4639 = vmatpush1.msra.mxu0 %v4562
        %4640 = vmatprep.subr.mxu0 0.0
        %4641 = vmatpush1.msra.mxu0 0.0
        %4642 = vmatprep.subr.mxu0 0.0
        %4643 = vmatpush1.msra.mxu0 0.0
        %4644 = vmatprep.subr.mxu0 0.0
        %4645 = vmatpush1.msra.mxu0 0.0
        %4646 = vmatprep.subr.mxu0 0.0
        %4647 = vmatpush1.msra.mxu0 0.0
        %4648 = vmatprep.subr.mxu0 0.0
        %4649 = vmatpush1.msra.mxu0 0.0
        %4650 = vmatprep.subr.mxu0 0.0
        %4651 = vmatpush1.msra.mxu0 0.0
        %4652 = vmatprep.subr.mxu0 0.0
        %4653 = vmatpush1.msra.mxu0 0.0
        %4654 = vmatprep.subr.mxu0 0.0
        %4655 = vmatpush1.msra.mxu0 0.0
        %4656 = vmatprep.subr.mxu0 0.0
        %4657 = vmatpush1.msra.mxu0 0.0
        %4658 = vmatprep.subr.mxu0 0.0
        %4659 = vmatpush1.msra.mxu0 0.0
        %4660 = vmatprep.subr.mxu0 0.0
        %4661 = vmatpush1.msra.mxu0 0.0
        %4662 = vmatprep.subr.mxu0 0.0
        %4663 = vmatpush1.msra.mxu0 0.0
        %4664 = vmatprep.subr.mxu0 0.0
        %4665 = vmatpush1.msra.mxu0 0.0
        %4666 = vmatprep.subr.mxu0 0.0
        %4667 = vmatpush1.msra.mxu0 0.0
        %4668 = vmatprep.subr.mxu0 0.0
        %4669 = vmatpush1.msra.mxu0 0.0
        %4670 = vmatprep.subr.mxu0 0.0
        %4671 = vmatpush1.msra.mxu0 0.0
        %4672 = vmatprep.subr.mxu0 0.0
        %4673 = vmatpush1.msra.mxu0 0.0
        %4674 = vmatprep.subr.mxu0 0.0
        %4675 = vmatpush1.msra.mxu0 0.0
        %4676 = vmatprep.subr.mxu0 0.0
        %4677 = vmatpush1.msra.mxu0 0.0
        %4678 = vmatprep.subr.mxu0 0.0
        %4679 = vmatpush1.msra.mxu0 0.0
        %4680 = vmatprep.subr.mxu0 0.0
        %4681 = vmatpush1.msra.mxu0 0.0
        %4682 = vmatprep.subr.mxu0 0.0
        %4683 = vmatpush1.msra.mxu0 0.0
        %4684 = vmatprep.subr.mxu0 0.0
        %4685 = vmatpush1.msra.mxu0 0.0
        %4686 = vmatprep.subr.mxu0 0.0
        %4687 = vmatpush1.msra.mxu0 0.0
        %4688 = vmatprep.subr.mxu0 0.0
        %4689 = vmatpush1.msra.mxu0 0.0
        %4690 = vmatprep.subr.mxu0 0.0
        %4691 = vmatpush1.msra.mxu0 0.0
        %4692 = vmatprep.subr.mxu0 0.0
        %4693 = vmatpush1.msra.mxu0 0.0
        %4694 = vmatprep.subr.mxu0 0.0
        %4695 = vmatpush1.msra.mxu0 0.0
        %4696 = vmatprep.subr.mxu0 0.0
        %4697 = vmatpush1.msra.mxu0 0.0
        %4698 = vmatprep.subr.mxu0 0.0
        %4699 = vmatpush1.msra.mxu0 0.0
        %4700 = vmatprep.subr.mxu0 0.0
        %4701 = vmatpush1.msra.mxu0 0.0
        %4702 = vmatprep.mubr.f32.mxu0 0.0
        %4703 = vmatmul.mubr.f32.gmra.mrb[0].mxu0 %v4565
        %v4704 = vpop.f32.mrb[0].mxu0
        %v4705 = vadd.f32 0.0, %v4704
        %v4706 = vpop.f32.mrb[0].mxu0
        %v4707 = vadd.f32 0.0, %v4706
        %4708 = vdwg.mxu0
        %v4709 = vadd.f32 %v4531, %v4634
        %v4710 = vadd.f32 %v4532, %v4636
        %v4711 = vadd.f32 %v4533, %v4705
        %v4712 = vadd.f32 %v4534, %v4707
        %s4713 = scalar_lea.vmem %s1, 192
        %v4714 = vld [vmem:[%s4713] sm:$0xff]
        %s4715 = scalar_lea.vmem %s4, 96
        %v4716 = vld [vmem:[%s4715] ss:$8 sm:$0xf]
        %v4718 = vlaneseq
        %v4719 = vshrl.u32 %v4718, 7
        %v4720 = vsub.s32 0, %v4719
        %v4721 = vrot.slane %v4716, %v4720
        %v4722 = vlaneseq
        %v4723 = vshrl.u32 %v4722, 7
        %v4724 = vsub.s32 1, %v4723
        %v4725 = vrot.slane %v4716, %v4724
        %v4726 = vlaneseq
        %v4727 = vshrl.u32 %v4726, 7
        %v4728 = vsub.s32 2, %v4727
        %v4729 = vrot.slane %v4716, %v4728
        %v4730 = vlaneseq
        %v4731 = vshrl.u32 %v4730, 7
        %v4732 = vsub.s32 3, %v4731
        %v4733 = vrot.slane %v4716, %v4732
        %v4738 = vmul.f32 %v1379, %v4721
        %v4739 = vmul.f32 %v1378, %v4725
        %v4740 = vmul.f32 %v1377, %v4729
        %v4741 = vmul.f32 %v1380, %v4733
        %v4743 = vsel %vm311, %v4714, 0
        %4745 = vmatprep.subr.mxu0 %v4739
        %4746 = vmatpush1.msra.mxu0 %v4738
        %4747 = vmatprep.subr.mxu0 0.0
        %4748 = vmatpush1.msra.mxu0 0.0
        %4749 = vmatprep.subr.mxu0 0.0
        %4750 = vmatpush1.msra.mxu0 0.0
        %4751 = vmatprep.subr.mxu0 0.0
        %4752 = vmatpush1.msra.mxu0 0.0
        %4753 = vmatprep.subr.mxu0 0.0
        %4754 = vmatpush1.msra.mxu0 0.0
        %4755 = vmatprep.subr.mxu0 0.0
        %4756 = vmatpush1.msra.mxu0 0.0
        %4757 = vmatprep.subr.mxu0 0.0
        %4758 = vmatpush1.msra.mxu0 0.0
        %4759 = vmatprep.subr.mxu0 0.0
        %4760 = vmatpush1.msra.mxu0 0.0
        %4761 = vmatprep.subr.mxu0 0.0
        %4762 = vmatpush1.msra.mxu0 0.0
        %4763 = vmatprep.subr.mxu0 0.0
        %4764 = vmatpush1.msra.mxu0 0.0
        %4765 = vmatprep.subr.mxu0 0.0
        %4766 = vmatpush1.msra.mxu0 0.0
        %4767 = vmatprep.subr.mxu0 0.0
        %4768 = vmatpush1.msra.mxu0 0.0
        %4769 = vmatprep.subr.mxu0 0.0
        %4770 = vmatpush1.msra.mxu0 0.0
        %4771 = vmatprep.subr.mxu0 0.0
        %4772 = vmatpush1.msra.mxu0 0.0
        %4773 = vmatprep.subr.mxu0 0.0
        %4774 = vmatpush1.msra.mxu0 0.0
        %4775 = vmatprep.subr.mxu0 0.0
        %4776 = vmatpush1.msra.mxu0 0.0
        %4777 = vmatprep.subr.mxu0 0.0
        %4778 = vmatpush1.msra.mxu0 0.0
        %4779 = vmatprep.subr.mxu0 0.0
        %4780 = vmatpush1.msra.mxu0 0.0
        %4781 = vmatprep.subr.mxu0 0.0
        %4782 = vmatpush1.msra.mxu0 0.0
        %4783 = vmatprep.subr.mxu0 0.0
        %4784 = vmatpush1.msra.mxu0 0.0
        %4785 = vmatprep.subr.mxu0 0.0
        %4786 = vmatpush1.msra.mxu0 0.0
        %4787 = vmatprep.subr.mxu0 0.0
        %4788 = vmatpush1.msra.mxu0 0.0
        %4789 = vmatprep.subr.mxu0 0.0
        %4790 = vmatpush1.msra.mxu0 0.0
        %4791 = vmatprep.subr.mxu0 0.0
        %4792 = vmatpush1.msra.mxu0 0.0
        %4793 = vmatprep.subr.mxu0 0.0
        %4794 = vmatpush1.msra.mxu0 0.0
        %4795 = vmatprep.subr.mxu0 0.0
        %4796 = vmatpush1.msra.mxu0 0.0
        %4797 = vmatprep.subr.mxu0 0.0
        %4798 = vmatpush1.msra.mxu0 0.0
        %4799 = vmatprep.subr.mxu0 0.0
        %4800 = vmatpush1.msra.mxu0 0.0
        %4801 = vmatprep.subr.mxu0 0.0
        %4802 = vmatpush1.msra.mxu0 0.0
        %4803 = vmatprep.subr.mxu0 0.0
        %4804 = vmatpush1.msra.mxu0 0.0
        %4805 = vmatprep.subr.mxu0 0.0
        %4806 = vmatpush1.msra.mxu0 0.0
        %4807 = vmatprep.subr.mxu0 0.0
        %4808 = vmatpush1.msra.mxu0 0.0
        %4809 = vmatprep.mubr.f32.mxu0 0.0
        %4810 = vmatmul.mubr.f32.gmra.mrb[0].mxu0 %v4743
        %v4811 = vpop.f32.mrb[0].mxu0
        %v4812 = vadd.f32 0.0, %v4811
        %v4813 = vpop.f32.mrb[0].mxu0
        %v4814 = vadd.f32 0.0, %v4813
        %4815 = vdwg.mxu0
        %4816 = vmatprep.subr.mxu0 %v4741
        %4817 = vmatpush1.msra.mxu0 %v4740
        %4818 = vmatprep.subr.mxu0 0.0
        %4819 = vmatpush1.msra.mxu0 0.0
        %4820 = vmatprep.subr.mxu0 0.0
        %4821 = vmatpush1.msra.mxu0 0.0
        %4822 = vmatprep.subr.mxu0 0.0
        %4823 = vmatpush1.msra.mxu0 0.0
        %4824 = vmatprep.subr.mxu0 0.0
        %4825 = vmatpush1.msra.mxu0 0.0
        %4826 = vmatprep.subr.mxu0 0.0
        %4827 = vmatpush1.msra.mxu0 0.0
        %4828 = vmatprep.subr.mxu0 0.0
        %4829 = vmatpush1.msra.mxu0 0.0
        %4830 = vmatprep.subr.mxu0 0.0
        %4831 = vmatpush1.msra.mxu0 0.0
        %4832 = vmatprep.subr.mxu0 0.0
        %4833 = vmatpush1.msra.mxu0 0.0
        %4834 = vmatprep.subr.mxu0 0.0
        %4835 = vmatpush1.msra.mxu0 0.0
        %4836 = vmatprep.subr.mxu0 0.0
        %4837 = vmatpush1.msra.mxu0 0.0
        %4838 = vmatprep.subr.mxu0 0.0
        %4839 = vmatpush1.msra.mxu0 0.0
        %4840 = vmatprep.subr.mxu0 0.0
        %4841 = vmatpush1.msra.mxu0 0.0
        %4842 = vmatprep.subr.mxu0 0.0
        %4843 = vmatpush1.msra.mxu0 0.0
        %4844 = vmatprep.subr.mxu0 0.0
        %4845 = vmatpush1.msra.mxu0 0.0
        %4846 = vmatprep.subr.mxu0 0.0
        %4847 = vmatpush1.msra.mxu0 0.0
        %4848 = vmatprep.subr.mxu0 0.0
        %4849 = vmatpush1.msra.mxu0 0.0
        %4850 = vmatprep.subr.mxu0 0.0
        %4851 = vmatpush1.msra.mxu0 0.0
        %4852 = vmatprep.subr.mxu0 0.0
        %4853 = vmatpush1.msra.mxu0 0.0
        %4854 = vmatprep.subr.mxu0 0.0
        %4855 = vmatpush1.msra.mxu0 0.0
        %4856 = vmatprep.subr.mxu0 0.0
        %4857 = vmatpush1.msra.mxu0 0.0
        %4858 = vmatprep.subr.mxu0 0.0
        %4859 = vmatpush1.msra.mxu0 0.0
        %4860 = vmatprep.subr.mxu0 0.0
        %4861 = vmatpush1.msra.mxu0 0.0
        %4862 = vmatprep.subr.mxu0 0.0
        %4863 = vmatpush1.msra.mxu0 0.0
        %4864 = vmatprep.subr.mxu0 0.0
        %4865 = vmatpush1.msra.mxu0 0.0
        %4866 = vmatprep.subr.mxu0 0.0
        %4867 = vmatpush1.msra.mxu0 0.0
        %4868 = vmatprep.subr.mxu0 0.0
        %4869 = vmatpush1.msra.mxu0 0.0
        %4870 = vmatprep.subr.mxu0 0.0
        %4871 = vmatpush1.msra.mxu0 0.0
        %4872 = vmatprep.subr.mxu0 0.0
        %4873 = vmatpush1.msra.mxu0 0.0
        %4874 = vmatprep.subr.mxu0 0.0
        %4875 = vmatpush1.msra.mxu0 0.0
        %4876 = vmatprep.subr.mxu0 0.0
        %4877 = vmatpush1.msra.mxu0 0.0
        %4878 = vmatprep.subr.mxu0 0.0
        %4879 = vmatpush1.msra.mxu0 0.0
        %4880 = vmatprep.mubr.f32.mxu0 0.0
        %4881 = vmatmul.mubr.f32.gmra.mrb[0].mxu0 %v4743
        %v4882 = vpop.f32.mrb[0].mxu0
        %v4883 = vadd.f32 0.0, %v4882
        %v4884 = vpop.f32.mrb[0].mxu0
        %v4885 = vadd.f32 0.0, %v4884
        %4886 = vdwg.mxu0
        %v4887 = vadd.f32 %v4709, %v4812
        %v4888 = vadd.f32 %v4710, %v4814
        %v4889 = vadd.f32 %v4711, %v4883
        %v4890 = vadd.f32 %v4712, %v4885
        %s4891 = scalar_lea.vmem %s1, 200
        %v4892 = vld [vmem:[%s4891] sm:$0xff]
        %s4893 = scalar_lea.vmem %s4, 97
        %v4894 = vld [vmem:[%s4893] ss:$8 sm:$0xf]
        %v4896 = vlaneseq
        %v4897 = vshrl.u32 %v4896, 7
        %v4898 = vsub.s32 0, %v4897
        %v4899 = vrot.slane %v4894, %v4898
        %v4900 = vlaneseq
        %v4901 = vshrl.u32 %v4900, 7
        %v4902 = vsub.s32 1, %v4901
        %v4903 = vrot.slane %v4894, %v4902
        %v4904 = vlaneseq
        %v4905 = vshrl.u32 %v4904, 7
        %v4906 = vsub.s32 2, %v4905
        %v4907 = vrot.slane %v4894, %v4906
        %v4908 = vlaneseq
        %v4909 = vshrl.u32 %v4908, 7
        %v4910 = vsub.s32 3, %v4909
        %v4911 = vrot.slane %v4894, %v4910
        %v4916 = vmul.f32 %v1570, %v4899
        %v4917 = vmul.f32 %v1569, %v4903
        %v4918 = vmul.f32 %v1568, %v4907
        %v4919 = vmul.f32 %v1571, %v4911
        %v4921 = vsel %vm311, %v4892, 0
        %4923 = vmatprep.subr.mxu0 %v4917
        %4924 = vmatpush1.msra.mxu0 %v4916
        %4925 = vmatprep.subr.mxu0 0.0
        %4926 = vmatpush1.msra.mxu0 0.0
        %4927 = vmatprep.subr.mxu0 0.0
        %4928 = vmatpush1.msra.mxu0 0.0
        %4929 = vmatprep.subr.mxu0 0.0
        %4930 = vmatpush1.msra.mxu0 0.0
        %4931 = vmatprep.subr.mxu0 0.0
        %4932 = vmatpush1.msra.mxu0 0.0
        %4933 = vmatprep.subr.mxu0 0.0
        %4934 = vmatpush1.msra.mxu0 0.0
        %4935 = vmatprep.subr.mxu0 0.0
        %4936 = vmatpush1.msra.mxu0 0.0
        %4937 = vmatprep.subr.mxu0 0.0
        %4938 = vmatpush1.msra.mxu0 0.0
        %4939 = vmatprep.subr.mxu0 0.0
        %4940 = vmatpush1.msra.mxu0 0.0
        %4941 = vmatprep.subr.mxu0 0.0
        %4942 = vmatpush1.msra.mxu0 0.0
        %4943 = vmatprep.subr.mxu0 0.0
        %4944 = vmatpush1.msra.mxu0 0.0
        %4945 = vmatprep.subr.mxu0 0.0
        %4946 = vmatpush1.msra.mxu0 0.0
        %4947 = vmatprep.subr.mxu0 0.0
        %4948 = vmatpush1.msra.mxu0 0.0
        %4949 = vmatprep.subr.mxu0 0.0
        %4950 = vmatpush1.msra.mxu0 0.0
        %4951 = vmatprep.subr.mxu0 0.0
        %4952 = vmatpush1.msra.mxu0 0.0
        %4953 = vmatprep.subr.mxu0 0.0
        %4954 = vmatpush1.msra.mxu0 0.0
        %4955 = vmatprep.subr.mxu0 0.0
        %4956 = vmatpush1.msra.mxu0 0.0
        %4957 = vmatprep.subr.mxu0 0.0
        %4958 = vmatpush1.msra.mxu0 0.0
        %4959 = vmatprep.subr.mxu0 0.0
        %4960 = vmatpush1.msra.mxu0 0.0
        %4961 = vmatprep.subr.mxu0 0.0
        %4962 = vmatpush1.msra.mxu0 0.0
        %4963 = vmatprep.subr.mxu0 0.0
        %4964 = vmatpush1.msra.mxu0 0.0
        %4965 = vmatprep.subr.mxu0 0.0
        %4966 = vmatpush1.msra.mxu0 0.0
        %4967 = vmatprep.subr.mxu0 0.0
        %4968 = vmatpush1.msra.mxu0 0.0
        %4969 = vmatprep.subr.mxu0 0.0
        %4970 = vmatpush1.msra.mxu0 0.0
        %4971 = vmatprep.subr.mxu0 0.0
        %4972 = vmatpush1.msra.mxu0 0.0
        %4973 = vmatprep.subr.mxu0 0.0
        %4974 = vmatpush1.msra.mxu0 0.0
        %4975 = vmatprep.subr.mxu0 0.0
        %4976 = vmatpush1.msra.mxu0 0.0
        %4977 = vmatprep.subr.mxu0 0.0
        %4978 = vmatpush1.msra.mxu0 0.0
        %4979 = vmatprep.subr.mxu0 0.0
        %4980 = vmatpush1.msra.mxu0 0.0
        %4981 = vmatprep.subr.mxu0 0.0
        %4982 = vmatpush1.msra.mxu0 0.0
        %4983 = vmatprep.subr.mxu0 0.0
        %4984 = vmatpush1.msra.mxu0 0.0
        %4985 = vmatprep.subr.mxu0 0.0
        %4986 = vmatpush1.msra.mxu0 0.0
        %4987 = vmatprep.mubr.f32.mxu0 0.0
        %4988 = vmatmul.mubr.f32.gmra.mrb[0].mxu0 %v4921
        %v4989 = vpop.f32.mrb[0].mxu0
        %v4990 = vadd.f32 0.0, %v4989
        %v4991 = vpop.f32.mrb[0].mxu0
        %v4992 = vadd.f32 0.0, %v4991
        %4993 = vdwg.mxu0
        %4994 = vmatprep.subr.mxu0 %v4919
        %4995 = vmatpush1.msra.mxu0 %v4918
        %4996 = vmatprep.subr.mxu0 0.0
        %4997 = vmatpush1.msra.mxu0 0.0
        %4998 = vmatprep.subr.mxu0 0.0
        %4999 = vmatpush1.msra.mxu0 0.0
        %5000 = vmatprep.subr.mxu0 0.0
        %5001 = vmatpush1.msra.mxu0 0.0
        %5002 = vmatprep.subr.mxu0 0.0
        %5003 = vmatpush1.msra.mxu0 0.0
        %5004 = vmatprep.subr.mxu0 0.0
        %5005 = vmatpush1.msra.mxu0 0.0
        %5006 = vmatprep.subr.mxu0 0.0
        %5007 = vmatpush1.msra.mxu0 0.0
        %5008 = vmatprep.subr.mxu0 0.0
        %5009 = vmatpush1.msra.mxu0 0.0
        %5010 = vmatprep.subr.mxu0 0.0
        %5011 = vmatpush1.msra.mxu0 0.0
        %5012 = vmatprep.subr.mxu0 0.0
        %5013 = vmatpush1.msra.mxu0 0.0
        %5014 = vmatprep.subr.mxu0 0.0
        %5015 = vmatpush1.msra.mxu0 0.0
        %5016 = vmatprep.subr.mxu0 0.0
        %5017 = vmatpush1.msra.mxu0 0.0
        %5018 = vmatprep.subr.mxu0 0.0
        %5019 = vmatpush1.msra.mxu0 0.0
        %5020 = vmatprep.subr.mxu0 0.0
        %5021 = vmatpush1.msra.mxu0 0.0
        %5022 = vmatprep.subr.mxu0 0.0
        %5023 = vmatpush1.msra.mxu0 0.0
        %5024 = vmatprep.subr.mxu0 0.0
        %5025 = vmatpush1.msra.mxu0 0.0
        %5026 = vmatprep.subr.mxu0 0.0
        %5027 = vmatpush1.msra.mxu0 0.0
        %5028 = vmatprep.subr.mxu0 0.0
        %5029 = vmatpush1.msra.mxu0 0.0
        %5030 = vmatprep.subr.mxu0 0.0
        %5031 = vmatpush1.msra.mxu0 0.0
        %5032 = vmatprep.subr.mxu0 0.0
        %5033 = vmatpush1.msra.mxu0 0.0
        %5034 = vmatprep.subr.mxu0 0.0
        %5035 = vmatpush1.msra.mxu0 0.0
        %5036 = vmatprep.subr.mxu0 0.0
        %5037 = vmatpush1.msra.mxu0 0.0
        %5038 = vmatprep.subr.mxu0 0.0
        %5039 = vmatpush1.msra.mxu0 0.0
        %5040 = vmatprep.subr.mxu0 0.0
        %5041 = vmatpush1.msra.mxu0 0.0
        %5042 = vmatprep.subr.mxu0 0.0
        %5043 = vmatpush1.msra.mxu0 0.0
        %5044 = vmatprep.subr.mxu0 0.0
        %5045 = vmatpush1.msra.mxu0 0.0
        %5046 = vmatprep.subr.mxu0 0.0
        %5047 = vmatpush1.msra.mxu0 0.0
        %5048 = vmatprep.subr.mxu0 0.0
        %5049 = vmatpush1.msra.mxu0 0.0
        %5050 = vmatprep.subr.mxu0 0.0
        %5051 = vmatpush1.msra.mxu0 0.0
        %5052 = vmatprep.subr.mxu0 0.0
        %5053 = vmatpush1.msra.mxu0 0.0
        %5054 = vmatprep.subr.mxu0 0.0
        %5055 = vmatpush1.msra.mxu0 0.0
        %5056 = vmatprep.subr.mxu0 0.0
        %5057 = vmatpush1.msra.mxu0 0.0
        %5058 = vmatprep.mubr.f32.mxu0 0.0
        %5059 = vmatmul.mubr.f32.gmra.mrb[0].mxu0 %v4921
        %v5060 = vpop.f32.mrb[0].mxu0
        %v5061 = vadd.f32 0.0, %v5060
        %v5062 = vpop.f32.mrb[0].mxu0
        %v5063 = vadd.f32 0.0, %v5062
        %5064 = vdwg.mxu0
        %v5065 = vadd.f32 %v4887, %v4990
        %v5066 = vadd.f32 %v4888, %v4992
        %v5067 = vadd.f32 %v4889, %v5061
        %v5068 = vadd.f32 %v4890, %v5063
        %s5069 = scalar_lea.vmem %s1, 208
        %v5070 = vld [vmem:[%s5069] sm:$0xff]
        %s5071 = scalar_lea.vmem %s4, 98
        %v5072 = vld [vmem:[%s5071] ss:$8 sm:$0xf]
        %v5074 = vlaneseq
        %v5075 = vshrl.u32 %v5074, 7
        %v5076 = vsub.s32 0, %v5075
        %v5077 = vrot.slane %v5072, %v5076
        %v5078 = vlaneseq
        %v5079 = vshrl.u32 %v5078, 7
        %v5080 = vsub.s32 1, %v5079
        %v5081 = vrot.slane %v5072, %v5080
        %v5082 = vlaneseq
        %v5083 = vshrl.u32 %v5082, 7
        %v5084 = vsub.s32 2, %v5083
        %v5085 = vrot.slane %v5072, %v5084
        %v5086 = vlaneseq
        %v5087 = vshrl.u32 %v5086, 7
        %v5088 = vsub.s32 3, %v5087
        %v5089 = vrot.slane %v5072, %v5088
        %v5094 = vmul.f32 %v1761, %v5077
        %v5095 = vmul.f32 %v1760, %v5081
        %v5096 = vmul.f32 %v1759, %v5085
        %v5097 = vmul.f32 %v1762, %v5089
        %v5099 = vsel %vm311, %v5070, 0
        %5101 = vmatprep.subr.mxu0 %v5095
        %5102 = vmatpush1.msra.mxu0 %v5094
        %5103 = vmatprep.subr.mxu0 0.0
        %5104 = vmatpush1.msra.mxu0 0.0
        %5105 = vmatprep.subr.mxu0 0.0
        %5106 = vmatpush1.msra.mxu0 0.0
        %5107 = vmatprep.subr.mxu0 0.0
        %5108 = vmatpush1.msra.mxu0 0.0
        %5109 = vmatprep.subr.mxu0 0.0
        %5110 = vmatpush1.msra.mxu0 0.0
        %5111 = vmatprep.subr.mxu0 0.0
        %5112 = vmatpush1.msra.mxu0 0.0
        %5113 = vmatprep.subr.mxu0 0.0
        %5114 = vmatpush1.msra.mxu0 0.0
        %5115 = vmatprep.subr.mxu0 0.0
        %5116 = vmatpush1.msra.mxu0 0.0
        %5117 = vmatprep.subr.mxu0 0.0
        %5118 = vmatpush1.msra.mxu0 0.0
        %5119 = vmatprep.subr.mxu0 0.0
        %5120 = vmatpush1.msra.mxu0 0.0
        %5121 = vmatprep.subr.mxu0 0.0
        %5122 = vmatpush1.msra.mxu0 0.0
        %5123 = vmatprep.subr.mxu0 0.0
        %5124 = vmatpush1.msra.mxu0 0.0
        %5125 = vmatprep.subr.mxu0 0.0
        %5126 = vmatpush1.msra.mxu0 0.0
        %5127 = vmatprep.subr.mxu0 0.0
        %5128 = vmatpush1.msra.mxu0 0.0
        %5129 = vmatprep.subr.mxu0 0.0
        %5130 = vmatpush1.msra.mxu0 0.0
        %5131 = vmatprep.subr.mxu0 0.0
        %5132 = vmatpush1.msra.mxu0 0.0
        %5133 = vmatprep.subr.mxu0 0.0
        %5134 = vmatpush1.msra.mxu0 0.0
        %5135 = vmatprep.subr.mxu0 0.0
        %5136 = vmatpush1.msra.mxu0 0.0
        %5137 = vmatprep.subr.mxu0 0.0
        %5138 = vmatpush1.msra.mxu0 0.0
        %5139 = vmatprep.subr.mxu0 0.0
        %5140 = vmatpush1.msra.mxu0 0.0
        %5141 = vmatprep.subr.mxu0 0.0
        %5142 = vmatpush1.msra.mxu0 0.0
        %5143 = vmatprep.subr.mxu0 0.0
        %5144 = vmatpush1.msra.mxu0 0.0
        %5145 = vmatprep.subr.mxu0 0.0
        %5146 = vmatpush1.msra.mxu0 0.0
        %5147 = vmatprep.subr.mxu0 0.0
        %5148 = vmatpush1.msra.mxu0 0.0
        %5149 = vmatprep.subr.mxu0 0.0
        %5150 = vmatpush1.msra.mxu0 0.0
        %5151 = vmatprep.subr.mxu0 0.0
        %5152 = vmatpush1.msra.mxu0 0.0
        %5153 = vmatprep.subr.mxu0 0.0
        %5154 = vmatpush1.msra.mxu0 0.0
        %5155 = vmatprep.subr.mxu0 0.0
        %5156 = vmatpush1.msra.mxu0 0.0
        %5157 = vmatprep.subr.mxu0 0.0
        %5158 = vmatpush1.msra.mxu0 0.0
        %5159 = vmatprep.subr.mxu0 0.0
        %5160 = vmatpush1.msra.mxu0 0.0
        %5161 = vmatprep.subr.mxu0 0.0
        %5162 = vmatpush1.msra.mxu0 0.0
        %5163 = vmatprep.subr.mxu0 0.0
        %5164 = vmatpush1.msra.mxu0 0.0
        %5165 = vmatprep.mubr.f32.mxu0 0.0
        %5166 = vmatmul.mubr.f32.gmra.mrb[0].mxu0 %v5099
        %v5167 = vpop.f32.mrb[0].mxu0
        %v5168 = vadd.f32 0.0, %v5167
        %v5169 = vpop.f32.mrb[0].mxu0
        %v5170 = vadd.f32 0.0, %v5169
        %5171 = vdwg.mxu0
        %5172 = vmatprep.subr.mxu0 %v5097
        %5173 = vmatpush1.msra.mxu0 %v5096
        %5174 = vmatprep.subr.mxu0 0.0
        %5175 = vmatpush1.msra.mxu0 0.0
        %5176 = vmatprep.subr.mxu0 0.0
        %5177 = vmatpush1.msra.mxu0 0.0
        %5178 = vmatprep.subr.mxu0 0.0
        %5179 = vmatpush1.msra.mxu0 0.0
        %5180 = vmatprep.subr.mxu0 0.0
        %5181 = vmatpush1.msra.mxu0 0.0
        %5182 = vmatprep.subr.mxu0 0.0
        %5183 = vmatpush1.msra.mxu0 0.0
        %5184 = vmatprep.subr.mxu0 0.0
        %5185 = vmatpush1.msra.mxu0 0.0
        %5186 = vmatprep.subr.mxu0 0.0
        %5187 = vmatpush1.msra.mxu0 0.0
        %5188 = vmatprep.subr.mxu0 0.0
        %5189 = vmatpush1.msra.mxu0 0.0
        %5190 = vmatprep.subr.mxu0 0.0
        %5191 = vmatpush1.msra.mxu0 0.0
        %5192 = vmatprep.subr.mxu0 0.0
        %5193 = vmatpush1.msra.mxu0 0.0
        %5194 = vmatprep.subr.mxu0 0.0
        %5195 = vmatpush1.msra.mxu0 0.0
        %5196 = vmatprep.subr.mxu0 0.0
        %5197 = vmatpush1.msra.mxu0 0.0
        %5198 = vmatprep.subr.mxu0 0.0
        %5199 = vmatpush1.msra.mxu0 0.0
        %5200 = vmatprep.subr.mxu0 0.0
        %5201 = vmatpush1.msra.mxu0 0.0
        %5202 = vmatprep.subr.mxu0 0.0
        %5203 = vmatpush1.msra.mxu0 0.0
        %5204 = vmatprep.subr.mxu0 0.0
        %5205 = vmatpush1.msra.mxu0 0.0
        %5206 = vmatprep.subr.mxu0 0.0
        %5207 = vmatpush1.msra.mxu0 0.0
        %5208 = vmatprep.subr.mxu0 0.0
        %5209 = vmatpush1.msra.mxu0 0.0
        %5210 = vmatprep.subr.mxu0 0.0
        %5211 = vmatpush1.msra.mxu0 0.0
        %5212 = vmatprep.subr.mxu0 0.0
        %5213 = vmatpush1.msra.mxu0 0.0
        %5214 = vmatprep.subr.mxu0 0.0
        %5215 = vmatpush1.msra.mxu0 0.0
        %5216 = vmatprep.subr.mxu0 0.0
        %5217 = vmatpush1.msra.mxu0 0.0
        %5218 = vmatprep.subr.mxu0 0.0
        %5219 = vmatpush1.msra.mxu0 0.0
        %5220 = vmatprep.subr.mxu0 0.0
        %5221 = vmatpush1.msra.mxu0 0.0
        %5222 = vmatprep.subr.mxu0 0.0
        %5223 = vmatpush1.msra.mxu0 0.0
        %5224 = vmatprep.subr.mxu0 0.0
        %5225 = vmatpush1.msra.mxu0 0.0
        %5226 = vmatprep.subr.mxu0 0.0
        %5227 = vmatpush1.msra.mxu0 0.0
        %5228 = vmatprep.subr.mxu0 0.0
        %5229 = vmatpush1.msra.mxu0 0.0
        %5230 = vmatprep.subr.mxu0 0.0
        %5231 = vmatpush1.msra.mxu0 0.0
        %5232 = vmatprep.subr.mxu0 0.0
        %5233 = vmatpush1.msra.mxu0 0.0
        %5234 = vmatprep.subr.mxu0 0.0
        %5235 = vmatpush1.msra.mxu0 0.0
        %5236 = vmatprep.mubr.f32.mxu0 0.0
        %5237 = vmatmul.mubr.f32.gmra.mrb[0].mxu0 %v5099
        %v5238 = vpop.f32.mrb[0].mxu0
        %v5239 = vadd.f32 0.0, %v5238
        %v5240 = vpop.f32.mrb[0].mxu0
        %v5241 = vadd.f32 0.0, %v5240
        %5242 = vdwg.mxu0
        %v5243 = vadd.f32 %v5065, %v5168
        %v5244 = vadd.f32 %v5066, %v5170
        %v5245 = vadd.f32 %v5067, %v5239
        %v5246 = vadd.f32 %v5068, %v5241
        %v5247 = vmax.f32 %v5243, 0.0
        %v5248 = vmax.f32 %v5244, 0.0
        %v5249 = vmax.f32 %v5245, 0.0
        %v5250 = vmax.f32 %v5246, 0.0
        %v5251 = vld [vmem:[%s3] sm:$0xff]
        %v5252 = vld [vmem:[%s2] sm:$0xff]
        %5253 = vrot.lane.b32.xlu0 %v5247, 73
        %v5254 = vpop.permute.xlu0 %5253
        %5255 = vrot.lane.b32.xlu0 %v5248, 73
        %v5256 = vpop.permute.xlu0 %5255
        %5257 = vrot.lane.b32.xlu0 %v5249, 73
        %v5258 = vpop.permute.xlu0 %5257
        %5259 = vrot.lane.b32.xlu0 %v5250, 73
        %v5260 = vpop.permute.xlu0 %5259
        %v5261 = vsel %vm238, %v5258, %v5260
        %v5262 = vsel %vm238, %v5256, %v5258
        %v5263 = vsel %vm238, %v5254, %v5256
        %v5264 = vsel %vm238, %v5260, %v5254
        %v5265 = vmul.f32 %v5264, %v248
        %v5266 = vmul.f32 %v5263, %v252
        %v5267 = vmul.f32 %v5262, %v256
        %v5268 = vmul.f32 %v5261, %v260
        %v5270 = vsel %vm311, %v5252, 0
        %5272 = vmatprep.subr.mxu0 %v5266
        %5273 = vmatpush1.msra.mxu0 %v5265
        %5274 = vmatprep.subr.mxu0 0.0
        %5275 = vmatpush1.msra.mxu0 0.0
        %5276 = vmatprep.subr.mxu0 0.0
        %5277 = vmatpush1.msra.mxu0 0.0
        %5278 = vmatprep.subr.mxu0 0.0
        %5279 = vmatpush1.msra.mxu0 0.0
        %5280 = vmatprep.subr.mxu0 0.0
        %5281 = vmatpush1.msra.mxu0 0.0
        %5282 = vmatprep.subr.mxu0 0.0
        %5283 = vmatpush1.msra.mxu0 0.0
        %5284 = vmatprep.subr.mxu0 0.0
        %5285 = vmatpush1.msra.mxu0 0.0
        %5286 = vmatprep.subr.mxu0 0.0
        %5287 = vmatpush1.msra.mxu0 0.0
        %5288 = vmatprep.subr.mxu0 0.0
        %5289 = vmatpush1.msra.mxu0 0.0
        %5290 = vmatprep.subr.mxu0 0.0
        %5291 = vmatpush1.msra.mxu0 0.0
        %5292 = vmatprep.subr.mxu0 0.0
        %5293 = vmatpush1.msra.mxu0 0.0
        %5294 = vmatprep.subr.mxu0 0.0
        %5295 = vmatpush1.msra.mxu0 0.0
        %5296 = vmatprep.subr.mxu0 0.0
        %5297 = vmatpush1.msra.mxu0 0.0
        %5298 = vmatprep.subr.mxu0 0.0
        %5299 = vmatpush1.msra.mxu0 0.0
        %5300 = vmatprep.subr.mxu0 0.0
        %5301 = vmatpush1.msra.mxu0 0.0
        %5302 = vmatprep.subr.mxu0 0.0
        %5303 = vmatpush1.msra.mxu0 0.0
        %5304 = vmatprep.subr.mxu0 0.0
        %5305 = vmatpush1.msra.mxu0 0.0
        %5306 = vmatprep.subr.mxu0 0.0
        %5307 = vmatpush1.msra.mxu0 0.0
        %5308 = vmatprep.subr.mxu0 0.0
        %5309 = vmatpush1.msra.mxu0 0.0
        %5310 = vmatprep.subr.mxu0 0.0
        %5311 = vmatpush1.msra.mxu0 0.0
        %5312 = vmatprep.subr.mxu0 0.0
        %5313 = vmatpush1.msra.mxu0 0.0
        %5314 = vmatprep.subr.mxu0 0.0
        %5315 = vmatpush1.msra.mxu0 0.0
        %5316 = vmatprep.subr.mxu0 0.0
        %5317 = vmatpush1.msra.mxu0 0.0
        %5318 = vmatprep.subr.mxu0 0.0
        %5319 = vmatpush1.msra.mxu0 0.0
        %5320 = vmatprep.subr.mxu0 0.0
        %5321 = vmatpush1.msra.mxu0 0.0
        %5322 = vmatprep.subr.mxu0 0.0
        %5323 = vmatpush1.msra.mxu0 0.0
        %5324 = vmatprep.subr.mxu0 0.0
        %5325 = vmatpush1.msra.mxu0 0.0
        %5326 = vmatprep.subr.mxu0 0.0
        %5327 = vmatpush1.msra.mxu0 0.0
        %5328 = vmatprep.subr.mxu0 0.0
        %5329 = vmatpush1.msra.mxu0 0.0
        %5330 = vmatprep.subr.mxu0 0.0
        %5331 = vmatpush1.msra.mxu0 0.0
        %5332 = vmatprep.subr.mxu0 0.0
        %5333 = vmatpush1.msra.mxu0 0.0
        %5334 = vmatprep.subr.mxu0 0.0
        %5335 = vmatpush1.msra.mxu0 0.0
        %5336 = vmatprep.mubr.f32.mxu0 0.0
        %5337 = vmatmul.mubr.f32.gmra.mrb[0].mxu0 %v5270
        %v5338 = vpop.f32.mrb[0].mxu0
        %v5339 = vadd.f32 0.0, %v5338
        %v5340 = vpop.f32.mrb[0].mxu0
        %v5341 = vadd.f32 0.0, %v5340
        %5342 = vdwg.mxu0
        %5343 = vmatprep.subr.mxu0 %v5268
        %5344 = vmatpush1.msra.mxu0 %v5267
        %5345 = vmatprep.subr.mxu0 0.0
        %5346 = vmatpush1.msra.mxu0 0.0
        %5347 = vmatprep.subr.mxu0 0.0
        %5348 = vmatpush1.msra.mxu0 0.0
        %5349 = vmatprep.subr.mxu0 0.0
        %5350 = vmatpush1.msra.mxu0 0.0
        %5351 = vmatprep.subr.mxu0 0.0
        %5352 = vmatpush1.msra.mxu0 0.0
        %5353 = vmatprep.subr.mxu0 0.0
        %5354 = vmatpush1.msra.mxu0 0.0
        %5355 = vmatprep.subr.mxu0 0.0
        %5356 = vmatpush1.msra.mxu0 0.0
        %5357 = vmatprep.subr.mxu0 0.0
        %5358 = vmatpush1.msra.mxu0 0.0
        %5359 = vmatprep.subr.mxu0 0.0
        %5360 = vmatpush1.msra.mxu0 0.0
        %5361 = vmatprep.subr.mxu0 0.0
        %5362 = vmatpush1.msra.mxu0 0.0
        %5363 = vmatprep.subr.mxu0 0.0
        %5364 = vmatpush1.msra.mxu0 0.0
        %5365 = vmatprep.subr.mxu0 0.0
        %5366 = vmatpush1.msra.mxu0 0.0
        %5367 = vmatprep.subr.mxu0 0.0
        %5368 = vmatpush1.msra.mxu0 0.0
        %5369 = vmatprep.subr.mxu0 0.0
        %5370 = vmatpush1.msra.mxu0 0.0
        %5371 = vmatprep.subr.mxu0 0.0
        %5372 = vmatpush1.msra.mxu0 0.0
        %5373 = vmatprep.subr.mxu0 0.0
        %5374 = vmatpush1.msra.mxu0 0.0
        %5375 = vmatprep.subr.mxu0 0.0
        %5376 = vmatpush1.msra.mxu0 0.0
        %5377 = vmatprep.subr.mxu0 0.0
        %5378 = vmatpush1.msra.mxu0 0.0
        %5379 = vmatprep.subr.mxu0 0.0
        %5380 = vmatpush1.msra.mxu0 0.0
        %5381 = vmatprep.subr.mxu0 0.0
        %5382 = vmatpush1.msra.mxu0 0.0
        %5383 = vmatprep.subr.mxu0 0.0
        %5384 = vmatpush1.msra.mxu0 0.0
        %5385 = vmatprep.subr.mxu0 0.0
        %5386 = vmatpush1.msra.mxu0 0.0
        %5387 = vmatprep.subr.mxu0 0.0
        %5388 = vmatpush1.msra.mxu0 0.0
        %5389 = vmatprep.subr.mxu0 0.0
        %5390 = vmatpush1.msra.mxu0 0.0
        %5391 = vmatprep.subr.mxu0 0.0
        %5392 = vmatpush1.msra.mxu0 0.0
        %5393 = vmatprep.subr.mxu0 0.0
        %5394 = vmatpush1.msra.mxu0 0.0
        %5395 = vmatprep.subr.mxu0 0.0
        %5396 = vmatpush1.msra.mxu0 0.0
        %5397 = vmatprep.subr.mxu0 0.0
        %5398 = vmatpush1.msra.mxu0 0.0
        %5399 = vmatprep.subr.mxu0 0.0
        %5400 = vmatpush1.msra.mxu0 0.0
        %5401 = vmatprep.subr.mxu0 0.0
        %5402 = vmatpush1.msra.mxu0 0.0
        %5403 = vmatprep.subr.mxu0 0.0
        %5404 = vmatpush1.msra.mxu0 0.0
        %5405 = vmatprep.subr.mxu0 0.0
        %5406 = vmatpush1.msra.mxu0 0.0
        %5407 = vmatprep.mubr.f32.mxu0 0.0
        %5408 = vmatmul.mubr.f32.gmra.mrb[0].mxu0 %v5270
        %v5409 = vpop.f32.mrb[0].mxu0
        %v5410 = vadd.f32 0.0, %v5409
        %v5411 = vpop.f32.mrb[0].mxu0
        %v5412 = vadd.f32 0.0, %v5411
        %5413 = vdwg.mxu0
        %v5415 = vsel %vm311, %v5251, 0
        %5417 = vmatprep.subr.mxu0 %v224
        %5418 = vmatpush1.msra.mxu0 %v223
        %5419 = vmatprep.subr.mxu0 0.0
        %5420 = vmatpush1.msra.mxu0 0.0
        %5421 = vmatprep.subr.mxu0 0.0
        %5422 = vmatpush1.msra.mxu0 0.0
        %5423 = vmatprep.subr.mxu0 0.0
        %5424 = vmatpush1.msra.mxu0 0.0
        %5425 = vmatprep.subr.mxu0 0.0
        %5426 = vmatpush1.msra.mxu0 0.0
        %5427 = vmatprep.subr.mxu0 0.0
        %5428 = vmatpush1.msra.mxu0 0.0
        %5429 = vmatprep.subr.mxu0 0.0
        %5430 = vmatpush1.msra.mxu0 0.0
        %5431 = vmatprep.subr.mxu0 0.0
        %5432 = vmatpush1.msra.mxu0 0.0
        %5433 = vmatprep.subr.mxu0 0.0
        %5434 = vmatpush1.msra.mxu0 0.0
        %5435 = vmatprep.subr.mxu0 0.0
        %5436 = vmatpush1.msra.mxu0 0.0
        %5437 = vmatprep.subr.mxu0 0.0
        %5438 = vmatpush1.msra.mxu0 0.0
        %5439 = vmatprep.subr.mxu0 0.0
        %5440 = vmatpush1.msra.mxu0 0.0
        %5441 = vmatprep.subr.mxu0 0.0
        %5442 = vmatpush1.msra.mxu0 0.0
        %5443 = vmatprep.subr.mxu0 0.0
        %5444 = vmatpush1.msra.mxu0 0.0
        %5445 = vmatprep.subr.mxu0 0.0
        %5446 = vmatpush1.msra.mxu0 0.0
        %5447 = vmatprep.subr.mxu0 0.0
        %5448 = vmatpush1.msra.mxu0 0.0
        %5449 = vmatprep.subr.mxu0 0.0
        %5450 = vmatpush1.msra.mxu0 0.0
        %5451 = vmatprep.subr.mxu0 0.0
        %5452 = vmatpush1.msra.mxu0 0.0
        %5453 = vmatprep.subr.mxu0 0.0
        %5454 = vmatpush1.msra.mxu0 0.0
        %5455 = vmatprep.subr.mxu0 0.0
        %5456 = vmatpush1.msra.mxu0 0.0
        %5457 = vmatprep.subr.mxu0 0.0
        %5458 = vmatpush1.msra.mxu0 0.0
        %5459 = vmatprep.subr.mxu0 0.0
        %5460 = vmatpush1.msra.mxu0 0.0
        %5461 = vmatprep.subr.mxu0 0.0
        %5462 = vmatpush1.msra.mxu0 0.0
        %5463 = vmatprep.subr.mxu0 0.0
        %5464 = vmatpush1.msra.mxu0 0.0
        %5465 = vmatprep.subr.mxu0 0.0
        %5466 = vmatpush1.msra.mxu0 0.0
        %5467 = vmatprep.subr.mxu0 0.0
        %5468 = vmatpush1.msra.mxu0 0.0
        %5469 = vmatprep.subr.mxu0 0.0
        %5470 = vmatpush1.msra.mxu0 0.0
        %5471 = vmatprep.subr.mxu0 0.0
        %5472 = vmatpush1.msra.mxu0 0.0
        %5473 = vmatprep.subr.mxu0 0.0
        %5474 = vmatpush1.msra.mxu0 0.0
        %5475 = vmatprep.subr.mxu0 0.0
        %5476 = vmatpush1.msra.mxu0 0.0
        %5477 = vmatprep.subr.mxu0 0.0
        %5478 = vmatpush1.msra.mxu0 0.0
        %5479 = vmatprep.subr.mxu0 0.0
        %5480 = vmatpush1.msra.mxu0 0.0
        %5481 = vmatprep.mubr.f32.mxu0 0.0
        %5482 = vmatmul.mubr.f32.gmra.mrb[0].mxu0 %v5415
        %v5483 = vpop.f32.mrb[0].mxu0
        %v5484 = vadd.f32 %v5339, %v5483
        %v5485 = vpop.f32.mrb[0].mxu0
        %v5486 = vadd.f32 %v5341, %v5485
        %5487 = vdwg.mxu0
        %5488 = vmatprep.subr.mxu0 %v226
        %5489 = vmatpush1.msra.mxu0 %v225
        %5490 = vmatprep.subr.mxu0 0.0
        %5491 = vmatpush1.msra.mxu0 0.0
        %5492 = vmatprep.subr.mxu0 0.0
        %5493 = vmatpush1.msra.mxu0 0.0
        %5494 = vmatprep.subr.mxu0 0.0
        %5495 = vmatpush1.msra.mxu0 0.0
        %5496 = vmatprep.subr.mxu0 0.0
        %5497 = vmatpush1.msra.mxu0 0.0
        %5498 = vmatprep.subr.mxu0 0.0
        %5499 = vmatpush1.msra.mxu0 0.0
        %5500 = vmatprep.subr.mxu0 0.0
        %5501 = vmatpush1.msra.mxu0 0.0
        %5502 = vmatprep.subr.mxu0 0.0
        %5503 = vmatpush1.msra.mxu0 0.0
        %5504 = vmatprep.subr.mxu0 0.0
        %5505 = vmatpush1.msra.mxu0 0.0
        %5506 = vmatprep.subr.mxu0 0.0
        %5507 = vmatpush1.msra.mxu0 0.0
        %5508 = vmatprep.subr.mxu0 0.0
        %5509 = vmatpush1.msra.mxu0 0.0
        %5510 = vmatprep.subr.mxu0 0.0
        %5511 = vmatpush1.msra.mxu0 0.0
        %5512 = vmatprep.subr.mxu0 0.0
        %5513 = vmatpush1.msra.mxu0 0.0
        %5514 = vmatprep.subr.mxu0 0.0
        %5515 = vmatpush1.msra.mxu0 0.0
        %5516 = vmatprep.subr.mxu0 0.0
        %5517 = vmatpush1.msra.mxu0 0.0
        %5518 = vmatprep.subr.mxu0 0.0
        %5519 = vmatpush1.msra.mxu0 0.0
        %5520 = vmatprep.subr.mxu0 0.0
        %5521 = vmatpush1.msra.mxu0 0.0
        %5522 = vmatprep.subr.mxu0 0.0
        %5523 = vmatpush1.msra.mxu0 0.0
        %5524 = vmatprep.subr.mxu0 0.0
        %5525 = vmatpush1.msra.mxu0 0.0
        %5526 = vmatprep.subr.mxu0 0.0
        %5527 = vmatpush1.msra.mxu0 0.0
        %5528 = vmatprep.subr.mxu0 0.0
        %5529 = vmatpush1.msra.mxu0 0.0
        %5530 = vmatprep.subr.mxu0 0.0
        %5531 = vmatpush1.msra.mxu0 0.0
        %5532 = vmatprep.subr.mxu0 0.0
        %5533 = vmatpush1.msra.mxu0 0.0
        %5534 = vmatprep.subr.mxu0 0.0
        %5535 = vmatpush1.msra.mxu0 0.0
        %5536 = vmatprep.subr.mxu0 0.0
        %5537 = vmatpush1.msra.mxu0 0.0
        %5538 = vmatprep.subr.mxu0 0.0
        %5539 = vmatpush1.msra.mxu0 0.0
        %5540 = vmatprep.subr.mxu0 0.0
        %5541 = vmatpush1.msra.mxu0 0.0
        %5542 = vmatprep.subr.mxu0 0.0
        %5543 = vmatpush1.msra.mxu0 0.0
        %5544 = vmatprep.subr.mxu0 0.0
        %5545 = vmatpush1.msra.mxu0 0.0
        %5546 = vmatprep.subr.mxu0 0.0
        %5547 = vmatpush1.msra.mxu0 0.0
        %5548 = vmatprep.subr.mxu0 0.0
        %5549 = vmatpush1.msra.mxu0 0.0
        %5550 = vmatprep.subr.mxu0 0.0
        %5551 = vmatpush1.msra.mxu0 0.0
        %5552 = vmatprep.mubr.f32.mxu0 0.0
        %5553 = vmatmul.mubr.f32.gmra.mrb[0].mxu0 %v5415
        %v5554 = vpop.f32.mrb[0].mxu0
        %v5555 = vadd.f32 %v5410, %v5554
        %v5556 = vpop.f32.mrb[0].mxu0
        %v5557 = vadd.f32 %v5412, %v5556
        %5558 = vdwg.mxu0
        %s5559 = scalar_lea.vmem %s2, 8
        %v5560 = vld [vmem:[%s5559] sm:$0xff]
        %5561 = vrot.lane.b32.xlu0 %v5247, 72
        %v5562 = vpop.permute.xlu0 %5561
        %5563 = vrot.lane.b32.xlu0 %v5248, 72
        %v5564 = vpop.permute.xlu0 %5563
        %5565 = vrot.lane.b32.xlu0 %v5249, 72
        %v5566 = vpop.permute.xlu0 %5565
        %5567 = vrot.lane.b32.xlu0 %v5250, 72
        %v5568 = vpop.permute.xlu0 %5567
        %v5569 = vsel %vm279, %v5566, %v5568
        %v5570 = vsel %vm279, %v5564, %v5566
        %v5571 = vsel %vm279, %v5562, %v5564
        %v5572 = vsel %vm279, %v5568, %v5562
        %v5573 = vmul.f32 %v5572, %v290
        %v5574 = vmul.f32 %v5571, %v294
        %v5575 = vmul.f32 %v5570, %v298
        %v5576 = vmul.f32 %v5569, %v302
        %v5578 = vsel %vm311, %v5560, 0
        %5580 = vmatprep.subr.mxu0 %v5574
        %5581 = vmatpush1.msra.mxu0 %v5573
        %5582 = vmatprep.subr.mxu0 0.0
        %5583 = vmatpush1.msra.mxu0 0.0
        %5584 = vmatprep.subr.mxu0 0.0
        %5585 = vmatpush1.msra.mxu0 0.0
        %5586 = vmatprep.subr.mxu0 0.0
        %5587 = vmatpush1.msra.mxu0 0.0
        %5588 = vmatprep.subr.mxu0 0.0
        %5589 = vmatpush1.msra.mxu0 0.0
        %5590 = vmatprep.subr.mxu0 0.0
        %5591 = vmatpush1.msra.mxu0 0.0
        %5592 = vmatprep.subr.mxu0 0.0
        %5593 = vmatpush1.msra.mxu0 0.0
        %5594 = vmatprep.subr.mxu0 0.0
        %5595 = vmatpush1.msra.mxu0 0.0
        %5596 = vmatprep.subr.mxu0 0.0
        %5597 = vmatpush1.msra.mxu0 0.0
        %5598 = vmatprep.subr.mxu0 0.0
        %5599 = vmatpush1.msra.mxu0 0.0
        %5600 = vmatprep.subr.mxu0 0.0
        %5601 = vmatpush1.msra.mxu0 0.0
        %5602 = vmatprep.subr.mxu0 0.0
        %5603 = vmatpush1.msra.mxu0 0.0
        %5604 = vmatprep.subr.mxu0 0.0
        %5605 = vmatpush1.msra.mxu0 0.0
        %5606 = vmatprep.subr.mxu0 0.0
        %5607 = vmatpush1.msra.mxu0 0.0
        %5608 = vmatprep.subr.mxu0 0.0
        %5609 = vmatpush1.msra.mxu0 0.0
        %5610 = vmatprep.subr.mxu0 0.0
        %5611 = vmatpush1.msra.mxu0 0.0
        %5612 = vmatprep.subr.mxu0 0.0
        %5613 = vmatpush1.msra.mxu0 0.0
        %5614 = vmatprep.subr.mxu0 0.0
        %5615 = vmatpush1.msra.mxu0 0.0
        %5616 = vmatprep.subr.mxu0 0.0
        %5617 = vmatpush1.msra.mxu0 0.0
        %5618 = vmatprep.subr.mxu0 0.0
        %5619 = vmatpush1.msra.mxu0 0.0
        %5620 = vmatprep.subr.mxu0 0.0
        %5621 = vmatpush1.msra.mxu0 0.0
        %5622 = vmatprep.subr.mxu0 0.0
        %5623 = vmatpush1.msra.mxu0 0.0
        %5624 = vmatprep.subr.mxu0 0.0
        %5625 = vmatpush1.msra.mxu0 0.0
        %5626 = vmatprep.subr.mxu0 0.0
        %5627 = vmatpush1.msra.mxu0 0.0
        %5628 = vmatprep.subr.mxu0 0.0
        %5629 = vmatpush1.msra.mxu0 0.0
        %5630 = vmatprep.subr.mxu0 0.0
        %5631 = vmatpush1.msra.mxu0 0.0
        %5632 = vmatprep.subr.mxu0 0.0
        %5633 = vmatpush1.msra.mxu0 0.0
        %5634 = vmatprep.subr.mxu0 0.0
        %5635 = vmatpush1.msra.mxu0 0.0
        %5636 = vmatprep.subr.mxu0 0.0
        %5637 = vmatpush1.msra.mxu0 0.0
        %5638 = vmatprep.subr.mxu0 0.0
        %5639 = vmatpush1.msra.mxu0 0.0
        %5640 = vmatprep.subr.mxu0 0.0
        %5641 = vmatpush1.msra.mxu0 0.0
        %5642 = vmatprep.subr.mxu0 0.0
        %5643 = vmatpush1.msra.mxu0 0.0
        %5644 = vmatprep.mubr.f32.mxu0 0.0
        %5645 = vmatmul.mubr.f32.gmra.mrb[0].mxu0 %v5578
        %v5646 = vpop.f32.mrb[0].mxu0
        %v5647 = vadd.f32 0.0, %v5646
        %v5648 = vpop.f32.mrb[0].mxu0
        %v5649 = vadd.f32 0.0, %v5648
        %5650 = vdwg.mxu0
        %5651 = vmatprep.subr.mxu0 %v5576
        %5652 = vmatpush1.msra.mxu0 %v5575
        %5653 = vmatprep.subr.mxu0 0.0
        %5654 = vmatpush1.msra.mxu0 0.0
        %5655 = vmatprep.subr.mxu0 0.0
        %5656 = vmatpush1.msra.mxu0 0.0
        %5657 = vmatprep.subr.mxu0 0.0
        %5658 = vmatpush1.msra.mxu0 0.0
        %5659 = vmatprep.subr.mxu0 0.0
        %5660 = vmatpush1.msra.mxu0 0.0
        %5661 = vmatprep.subr.mxu0 0.0
        %5662 = vmatpush1.msra.mxu0 0.0
        %5663 = vmatprep.subr.mxu0 0.0
        %5664 = vmatpush1.msra.mxu0 0.0
        %5665 = vmatprep.subr.mxu0 0.0
        %5666 = vmatpush1.msra.mxu0 0.0
        %5667 = vmatprep.subr.mxu0 0.0
        %5668 = vmatpush1.msra.mxu0 0.0
        %5669 = vmatprep.subr.mxu0 0.0
        %5670 = vmatpush1.msra.mxu0 0.0
        %5671 = vmatprep.subr.mxu0 0.0
        %5672 = vmatpush1.msra.mxu0 0.0
        %5673 = vmatprep.subr.mxu0 0.0
        %5674 = vmatpush1.msra.mxu0 0.0
        %5675 = vmatprep.subr.mxu0 0.0
        %5676 = vmatpush1.msra.mxu0 0.0
        %5677 = vmatprep.subr.mxu0 0.0
        %5678 = vmatpush1.msra.mxu0 0.0
        %5679 = vmatprep.subr.mxu0 0.0
        %5680 = vmatpush1.msra.mxu0 0.0
        %5681 = vmatprep.subr.mxu0 0.0
        %5682 = vmatpush1.msra.mxu0 0.0
        %5683 = vmatprep.subr.mxu0 0.0
        %5684 = vmatpush1.msra.mxu0 0.0
        %5685 = vmatprep.subr.mxu0 0.0
        %5686 = vmatpush1.msra.mxu0 0.0
        %5687 = vmatprep.subr.mxu0 0.0
        %5688 = vmatpush1.msra.mxu0 0.0
        %5689 = vmatprep.subr.mxu0 0.0
        %5690 = vmatpush1.msra.mxu0 0.0
        %5691 = vmatprep.subr.mxu0 0.0
        %5692 = vmatpush1.msra.mxu0 0.0
        %5693 = vmatprep.subr.mxu0 0.0
        %5694 = vmatpush1.msra.mxu0 0.0
        %5695 = vmatprep.subr.mxu0 0.0
        %5696 = vmatpush1.msra.mxu0 0.0
        %5697 = vmatprep.subr.mxu0 0.0
        %5698 = vmatpush1.msra.mxu0 0.0
        %5699 = vmatprep.subr.mxu0 0.0
        %5700 = vmatpush1.msra.mxu0 0.0
        %5701 = vmatprep.subr.mxu0 0.0
        %5702 = vmatpush1.msra.mxu0 0.0
        %5703 = vmatprep.subr.mxu0 0.0
        %5704 = vmatpush1.msra.mxu0 0.0
        %5705 = vmatprep.subr.mxu0 0.0
        %5706 = vmatpush1.msra.mxu0 0.0
        %5707 = vmatprep.subr.mxu0 0.0
        %5708 = vmatpush1.msra.mxu0 0.0
        %5709 = vmatprep.subr.mxu0 0.0
        %5710 = vmatpush1.msra.mxu0 0.0
        %5711 = vmatprep.subr.mxu0 0.0
        %5712 = vmatpush1.msra.mxu0 0.0
        %5713 = vmatprep.subr.mxu0 0.0
        %5714 = vmatpush1.msra.mxu0 0.0
        %5715 = vmatprep.mubr.f32.mxu0 0.0
        %5716 = vmatmul.mubr.f32.gmra.mrb[0].mxu0 %v5578
        %v5717 = vpop.f32.mrb[0].mxu0
        %v5718 = vadd.f32 0.0, %v5717
        %v5719 = vpop.f32.mrb[0].mxu0
        %v5720 = vadd.f32 0.0, %v5719
        %5721 = vdwg.mxu0
        %v5722 = vadd.f32 %v5484, %v5647
        %v5723 = vadd.f32 %v5486, %v5649
        %v5724 = vadd.f32 %v5555, %v5718
        %v5725 = vadd.f32 %v5557, %v5720
        %s5726 = scalar_lea.vmem %s2, 16
        %v5727 = vld [vmem:[%s5726] sm:$0xff]
        %5728 = vrot.lane.b32.xlu0 %v5247, 71
        %v5729 = vpop.permute.xlu0 %5728
        %5730 = vrot.lane.b32.xlu0 %v5248, 71
        %v5731 = vpop.permute.xlu0 %5730
        %5732 = vrot.lane.b32.xlu0 %v5249, 71
        %v5733 = vpop.permute.xlu0 %5732
        %5734 = vrot.lane.b32.xlu0 %v5250, 71
        %v5735 = vpop.permute.xlu0 %5734
        %v5736 = vsel %vm612, %v5733, %v5735
        %v5737 = vsel %vm612, %v5731, %v5733
        %v5738 = vsel %vm612, %v5729, %v5731
        %v5739 = vsel %vm612, %v5735, %v5729
        %v5740 = vmul.f32 %v5739, %v623
        %v5741 = vmul.f32 %v5738, %v627
        %v5742 = vmul.f32 %v5737, %v631
        %v5743 = vmul.f32 %v5736, %v635
        %v5745 = vsel %vm311, %v5727, 0
        %5747 = vmatprep.subr.mxu0 %v5741
        %5748 = vmatpush1.msra.mxu0 %v5740
        %5749 = vmatprep.subr.mxu0 0.0
        %5750 = vmatpush1.msra.mxu0 0.0
        %5751 = vmatprep.subr.mxu0 0.0
        %5752 = vmatpush1.msra.mxu0 0.0
        %5753 = vmatprep.subr.mxu0 0.0
        %5754 = vmatpush1.msra.mxu0 0.0
        %5755 = vmatprep.subr.mxu0 0.0
        %5756 = vmatpush1.msra.mxu0 0.0
        %5757 = vmatprep.subr.mxu0 0.0
        %5758 = vmatpush1.msra.mxu0 0.0
        %5759 = vmatprep.subr.mxu0 0.0
        %5760 = vmatpush1.msra.mxu0 0.0
        %5761 = vmatprep.subr.mxu0 0.0
        %5762 = vmatpush1.msra.mxu0 0.0
        %5763 = vmatprep.subr.mxu0 0.0
        %5764 = vmatpush1.msra.mxu0 0.0
        %5765 = vmatprep.subr.mxu0 0.0
        %5766 = vmatpush1.msra.mxu0 0.0
        %5767 = vmatprep.subr.mxu0 0.0
        %5768 = vmatpush1.msra.mxu0 0.0
        %5769 = vmatprep.subr.mxu0 0.0
        %5770 = vmatpush1.msra.mxu0 0.0
        %5771 = vmatprep.subr.mxu0 0.0
        %5772 = vmatpush1.msra.mxu0 0.0
        %5773 = vmatprep.subr.mxu0 0.0
        %5774 = vmatpush1.msra.mxu0 0.0
        %5775 = vmatprep.subr.mxu0 0.0
        %5776 = vmatpush1.msra.mxu0 0.0
        %5777 = vmatprep.subr.mxu0 0.0
        %5778 = vmatpush1.msra.mxu0 0.0
        %5779 = vmatprep.subr.mxu0 0.0
        %5780 = vmatpush1.msra.mxu0 0.0
        %5781 = vmatprep.subr.mxu0 0.0
        %5782 = vmatpush1.msra.mxu0 0.0
        %5783 = vmatprep.subr.mxu0 0.0
        %5784 = vmatpush1.msra.mxu0 0.0
        %5785 = vmatprep.subr.mxu0 0.0
        %5786 = vmatpush1.msra.mxu0 0.0
        %5787 = vmatprep.subr.mxu0 0.0
        %5788 = vmatpush1.msra.mxu0 0.0
        %5789 = vmatprep.subr.mxu0 0.0
        %5790 = vmatpush1.msra.mxu0 0.0
        %5791 = vmatprep.subr.mxu0 0.0
        %5792 = vmatpush1.msra.mxu0 0.0
        %5793 = vmatprep.subr.mxu0 0.0
        %5794 = vmatpush1.msra.mxu0 0.0
        %5795 = vmatprep.subr.mxu0 0.0
        %5796 = vmatpush1.msra.mxu0 0.0
        %5797 = vmatprep.subr.mxu0 0.0
        %5798 = vmatpush1.msra.mxu0 0.0
        %5799 = vmatprep.subr.mxu0 0.0
        %5800 = vmatpush1.msra.mxu0 0.0
        %5801 = vmatprep.subr.mxu0 0.0
        %5802 = vmatpush1.msra.mxu0 0.0
        %5803 = vmatprep.subr.mxu0 0.0
        %5804 = vmatpush1.msra.mxu0 0.0
        %5805 = vmatprep.subr.mxu0 0.0
        %5806 = vmatpush1.msra.mxu0 0.0
        %5807 = vmatprep.subr.mxu0 0.0
        %5808 = vmatpush1.msra.mxu0 0.0
        %5809 = vmatprep.subr.mxu0 0.0
        %5810 = vmatpush1.msra.mxu0 0.0
        %5811 = vmatprep.mubr.f32.mxu0 0.0
        %5812 = vmatmul.mubr.f32.gmra.mrb[0].mxu0 %v5745
        %v5813 = vpop.f32.mrb[0].mxu0
        %v5814 = vadd.f32 0.0, %v5813
        %v5815 = vpop.f32.mrb[0].mxu0
        %v5816 = vadd.f32 0.0, %v5815
        %5817 = vdwg.mxu0
        %5818 = vmatprep.subr.mxu0 %v5743
        %5819 = vmatpush1.msra.mxu0 %v5742
        %5820 = vmatprep.subr.mxu0 0.0
        %5821 = vmatpush1.msra.mxu0 0.0
        %5822 = vmatprep.subr.mxu0 0.0
        %5823 = vmatpush1.msra.mxu0 0.0
        %5824 = vmatprep.subr.mxu0 0.0
        %5825 = vmatpush1.msra.mxu0 0.0
        %5826 = vmatprep.subr.mxu0 0.0
        %5827 = vmatpush1.msra.mxu0 0.0
        %5828 = vmatprep.subr.mxu0 0.0
        %5829 = vmatpush1.msra.mxu0 0.0
        %5830 = vmatprep.subr.mxu0 0.0
        %5831 = vmatpush1.msra.mxu0 0.0
        %5832 = vmatprep.subr.mxu0 0.0
        %5833 = vmatpush1.msra.mxu0 0.0
        %5834 = vmatprep.subr.mxu0 0.0
        %5835 = vmatpush1.msra.mxu0 0.0
        %5836 = vmatprep.subr.mxu0 0.0
        %5837 = vmatpush1.msra.mxu0 0.0
        %5838 = vmatprep.subr.mxu0 0.0
        %5839 = vmatpush1.msra.mxu0 0.0
        %5840 = vmatprep.subr.mxu0 0.0
        %5841 = vmatpush1.msra.mxu0 0.0
        %5842 = vmatprep.subr.mxu0 0.0
        %5843 = vmatpush1.msra.mxu0 0.0
        %5844 = vmatprep.subr.mxu0 0.0
        %5845 = vmatpush1.msra.mxu0 0.0
        %5846 = vmatprep.subr.mxu0 0.0
        %5847 = vmatpush1.msra.mxu0 0.0
        %5848 = vmatprep.subr.mxu0 0.0
        %5849 = vmatpush1.msra.mxu0 0.0
        %5850 = vmatprep.subr.mxu0 0.0
        %5851 = vmatpush1.msra.mxu0 0.0
        %5852 = vmatprep.subr.mxu0 0.0
        %5853 = vmatpush1.msra.mxu0 0.0
        %5854 = vmatprep.subr.mxu0 0.0
        %5855 = vmatpush1.msra.mxu0 0.0
        %5856 = vmatprep.subr.mxu0 0.0
        %5857 = vmatpush1.msra.mxu0 0.0
        %5858 = vmatprep.subr.mxu0 0.0
        %5859 = vmatpush1.msra.mxu0 0.0
        %5860 = vmatprep.subr.mxu0 0.0
        %5861 = vmatpush1.msra.mxu0 0.0
        %5862 = vmatprep.subr.mxu0 0.0
        %5863 = vmatpush1.msra.mxu0 0.0
        %5864 = vmatprep.subr.mxu0 0.0
        %5865 = vmatpush1.msra.mxu0 0.0
        %5866 = vmatprep.subr.mxu0 0.0
        %5867 = vmatpush1.msra.mxu0 0.0
        %5868 = vmatprep.subr.mxu0 0.0
        %5869 = vmatpush1.msra.mxu0 0.0
        %5870 = vmatprep.subr.mxu0 0.0
        %5871 = vmatpush1.msra.mxu0 0.0
        %5872 = vmatprep.subr.mxu0 0.0
        %5873 = vmatpush1.msra.mxu0 0.0
        %5874 = vmatprep.subr.mxu0 0.0
        %5875 = vmatpush1.msra.mxu0 0.0
        %5876 = vmatprep.subr.mxu0 0.0
        %5877 = vmatpush1.msra.mxu0 0.0
        %5878 = vmatprep.subr.mxu0 0.0
        %5879 = vmatpush1.msra.mxu0 0.0
        %5880 = vmatprep.subr.mxu0 0.0
        %5881 = vmatpush1.msra.mxu0 0.0
        %5882 = vmatprep.mubr.f32.mxu0 0.0
        %5883 = vmatmul.mubr.f32.gmra.mrb[0].mxu0 %v5745
        %v5884 = vpop.f32.mrb[0].mxu0
        %v5885 = vadd.f32 0.0, %v5884
        %v5886 = vpop.f32.mrb[0].mxu0
        %v5887 = vadd.f32 0.0, %v5886
        %5888 = vdwg.mxu0
        %v5889 = vadd.f32 %v5722, %v5814
        %v5890 = vadd.f32 %v5723, %v5816
        %v5891 = vadd.f32 %v5724, %v5885
        %v5892 = vadd.f32 %v5725, %v5887
        %s5893 = scalar_lea.vmem %s2, 24
        %v5894 = vld [vmem:[%s5893] sm:$0xff]
        %5895 = vrot.lane.b32.xlu0 %v5247, 65
        %v5896 = vpop.permute.xlu0 %5895
        %5897 = vrot.lane.b32.xlu0 %v5248, 65
        %v5898 = vpop.permute.xlu0 %5897
        %5899 = vrot.lane.b32.xlu0 %v5249, 65
        %v5900 = vpop.permute.xlu0 %5899
        %5901 = vrot.lane.b32.xlu0 %v5250, 65
        %v5902 = vpop.permute.xlu0 %5901
        %v5903 = vsel %vm803, %v5900, %v5902
        %v5904 = vsel %vm803, %v5898, %v5900
        %v5905 = vsel %vm803, %v5896, %v5898
        %v5906 = vsel %vm803, %v5902, %v5896
        %v5907 = vmul.f32 %v5906, %v814
        %v5908 = vmul.f32 %v5905, %v818
        %v5909 = vmul.f32 %v5904, %v822
        %v5910 = vmul.f32 %v5903, %v826
        %v5912 = vsel %vm311, %v5894, 0
        %5914 = vmatprep.subr.mxu0 %v5908
        %5915 = vmatpush1.msra.mxu0 %v5907
        %5916 = vmatprep.subr.mxu0 0.0
        %5917 = vmatpush1.msra.mxu0 0.0
        %5918 = vmatprep.subr.mxu0 0.0
        %5919 = vmatpush1.msra.mxu0 0.0
        %5920 = vmatprep.subr.mxu0 0.0
        %5921 = vmatpush1.msra.mxu0 0.0
        %5922 = vmatprep.subr.mxu0 0.0
        %5923 = vmatpush1.msra.mxu0 0.0
        %5924 = vmatprep.subr.mxu0 0.0
        %5925 = vmatpush1.msra.mxu0 0.0
        %5926 = vmatprep.subr.mxu0 0.0
        %5927 = vmatpush1.msra.mxu0 0.0
        %5928 = vmatprep.subr.mxu0 0.0
        %5929 = vmatpush1.msra.mxu0 0.0
        %5930 = vmatprep.subr.mxu0 0.0
        %5931 = vmatpush1.msra.mxu0 0.0
        %5932 = vmatprep.subr.mxu0 0.0
        %5933 = vmatpush1.msra.mxu0 0.0
        %5934 = vmatprep.subr.mxu0 0.0
        %5935 = vmatpush1.msra.mxu0 0.0
        %5936 = vmatprep.subr.mxu0 0.0
        %5937 = vmatpush1.msra.mxu0 0.0
        %5938 = vmatprep.subr.mxu0 0.0
        %5939 = vmatpush1.msra.mxu0 0.0
        %5940 = vmatprep.subr.mxu0 0.0
        %5941 = vmatpush1.msra.mxu0 0.0
        %5942 = vmatprep.subr.mxu0 0.0
        %5943 = vmatpush1.msra.mxu0 0.0
        %5944 = vmatprep.subr.mxu0 0.0
        %5945 = vmatpush1.msra.mxu0 0.0
        %5946 = vmatprep.subr.mxu0 0.0
        %5947 = vmatpush1.msra.mxu0 0.0
        %5948 = vmatprep.subr.mxu0 0.0
        %5949 = vmatpush1.msra.mxu0 0.0
        %5950 = vmatprep.subr.mxu0 0.0
        %5951 = vmatpush1.msra.mxu0 0.0
        %5952 = vmatprep.subr.mxu0 0.0
        %5953 = vmatpush1.msra.mxu0 0.0
        %5954 = vmatprep.subr.mxu0 0.0
        %5955 = vmatpush1.msra.mxu0 0.0
        %5956 = vmatprep.subr.mxu0 0.0
        %5957 = vmatpush1.msra.mxu0 0.0
        %5958 = vmatprep.subr.mxu0 0.0
        %5959 = vmatpush1.msra.mxu0 0.0
        %5960 = vmatprep.subr.mxu0 0.0
        %5961 = vmatpush1.msra.mxu0 0.0
        %5962 = vmatprep.subr.mxu0 0.0
        %5963 = vmatpush1.msra.mxu0 0.0
        %5964 = vmatprep.subr.mxu0 0.0
        %5965 = vmatpush1.msra.mxu0 0.0
        %5966 = vmatprep.subr.mxu0 0.0
        %5967 = vmatpush1.msra.mxu0 0.0
        %5968 = vmatprep.subr.mxu0 0.0
        %5969 = vmatpush1.msra.mxu0 0.0
        %5970 = vmatprep.subr.mxu0 0.0
        %5971 = vmatpush1.msra.mxu0 0.0
        %5972 = vmatprep.subr.mxu0 0.0
        %5973 = vmatpush1.msra.mxu0 0.0
        %5974 = vmatprep.subr.mxu0 0.0
        %5975 = vmatpush1.msra.mxu0 0.0
        %5976 = vmatprep.subr.mxu0 0.0
        %5977 = vmatpush1.msra.mxu0 0.0
        %5978 = vmatprep.mubr.f32.mxu0 0.0
        %5979 = vmatmul.mubr.f32.gmra.mrb[0].mxu0 %v5912
        %v5980 = vpop.f32.mrb[0].mxu0
        %v5981 = vadd.f32 0.0, %v5980
        %v5982 = vpop.f32.mrb[0].mxu0
        %v5983 = vadd.f32 0.0, %v5982
        %5984 = vdwg.mxu0
        %5985 = vmatprep.subr.mxu0 %v5910
        %5986 = vmatpush1.msra.mxu0 %v5909
        %5987 = vmatprep.subr.mxu0 0.0
        %5988 = vmatpush1.msra.mxu0 0.0
        %5989 = vmatprep.subr.mxu0 0.0
        %5990 = vmatpush1.msra.mxu0 0.0
        %5991 = vmatprep.subr.mxu0 0.0
        %5992 = vmatpush1.msra.mxu0 0.0
        %5993 = vmatprep.subr.mxu0 0.0
        %5994 = vmatpush1.msra.mxu0 0.0
        %5995 = vmatprep.subr.mxu0 0.0
        %5996 = vmatpush1.msra.mxu0 0.0
        %5997 = vmatprep.subr.mxu0 0.0
        %5998 = vmatpush1.msra.mxu0 0.0
        %5999 = vmatprep.subr.mxu0 0.0
        %6000 = vmatpush1.msra.mxu0 0.0
        %6001 = vmatprep.subr.mxu0 0.0
        %6002 = vmatpush1.msra.mxu0 0.0
        %6003 = vmatprep.subr.mxu0 0.0
        %6004 = vmatpush1.msra.mxu0 0.0
        %6005 = vmatprep.subr.mxu0 0.0
        %6006 = vmatpush1.msra.mxu0 0.0
        %6007 = vmatprep.subr.mxu0 0.0
        %6008 = vmatpush1.msra.mxu0 0.0
        %6009 = vmatprep.subr.mxu0 0.0
        %6010 = vmatpush1.msra.mxu0 0.0
        %6011 = vmatprep.subr.mxu0 0.0
        %6012 = vmatpush1.msra.mxu0 0.0
        %6013 = vmatprep.subr.mxu0 0.0
        %6014 = vmatpush1.msra.mxu0 0.0
        %6015 = vmatprep.subr.mxu0 0.0
        %6016 = vmatpush1.msra.mxu0 0.0
        %6017 = vmatprep.subr.mxu0 0.0
        %6018 = vmatpush1.msra.mxu0 0.0
        %6019 = vmatprep.subr.mxu0 0.0
        %6020 = vmatpush1.msra.mxu0 0.0
        %6021 = vmatprep.subr.mxu0 0.0
        %6022 = vmatpush1.msra.mxu0 0.0
        %6023 = vmatprep.subr.mxu0 0.0
        %6024 = vmatpush1.msra.mxu0 0.0
        %6025 = vmatprep.subr.mxu0 0.0
        %6026 = vmatpush1.msra.mxu0 0.0
        %6027 = vmatprep.subr.mxu0 0.0
        %6028 = vmatpush1.msra.mxu0 0.0
        %6029 = vmatprep.subr.mxu0 0.0
        %6030 = vmatpush1.msra.mxu0 0.0
        %6031 = vmatprep.subr.mxu0 0.0
        %6032 = vmatpush1.msra.mxu0 0.0
        %6033 = vmatprep.subr.mxu0 0.0
        %6034 = vmatpush1.msra.mxu0 0.0
        %6035 = vmatprep.subr.mxu0 0.0
        %6036 = vmatpush1.msra.mxu0 0.0
        %6037 = vmatprep.subr.mxu0 0.0
        %6038 = vmatpush1.msra.mxu0 0.0
        %6039 = vmatprep.subr.mxu0 0.0
        %6040 = vmatpush1.msra.mxu0 0.0
        %6041 = vmatprep.subr.mxu0 0.0
        %6042 = vmatpush1.msra.mxu0 0.0
        %6043 = vmatprep.subr.mxu0 0.0
        %6044 = vmatpush1.msra.mxu0 0.0
        %6045 = vmatprep.subr.mxu0 0.0
        %6046 = vmatpush1.msra.mxu0 0.0
        %6047 = vmatprep.subr.mxu0 0.0
        %6048 = vmatpush1.msra.mxu0 0.0
        %6049 = vmatprep.mubr.f32.mxu0 0.0
        %6050 = vmatmul.mubr.f32.gmra.mrb[0].mxu0 %v5912
        %v6051 = vpop.f32.mrb[0].mxu0
        %v6052 = vadd.f32 0.0, %v6051
        %v6053 = vpop.f32.mrb[0].mxu0
        %v6054 = vadd.f32 0.0, %v6053
        %6055 = vdwg.mxu0
        %v6056 = vadd.f32 %v5889, %v5981
        %v6057 = vadd.f32 %v5890, %v5983
        %v6058 = vadd.f32 %v5891, %v6052
        %v6059 = vadd.f32 %v5892, %v6054
        %s6060 = scalar_lea.vmem %s2, 32
        %v6061 = vld [vmem:[%s6060] sm:$0xff]
        %6062 = vrot.lane.b32.xlu0 %v5247, 64
        %v6063 = vpop.permute.xlu0 %6062
        %6064 = vrot.lane.b32.xlu0 %v5248, 64
        %v6065 = vpop.permute.xlu0 %6064
        %6066 = vrot.lane.b32.xlu0 %v5249, 64
        %v6067 = vpop.permute.xlu0 %6066
        %6068 = vrot.lane.b32.xlu0 %v5250, 64
        %v6069 = vpop.permute.xlu0 %6068
        %v6070 = vsel %vm994, %v6067, %v6069
        %v6071 = vsel %vm994, %v6065, %v6067
        %v6072 = vsel %vm994, %v6063, %v6065
        %v6073 = vsel %vm994, %v6069, %v6063
        %v6074 = vmul.f32 %v6073, %v1005
        %v6075 = vmul.f32 %v6072, %v1009
        %v6076 = vmul.f32 %v6071, %v1013
        %v6077 = vmul.f32 %v6070, %v1017
        %v6079 = vsel %vm311, %v6061, 0
        %6081 = vmatprep.subr.mxu0 %v6075
        %6082 = vmatpush1.msra.mxu0 %v6074
        %6083 = vmatprep.subr.mxu0 0.0
        %6084 = vmatpush1.msra.mxu0 0.0
        %6085 = vmatprep.subr.mxu0 0.0
        %6086 = vmatpush1.msra.mxu0 0.0
        %6087 = vmatprep.subr.mxu0 0.0
        %6088 = vmatpush1.msra.mxu0 0.0
        %6089 = vmatprep.subr.mxu0 0.0
        %6090 = vmatpush1.msra.mxu0 0.0
        %6091 = vmatprep.subr.mxu0 0.0
        %6092 = vmatpush1.msra.mxu0 0.0
        %6093 = vmatprep.subr.mxu0 0.0
        %6094 = vmatpush1.msra.mxu0 0.0
        %6095 = vmatprep.subr.mxu0 0.0
        %6096 = vmatpush1.msra.mxu0 0.0
        %6097 = vmatprep.subr.mxu0 0.0
        %6098 = vmatpush1.msra.mxu0 0.0
        %6099 = vmatprep.subr.mxu0 0.0
        %6100 = vmatpush1.msra.mxu0 0.0
        %6101 = vmatprep.subr.mxu0 0.0
        %6102 = vmatpush1.msra.mxu0 0.0
        %6103 = vmatprep.subr.mxu0 0.0
        %6104 = vmatpush1.msra.mxu0 0.0
        %6105 = vmatprep.subr.mxu0 0.0
        %6106 = vmatpush1.msra.mxu0 0.0
        %6107 = vmatprep.subr.mxu0 0.0
        %6108 = vmatpush1.msra.mxu0 0.0
        %6109 = vmatprep.subr.mxu0 0.0
        %6110 = vmatpush1.msra.mxu0 0.0
        %6111 = vmatprep.subr.mxu0 0.0
        %6112 = vmatpush1.msra.mxu0 0.0
        %6113 = vmatprep.subr.mxu0 0.0
        %6114 = vmatpush1.msra.mxu0 0.0
        %6115 = vmatprep.subr.mxu0 0.0
        %6116 = vmatpush1.msra.mxu0 0.0
        %6117 = vmatprep.subr.mxu0 0.0
        %6118 = vmatpush1.msra.mxu0 0.0
        %6119 = vmatprep.subr.mxu0 0.0
        %6120 = vmatpush1.msra.mxu0 0.0
        %6121 = vmatprep.subr.mxu0 0.0
        %6122 = vmatpush1.msra.mxu0 0.0
        %6123 = vmatprep.subr.mxu0 0.0
        %6124 = vmatpush1.msra.mxu0 0.0
        %6125 = vmatprep.subr.mxu0 0.0
        %6126 = vmatpush1.msra.mxu0 0.0
        %6127 = vmatprep.subr.mxu0 0.0
        %6128 = vmatpush1.msra.mxu0 0.0
        %6129 = vmatprep.subr.mxu0 0.0
        %6130 = vmatpush1.msra.mxu0 0.0
        %6131 = vmatprep.subr.mxu0 0.0
        %6132 = vmatpush1.msra.mxu0 0.0
        %6133 = vmatprep.subr.mxu0 0.0
        %6134 = vmatpush1.msra.mxu0 0.0
        %6135 = vmatprep.subr.mxu0 0.0
        %6136 = vmatpush1.msra.mxu0 0.0
        %6137 = vmatprep.subr.mxu0 0.0
        %6138 = vmatpush1.msra.mxu0 0.0
        %6139 = vmatprep.subr.mxu0 0.0
        %6140 = vmatpush1.msra.mxu0 0.0
        %6141 = vmatprep.subr.mxu0 0.0
        %6142 = vmatpush1.msra.mxu0 0.0
        %6143 = vmatprep.subr.mxu0 0.0
        %6144 = vmatpush1.msra.mxu0 0.0
        %6145 = vmatprep.mubr.f32.mxu0 0.0
        %6146 = vmatmul.mubr.f32.gmra.mrb[0].mxu0 %v6079
        %v6147 = vpop.f32.mrb[0].mxu0
        %v6148 = vadd.f32 0.0, %v6147
        %v6149 = vpop.f32.mrb[0].mxu0
        %v6150 = vadd.f32 0.0, %v6149
        %6151 = vdwg.mxu0
        %6152 = vmatprep.subr.mxu0 %v6077
        %6153 = vmatpush1.msra.mxu0 %v6076
        %6154 = vmatprep.subr.mxu0 0.0
        %6155 = vmatpush1.msra.mxu0 0.0
        %6156 = vmatprep.subr.mxu0 0.0
        %6157 = vmatpush1.msra.mxu0 0.0
        %6158 = vmatprep.subr.mxu0 0.0
        %6159 = vmatpush1.msra.mxu0 0.0
        %6160 = vmatprep.subr.mxu0 0.0
        %6161 = vmatpush1.msra.mxu0 0.0
        %6162 = vmatprep.subr.mxu0 0.0
        %6163 = vmatpush1.msra.mxu0 0.0
        %6164 = vmatprep.subr.mxu0 0.0
        %6165 = vmatpush1.msra.mxu0 0.0
        %6166 = vmatprep.subr.mxu0 0.0
        %6167 = vmatpush1.msra.mxu0 0.0
        %6168 = vmatprep.subr.mxu0 0.0
        %6169 = vmatpush1.msra.mxu0 0.0
        %6170 = vmatprep.subr.mxu0 0.0
        %6171 = vmatpush1.msra.mxu0 0.0
        %6172 = vmatprep.subr.mxu0 0.0
        %6173 = vmatpush1.msra.mxu0 0.0
        %6174 = vmatprep.subr.mxu0 0.0
        %6175 = vmatpush1.msra.mxu0 0.0
        %6176 = vmatprep.subr.mxu0 0.0
        %6177 = vmatpush1.msra.mxu0 0.0
        %6178 = vmatprep.subr.mxu0 0.0
        %6179 = vmatpush1.msra.mxu0 0.0
        %6180 = vmatprep.subr.mxu0 0.0
        %6181 = vmatpush1.msra.mxu0 0.0
        %6182 = vmatprep.subr.mxu0 0.0
        %6183 = vmatpush1.msra.mxu0 0.0
        %6184 = vmatprep.subr.mxu0 0.0
        %6185 = vmatpush1.msra.mxu0 0.0
        %6186 = vmatprep.subr.mxu0 0.0
        %6187 = vmatpush1.msra.mxu0 0.0
        %6188 = vmatprep.subr.mxu0 0.0
        %6189 = vmatpush1.msra.mxu0 0.0
        %6190 = vmatprep.subr.mxu0 0.0
        %6191 = vmatpush1.msra.mxu0 0.0
        %6192 = vmatprep.subr.mxu0 0.0
        %6193 = vmatpush1.msra.mxu0 0.0
        %6194 = vmatprep.subr.mxu0 0.0
        %6195 = vmatpush1.msra.mxu0 0.0
        %6196 = vmatprep.subr.mxu0 0.0
        %6197 = vmatpush1.msra.mxu0 0.0
        %6198 = vmatprep.subr.mxu0 0.0
        %6199 = vmatpush1.msra.mxu0 0.0
        %6200 = vmatprep.subr.mxu0 0.0
        %6201 = vmatpush1.msra.mxu0 0.0
        %6202 = vmatprep.subr.mxu0 0.0
        %6203 = vmatpush1.msra.mxu0 0.0
        %6204 = vmatprep.subr.mxu0 0.0
        %6205 = vmatpush1.msra.mxu0 0.0
        %6206 = vmatprep.subr.mxu0 0.0
        %6207 = vmatpush1.msra.mxu0 0.0
        %6208 = vmatprep.subr.mxu0 0.0
        %6209 = vmatpush1.msra.mxu0 0.0
        %6210 = vmatprep.subr.mxu0 0.0
        %6211 = vmatpush1.msra.mxu0 0.0
        %6212 = vmatprep.subr.mxu0 0.0
        %6213 = vmatpush1.msra.mxu0 0.0
        %6214 = vmatprep.subr.mxu0 0.0
        %6215 = vmatpush1.msra.mxu0 0.0
        %6216 = vmatprep.mubr.f32.mxu0 0.0
        %6217 = vmatmul.mubr.f32.gmra.mrb[0].mxu0 %v6079
        %v6218 = vpop.f32.mrb[0].mxu0
        %v6219 = vadd.f32 0.0, %v6218
        %v6220 = vpop.f32.mrb[0].mxu0
        %v6221 = vadd.f32 0.0, %v6220
        %6222 = vdwg.mxu0
        %v6223 = vadd.f32 %v6056, %v6148
        %v6224 = vadd.f32 %v6057, %v6150
        %v6225 = vadd.f32 %v6058, %v6219
        %v6226 = vadd.f32 %v6059, %v6221
        %s6227 = scalar_lea.vmem %s2, 40
        %v6228 = vld [vmem:[%s6227] sm:$0xff]
        %6229 = vrot.lane.b32.xlu0 %v5247, 63
        %v6230 = vpop.permute.xlu0 %6229
        %6231 = vrot.lane.b32.xlu0 %v5248, 63
        %v6232 = vpop.permute.xlu0 %6231
        %6233 = vrot.lane.b32.xlu0 %v5249, 63
        %v6234 = vpop.permute.xlu0 %6233
        %6235 = vrot.lane.b32.xlu0 %v5250, 63
        %v6236 = vpop.permute.xlu0 %6235
        %v6237 = vsel %vm1185, %v6234, %v6236
        %v6238 = vsel %vm1185, %v6232, %v6234
        %v6239 = vsel %vm1185, %v6230, %v6232
        %v6240 = vsel %vm1185, %v6236, %v6230
        %v6241 = vmul.f32 %v6240, %v1196
        %v6242 = vmul.f32 %v6239, %v1200
        %v6243 = vmul.f32 %v6238, %v1204
        %v6244 = vmul.f32 %v6237, %v1208
        %v6246 = vsel %vm311, %v6228, 0
        %6248 = vmatprep.subr.mxu0 %v6242
        %6249 = vmatpush1.msra.mxu0 %v6241
        %6250 = vmatprep.subr.mxu0 0.0
        %6251 = vmatpush1.msra.mxu0 0.0
        %6252 = vmatprep.subr.mxu0 0.0
        %6253 = vmatpush1.msra.mxu0 0.0
        %6254 = vmatprep.subr.mxu0 0.0
        %6255 = vmatpush1.msra.mxu0 0.0
        %6256 = vmatprep.subr.mxu0 0.0
        %6257 = vmatpush1.msra.mxu0 0.0
        %6258 = vmatprep.subr.mxu0 0.0
        %6259 = vmatpush1.msra.mxu0 0.0
        %6260 = vmatprep.subr.mxu0 0.0
        %6261 = vmatpush1.msra.mxu0 0.0
        %6262 = vmatprep.subr.mxu0 0.0
        %6263 = vmatpush1.msra.mxu0 0.0
        %6264 = vmatprep.subr.mxu0 0.0
        %6265 = vmatpush1.msra.mxu0 0.0
        %6266 = vmatprep.subr.mxu0 0.0
        %6267 = vmatpush1.msra.mxu0 0.0
        %6268 = vmatprep.subr.mxu0 0.0
        %6269 = vmatpush1.msra.mxu0 0.0
        %6270 = vmatprep.subr.mxu0 0.0
        %6271 = vmatpush1.msra.mxu0 0.0
        %6272 = vmatprep.subr.mxu0 0.0
        %6273 = vmatpush1.msra.mxu0 0.0
        %6274 = vmatprep.subr.mxu0 0.0
        %6275 = vmatpush1.msra.mxu0 0.0
        %6276 = vmatprep.subr.mxu0 0.0
        %6277 = vmatpush1.msra.mxu0 0.0
        %6278 = vmatprep.subr.mxu0 0.0
        %6279 = vmatpush1.msra.mxu0 0.0
        %6280 = vmatprep.subr.mxu0 0.0
        %6281 = vmatpush1.msra.mxu0 0.0
        %6282 = vmatprep.subr.mxu0 0.0
        %6283 = vmatpush1.msra.mxu0 0.0
        %6284 = vmatprep.subr.mxu0 0.0
        %6285 = vmatpush1.msra.mxu0 0.0
        %6286 = vmatprep.subr.mxu0 0.0
        %6287 = vmatpush1.msra.mxu0 0.0
        %6288 = vmatprep.subr.mxu0 0.0
        %6289 = vmatpush1.msra.mxu0 0.0
        %6290 = vmatprep.subr.mxu0 0.0
        %6291 = vmatpush1.msra.mxu0 0.0
        %6292 = vmatprep.subr.mxu0 0.0
        %6293 = vmatpush1.msra.mxu0 0.0
        %6294 = vmatprep.subr.mxu0 0.0
        %6295 = vmatpush1.msra.mxu0 0.0
        %6296 = vmatprep.subr.mxu0 0.0
        %6297 = vmatpush1.msra.mxu0 0.0
        %6298 = vmatprep.subr.mxu0 0.0
        %6299 = vmatpush1.msra.mxu0 0.0
        %6300 = vmatprep.subr.mxu0 0.0
        %6301 = vmatpush1.msra.mxu0 0.0
        %6302 = vmatprep.subr.mxu0 0.0
        %6303 = vmatpush1.msra.mxu0 0.0
        %6304 = vmatprep.subr.mxu0 0.0
        %6305 = vmatpush1.msra.mxu0 0.0
        %6306 = vmatprep.subr.mxu0 0.0
        %6307 = vmatpush1.msra.mxu0 0.0
        %6308 = vmatprep.subr.mxu0 0.0
        %6309 = vmatpush1.msra.mxu0 0.0
        %6310 = vmatprep.subr.mxu0 0.0
        %6311 = vmatpush1.msra.mxu0 0.0
        %6312 = vmatprep.mubr.f32.mxu0 0.0
        %6313 = vmatmul.mubr.f32.gmra.mrb[0].mxu0 %v6246
        %v6314 = vpop.f32.mrb[0].mxu0
        %v6315 = vadd.f32 0.0, %v6314
        %v6316 = vpop.f32.mrb[0].mxu0
        %v6317 = vadd.f32 0.0, %v6316
        %6318 = vdwg.mxu0
        %6319 = vmatprep.subr.mxu0 %v6244
        %6320 = vmatpush1.msra.mxu0 %v6243
        %6321 = vmatprep.subr.mxu0 0.0
        %6322 = vmatpush1.msra.mxu0 0.0
        %6323 = vmatprep.subr.mxu0 0.0
        %6324 = vmatpush1.msra.mxu0 0.0
        %6325 = vmatprep.subr.mxu0 0.0
        %6326 = vmatpush1.msra.mxu0 0.0
        %6327 = vmatprep.subr.mxu0 0.0
        %6328 = vmatpush1.msra.mxu0 0.0
        %6329 = vmatprep.subr.mxu0 0.0
        %6330 = vmatpush1.msra.mxu0 0.0
        %6331 = vmatprep.subr.mxu0 0.0
        %6332 = vmatpush1.msra.mxu0 0.0
        %6333 = vmatprep.subr.mxu0 0.0
        %6334 = vmatpush1.msra.mxu0 0.0
        %6335 = vmatprep.subr.mxu0 0.0
        %6336 = vmatpush1.msra.mxu0 0.0
        %6337 = vmatprep.subr.mxu0 0.0
        %6338 = vmatpush1.msra.mxu0 0.0
        %6339 = vmatprep.subr.mxu0 0.0
        %6340 = vmatpush1.msra.mxu0 0.0
        %6341 = vmatprep.subr.mxu0 0.0
        %6342 = vmatpush1.msra.mxu0 0.0
        %6343 = vmatprep.subr.mxu0 0.0
        %6344 = vmatpush1.msra.mxu0 0.0
        %6345 = vmatprep.subr.mxu0 0.0
        %6346 = vmatpush1.msra.mxu0 0.0
        %6347 = vmatprep.subr.mxu0 0.0
        %6348 = vmatpush1.msra.mxu0 0.0
        %6349 = vmatprep.subr.mxu0 0.0
        %6350 = vmatpush1.msra.mxu0 0.0
        %6351 = vmatprep.subr.mxu0 0.0
        %6352 = vmatpush1.msra.mxu0 0.0
        %6353 = vmatprep.subr.mxu0 0.0
        %6354 = vmatpush1.msra.mxu0 0.0
        %6355 = vmatprep.subr.mxu0 0.0
        %6356 = vmatpush1.msra.mxu0 0.0
        %6357 = vmatprep.subr.mxu0 0.0
        %6358 = vmatpush1.msra.mxu0 0.0
        %6359 = vmatprep.subr.mxu0 0.0
        %6360 = vmatpush1.msra.mxu0 0.0
        %6361 = vmatprep.subr.mxu0 0.0
        %6362 = vmatpush1.msra.mxu0 0.0
        %6363 = vmatprep.subr.mxu0 0.0
        %6364 = vmatpush1.msra.mxu0 0.0
        %6365 = vmatprep.subr.mxu0 0.0
        %6366 = vmatpush1.msra.mxu0 0.0
        %6367 = vmatprep.subr.mxu0 0.0
        %6368 = vmatpush1.msra.mxu0 0.0
        %6369 = vmatprep.subr.mxu0 0.0
        %6370 = vmatpush1.msra.mxu0 0.0
        %6371 = vmatprep.subr.mxu0 0.0
        %6372 = vmatpush1.msra.mxu0 0.0
        %6373 = vmatprep.subr.mxu0 0.0
        %6374 = vmatpush1.msra.mxu0 0.0
        %6375 = vmatprep.subr.mxu0 0.0
        %6376 = vmatpush1.msra.mxu0 0.0
        %6377 = vmatprep.subr.mxu0 0.0
        %6378 = vmatpush1.msra.mxu0 0.0
        %6379 = vmatprep.subr.mxu0 0.0
        %6380 = vmatpush1.msra.mxu0 0.0
        %6381 = vmatprep.subr.mxu0 0.0
        %6382 = vmatpush1.msra.mxu0 0.0
        %6383 = vmatprep.mubr.f32.mxu0 0.0
        %6384 = vmatmul.mubr.f32.gmra.mrb[0].mxu0 %v6246
        %v6385 = vpop.f32.mrb[0].mxu0
        %v6386 = vadd.f32 0.0, %v6385
        %v6387 = vpop.f32.mrb[0].mxu0
        %v6388 = vadd.f32 0.0, %v6387
        %6389 = vdwg.mxu0
        %v6390 = vadd.f32 %v6223, %v6315
        %v6391 = vadd.f32 %v6224, %v6317
        %v6392 = vadd.f32 %v6225, %v6386
        %v6393 = vadd.f32 %v6226, %v6388
        %s6394 = scalar_lea.vmem %s2, 48
        %v6395 = vld [vmem:[%s6394] sm:$0xff]
        %6396 = vrot.lane.b32.xlu0 %v5247, 57
        %v6397 = vpop.permute.xlu0 %6396
        %6398 = vrot.lane.b32.xlu0 %v5248, 57
        %v6399 = vpop.permute.xlu0 %6398
        %6400 = vrot.lane.b32.xlu0 %v5249, 57
        %v6401 = vpop.permute.xlu0 %6400
        %6402 = vrot.lane.b32.xlu0 %v5250, 57
        %v6403 = vpop.permute.xlu0 %6402
        %v6404 = vsel %vm1376, %v6401, %v6403
        %v6405 = vsel %vm1376, %v6399, %v6401
        %v6406 = vsel %vm1376, %v6397, %v6399
        %v6407 = vsel %vm1376, %v6403, %v6397
        %v6408 = vmul.f32 %v6407, %v1387
        %v6409 = vmul.f32 %v6406, %v1391
        %v6410 = vmul.f32 %v6405, %v1395
        %v6411 = vmul.f32 %v6404, %v1399
        %v6413 = vsel %vm311, %v6395, 0
        %6415 = vmatprep.subr.mxu0 %v6409
        %6416 = vmatpush1.msra.mxu0 %v6408
        %6417 = vmatprep.subr.mxu0 0.0
        %6418 = vmatpush1.msra.mxu0 0.0
        %6419 = vmatprep.subr.mxu0 0.0
        %6420 = vmatpush1.msra.mxu0 0.0
        %6421 = vmatprep.subr.mxu0 0.0
        %6422 = vmatpush1.msra.mxu0 0.0
        %6423 = vmatprep.subr.mxu0 0.0
        %6424 = vmatpush1.msra.mxu0 0.0
        %6425 = vmatprep.subr.mxu0 0.0
        %6426 = vmatpush1.msra.mxu0 0.0
        %6427 = vmatprep.subr.mxu0 0.0
        %6428 = vmatpush1.msra.mxu0 0.0
        %6429 = vmatprep.subr.mxu0 0.0
        %6430 = vmatpush1.msra.mxu0 0.0
        %6431 = vmatprep.subr.mxu0 0.0
        %6432 = vmatpush1.msra.mxu0 0.0
        %6433 = vmatprep.subr.mxu0 0.0
        %6434 = vmatpush1.msra.mxu0 0.0
        %6435 = vmatprep.subr.mxu0 0.0
        %6436 = vmatpush1.msra.mxu0 0.0
        %6437 = vmatprep.subr.mxu0 0.0
        %6438 = vmatpush1.msra.mxu0 0.0
        %6439 = vmatprep.subr.mxu0 0.0
        %6440 = vmatpush1.msra.mxu0 0.0
        %6441 = vmatprep.subr.mxu0 0.0
        %6442 = vmatpush1.msra.mxu0 0.0
        %6443 = vmatprep.subr.mxu0 0.0
        %6444 = vmatpush1.msra.mxu0 0.0
        %6445 = vmatprep.subr.mxu0 0.0
        %6446 = vmatpush1.msra.mxu0 0.0
        %6447 = vmatprep.subr.mxu0 0.0
        %6448 = vmatpush1.msra.mxu0 0.0
        %6449 = vmatprep.subr.mxu0 0.0
        %6450 = vmatpush1.msra.mxu0 0.0
        %6451 = vmatprep.subr.mxu0 0.0
        %6452 = vmatpush1.msra.mxu0 0.0
        %6453 = vmatprep.subr.mxu0 0.0
        %6454 = vmatpush1.msra.mxu0 0.0
        %6455 = vmatprep.subr.mxu0 0.0
        %6456 = vmatpush1.msra.mxu0 0.0
        %6457 = vmatprep.subr.mxu0 0.0
        %6458 = vmatpush1.msra.mxu0 0.0
        %6459 = vmatprep.subr.mxu0 0.0
        %6460 = vmatpush1.msra.mxu0 0.0
        %6461 = vmatprep.subr.mxu0 0.0
        %6462 = vmatpush1.msra.mxu0 0.0
        %6463 = vmatprep.subr.mxu0 0.0
        %6464 = vmatpush1.msra.mxu0 0.0
        %6465 = vmatprep.subr.mxu0 0.0
        %6466 = vmatpush1.msra.mxu0 0.0
        %6467 = vmatprep.subr.mxu0 0.0
        %6468 = vmatpush1.msra.mxu0 0.0
        %6469 = vmatprep.subr.mxu0 0.0
        %6470 = vmatpush1.msra.mxu0 0.0
        %6471 = vmatprep.subr.mxu0 0.0
        %6472 = vmatpush1.msra.mxu0 0.0
        %6473 = vmatprep.subr.mxu0 0.0
        %6474 = vmatpush1.msra.mxu0 0.0
        %6475 = vmatprep.subr.mxu0 0.0
        %6476 = vmatpush1.msra.mxu0 0.0
        %6477 = vmatprep.subr.mxu0 0.0
        %6478 = vmatpush1.msra.mxu0 0.0
        %6479 = vmatprep.mubr.f32.mxu0 0.0
        %6480 = vmatmul.mubr.f32.gmra.mrb[0].mxu0 %v6413
        %v6481 = vpop.f32.mrb[0].mxu0
        %v6482 = vadd.f32 0.0, %v6481
        %v6483 = vpop.f32.mrb[0].mxu0
        %v6484 = vadd.f32 0.0, %v6483
        %6485 = vdwg.mxu0
        %6486 = vmatprep.subr.mxu0 %v6411
        %6487 = vmatpush1.msra.mxu0 %v6410
        %6488 = vmatprep.subr.mxu0 0.0
        %6489 = vmatpush1.msra.mxu0 0.0
        %6490 = vmatprep.subr.mxu0 0.0
        %6491 = vmatpush1.msra.mxu0 0.0
        %6492 = vmatprep.subr.mxu0 0.0
        %6493 = vmatpush1.msra.mxu0 0.0
        %6494 = vmatprep.subr.mxu0 0.0
        %6495 = vmatpush1.msra.mxu0 0.0
        %6496 = vmatprep.subr.mxu0 0.0
        %6497 = vmatpush1.msra.mxu0 0.0
        %6498 = vmatprep.subr.mxu0 0.0
        %6499 = vmatpush1.msra.mxu0 0.0
        %6500 = vmatprep.subr.mxu0 0.0
        %6501 = vmatpush1.msra.mxu0 0.0
        %6502 = vmatprep.subr.mxu0 0.0
        %6503 = vmatpush1.msra.mxu0 0.0
        %6504 = vmatprep.subr.mxu0 0.0
        %6505 = vmatpush1.msra.mxu0 0.0
        %6506 = vmatprep.subr.mxu0 0.0
        %6507 = vmatpush1.msra.mxu0 0.0
        %6508 = vmatprep.subr.mxu0 0.0
        %6509 = vmatpush1.msra.mxu0 0.0
        %6510 = vmatprep.subr.mxu0 0.0
        %6511 = vmatpush1.msra.mxu0 0.0
        %6512 = vmatprep.subr.mxu0 0.0
        %6513 = vmatpush1.msra.mxu0 0.0
        %6514 = vmatprep.subr.mxu0 0.0
        %6515 = vmatpush1.msra.mxu0 0.0
        %6516 = vmatprep.subr.mxu0 0.0
        %6517 = vmatpush1.msra.mxu0 0.0
        %6518 = vmatprep.subr.mxu0 0.0
        %6519 = vmatpush1.msra.mxu0 0.0
        %6520 = vmatprep.subr.mxu0 0.0
        %6521 = vmatpush1.msra.mxu0 0.0
        %6522 = vmatprep.subr.mxu0 0.0
        %6523 = vmatpush1.msra.mxu0 0.0
        %6524 = vmatprep.subr.mxu0 0.0
        %6525 = vmatpush1.msra.mxu0 0.0
        %6526 = vmatprep.subr.mxu0 0.0
        %6527 = vmatpush1.msra.mxu0 0.0
        %6528 = vmatprep.subr.mxu0 0.0
        %6529 = vmatpush1.msra.mxu0 0.0
        %6530 = vmatprep.subr.mxu0 0.0
        %6531 = vmatpush1.msra.mxu0 0.0
        %6532 = vmatprep.subr.mxu0 0.0
        %6533 = vmatpush1.msra.mxu0 0.0
        %6534 = vmatprep.subr.mxu0 0.0
        %6535 = vmatpush1.msra.mxu0 0.0
        %6536 = vmatprep.subr.mxu0 0.0
        %6537 = vmatpush1.msra.mxu0 0.0
        %6538 = vmatprep.subr.mxu0 0.0
        %6539 = vmatpush1.msra.mxu0 0.0
        %6540 = vmatprep.subr.mxu0 0.0
        %6541 = vmatpush1.msra.mxu0 0.0
        %6542 = vmatprep.subr.mxu0 0.0
        %6543 = vmatpush1.msra.mxu0 0.0
        %6544 = vmatprep.subr.mxu0 0.0
        %6545 = vmatpush1.msra.mxu0 0.0
        %6546 = vmatprep.subr.mxu0 0.0
        %6547 = vmatpush1.msra.mxu0 0.0
        %6548 = vmatprep.subr.mxu0 0.0
        %6549 = vmatpush1.msra.mxu0 0.0
        %6550 = vmatprep.mubr.f32.mxu0 0.0
        %6551 = vmatmul.mubr.f32.gmra.mrb[0].mxu0 %v6413
        %v6552 = vpop.f32.mrb[0].mxu0
        %v6553 = vadd.f32 0.0, %v6552
        %v6554 = vpop.f32.mrb[0].mxu0
        %v6555 = vadd.f32 0.0, %v6554
        %6556 = vdwg.mxu0
        %v6557 = vadd.f32 %v6390, %v6482
        %v6558 = vadd.f32 %v6391, %v6484
        %v6559 = vadd.f32 %v6392, %v6553
        %v6560 = vadd.f32 %v6393, %v6555
        %s6561 = scalar_lea.vmem %s2, 56
        %v6562 = vld [vmem:[%s6561] sm:$0xff]
        %6563 = vrot.lane.b32.xlu0 %v5247, 56
        %v6564 = vpop.permute.xlu0 %6563
        %6565 = vrot.lane.b32.xlu0 %v5248, 56
        %v6566 = vpop.permute.xlu0 %6565
        %6567 = vrot.lane.b32.xlu0 %v5249, 56
        %v6568 = vpop.permute.xlu0 %6567
        %6569 = vrot.lane.b32.xlu0 %v5250, 56
        %v6570 = vpop.permute.xlu0 %6569
        %v6571 = vsel %vm1567, %v6568, %v6570
        %v6572 = vsel %vm1567, %v6566, %v6568
        %v6573 = vsel %vm1567, %v6564, %v6566
        %v6574 = vsel %vm1567, %v6570, %v6564
        %v6575 = vmul.f32 %v6574, %v1578
        %v6576 = vmul.f32 %v6573, %v1582
        %v6577 = vmul.f32 %v6572, %v1586
        %v6578 = vmul.f32 %v6571, %v1590
        %v6580 = vsel %vm311, %v6562, 0
        %6582 = vmatprep.subr.mxu0 %v6576
        %6583 = vmatpush1.msra.mxu0 %v6575
        %6584 = vmatprep.subr.mxu0 0.0
        %6585 = vmatpush1.msra.mxu0 0.0
        %6586 = vmatprep.subr.mxu0 0.0
        %6587 = vmatpush1.msra.mxu0 0.0
        %6588 = vmatprep.subr.mxu0 0.0
        %6589 = vmatpush1.msra.mxu0 0.0
        %6590 = vmatprep.subr.mxu0 0.0
        %6591 = vmatpush1.msra.mxu0 0.0
        %6592 = vmatprep.subr.mxu0 0.0
        %6593 = vmatpush1.msra.mxu0 0.0
        %6594 = vmatprep.subr.mxu0 0.0
        %6595 = vmatpush1.msra.mxu0 0.0
        %6596 = vmatprep.subr.mxu0 0.0
        %6597 = vmatpush1.msra.mxu0 0.0
        %6598 = vmatprep.subr.mxu0 0.0
        %6599 = vmatpush1.msra.mxu0 0.0
        %6600 = vmatprep.subr.mxu0 0.0
        %6601 = vmatpush1.msra.mxu0 0.0
        %6602 = vmatprep.subr.mxu0 0.0
        %6603 = vmatpush1.msra.mxu0 0.0
        %6604 = vmatprep.subr.mxu0 0.0
        %6605 = vmatpush1.msra.mxu0 0.0
        %6606 = vmatprep.subr.mxu0 0.0
        %6607 = vmatpush1.msra.mxu0 0.0
        %6608 = vmatprep.subr.mxu0 0.0
        %6609 = vmatpush1.msra.mxu0 0.0
        %6610 = vmatprep.subr.mxu0 0.0
        %6611 = vmatpush1.msra.mxu0 0.0
        %6612 = vmatprep.subr.mxu0 0.0
        %6613 = vmatpush1.msra.mxu0 0.0
        %6614 = vmatprep.subr.mxu0 0.0
        %6615 = vmatpush1.msra.mxu0 0.0
        %6616 = vmatprep.subr.mxu0 0.0
        %6617 = vmatpush1.msra.mxu0 0.0
        %6618 = vmatprep.subr.mxu0 0.0
        %6619 = vmatpush1.msra.mxu0 0.0
        %6620 = vmatprep.subr.mxu0 0.0
        %6621 = vmatpush1.msra.mxu0 0.0
        %6622 = vmatprep.subr.mxu0 0.0
        %6623 = vmatpush1.msra.mxu0 0.0
        %6624 = vmatprep.subr.mxu0 0.0
        %6625 = vmatpush1.msra.mxu0 0.0
        %6626 = vmatprep.subr.mxu0 0.0
        %6627 = vmatpush1.msra.mxu0 0.0
        %6628 = vmatprep.subr.mxu0 0.0
        %6629 = vmatpush1.msra.mxu0 0.0
        %6630 = vmatprep.subr.mxu0 0.0
        %6631 = vmatpush1.msra.mxu0 0.0
        %6632 = vmatprep.subr.mxu0 0.0
        %6633 = vmatpush1.msra.mxu0 0.0
        %6634 = vmatprep.subr.mxu0 0.0
        %6635 = vmatpush1.msra.mxu0 0.0
        %6636 = vmatprep.subr.mxu0 0.0
        %6637 = vmatpush1.msra.mxu0 0.0
        %6638 = vmatprep.subr.mxu0 0.0
        %6639 = vmatpush1.msra.mxu0 0.0
        %6640 = vmatprep.subr.mxu0 0.0
        %6641 = vmatpush1.msra.mxu0 0.0
        %6642 = vmatprep.subr.mxu0 0.0
        %6643 = vmatpush1.msra.mxu0 0.0
        %6644 = vmatprep.subr.mxu0 0.0
        %6645 = vmatpush1.msra.mxu0 0.0
        %6646 = vmatprep.mubr.f32.mxu0 0.0
        %6647 = vmatmul.mubr.f32.gmra.mrb[0].mxu0 %v6580
        %v6648 = vpop.f32.mrb[0].mxu0
        %v6649 = vadd.f32 0.0, %v6648
        %v6650 = vpop.f32.mrb[0].mxu0
        %v6651 = vadd.f32 0.0, %v6650
        %6652 = vdwg.mxu0
        %6653 = vmatprep.subr.mxu0 %v6578
        %6654 = vmatpush1.msra.mxu0 %v6577
        %6655 = vmatprep.subr.mxu0 0.0
        %6656 = vmatpush1.msra.mxu0 0.0
        %6657 = vmatprep.subr.mxu0 0.0
        %6658 = vmatpush1.msra.mxu0 0.0
        %6659 = vmatprep.subr.mxu0 0.0
        %6660 = vmatpush1.msra.mxu0 0.0
        %6661 = vmatprep.subr.mxu0 0.0
        %6662 = vmatpush1.msra.mxu0 0.0
        %6663 = vmatprep.subr.mxu0 0.0
        %6664 = vmatpush1.msra.mxu0 0.0
        %6665 = vmatprep.subr.mxu0 0.0
        %6666 = vmatpush1.msra.mxu0 0.0
        %6667 = vmatprep.subr.mxu0 0.0
        %6668 = vmatpush1.msra.mxu0 0.0
        %6669 = vmatprep.subr.mxu0 0.0
        %6670 = vmatpush1.msra.mxu0 0.0
        %6671 = vmatprep.subr.mxu0 0.0
        %6672 = vmatpush1.msra.mxu0 0.0
        %6673 = vmatprep.subr.mxu0 0.0
        %6674 = vmatpush1.msra.mxu0 0.0
        %6675 = vmatprep.subr.mxu0 0.0
        %6676 = vmatpush1.msra.mxu0 0.0
        %6677 = vmatprep.subr.mxu0 0.0
        %6678 = vmatpush1.msra.mxu0 0.0
        %6679 = vmatprep.subr.mxu0 0.0
        %6680 = vmatpush1.msra.mxu0 0.0
        %6681 = vmatprep.subr.mxu0 0.0
        %6682 = vmatpush1.msra.mxu0 0.0
        %6683 = vmatprep.subr.mxu0 0.0
        %6684 = vmatpush1.msra.mxu0 0.0
        %6685 = vmatprep.subr.mxu0 0.0
        %6686 = vmatpush1.msra.mxu0 0.0
        %6687 = vmatprep.subr.mxu0 0.0
        %6688 = vmatpush1.msra.mxu0 0.0
        %6689 = vmatprep.subr.mxu0 0.0
        %6690 = vmatpush1.msra.mxu0 0.0
        %6691 = vmatprep.subr.mxu0 0.0
        %6692 = vmatpush1.msra.mxu0 0.0
        %6693 = vmatprep.subr.mxu0 0.0
        %6694 = vmatpush1.msra.mxu0 0.0
        %6695 = vmatprep.subr.mxu0 0.0
        %6696 = vmatpush1.msra.mxu0 0.0
        %6697 = vmatprep.subr.mxu0 0.0
        %6698 = vmatpush1.msra.mxu0 0.0
        %6699 = vmatprep.subr.mxu0 0.0
        %6700 = vmatpush1.msra.mxu0 0.0
        %6701 = vmatprep.subr.mxu0 0.0
        %6702 = vmatpush1.msra.mxu0 0.0
        %6703 = vmatprep.subr.mxu0 0.0
        %6704 = vmatpush1.msra.mxu0 0.0
        %6705 = vmatprep.subr.mxu0 0.0
        %6706 = vmatpush1.msra.mxu0 0.0
        %6707 = vmatprep.subr.mxu0 0.0
        %6708 = vmatpush1.msra.mxu0 0.0
        %6709 = vmatprep.subr.mxu0 0.0
        %6710 = vmatpush1.msra.mxu0 0.0
        %6711 = vmatprep.subr.mxu0 0.0
        %6712 = vmatpush1.msra.mxu0 0.0
        %6713 = vmatprep.subr.mxu0 0.0
        %6714 = vmatpush1.msra.mxu0 0.0
        %6715 = vmatprep.subr.mxu0 0.0
        %6716 = vmatpush1.msra.mxu0 0.0
        %6717 = vmatprep.mubr.f32.mxu0 0.0
        %6718 = vmatmul.mubr.f32.gmra.mrb[0].mxu0 %v6580
        %v6719 = vpop.f32.mrb[0].mxu0
        %v6720 = vadd.f32 0.0, %v6719
        %v6721 = vpop.f32.mrb[0].mxu0
        %v6722 = vadd.f32 0.0, %v6721
        %6723 = vdwg.mxu0
        %v6724 = vadd.f32 %v6557, %v6649
        %v6725 = vadd.f32 %v6558, %v6651
        %v6726 = vadd.f32 %v6559, %v6720
        %v6727 = vadd.f32 %v6560, %v6722
        %s6728 = scalar_lea.vmem %s2, 64
        %v6729 = vld [vmem:[%s6728] sm:$0xff]
        %6730 = vrot.lane.b32.xlu0 %v5247, 55
        %v6731 = vpop.permute.xlu0 %6730
        %6732 = vrot.lane.b32.xlu0 %v5248, 55
        %v6733 = vpop.permute.xlu0 %6732
        %6734 = vrot.lane.b32.xlu0 %v5249, 55
        %v6735 = vpop.permute.xlu0 %6734
        %6736 = vrot.lane.b32.xlu0 %v5250, 55
        %v6737 = vpop.permute.xlu0 %6736
        %v6738 = vsel %vm1758, %v6735, %v6737
        %v6739 = vsel %vm1758, %v6733, %v6735
        %v6740 = vsel %vm1758, %v6731, %v6733
        %v6741 = vsel %vm1758, %v6737, %v6731
        %v6742 = vmul.f32 %v6741, %v1769
        %v6743 = vmul.f32 %v6740, %v1773
        %v6744 = vmul.f32 %v6739, %v1777
        %v6745 = vmul.f32 %v6738, %v1781
        %v6747 = vsel %vm311, %v6729, 0
        %6749 = vmatprep.subr.mxu0 %v6743
        %6750 = vmatpush1.msra.mxu0 %v6742
        %6751 = vmatprep.subr.mxu0 0.0
        %6752 = vmatpush1.msra.mxu0 0.0
        %6753 = vmatprep.subr.mxu0 0.0
        %6754 = vmatpush1.msra.mxu0 0.0
        %6755 = vmatprep.subr.mxu0 0.0
        %6756 = vmatpush1.msra.mxu0 0.0
        %6757 = vmatprep.subr.mxu0 0.0
        %6758 = vmatpush1.msra.mxu0 0.0
        %6759 = vmatprep.subr.mxu0 0.0
        %6760 = vmatpush1.msra.mxu0 0.0
        %6761 = vmatprep.subr.mxu0 0.0
        %6762 = vmatpush1.msra.mxu0 0.0
        %6763 = vmatprep.subr.mxu0 0.0
        %6764 = vmatpush1.msra.mxu0 0.0
        %6765 = vmatprep.subr.mxu0 0.0
        %6766 = vmatpush1.msra.mxu0 0.0
        %6767 = vmatprep.subr.mxu0 0.0
        %6768 = vmatpush1.msra.mxu0 0.0
        %6769 = vmatprep.subr.mxu0 0.0
        %6770 = vmatpush1.msra.mxu0 0.0
        %6771 = vmatprep.subr.mxu0 0.0
        %6772 = vmatpush1.msra.mxu0 0.0
        %6773 = vmatprep.subr.mxu0 0.0
        %6774 = vmatpush1.msra.mxu0 0.0
        %6775 = vmatprep.subr.mxu0 0.0
        %6776 = vmatpush1.msra.mxu0 0.0
        %6777 = vmatprep.subr.mxu0 0.0
        %6778 = vmatpush1.msra.mxu0 0.0
        %6779 = vmatprep.subr.mxu0 0.0
        %6780 = vmatpush1.msra.mxu0 0.0
        %6781 = vmatprep.subr.mxu0 0.0
        %6782 = vmatpush1.msra.mxu0 0.0
        %6783 = vmatprep.subr.mxu0 0.0
        %6784 = vmatpush1.msra.mxu0 0.0
        %6785 = vmatprep.subr.mxu0 0.0
        %6786 = vmatpush1.msra.mxu0 0.0
        %6787 = vmatprep.subr.mxu0 0.0
        %6788 = vmatpush1.msra.mxu0 0.0
        %6789 = vmatprep.subr.mxu0 0.0
        %6790 = vmatpush1.msra.mxu0 0.0
        %6791 = vmatprep.subr.mxu0 0.0
        %6792 = vmatpush1.msra.mxu0 0.0
        %6793 = vmatprep.subr.mxu0 0.0
        %6794 = vmatpush1.msra.mxu0 0.0
        %6795 = vmatprep.subr.mxu0 0.0
        %6796 = vmatpush1.msra.mxu0 0.0
        %6797 = vmatprep.subr.mxu0 0.0
        %6798 = vmatpush1.msra.mxu0 0.0
        %6799 = vmatprep.subr.mxu0 0.0
        %6800 = vmatpush1.msra.mxu0 0.0
        %6801 = vmatprep.subr.mxu0 0.0
        %6802 = vmatpush1.msra.mxu0 0.0
        %6803 = vmatprep.subr.mxu0 0.0
        %6804 = vmatpush1.msra.mxu0 0.0
        %6805 = vmatprep.subr.mxu0 0.0
        %6806 = vmatpush1.msra.mxu0 0.0
        %6807 = vmatprep.subr.mxu0 0.0
        %6808 = vmatpush1.msra.mxu0 0.0
        %6809 = vmatprep.subr.mxu0 0.0
        %6810 = vmatpush1.msra.mxu0 0.0
        %6811 = vmatprep.subr.mxu0 0.0
        %6812 = vmatpush1.msra.mxu0 0.0
        %6813 = vmatprep.mubr.f32.mxu0 0.0
        %6814 = vmatmul.mubr.f32.gmra.mrb[0].mxu0 %v6747
        %v6815 = vpop.f32.mrb[0].mxu0
        %v6816 = vadd.f32 0.0, %v6815
        %v6817 = vpop.f32.mrb[0].mxu0
        %v6818 = vadd.f32 0.0, %v6817
        %6819 = vdwg.mxu0
        %6820 = vmatprep.subr.mxu0 %v6745
        %6821 = vmatpush1.msra.mxu0 %v6744
        %6822 = vmatprep.subr.mxu0 0.0
        %6823 = vmatpush1.msra.mxu0 0.0
        %6824 = vmatprep.subr.mxu0 0.0
        %6825 = vmatpush1.msra.mxu0 0.0
        %6826 = vmatprep.subr.mxu0 0.0
        %6827 = vmatpush1.msra.mxu0 0.0
        %6828 = vmatprep.subr.mxu0 0.0
        %6829 = vmatpush1.msra.mxu0 0.0
        %6830 = vmatprep.subr.mxu0 0.0
        %6831 = vmatpush1.msra.mxu0 0.0
        %6832 = vmatprep.subr.mxu0 0.0
        %6833 = vmatpush1.msra.mxu0 0.0
        %6834 = vmatprep.subr.mxu0 0.0
        %6835 = vmatpush1.msra.mxu0 0.0
        %6836 = vmatprep.subr.mxu0 0.0
        %6837 = vmatpush1.msra.mxu0 0.0
        %6838 = vmatprep.subr.mxu0 0.0
        %6839 = vmatpush1.msra.mxu0 0.0
        %6840 = vmatprep.subr.mxu0 0.0
        %6841 = vmatpush1.msra.mxu0 0.0
        %6842 = vmatprep.subr.mxu0 0.0
        %6843 = vmatpush1.msra.mxu0 0.0
        %6844 = vmatprep.subr.mxu0 0.0
        %6845 = vmatpush1.msra.mxu0 0.0
        %6846 = vmatprep.subr.mxu0 0.0
        %6847 = vmatpush1.msra.mxu0 0.0
        %6848 = vmatprep.subr.mxu0 0.0
        %6849 = vmatpush1.msra.mxu0 0.0
        %6850 = vmatprep.subr.mxu0 0.0
        %6851 = vmatpush1.msra.mxu0 0.0
        %6852 = vmatprep.subr.mxu0 0.0
        %6853 = vmatpush1.msra.mxu0 0.0
        %6854 = vmatprep.subr.mxu0 0.0
        %6855 = vmatpush1.msra.mxu0 0.0
        %6856 = vmatprep.subr.mxu0 0.0
        %6857 = vmatpush1.msra.mxu0 0.0
        %6858 = vmatprep.subr.mxu0 0.0
        %6859 = vmatpush1.msra.mxu0 0.0
        %6860 = vmatprep.subr.mxu0 0.0
        %6861 = vmatpush1.msra.mxu0 0.0
        %6862 = vmatprep.subr.mxu0 0.0
        %6863 = vmatpush1.msra.mxu0 0.0
        %6864 = vmatprep.subr.mxu0 0.0
        %6865 = vmatpush1.msra.mxu0 0.0
        %6866 = vmatprep.subr.mxu0 0.0
        %6867 = vmatpush1.msra.mxu0 0.0
        %6868 = vmatprep.subr.mxu0 0.0
        %6869 = vmatpush1.msra.mxu0 0.0
        %6870 = vmatprep.subr.mxu0 0.0
        %6871 = vmatpush1.msra.mxu0 0.0
        %6872 = vmatprep.subr.mxu0 0.0
        %6873 = vmatpush1.msra.mxu0 0.0
        %6874 = vmatprep.subr.mxu0 0.0
        %6875 = vmatpush1.msra.mxu0 0.0
        %6876 = vmatprep.subr.mxu0 0.0
        %6877 = vmatpush1.msra.mxu0 0.0
        %6878 = vmatprep.subr.mxu0 0.0
        %6879 = vmatpush1.msra.mxu0 0.0
        %6880 = vmatprep.subr.mxu0 0.0
        %6881 = vmatpush1.msra.mxu0 0.0
        %6882 = vmatprep.subr.mxu0 0.0
        %6883 = vmatpush1.msra.mxu0 0.0
        %6884 = vmatprep.mubr.f32.mxu0 0.0
        %6885 = vmatmul.mubr.f32.gmra.mrb[0].mxu0 %v6747
        %v6886 = vpop.f32.mrb[0].mxu0
        %v6887 = vadd.f32 0.0, %v6886
        %v6888 = vpop.f32.mrb[0].mxu0
        %v6889 = vadd.f32 0.0, %v6888
        %6890 = vdwg.mxu0
        %v6891 = vadd.f32 %v6724, %v6816
        %v6892 = vadd.f32 %v6725, %v6818
        %v6893 = vadd.f32 %v6726, %v6887
        %v6894 = vadd.f32 %v6727, %v6889
        %s6895 = scalar_lea.vmem %s2, 72
        %v6896 = vld [vmem:[%s6895] sm:$0xff]
        %6897 = vrot.lane.b32.xlu0 %v5247, 9
        %v6898 = vpop.permute.xlu0 %6897
        %6899 = vrot.lane.b32.xlu0 %v5248, 9
        %v6900 = vpop.permute.xlu0 %6899
        %6901 = vrot.lane.b32.xlu0 %v5249, 9
        %v6902 = vpop.permute.xlu0 %6901
        %6903 = vrot.lane.b32.xlu0 %v5250, 9
        %v6904 = vpop.permute.xlu0 %6903
        %v6905 = vsel %vm1949, %v6902, %v6904
        %v6906 = vsel %vm1949, %v6900, %v6902
        %v6907 = vsel %vm1949, %v6898, %v6900
        %v6908 = vsel %vm1949, %v6904, %v6898
        %v6909 = vmul.f32 %v6908, %v1960
        %v6910 = vmul.f32 %v6907, %v1964
        %v6911 = vmul.f32 %v6906, %v1968
        %v6912 = vmul.f32 %v6905, %v1972
        %v6914 = vsel %vm311, %v6896, 0
        %6916 = vmatprep.subr.mxu0 %v6910
        %6917 = vmatpush1.msra.mxu0 %v6909
        %6918 = vmatprep.subr.mxu0 0.0
        %6919 = vmatpush1.msra.mxu0 0.0
        %6920 = vmatprep.subr.mxu0 0.0
        %6921 = vmatpush1.msra.mxu0 0.0
        %6922 = vmatprep.subr.mxu0 0.0
        %6923 = vmatpush1.msra.mxu0 0.0
        %6924 = vmatprep.subr.mxu0 0.0
        %6925 = vmatpush1.msra.mxu0 0.0
        %6926 = vmatprep.subr.mxu0 0.0
        %6927 = vmatpush1.msra.mxu0 0.0
        %6928 = vmatprep.subr.mxu0 0.0
        %6929 = vmatpush1.msra.mxu0 0.0
        %6930 = vmatprep.subr.mxu0 0.0
        %6931 = vmatpush1.msra.mxu0 0.0
        %6932 = vmatprep.subr.mxu0 0.0
        %6933 = vmatpush1.msra.mxu0 0.0
        %6934 = vmatprep.subr.mxu0 0.0
        %6935 = vmatpush1.msra.mxu0 0.0
        %6936 = vmatprep.subr.mxu0 0.0
        %6937 = vmatpush1.msra.mxu0 0.0
        %6938 = vmatprep.subr.mxu0 0.0
        %6939 = vmatpush1.msra.mxu0 0.0
        %6940 = vmatprep.subr.mxu0 0.0
        %6941 = vmatpush1.msra.mxu0 0.0
        %6942 = vmatprep.subr.mxu0 0.0
        %6943 = vmatpush1.msra.mxu0 0.0
        %6944 = vmatprep.subr.mxu0 0.0
        %6945 = vmatpush1.msra.mxu0 0.0
        %6946 = vmatprep.subr.mxu0 0.0
        %6947 = vmatpush1.msra.mxu0 0.0
        %6948 = vmatprep.subr.mxu0 0.0
        %6949 = vmatpush1.msra.mxu0 0.0
        %6950 = vmatprep.subr.mxu0 0.0
        %6951 = vmatpush1.msra.mxu0 0.0
        %6952 = vmatprep.subr.mxu0 0.0
        %6953 = vmatpush1.msra.mxu0 0.0
        %6954 = vmatprep.subr.mxu0 0.0
        %6955 = vmatpush1.msra.mxu0 0.0
        %6956 = vmatprep.subr.mxu0 0.0
        %6957 = vmatpush1.msra.mxu0 0.0
        %6958 = vmatprep.subr.mxu0 0.0
        %6959 = vmatpush1.msra.mxu0 0.0
        %6960 = vmatprep.subr.mxu0 0.0
        %6961 = vmatpush1.msra.mxu0 0.0
        %6962 = vmatprep.subr.mxu0 0.0
        %6963 = vmatpush1.msra.mxu0 0.0
        %6964 = vmatprep.subr.mxu0 0.0
        %6965 = vmatpush1.msra.mxu0 0.0
        %6966 = vmatprep.subr.mxu0 0.0
        %6967 = vmatpush1.msra.mxu0 0.0
        %6968 = vmatprep.subr.mxu0 0.0
        %6969 = vmatpush1.msra.mxu0 0.0
        %6970 = vmatprep.subr.mxu0 0.0
        %6971 = vmatpush1.msra.mxu0 0.0
        %6972 = vmatprep.subr.mxu0 0.0
        %6973 = vmatpush1.msra.mxu0 0.0
        %6974 = vmatprep.subr.mxu0 0.0
        %6975 = vmatpush1.msra.mxu0 0.0
        %6976 = vmatprep.subr.mxu0 0.0
        %6977 = vmatpush1.msra.mxu0 0.0
        %6978 = vmatprep.subr.mxu0 0.0
        %6979 = vmatpush1.msra.mxu0 0.0
        %6980 = vmatprep.mubr.f32.mxu0 0.0
        %6981 = vmatmul.mubr.f32.gmra.mrb[0].mxu0 %v6914
        %v6982 = vpop.f32.mrb[0].mxu0
        %v6983 = vadd.f32 0.0, %v6982
        %v6984 = vpop.f32.mrb[0].mxu0
        %v6985 = vadd.f32 0.0, %v6984
        %6986 = vdwg.mxu0
        %6987 = vmatprep.subr.mxu0 %v6912
        %6988 = vmatpush1.msra.mxu0 %v6911
        %6989 = vmatprep.subr.mxu0 0.0
        %6990 = vmatpush1.msra.mxu0 0.0
        %6991 = vmatprep.subr.mxu0 0.0
        %6992 = vmatpush1.msra.mxu0 0.0
        %6993 = vmatprep.subr.mxu0 0.0
        %6994 = vmatpush1.msra.mxu0 0.0
        %6995 = vmatprep.subr.mxu0 0.0
        %6996 = vmatpush1.msra.mxu0 0.0
        %6997 = vmatprep.subr.mxu0 0.0
        %6998 = vmatpush1.msra.mxu0 0.0
        %6999 = vmatprep.subr.mxu0 0.0
        %7000 = vmatpush1.msra.mxu0 0.0
        %7001 = vmatprep.subr.mxu0 0.0
        %7002 = vmatpush1.msra.mxu0 0.0
        %7003 = vmatprep.subr.mxu0 0.0
        %7004 = vmatpush1.msra.mxu0 0.0
        %7005 = vmatprep.subr.mxu0 0.0
        %7006 = vmatpush1.msra.mxu0 0.0
        %7007 = vmatprep.subr.mxu0 0.0
        %7008 = vmatpush1.msra.mxu0 0.0
        %7009 = vmatprep.subr.mxu0 0.0
        %7010 = vmatpush1.msra.mxu0 0.0
        %7011 = vmatprep.subr.mxu0 0.0
        %7012 = vmatpush1.msra.mxu0 0.0
        %7013 = vmatprep.subr.mxu0 0.0
        %7014 = vmatpush1.msra.mxu0 0.0
        %7015 = vmatprep.subr.mxu0 0.0
        %7016 = vmatpush1.msra.mxu0 0.0
        %7017 = vmatprep.subr.mxu0 0.0
        %7018 = vmatpush1.msra.mxu0 0.0
        %7019 = vmatprep.subr.mxu0 0.0
        %7020 = vmatpush1.msra.mxu0 0.0
        %7021 = vmatprep.subr.mxu0 0.0
        %7022 = vmatpush1.msra.mxu0 0.0
        %7023 = vmatprep.subr.mxu0 0.0
        %7024 = vmatpush1.msra.mxu0 0.0
        %7025 = vmatprep.subr.mxu0 0.0
        %7026 = vmatpush1.msra.mxu0 0.0
        %7027 = vmatprep.subr.mxu0 0.0
        %7028 = vmatpush1.msra.mxu0 0.0
        %7029 = vmatprep.subr.mxu0 0.0
        %7030 = vmatpush1.msra.mxu0 0.0
        %7031 = vmatprep.subr.mxu0 0.0
        %7032 = vmatpush1.msra.mxu0 0.0
        %7033 = vmatprep.subr.mxu0 0.0
        %7034 = vmatpush1.msra.mxu0 0.0
        %7035 = vmatprep.subr.mxu0 0.0
        %7036 = vmatpush1.msra.mxu0 0.0
        %7037 = vmatprep.subr.mxu0 0.0
        %7038 = vmatpush1.msra.mxu0 0.0
        %7039 = vmatprep.subr.mxu0 0.0
        %7040 = vmatpush1.msra.mxu0 0.0
        %7041 = vmatprep.subr.mxu0 0.0
        %7042 = vmatpush1.msra.mxu0 0.0
        %7043 = vmatprep.subr.mxu0 0.0
        %7044 = vmatpush1.msra.mxu0 0.0
        %7045 = vmatprep.subr.mxu0 0.0
        %7046 = vmatpush1.msra.mxu0 0.0
        %7047 = vmatprep.subr.mxu0 0.0
        %7048 = vmatpush1.msra.mxu0 0.0
        %7049 = vmatprep.subr.mxu0 0.0
        %7050 = vmatpush1.msra.mxu0 0.0
        %7051 = vmatprep.mubr.f32.mxu0 0.0
        %7052 = vmatmul.mubr.f32.gmra.mrb[0].mxu0 %v6914
        %v7053 = vpop.f32.mrb[0].mxu0
        %v7054 = vadd.f32 0.0, %v7053
        %v7055 = vpop.f32.mrb[0].mxu0
        %v7056 = vadd.f32 0.0, %v7055
        %7057 = vdwg.mxu0
        %v7058 = vadd.f32 %v6891, %v6983
        %v7059 = vadd.f32 %v6892, %v6985
        %v7060 = vadd.f32 %v6893, %v7054
        %v7061 = vadd.f32 %v6894, %v7056
        %s7062 = scalar_lea.vmem %s2, 80
        %v7063 = vld [vmem:[%s7062] sm:$0xff]
        %7064 = vrot.lane.b32.xlu0 %v5247, 8
        %v7065 = vpop.permute.xlu0 %7064
        %7066 = vrot.lane.b32.xlu0 %v5248, 8
        %v7067 = vpop.permute.xlu0 %7066
        %7068 = vrot.lane.b32.xlu0 %v5249, 8
        %v7069 = vpop.permute.xlu0 %7068
        %7070 = vrot.lane.b32.xlu0 %v5250, 8
        %v7071 = vpop.permute.xlu0 %7070
        %v7072 = vsel %vm2140, %v7069, %v7071
        %v7073 = vsel %vm2140, %v7067, %v7069
        %v7074 = vsel %vm2140, %v7065, %v7067
        %v7075 = vsel %vm2140, %v7071, %v7065
        %v7076 = vmul.f32 %v7075, %v2151
        %v7077 = vmul.f32 %v7074, %v2155
        %v7078 = vmul.f32 %v7073, %v2159
        %v7079 = vmul.f32 %v7072, %v2163
        %v7081 = vsel %vm311, %v7063, 0
        %7083 = vmatprep.subr.mxu0 %v7077
        %7084 = vmatpush1.msra.mxu0 %v7076
        %7085 = vmatprep.subr.mxu0 0.0
        %7086 = vmatpush1.msra.mxu0 0.0
        %7087 = vmatprep.subr.mxu0 0.0
        %7088 = vmatpush1.msra.mxu0 0.0
        %7089 = vmatprep.subr.mxu0 0.0
        %7090 = vmatpush1.msra.mxu0 0.0
        %7091 = vmatprep.subr.mxu0 0.0
        %7092 = vmatpush1.msra.mxu0 0.0
        %7093 = vmatprep.subr.mxu0 0.0
        %7094 = vmatpush1.msra.mxu0 0.0
        %7095 = vmatprep.subr.mxu0 0.0
        %7096 = vmatpush1.msra.mxu0 0.0
        %7097 = vmatprep.subr.mxu0 0.0
        %7098 = vmatpush1.msra.mxu0 0.0
        %7099 = vmatprep.subr.mxu0 0.0
        %7100 = vmatpush1.msra.mxu0 0.0
        %7101 = vmatprep.subr.mxu0 0.0
        %7102 = vmatpush1.msra.mxu0 0.0
        %7103 = vmatprep.subr.mxu0 0.0
        %7104 = vmatpush1.msra.mxu0 0.0
        %7105 = vmatprep.subr.mxu0 0.0
        %7106 = vmatpush1.msra.mxu0 0.0
        %7107 = vmatprep.subr.mxu0 0.0
        %7108 = vmatpush1.msra.mxu0 0.0
        %7109 = vmatprep.subr.mxu0 0.0
        %7110 = vmatpush1.msra.mxu0 0.0
        %7111 = vmatprep.subr.mxu0 0.0
        %7112 = vmatpush1.msra.mxu0 0.0
        %7113 = vmatprep.subr.mxu0 0.0
        %7114 = vmatpush1.msra.mxu0 0.0
        %7115 = vmatprep.subr.mxu0 0.0
        %7116 = vmatpush1.msra.mxu0 0.0
        %7117 = vmatprep.subr.mxu0 0.0
        %7118 = vmatpush1.msra.mxu0 0.0
        %7119 = vmatprep.subr.mxu0 0.0
        %7120 = vmatpush1.msra.mxu0 0.0
        %7121 = vmatprep.subr.mxu0 0.0
        %7122 = vmatpush1.msra.mxu0 0.0
        %7123 = vmatprep.subr.mxu0 0.0
        %7124 = vmatpush1.msra.mxu0 0.0
        %7125 = vmatprep.subr.mxu0 0.0
        %7126 = vmatpush1.msra.mxu0 0.0
        %7127 = vmatprep.subr.mxu0 0.0
        %7128 = vmatpush1.msra.mxu0 0.0
        %7129 = vmatprep.subr.mxu0 0.0
        %7130 = vmatpush1.msra.mxu0 0.0
        %7131 = vmatprep.subr.mxu0 0.0
        %7132 = vmatpush1.msra.mxu0 0.0
        %7133 = vmatprep.subr.mxu0 0.0
        %7134 = vmatpush1.msra.mxu0 0.0
        %7135 = vmatprep.subr.mxu0 0.0
        %7136 = vmatpush1.msra.mxu0 0.0
        %7137 = vmatprep.subr.mxu0 0.0
        %7138 = vmatpush1.msra.mxu0 0.0
        %7139 = vmatprep.subr.mxu0 0.0
        %7140 = vmatpush1.msra.mxu0 0.0
        %7141 = vmatprep.subr.mxu0 0.0
        %7142 = vmatpush1.msra.mxu0 0.0
        %7143 = vmatprep.subr.mxu0 0.0
        %7144 = vmatpush1.msra.mxu0 0.0
        %7145 = vmatprep.subr.mxu0 0.0
        %7146 = vmatpush1.msra.mxu0 0.0
        %7147 = vmatprep.mubr.f32.mxu0 0.0
        %7148 = vmatmul.mubr.f32.gmra.mrb[0].mxu0 %v7081
        %v7149 = vpop.f32.mrb[0].mxu0
        %v7150 = vadd.f32 0.0, %v7149
        %v7151 = vpop.f32.mrb[0].mxu0
        %v7152 = vadd.f32 0.0, %v7151
        %7153 = vdwg.mxu0
        %7154 = vmatprep.subr.mxu0 %v7079
        %7155 = vmatpush1.msra.mxu0 %v7078
        %7156 = vmatprep.subr.mxu0 0.0
        %7157 = vmatpush1.msra.mxu0 0.0
        %7158 = vmatprep.subr.mxu0 0.0
        %7159 = vmatpush1.msra.mxu0 0.0
        %7160 = vmatprep.subr.mxu0 0.0
        %7161 = vmatpush1.msra.mxu0 0.0
        %7162 = vmatprep.subr.mxu0 0.0
        %7163 = vmatpush1.msra.mxu0 0.0
        %7164 = vmatprep.subr.mxu0 0.0
        %7165 = vmatpush1.msra.mxu0 0.0
        %7166 = vmatprep.subr.mxu0 0.0
        %7167 = vmatpush1.msra.mxu0 0.0
        %7168 = vmatprep.subr.mxu0 0.0
        %7169 = vmatpush1.msra.mxu0 0.0
        %7170 = vmatprep.subr.mxu0 0.0
        %7171 = vmatpush1.msra.mxu0 0.0
        %7172 = vmatprep.subr.mxu0 0.0
        %7173 = vmatpush1.msra.mxu0 0.0
        %7174 = vmatprep.subr.mxu0 0.0
        %7175 = vmatpush1.msra.mxu0 0.0
        %7176 = vmatprep.subr.mxu0 0.0
        %7177 = vmatpush1.msra.mxu0 0.0
        %7178 = vmatprep.subr.mxu0 0.0
        %7179 = vmatpush1.msra.mxu0 0.0
        %7180 = vmatprep.subr.mxu0 0.0
        %7181 = vmatpush1.msra.mxu0 0.0
        %7182 = vmatprep.subr.mxu0 0.0
        %7183 = vmatpush1.msra.mxu0 0.0
        %7184 = vmatprep.subr.mxu0 0.0
        %7185 = vmatpush1.msra.mxu0 0.0
        %7186 = vmatprep.subr.mxu0 0.0
        %7187 = vmatpush1.msra.mxu0 0.0
        %7188 = vmatprep.subr.mxu0 0.0
        %7189 = vmatpush1.msra.mxu0 0.0
        %7190 = vmatprep.subr.mxu0 0.0
        %7191 = vmatpush1.msra.mxu0 0.0
        %7192 = vmatprep.subr.mxu0 0.0
        %7193 = vmatpush1.msra.mxu0 0.0
        %7194 = vmatprep.subr.mxu0 0.0
        %7195 = vmatpush1.msra.mxu0 0.0
        %7196 = vmatprep.subr.mxu0 0.0
        %7197 = vmatpush1.msra.mxu0 0.0
        %7198 = vmatprep.subr.mxu0 0.0
        %7199 = vmatpush1.msra.mxu0 0.0
        %7200 = vmatprep.subr.mxu0 0.0
        %7201 = vmatpush1.msra.mxu0 0.0
        %7202 = vmatprep.subr.mxu0 0.0
        %7203 = vmatpush1.msra.mxu0 0.0
        %7204 = vmatprep.subr.mxu0 0.0
        %7205 = vmatpush1.msra.mxu0 0.0
        %7206 = vmatprep.subr.mxu0 0.0
        %7207 = vmatpush1.msra.mxu0 0.0
        %7208 = vmatprep.subr.mxu0 0.0
        %7209 = vmatpush1.msra.mxu0 0.0
        %7210 = vmatprep.subr.mxu0 0.0
        %7211 = vmatpush1.msra.mxu0 0.0
        %7212 = vmatprep.subr.mxu0 0.0
        %7213 = vmatpush1.msra.mxu0 0.0
        %7214 = vmatprep.subr.mxu0 0.0
        %7215 = vmatpush1.msra.mxu0 0.0
        %7216 = vmatprep.subr.mxu0 0.0
        %7217 = vmatpush1.msra.mxu0 0.0
        %7218 = vmatprep.mubr.f32.mxu0 0.0
        %7219 = vmatmul.mubr.f32.gmra.mrb[0].mxu0 %v7081
        %v7220 = vpop.f32.mrb[0].mxu0
        %v7221 = vadd.f32 0.0, %v7220
        %v7222 = vpop.f32.mrb[0].mxu0
        %v7223 = vadd.f32 0.0, %v7222
        %7224 = vdwg.mxu0
        %v7225 = vadd.f32 %v7058, %v7150
        %v7226 = vadd.f32 %v7059, %v7152
        %v7227 = vadd.f32 %v7060, %v7221
        %v7228 = vadd.f32 %v7061, %v7223
        %s7229 = scalar_lea.vmem %s2, 88
        %v7230 = vld [vmem:[%s7229] sm:$0xff]
        %7231 = vrot.lane.b32.xlu0 %v5247, 7
        %v7232 = vpop.permute.xlu0 %7231
        %7233 = vrot.lane.b32.xlu0 %v5248, 7
        %v7234 = vpop.permute.xlu0 %7233
        %7235 = vrot.lane.b32.xlu0 %v5249, 7
        %v7236 = vpop.permute.xlu0 %7235
        %7237 = vrot.lane.b32.xlu0 %v5250, 7
        %v7238 = vpop.permute.xlu0 %7237
        %v7239 = vsel %vm2331, %v7236, %v7238
        %v7240 = vsel %vm2331, %v7234, %v7236
        %v7241 = vsel %vm2331, %v7232, %v7234
        %v7242 = vsel %vm2331, %v7238, %v7232
        %v7243 = vmul.f32 %v7242, %v2342
        %v7244 = vmul.f32 %v7241, %v2346
        %v7245 = vmul.f32 %v7240, %v2350
        %v7246 = vmul.f32 %v7239, %v2354
        %v7248 = vsel %vm311, %v7230, 0
        %7250 = vmatprep.subr.mxu0 %v7244
        %7251 = vmatpush1.msra.mxu0 %v7243
        %7252 = vmatprep.subr.mxu0 0.0
        %7253 = vmatpush1.msra.mxu0 0.0
        %7254 = vmatprep.subr.mxu0 0.0
        %7255 = vmatpush1.msra.mxu0 0.0
        %7256 = vmatprep.subr.mxu0 0.0
        %7257 = vmatpush1.msra.mxu0 0.0
        %7258 = vmatprep.subr.mxu0 0.0
        %7259 = vmatpush1.msra.mxu0 0.0
        %7260 = vmatprep.subr.mxu0 0.0
        %7261 = vmatpush1.msra.mxu0 0.0
        %7262 = vmatprep.subr.mxu0 0.0
        %7263 = vmatpush1.msra.mxu0 0.0
        %7264 = vmatprep.subr.mxu0 0.0
        %7265 = vmatpush1.msra.mxu0 0.0
        %7266 = vmatprep.subr.mxu0 0.0
        %7267 = vmatpush1.msra.mxu0 0.0
        %7268 = vmatprep.subr.mxu0 0.0
        %7269 = vmatpush1.msra.mxu0 0.0
        %7270 = vmatprep.subr.mxu0 0.0
        %7271 = vmatpush1.msra.mxu0 0.0
        %7272 = vmatprep.subr.mxu0 0.0
        %7273 = vmatpush1.msra.mxu0 0.0
        %7274 = vmatprep.subr.mxu0 0.0
        %7275 = vmatpush1.msra.mxu0 0.0
        %7276 = vmatprep.subr.mxu0 0.0
        %7277 = vmatpush1.msra.mxu0 0.0
        %7278 = vmatprep.subr.mxu0 0.0
        %7279 = vmatpush1.msra.mxu0 0.0
        %7280 = vmatprep.subr.mxu0 0.0
        %7281 = vmatpush1.msra.mxu0 0.0
        %7282 = vmatprep.subr.mxu0 0.0
        %7283 = vmatpush1.msra.mxu0 0.0
        %7284 = vmatprep.subr.mxu0 0.0
        %7285 = vmatpush1.msra.mxu0 0.0
        %7286 = vmatprep.subr.mxu0 0.0
        %7287 = vmatpush1.msra.mxu0 0.0
        %7288 = vmatprep.subr.mxu0 0.0
        %7289 = vmatpush1.msra.mxu0 0.0
        %7290 = vmatprep.subr.mxu0 0.0
        %7291 = vmatpush1.msra.mxu0 0.0
        %7292 = vmatprep.subr.mxu0 0.0
        %7293 = vmatpush1.msra.mxu0 0.0
        %7294 = vmatprep.subr.mxu0 0.0
        %7295 = vmatpush1.msra.mxu0 0.0
        %7296 = vmatprep.subr.mxu0 0.0
        %7297 = vmatpush1.msra.mxu0 0.0
        %7298 = vmatprep.subr.mxu0 0.0
        %7299 = vmatpush1.msra.mxu0 0.0
        %7300 = vmatprep.subr.mxu0 0.0
        %7301 = vmatpush1.msra.mxu0 0.0
        %7302 = vmatprep.subr.mxu0 0.0
        %7303 = vmatpush1.msra.mxu0 0.0
        %7304 = vmatprep.subr.mxu0 0.0
        %7305 = vmatpush1.msra.mxu0 0.0
        %7306 = vmatprep.subr.mxu0 0.0
        %7307 = vmatpush1.msra.mxu0 0.0
        %7308 = vmatprep.subr.mxu0 0.0
        %7309 = vmatpush1.msra.mxu0 0.0
        %7310 = vmatprep.subr.mxu0 0.0
        %7311 = vmatpush1.msra.mxu0 0.0
        %7312 = vmatprep.subr.mxu0 0.0
        %7313 = vmatpush1.msra.mxu0 0.0
        %7314 = vmatprep.mubr.f32.mxu0 0.0
        %7315 = vmatmul.mubr.f32.gmra.mrb[0].mxu0 %v7248
        %v7316 = vpop.f32.mrb[0].mxu0
        %v7317 = vadd.f32 0.0, %v7316
        %v7318 = vpop.f32.mrb[0].mxu0
        %v7319 = vadd.f32 0.0, %v7318
        %7320 = vdwg.mxu0
        %7321 = vmatprep.subr.mxu0 %v7246
        %7322 = vmatpush1.msra.mxu0 %v7245
        %7323 = vmatprep.subr.mxu0 0.0
        %7324 = vmatpush1.msra.mxu0 0.0
        %7325 = vmatprep.subr.mxu0 0.0
        %7326 = vmatpush1.msra.mxu0 0.0
        %7327 = vmatprep.subr.mxu0 0.0
        %7328 = vmatpush1.msra.mxu0 0.0
        %7329 = vmatprep.subr.mxu0 0.0
        %7330 = vmatpush1.msra.mxu0 0.0
        %7331 = vmatprep.subr.mxu0 0.0
        %7332 = vmatpush1.msra.mxu0 0.0
        %7333 = vmatprep.subr.mxu0 0.0
        %7334 = vmatpush1.msra.mxu0 0.0
        %7335 = vmatprep.subr.mxu0 0.0
        %7336 = vmatpush1.msra.mxu0 0.0
        %7337 = vmatprep.subr.mxu0 0.0
        %7338 = vmatpush1.msra.mxu0 0.0
        %7339 = vmatprep.subr.mxu0 0.0
        %7340 = vmatpush1.msra.mxu0 0.0
        %7341 = vmatprep.subr.mxu0 0.0
        %7342 = vmatpush1.msra.mxu0 0.0
        %7343 = vmatprep.subr.mxu0 0.0
        %7344 = vmatpush1.msra.mxu0 0.0
        %7345 = vmatprep.subr.mxu0 0.0
        %7346 = vmatpush1.msra.mxu0 0.0
        %7347 = vmatprep.subr.mxu0 0.0
        %7348 = vmatpush1.msra.mxu0 0.0
        %7349 = vmatprep.subr.mxu0 0.0
        %7350 = vmatpush1.msra.mxu0 0.0
        %7351 = vmatprep.subr.mxu0 0.0
        %7352 = vmatpush1.msra.mxu0 0.0
        %7353 = vmatprep.subr.mxu0 0.0
        %7354 = vmatpush1.msra.mxu0 0.0
        %7355 = vmatprep.subr.mxu0 0.0
        %7356 = vmatpush1.msra.mxu0 0.0
        %7357 = vmatprep.subr.mxu0 0.0
        %7358 = vmatpush1.msra.mxu0 0.0
        %7359 = vmatprep.subr.mxu0 0.0
        %7360 = vmatpush1.msra.mxu0 0.0
        %7361 = vmatprep.subr.mxu0 0.0
        %7362 = vmatpush1.msra.mxu0 0.0
        %7363 = vmatprep.subr.mxu0 0.0
        %7364 = vmatpush1.msra.mxu0 0.0
        %7365 = vmatprep.subr.mxu0 0.0
        %7366 = vmatpush1.msra.mxu0 0.0
        %7367 = vmatprep.subr.mxu0 0.0
        %7368 = vmatpush1.msra.mxu0 0.0
        %7369 = vmatprep.subr.mxu0 0.0
        %7370 = vmatpush1.msra.mxu0 0.0
        %7371 = vmatprep.subr.mxu0 0.0
        %7372 = vmatpush1.msra.mxu0 0.0
        %7373 = vmatprep.subr.mxu0 0.0
        %7374 = vmatpush1.msra.mxu0 0.0
        %7375 = vmatprep.subr.mxu0 0.0
        %7376 = vmatpush1.msra.mxu0 0.0
        %7377 = vmatprep.subr.mxu0 0.0
        %7378 = vmatpush1.msra.mxu0 0.0
        %7379 = vmatprep.subr.mxu0 0.0
        %7380 = vmatpush1.msra.mxu0 0.0
        %7381 = vmatprep.subr.mxu0 0.0
        %7382 = vmatpush1.msra.mxu0 0.0
        %7383 = vmatprep.subr.mxu0 0.0
        %7384 = vmatpush1.msra.mxu0 0.0
        %7385 = vmatprep.mubr.f32.mxu0 0.0
        %7386 = vmatmul.mubr.f32.gmra.mrb[0].mxu0 %v7248
        %v7387 = vpop.f32.mrb[0].mxu0
        %v7388 = vadd.f32 0.0, %v7387
        %v7389 = vpop.f32.mrb[0].mxu0
        %v7390 = vadd.f32 0.0, %v7389
        %7391 = vdwg.mxu0
        %v7392 = vadd.f32 %v7225, %v7317
        %v7393 = vadd.f32 %v7226, %v7319
        %v7394 = vadd.f32 %v7227, %v7388
        %v7395 = vadd.f32 %v7228, %v7390
        %s7396 = scalar_lea.vmem %s2, 96
        %v7397 = vld [vmem:[%s7396] sm:$0xff]
        %7398 = vrot.lane.b32.xlu0 %v5247, 1
        %v7399 = vpop.permute.xlu0 %7398
        %7400 = vrot.lane.b32.xlu0 %v5248, 1
        %v7401 = vpop.permute.xlu0 %7400
        %7402 = vrot.lane.b32.xlu0 %v5249, 1
        %v7403 = vpop.permute.xlu0 %7402
        %7404 = vrot.lane.b32.xlu0 %v5250, 1
        %v7405 = vpop.permute.xlu0 %7404
        %v7406 = vsel %vm2522, %v7403, %v7405
        %v7407 = vsel %vm2522, %v7401, %v7403
        %v7408 = vsel %vm2522, %v7399, %v7401
        %v7409 = vsel %vm2522, %v7405, %v7399
        %v7410 = vmul.f32 %v7409, %v2533
        %v7411 = vmul.f32 %v7408, %v2537
        %v7412 = vmul.f32 %v7407, %v2541
        %v7413 = vmul.f32 %v7406, %v2545
        %v7415 = vsel %vm311, %v7397, 0
        %7417 = vmatprep.subr.mxu0 %v7411
        %7418 = vmatpush1.msra.mxu0 %v7410
        %7419 = vmatprep.subr.mxu0 0.0
        %7420 = vmatpush1.msra.mxu0 0.0
        %7421 = vmatprep.subr.mxu0 0.0
        %7422 = vmatpush1.msra.mxu0 0.0
        %7423 = vmatprep.subr.mxu0 0.0
        %7424 = vmatpush1.msra.mxu0 0.0
        %7425 = vmatprep.subr.mxu0 0.0
        %7426 = vmatpush1.msra.mxu0 0.0
        %7427 = vmatprep.subr.mxu0 0.0
        %7428 = vmatpush1.msra.mxu0 0.0
        %7429 = vmatprep.subr.mxu0 0.0
        %7430 = vmatpush1.msra.mxu0 0.0
        %7431 = vmatprep.subr.mxu0 0.0
        %7432 = vmatpush1.msra.mxu0 0.0
        %7433 = vmatprep.subr.mxu0 0.0
        %7434 = vmatpush1.msra.mxu0 0.0
        %7435 = vmatprep.subr.mxu0 0.0
        %7436 = vmatpush1.msra.mxu0 0.0
        %7437 = vmatprep.subr.mxu0 0.0
        %7438 = vmatpush1.msra.mxu0 0.0
        %7439 = vmatprep.subr.mxu0 0.0
        %7440 = vmatpush1.msra.mxu0 0.0
        %7441 = vmatprep.subr.mxu0 0.0
        %7442 = vmatpush1.msra.mxu0 0.0
        %7443 = vmatprep.subr.mxu0 0.0
        %7444 = vmatpush1.msra.mxu0 0.0
        %7445 = vmatprep.subr.mxu0 0.0
        %7446 = vmatpush1.msra.mxu0 0.0
        %7447 = vmatprep.subr.mxu0 0.0
        %7448 = vmatpush1.msra.mxu0 0.0
        %7449 = vmatprep.subr.mxu0 0.0
        %7450 = vmatpush1.msra.mxu0 0.0
        %7451 = vmatprep.subr.mxu0 0.0
        %7452 = vmatpush1.msra.mxu0 0.0
        %7453 = vmatprep.subr.mxu0 0.0
        %7454 = vmatpush1.msra.mxu0 0.0
        %7455 = vmatprep.subr.mxu0 0.0
        %7456 = vmatpush1.msra.mxu0 0.0
        %7457 = vmatprep.subr.mxu0 0.0
        %7458 = vmatpush1.msra.mxu0 0.0
        %7459 = vmatprep.subr.mxu0 0.0
        %7460 = vmatpush1.msra.mxu0 0.0
        %7461 = vmatprep.subr.mxu0 0.0
        %7462 = vmatpush1.msra.mxu0 0.0
        %7463 = vmatprep.subr.mxu0 0.0
        %7464 = vmatpush1.msra.mxu0 0.0
        %7465 = vmatprep.subr.mxu0 0.0
        %7466 = vmatpush1.msra.mxu0 0.0
        %7467 = vmatprep.subr.mxu0 0.0
        %7468 = vmatpush1.msra.mxu0 0.0
        %7469 = vmatprep.subr.mxu0 0.0
        %7470 = vmatpush1.msra.mxu0 0.0
        %7471 = vmatprep.subr.mxu0 0.0
        %7472 = vmatpush1.msra.mxu0 0.0
        %7473 = vmatprep.subr.mxu0 0.0
        %7474 = vmatpush1.msra.mxu0 0.0
        %7475 = vmatprep.subr.mxu0 0.0
        %7476 = vmatpush1.msra.mxu0 0.0
        %7477 = vmatprep.subr.mxu0 0.0
        %7478 = vmatpush1.msra.mxu0 0.0
        %7479 = vmatprep.subr.mxu0 0.0
        %7480 = vmatpush1.msra.mxu0 0.0
        %7481 = vmatprep.mubr.f32.mxu0 0.0
        %7482 = vmatmul.mubr.f32.gmra.mrb[0].mxu0 %v7415
        %v7483 = vpop.f32.mrb[0].mxu0
        %v7484 = vadd.f32 0.0, %v7483
        %v7485 = vpop.f32.mrb[0].mxu0
        %v7486 = vadd.f32 0.0, %v7485
        %7487 = vdwg.mxu0
        %7488 = vmatprep.subr.mxu0 %v7413
        %7489 = vmatpush1.msra.mxu0 %v7412
        %7490 = vmatprep.subr.mxu0 0.0
        %7491 = vmatpush1.msra.mxu0 0.0
        %7492 = vmatprep.subr.mxu0 0.0
        %7493 = vmatpush1.msra.mxu0 0.0
        %7494 = vmatprep.subr.mxu0 0.0
        %7495 = vmatpush1.msra.mxu0 0.0
        %7496 = vmatprep.subr.mxu0 0.0
        %7497 = vmatpush1.msra.mxu0 0.0
        %7498 = vmatprep.subr.mxu0 0.0
        %7499 = vmatpush1.msra.mxu0 0.0
        %7500 = vmatprep.subr.mxu0 0.0
        %7501 = vmatpush1.msra.mxu0 0.0
        %7502 = vmatprep.subr.mxu0 0.0
        %7503 = vmatpush1.msra.mxu0 0.0
        %7504 = vmatprep.subr.mxu0 0.0
        %7505 = vmatpush1.msra.mxu0 0.0
        %7506 = vmatprep.subr.mxu0 0.0
        %7507 = vmatpush1.msra.mxu0 0.0
        %7508 = vmatprep.subr.mxu0 0.0
        %7509 = vmatpush1.msra.mxu0 0.0
        %7510 = vmatprep.subr.mxu0 0.0
        %7511 = vmatpush1.msra.mxu0 0.0
        %7512 = vmatprep.subr.mxu0 0.0
        %7513 = vmatpush1.msra.mxu0 0.0
        %7514 = vmatprep.subr.mxu0 0.0
        %7515 = vmatpush1.msra.mxu0 0.0
        %7516 = vmatprep.subr.mxu0 0.0
        %7517 = vmatpush1.msra.mxu0 0.0
        %7518 = vmatprep.subr.mxu0 0.0
        %7519 = vmatpush1.msra.mxu0 0.0
        %7520 = vmatprep.subr.mxu0 0.0
        %7521 = vmatpush1.msra.mxu0 0.0
        %7522 = vmatprep.subr.mxu0 0.0
        %7523 = vmatpush1.msra.mxu0 0.0
        %7524 = vmatprep.subr.mxu0 0.0
        %7525 = vmatpush1.msra.mxu0 0.0
        %7526 = vmatprep.subr.mxu0 0.0
        %7527 = vmatpush1.msra.mxu0 0.0
        %7528 = vmatprep.subr.mxu0 0.0
        %7529 = vmatpush1.msra.mxu0 0.0
        %7530 = vmatprep.subr.mxu0 0.0
        %7531 = vmatpush1.msra.mxu0 0.0
        %7532 = vmatprep.subr.mxu0 0.0
        %7533 = vmatpush1.msra.mxu0 0.0
        %7534 = vmatprep.subr.mxu0 0.0
        %7535 = vmatpush1.msra.mxu0 0.0
        %7536 = vmatprep.subr.mxu0 0.0
        %7537 = vmatpush1.msra.mxu0 0.0
        %7538 = vmatprep.subr.mxu0 0.0
        %7539 = vmatpush1.msra.mxu0 0.0
        %7540 = vmatprep.subr.mxu0 0.0
        %7541 = vmatpush1.msra.mxu0 0.0
        %7542 = vmatprep.subr.mxu0 0.0
        %7543 = vmatpush1.msra.mxu0 0.0
        %7544 = vmatprep.subr.mxu0 0.0
        %7545 = vmatpush1.msra.mxu0 0.0
        %7546 = vmatprep.subr.mxu0 0.0
        %7547 = vmatpush1.msra.mxu0 0.0
        %7548 = vmatprep.subr.mxu0 0.0
        %7549 = vmatpush1.msra.mxu0 0.0
        %7550 = vmatprep.subr.mxu0 0.0
        %7551 = vmatpush1.msra.mxu0 0.0
        %7552 = vmatprep.mubr.f32.mxu0 0.0
        %7553 = vmatmul.mubr.f32.gmra.mrb[0].mxu0 %v7415
        %v7554 = vpop.f32.mrb[0].mxu0
        %v7555 = vadd.f32 0.0, %v7554
        %v7556 = vpop.f32.mrb[0].mxu0
        %v7557 = vadd.f32 0.0, %v7556
        %7558 = vdwg.mxu0
        %v7559 = vadd.f32 %v7392, %v7484
        %v7560 = vadd.f32 %v7393, %v7486
        %v7561 = vadd.f32 %v7394, %v7555
        %v7562 = vadd.f32 %v7395, %v7557
        %s7563 = scalar_lea.vmem %s2, 104
        %v7564 = vld [vmem:[%s7563] sm:$0xff]
        %v7565 = vmul.f32 %v5247, %v2711
        %v7566 = vmul.f32 %v5248, %v2715
        %v7567 = vmul.f32 %v5249, %v2719
        %v7568 = vmul.f32 %v5250, %v2723
        %v7570 = vsel %vm311, %v7564, 0
        %7572 = vmatprep.subr.mxu0 %v7566
        %7573 = vmatpush1.msra.mxu0 %v7565
        %7574 = vmatprep.subr.mxu0 0.0
        %7575 = vmatpush1.msra.mxu0 0.0
        %7576 = vmatprep.subr.mxu0 0.0
        %7577 = vmatpush1.msra.mxu0 0.0
        %7578 = vmatprep.subr.mxu0 0.0
        %7579 = vmatpush1.msra.mxu0 0.0
        %7580 = vmatprep.subr.mxu0 0.0
        %7581 = vmatpush1.msra.mxu0 0.0
        %7582 = vmatprep.subr.mxu0 0.0
        %7583 = vmatpush1.msra.mxu0 0.0
        %7584 = vmatprep.subr.mxu0 0.0
        %7585 = vmatpush1.msra.mxu0 0.0
        %7586 = vmatprep.subr.mxu0 0.0
        %7587 = vmatpush1.msra.mxu0 0.0
        %7588 = vmatprep.subr.mxu0 0.0
        %7589 = vmatpush1.msra.mxu0 0.0
        %7590 = vmatprep.subr.mxu0 0.0
        %7591 = vmatpush1.msra.mxu0 0.0
        %7592 = vmatprep.subr.mxu0 0.0
        %7593 = vmatpush1.msra.mxu0 0.0
        %7594 = vmatprep.subr.mxu0 0.0
        %7595 = vmatpush1.msra.mxu0 0.0
        %7596 = vmatprep.subr.mxu0 0.0
        %7597 = vmatpush1.msra.mxu0 0.0
        %7598 = vmatprep.subr.mxu0 0.0
        %7599 = vmatpush1.msra.mxu0 0.0
        %7600 = vmatprep.subr.mxu0 0.0
        %7601 = vmatpush1.msra.mxu0 0.0
        %7602 = vmatprep.subr.mxu0 0.0
        %7603 = vmatpush1.msra.mxu0 0.0
        %7604 = vmatprep.subr.mxu0 0.0
        %7605 = vmatpush1.msra.mxu0 0.0
        %7606 = vmatprep.subr.mxu0 0.0
        %7607 = vmatpush1.msra.mxu0 0.0
        %7608 = vmatprep.subr.mxu0 0.0
        %7609 = vmatpush1.msra.mxu0 0.0
        %7610 = vmatprep.subr.mxu0 0.0
        %7611 = vmatpush1.msra.mxu0 0.0
        %7612 = vmatprep.subr.mxu0 0.0
        %7613 = vmatpush1.msra.mxu0 0.0
        %7614 = vmatprep.subr.mxu0 0.0
        %7615 = vmatpush1.msra.mxu0 0.0
        %7616 = vmatprep.subr.mxu0 0.0
        %7617 = vmatpush1.msra.mxu0 0.0
        %7618 = vmatprep.subr.mxu0 0.0
        %7619 = vmatpush1.msra.mxu0 0.0
        %7620 = vmatprep.subr.mxu0 0.0
        %7621 = vmatpush1.msra.mxu0 0.0
        %7622 = vmatprep.subr.mxu0 0.0
        %7623 = vmatpush1.msra.mxu0 0.0
        %7624 = vmatprep.subr.mxu0 0.0
        %7625 = vmatpush1.msra.mxu0 0.0
        %7626 = vmatprep.subr.mxu0 0.0
        %7627 = vmatpush1.msra.mxu0 0.0
        %7628 = vmatprep.subr.mxu0 0.0
        %7629 = vmatpush1.msra.mxu0 0.0
        %7630 = vmatprep.subr.mxu0 0.0
        %7631 = vmatpush1.msra.mxu0 0.0
        %7632 = vmatprep.subr.mxu0 0.0
        %7633 = vmatpush1.msra.mxu0 0.0
        %7634 = vmatprep.subr.mxu0 0.0
        %7635 = vmatpush1.msra.mxu0 0.0
        %7636 = vmatprep.mubr.f32.mxu0 0.0
        %7637 = vmatmul.mubr.f32.gmra.mrb[0].mxu0 %v7570
        %v7638 = vpop.f32.mrb[0].mxu0
        %v7639 = vadd.f32 0.0, %v7638
        %v7640 = vpop.f32.mrb[0].mxu0
        %v7641 = vadd.f32 0.0, %v7640
        %7642 = vdwg.mxu0
        %7643 = vmatprep.subr.mxu0 %v7568
        %7644 = vmatpush1.msra.mxu0 %v7567
        %7645 = vmatprep.subr.mxu0 0.0
        %7646 = vmatpush1.msra.mxu0 0.0
        %7647 = vmatprep.subr.mxu0 0.0
        %7648 = vmatpush1.msra.mxu0 0.0
        %7649 = vmatprep.subr.mxu0 0.0
        %7650 = vmatpush1.msra.mxu0 0.0
        %7651 = vmatprep.subr.mxu0 0.0
        %7652 = vmatpush1.msra.mxu0 0.0
        %7653 = vmatprep.subr.mxu0 0.0
        %7654 = vmatpush1.msra.mxu0 0.0
        %7655 = vmatprep.subr.mxu0 0.0
        %7656 = vmatpush1.msra.mxu0 0.0
        %7657 = vmatprep.subr.mxu0 0.0
        %7658 = vmatpush1.msra.mxu0 0.0
        %7659 = vmatprep.subr.mxu0 0.0
        %7660 = vmatpush1.msra.mxu0 0.0
        %7661 = vmatprep.subr.mxu0 0.0
        %7662 = vmatpush1.msra.mxu0 0.0
        %7663 = vmatprep.subr.mxu0 0.0
        %7664 = vmatpush1.msra.mxu0 0.0
        %7665 = vmatprep.subr.mxu0 0.0
        %7666 = vmatpush1.msra.mxu0 0.0
        %7667 = vmatprep.subr.mxu0 0.0
        %7668 = vmatpush1.msra.mxu0 0.0
        %7669 = vmatprep.subr.mxu0 0.0
        %7670 = vmatpush1.msra.mxu0 0.0
        %7671 = vmatprep.subr.mxu0 0.0
        %7672 = vmatpush1.msra.mxu0 0.0
        %7673 = vmatprep.subr.mxu0 0.0
        %7674 = vmatpush1.msra.mxu0 0.0
        %7675 = vmatprep.subr.mxu0 0.0
        %7676 = vmatpush1.msra.mxu0 0.0
        %7677 = vmatprep.subr.mxu0 0.0
        %7678 = vmatpush1.msra.mxu0 0.0
        %7679 = vmatprep.subr.mxu0 0.0
        %7680 = vmatpush1.msra.mxu0 0.0
        %7681 = vmatprep.subr.mxu0 0.0
        %7682 = vmatpush1.msra.mxu0 0.0
        %7683 = vmatprep.subr.mxu0 0.0
        %7684 = vmatpush1.msra.mxu0 0.0
        %7685 = vmatprep.subr.mxu0 0.0
        %7686 = vmatpush1.msra.mxu0 0.0
        %7687 = vmatprep.subr.mxu0 0.0
        %7688 = vmatpush1.msra.mxu0 0.0
        %7689 = vmatprep.subr.mxu0 0.0
        %7690 = vmatpush1.msra.mxu0 0.0
        %7691 = vmatprep.subr.mxu0 0.0
        %7692 = vmatpush1.msra.mxu0 0.0
        %7693 = vmatprep.subr.mxu0 0.0
        %7694 = vmatpush1.msra.mxu0 0.0
        %7695 = vmatprep.subr.mxu0 0.0
        %7696 = vmatpush1.msra.mxu0 0.0
        %7697 = vmatprep.subr.mxu0 0.0
        %7698 = vmatpush1.msra.mxu0 0.0
        %7699 = vmatprep.subr.mxu0 0.0
        %7700 = vmatpush1.msra.mxu0 0.0
        %7701 = vmatprep.subr.mxu0 0.0
        %7702 = vmatpush1.msra.mxu0 0.0
        %7703 = vmatprep.subr.mxu0 0.0
        %7704 = vmatpush1.msra.mxu0 0.0
        %7705 = vmatprep.subr.mxu0 0.0
        %7706 = vmatpush1.msra.mxu0 0.0
        %7707 = vmatprep.mubr.f32.mxu0 0.0
        %7708 = vmatmul.mubr.f32.gmra.mrb[0].mxu0 %v7570
        %v7709 = vpop.f32.mrb[0].mxu0
        %v7710 = vadd.f32 0.0, %v7709
        %v7711 = vpop.f32.mrb[0].mxu0
        %v7712 = vadd.f32 0.0, %v7711
        %7713 = vdwg.mxu0
        %v7714 = vadd.f32 %v7559, %v7639
        %v7715 = vadd.f32 %v7560, %v7641
        %v7716 = vadd.f32 %v7561, %v7710
        %v7717 = vadd.f32 %v7562, %v7712
        %s7718 = scalar_lea.vmem %s2, 112
        %v7719 = vld [vmem:[%s7718] sm:$0xff]
        %7720 = vrot.lane.b32.xlu0 %v5247, 127
        %v7721 = vpop.permute.xlu0 %7720
        %7722 = vrot.lane.b32.xlu0 %v5248, 127
        %v7723 = vpop.permute.xlu0 %7722
        %7724 = vrot.lane.b32.xlu0 %v5249, 127
        %v7725 = vpop.permute.xlu0 %7724
        %7726 = vrot.lane.b32.xlu0 %v5250, 127
        %v7727 = vpop.permute.xlu0 %7726
        %v7728 = vsel %vm2891, %v7725, %v7727
        %v7729 = vsel %vm2891, %v7723, %v7725
        %v7730 = vsel %vm2891, %v7721, %v7723
        %v7731 = vsel %vm2891, %v7727, %v7721
        %v7732 = vmul.f32 %v7730, %v2902
        %v7733 = vmul.f32 %v7729, %v2906
        %v7734 = vmul.f32 %v7728, %v2910
        %v7735 = vmul.f32 %v7731, %v2914
        %v7737 = vsel %vm311, %v7719, 0
        %7739 = vmatprep.subr.mxu0 %v7733
        %7740 = vmatpush1.msra.mxu0 %v7732
        %7741 = vmatprep.subr.mxu0 0.0
        %7742 = vmatpush1.msra.mxu0 0.0
        %7743 = vmatprep.subr.mxu0 0.0
        %7744 = vmatpush1.msra.mxu0 0.0
        %7745 = vmatprep.subr.mxu0 0.0
        %7746 = vmatpush1.msra.mxu0 0.0
        %7747 = vmatprep.subr.mxu0 0.0
        %7748 = vmatpush1.msra.mxu0 0.0
        %7749 = vmatprep.subr.mxu0 0.0
        %7750 = vmatpush1.msra.mxu0 0.0
        %7751 = vmatprep.subr.mxu0 0.0
        %7752 = vmatpush1.msra.mxu0 0.0
        %7753 = vmatprep.subr.mxu0 0.0
        %7754 = vmatpush1.msra.mxu0 0.0
        %7755 = vmatprep.subr.mxu0 0.0
        %7756 = vmatpush1.msra.mxu0 0.0
        %7757 = vmatprep.subr.mxu0 0.0
        %7758 = vmatpush1.msra.mxu0 0.0
        %7759 = vmatprep.subr.mxu0 0.0
        %7760 = vmatpush1.msra.mxu0 0.0
        %7761 = vmatprep.subr.mxu0 0.0
        %7762 = vmatpush1.msra.mxu0 0.0
        %7763 = vmatprep.subr.mxu0 0.0
        %7764 = vmatpush1.msra.mxu0 0.0
        %7765 = vmatprep.subr.mxu0 0.0
        %7766 = vmatpush1.msra.mxu0 0.0
        %7767 = vmatprep.subr.mxu0 0.0
        %7768 = vmatpush1.msra.mxu0 0.0
        %7769 = vmatprep.subr.mxu0 0.0
        %7770 = vmatpush1.msra.mxu0 0.0
        %7771 = vmatprep.subr.mxu0 0.0
        %7772 = vmatpush1.msra.mxu0 0.0
        %7773 = vmatprep.subr.mxu0 0.0
        %7774 = vmatpush1.msra.mxu0 0.0
        %7775 = vmatprep.subr.mxu0 0.0
        %7776 = vmatpush1.msra.mxu0 0.0
        %7777 = vmatprep.subr.mxu0 0.0
        %7778 = vmatpush1.msra.mxu0 0.0
        %7779 = vmatprep.subr.mxu0 0.0
        %7780 = vmatpush1.msra.mxu0 0.0
        %7781 = vmatprep.subr.mxu0 0.0
        %7782 = vmatpush1.msra.mxu0 0.0
        %7783 = vmatprep.subr.mxu0 0.0
        %7784 = vmatpush1.msra.mxu0 0.0
        %7785 = vmatprep.subr.mxu0 0.0
        %7786 = vmatpush1.msra.mxu0 0.0
        %7787 = vmatprep.subr.mxu0 0.0
        %7788 = vmatpush1.msra.mxu0 0.0
        %7789 = vmatprep.subr.mxu0 0.0
        %7790 = vmatpush1.msra.mxu0 0.0
        %7791 = vmatprep.subr.mxu0 0.0
        %7792 = vmatpush1.msra.mxu0 0.0
        %7793 = vmatprep.subr.mxu0 0.0
        %7794 = vmatpush1.msra.mxu0 0.0
        %7795 = vmatprep.subr.mxu0 0.0
        %7796 = vmatpush1.msra.mxu0 0.0
        %7797 = vmatprep.subr.mxu0 0.0
        %7798 = vmatpush1.msra.mxu0 0.0
        %7799 = vmatprep.subr.mxu0 0.0
        %7800 = vmatpush1.msra.mxu0 0.0
        %7801 = vmatprep.subr.mxu0 0.0
        %7802 = vmatpush1.msra.mxu0 0.0
        %7803 = vmatprep.mubr.f32.mxu0 0.0
        %7804 = vmatmul.mubr.f32.gmra.mrb[0].mxu0 %v7737
        %v7805 = vpop.f32.mrb[0].mxu0
        %v7806 = vadd.f32 0.0, %v7805
        %v7807 = vpop.f32.mrb[0].mxu0
        %v7808 = vadd.f32 0.0, %v7807
        %7809 = vdwg.mxu0
        %7810 = vmatprep.subr.mxu0 %v7735
        %7811 = vmatpush1.msra.mxu0 %v7734
        %7812 = vmatprep.subr.mxu0 0.0
        %7813 = vmatpush1.msra.mxu0 0.0
        %7814 = vmatprep.subr.mxu0 0.0
        %7815 = vmatpush1.msra.mxu0 0.0
        %7816 = vmatprep.subr.mxu0 0.0
        %7817 = vmatpush1.msra.mxu0 0.0
        %7818 = vmatprep.subr.mxu0 0.0
        %7819 = vmatpush1.msra.mxu0 0.0
        %7820 = vmatprep.subr.mxu0 0.0
        %7821 = vmatpush1.msra.mxu0 0.0
        %7822 = vmatprep.subr.mxu0 0.0
        %7823 = vmatpush1.msra.mxu0 0.0
        %7824 = vmatprep.subr.mxu0 0.0
        %7825 = vmatpush1.msra.mxu0 0.0
        %7826 = vmatprep.subr.mxu0 0.0
        %7827 = vmatpush1.msra.mxu0 0.0
        %7828 = vmatprep.subr.mxu0 0.0
        %7829 = vmatpush1.msra.mxu0 0.0
        %7830 = vmatprep.subr.mxu0 0.0
        %7831 = vmatpush1.msra.mxu0 0.0
        %7832 = vmatprep.subr.mxu0 0.0
        %7833 = vmatpush1.msra.mxu0 0.0
        %7834 = vmatprep.subr.mxu0 0.0
        %7835 = vmatpush1.msra.mxu0 0.0
        %7836 = vmatprep.subr.mxu0 0.0
        %7837 = vmatpush1.msra.mxu0 0.0
        %7838 = vmatprep.subr.mxu0 0.0
        %7839 = vmatpush1.msra.mxu0 0.0
        %7840 = vmatprep.subr.mxu0 0.0
        %7841 = vmatpush1.msra.mxu0 0.0
        %7842 = vmatprep.subr.mxu0 0.0
        %7843 = vmatpush1.msra.mxu0 0.0
        %7844 = vmatprep.subr.mxu0 0.0
        %7845 = vmatpush1.msra.mxu0 0.0
        %7846 = vmatprep.subr.mxu0 0.0
        %7847 = vmatpush1.msra.mxu0 0.0
        %7848 = vmatprep.subr.mxu0 0.0
        %7849 = vmatpush1.msra.mxu0 0.0
        %7850 = vmatprep.subr.mxu0 0.0
        %7851 = vmatpush1.msra.mxu0 0.0
        %7852 = vmatprep.subr.mxu0 0.0
        %7853 = vmatpush1.msra.mxu0 0.0
        %7854 = vmatprep.subr.mxu0 0.0
        %7855 = vmatpush1.msra.mxu0 0.0
        %7856 = vmatprep.subr.mxu0 0.0
        %7857 = vmatpush1.msra.mxu0 0.0
        %7858 = vmatprep.subr.mxu0 0.0
        %7859 = vmatpush1.msra.mxu0 0.0
        %7860 = vmatprep.subr.mxu0 0.0
        %7861 = vmatpush1.msra.mxu0 0.0
        %7862 = vmatprep.subr.mxu0 0.0
        %7863 = vmatpush1.msra.mxu0 0.0
        %7864 = vmatprep.subr.mxu0 0.0
        %7865 = vmatpush1.msra.mxu0 0.0
        %7866 = vmatprep.subr.mxu0 0.0
        %7867 = vmatpush1.msra.mxu0 0.0
        %7868 = vmatprep.subr.mxu0 0.0
        %7869 = vmatpush1.msra.mxu0 0.0
        %7870 = vmatprep.subr.mxu0 0.0
        %7871 = vmatpush1.msra.mxu0 0.0
        %7872 = vmatprep.subr.mxu0 0.0
        %7873 = vmatpush1.msra.mxu0 0.0
        %7874 = vmatprep.mubr.f32.mxu0 0.0
        %7875 = vmatmul.mubr.f32.gmra.mrb[0].mxu0 %v7737
        %v7876 = vpop.f32.mrb[0].mxu0
        %v7877 = vadd.f32 0.0, %v7876
        %v7878 = vpop.f32.mrb[0].mxu0
        %v7879 = vadd.f32 0.0, %v7878
        %7880 = vdwg.mxu0
        %v7881 = vadd.f32 %v7714, %v7806
        %v7882 = vadd.f32 %v7715, %v7808
        %v7883 = vadd.f32 %v7716, %v7877
        %v7884 = vadd.f32 %v7717, %v7879
        %s7885 = scalar_lea.vmem %s2, 120
        %v7886 = vld [vmem:[%s7885] sm:$0xff]
        %7887 = vrot.lane.b32.xlu0 %v5247, 121
        %v7888 = vpop.permute.xlu0 %7887
        %7889 = vrot.lane.b32.xlu0 %v5248, 121
        %v7890 = vpop.permute.xlu0 %7889
        %7891 = vrot.lane.b32.xlu0 %v5249, 121
        %v7892 = vpop.permute.xlu0 %7891
        %7893 = vrot.lane.b32.xlu0 %v5250, 121
        %v7894 = vpop.permute.xlu0 %7893
        %v7895 = vsel %vm3082, %v7892, %v7894
        %v7896 = vsel %vm3082, %v7890, %v7892
        %v7897 = vsel %vm3082, %v7888, %v7890
        %v7898 = vsel %vm3082, %v7894, %v7888
        %v7899 = vmul.f32 %v7897, %v3093
        %v7900 = vmul.f32 %v7896, %v3097
        %v7901 = vmul.f32 %v7895, %v3101
        %v7902 = vmul.f32 %v7898, %v3105
        %v7904 = vsel %vm311, %v7886, 0
        %7906 = vmatprep.subr.mxu0 %v7900
        %7907 = vmatpush1.msra.mxu0 %v7899
        %7908 = vmatprep.subr.mxu0 0.0
        %7909 = vmatpush1.msra.mxu0 0.0
        %7910 = vmatprep.subr.mxu0 0.0
        %7911 = vmatpush1.msra.mxu0 0.0
        %7912 = vmatprep.subr.mxu0 0.0
        %7913 = vmatpush1.msra.mxu0 0.0
        %7914 = vmatprep.subr.mxu0 0.0
        %7915 = vmatpush1.msra.mxu0 0.0
        %7916 = vmatprep.subr.mxu0 0.0
        %7917 = vmatpush1.msra.mxu0 0.0
        %7918 = vmatprep.subr.mxu0 0.0
        %7919 = vmatpush1.msra.mxu0 0.0
        %7920 = vmatprep.subr.mxu0 0.0
        %7921 = vmatpush1.msra.mxu0 0.0
        %7922 = vmatprep.subr.mxu0 0.0
        %7923 = vmatpush1.msra.mxu0 0.0
        %7924 = vmatprep.subr.mxu0 0.0
        %7925 = vmatpush1.msra.mxu0 0.0
        %7926 = vmatprep.subr.mxu0 0.0
        %7927 = vmatpush1.msra.mxu0 0.0
        %7928 = vmatprep.subr.mxu0 0.0
        %7929 = vmatpush1.msra.mxu0 0.0
        %7930 = vmatprep.subr.mxu0 0.0
        %7931 = vmatpush1.msra.mxu0 0.0
        %7932 = vmatprep.subr.mxu0 0.0
        %7933 = vmatpush1.msra.mxu0 0.0
        %7934 = vmatprep.subr.mxu0 0.0
        %7935 = vmatpush1.msra.mxu0 0.0
        %7936 = vmatprep.subr.mxu0 0.0
        %7937 = vmatpush1.msra.mxu0 0.0
        %7938 = vmatprep.subr.mxu0 0.0
        %7939 = vmatpush1.msra.mxu0 0.0
        %7940 = vmatprep.subr.mxu0 0.0
        %7941 = vmatpush1.msra.mxu0 0.0
        %7942 = vmatprep.subr.mxu0 0.0
        %7943 = vmatpush1.msra.mxu0 0.0
        %7944 = vmatprep.subr.mxu0 0.0
        %7945 = vmatpush1.msra.mxu0 0.0
        %7946 = vmatprep.subr.mxu0 0.0
        %7947 = vmatpush1.msra.mxu0 0.0
        %7948 = vmatprep.subr.mxu0 0.0
        %7949 = vmatpush1.msra.mxu0 0.0
        %7950 = vmatprep.subr.mxu0 0.0
        %7951 = vmatpush1.msra.mxu0 0.0
        %7952 = vmatprep.subr.mxu0 0.0
        %7953 = vmatpush1.msra.mxu0 0.0
        %7954 = vmatprep.subr.mxu0 0.0
        %7955 = vmatpush1.msra.mxu0 0.0
        %7956 = vmatprep.subr.mxu0 0.0
        %7957 = vmatpush1.msra.mxu0 0.0
        %7958 = vmatprep.subr.mxu0 0.0
        %7959 = vmatpush1.msra.mxu0 0.0
        %7960 = vmatprep.subr.mxu0 0.0
        %7961 = vmatpush1.msra.mxu0 0.0
        %7962 = vmatprep.subr.mxu0 0.0
        %7963 = vmatpush1.msra.mxu0 0.0
        %7964 = vmatprep.subr.mxu0 0.0
        %7965 = vmatpush1.msra.mxu0 0.0
        %7966 = vmatprep.subr.mxu0 0.0
        %7967 = vmatpush1.msra.mxu0 0.0
        %7968 = vmatprep.subr.mxu0 0.0
        %7969 = vmatpush1.msra.mxu0 0.0
        %7970 = vmatprep.mubr.f32.mxu0 0.0
        %7971 = vmatmul.mubr.f32.gmra.mrb[0].mxu0 %v7904
        %v7972 = vpop.f32.mrb[0].mxu0
        %v7973 = vadd.f32 0.0, %v7972
        %v7974 = vpop.f32.mrb[0].mxu0
        %v7975 = vadd.f32 0.0, %v7974
        %7976 = vdwg.mxu0
        %7977 = vmatprep.subr.mxu0 %v7902
        %7978 = vmatpush1.msra.mxu0 %v7901
        %7979 = vmatprep.subr.mxu0 0.0
        %7980 = vmatpush1.msra.mxu0 0.0
        %7981 = vmatprep.subr.mxu0 0.0
        %7982 = vmatpush1.msra.mxu0 0.0
        %7983 = vmatprep.subr.mxu0 0.0
        %7984 = vmatpush1.msra.mxu0 0.0
        %7985 = vmatprep.subr.mxu0 0.0
        %7986 = vmatpush1.msra.mxu0 0.0
        %7987 = vmatprep.subr.mxu0 0.0
        %7988 = vmatpush1.msra.mxu0 0.0
        %7989 = vmatprep.subr.mxu0 0.0
        %7990 = vmatpush1.msra.mxu0 0.0
        %7991 = vmatprep.subr.mxu0 0.0
        %7992 = vmatpush1.msra.mxu0 0.0
        %7993 = vmatprep.subr.mxu0 0.0
        %7994 = vmatpush1.msra.mxu0 0.0
        %7995 = vmatprep.subr.mxu0 0.0
        %7996 = vmatpush1.msra.mxu0 0.0
        %7997 = vmatprep.subr.mxu0 0.0
        %7998 = vmatpush1.msra.mxu0 0.0
        %7999 = vmatprep.subr.mxu0 0.0
        %8000 = vmatpush1.msra.mxu0 0.0
        %8001 = vmatprep.subr.mxu0 0.0
        %8002 = vmatpush1.msra.mxu0 0.0
        %8003 = vmatprep.subr.mxu0 0.0
        %8004 = vmatpush1.msra.mxu0 0.0
        %8005 = vmatprep.subr.mxu0 0.0
        %8006 = vmatpush1.msra.mxu0 0.0
        %8007 = vmatprep.subr.mxu0 0.0
        %8008 = vmatpush1.msra.mxu0 0.0
        %8009 = vmatprep.subr.mxu0 0.0
        %8010 = vmatpush1.msra.mxu0 0.0
        %8011 = vmatprep.subr.mxu0 0.0
        %8012 = vmatpush1.msra.mxu0 0.0
        %8013 = vmatprep.subr.mxu0 0.0
        %8014 = vmatpush1.msra.mxu0 0.0
        %8015 = vmatprep.subr.mxu0 0.0
        %8016 = vmatpush1.msra.mxu0 0.0
        %8017 = vmatprep.subr.mxu0 0.0
        %8018 = vmatpush1.msra.mxu0 0.0
        %8019 = vmatprep.subr.mxu0 0.0
        %8020 = vmatpush1.msra.mxu0 0.0
        %8021 = vmatprep.subr.mxu0 0.0
        %8022 = vmatpush1.msra.mxu0 0.0
        %8023 = vmatprep.subr.mxu0 0.0
        %8024 = vmatpush1.msra.mxu0 0.0
        %8025 = vmatprep.subr.mxu0 0.0
        %8026 = vmatpush1.msra.mxu0 0.0
        %8027 = vmatprep.subr.mxu0 0.0
        %8028 = vmatpush1.msra.mxu0 0.0
        %8029 = vmatprep.subr.mxu0 0.0
        %8030 = vmatpush1.msra.mxu0 0.0
        %8031 = vmatprep.subr.mxu0 0.0
        %8032 = vmatpush1.msra.mxu0 0.0
        %8033 = vmatprep.subr.mxu0 0.0
        %8034 = vmatpush1.msra.mxu0 0.0
        %8035 = vmatprep.subr.mxu0 0.0
        %8036 = vmatpush1.msra.mxu0 0.0
        %8037 = vmatprep.subr.mxu0 0.0
        %8038 = vmatpush1.msra.mxu0 0.0
        %8039 = vmatprep.subr.mxu0 0.0
        %8040 = vmatpush1.msra.mxu0 0.0
        %8041 = vmatprep.mubr.f32.mxu0 0.0
        %8042 = vmatmul.mubr.f32.gmra.mrb[0].mxu0 %v7904
        %v8043 = vpop.f32.mrb[0].mxu0
        %v8044 = vadd.f32 0.0, %v8043
        %v8045 = vpop.f32.mrb[0].mxu0
        %v8046 = vadd.f32 0.0, %v8045
        %8047 = vdwg.mxu0
        %v8048 = vadd.f32 %v7881, %v7973
        %v8049 = vadd.f32 %v7882, %v7975
        %v8050 = vadd.f32 %v7883, %v8044
        %v8051 = vadd.f32 %v7884, %v8046
        %s8052 = scalar_lea.vmem %s2, 128
        %v8053 = vld [vmem:[%s8052] sm:$0xff]
        %8054 = vrot.lane.b32.xlu0 %v5247, 120
        %v8055 = vpop.permute.xlu0 %8054
        %8056 = vrot.lane.b32.xlu0 %v5248, 120
        %v8057 = vpop.permute.xlu0 %8056
        %8058 = vrot.lane.b32.xlu0 %v5249, 120
        %v8059 = vpop.permute.xlu0 %8058
        %8060 = vrot.lane.b32.xlu0 %v5250, 120
        %v8061 = vpop.permute.xlu0 %8060
        %v8062 = vsel %vm3273, %v8059, %v8061
        %v8063 = vsel %vm3273, %v8057, %v8059
        %v8064 = vsel %vm3273, %v8055, %v8057
        %v8065 = vsel %vm3273, %v8061, %v8055
        %v8066 = vmul.f32 %v8064, %v3284
        %v8067 = vmul.f32 %v8063, %v3288
        %v8068 = vmul.f32 %v8062, %v3292
        %v8069 = vmul.f32 %v8065, %v3296
        %v8071 = vsel %vm311, %v8053, 0
        %8073 = vmatprep.subr.mxu0 %v8067
        %8074 = vmatpush1.msra.mxu0 %v8066
        %8075 = vmatprep.subr.mxu0 0.0
        %8076 = vmatpush1.msra.mxu0 0.0
        %8077 = vmatprep.subr.mxu0 0.0
        %8078 = vmatpush1.msra.mxu0 0.0
        %8079 = vmatprep.subr.mxu0 0.0
        %8080 = vmatpush1.msra.mxu0 0.0
        %8081 = vmatprep.subr.mxu0 0.0
        %8082 = vmatpush1.msra.mxu0 0.0
        %8083 = vmatprep.subr.mxu0 0.0
        %8084 = vmatpush1.msra.mxu0 0.0
        %8085 = vmatprep.subr.mxu0 0.0
        %8086 = vmatpush1.msra.mxu0 0.0
        %8087 = vmatprep.subr.mxu0 0.0
        %8088 = vmatpush1.msra.mxu0 0.0
        %8089 = vmatprep.subr.mxu0 0.0
        %8090 = vmatpush1.msra.mxu0 0.0
        %8091 = vmatprep.subr.mxu0 0.0
        %8092 = vmatpush1.msra.mxu0 0.0
        %8093 = vmatprep.subr.mxu0 0.0
        %8094 = vmatpush1.msra.mxu0 0.0
        %8095 = vmatprep.subr.mxu0 0.0
        %8096 = vmatpush1.msra.mxu0 0.0
        %8097 = vmatprep.subr.mxu0 0.0
        %8098 = vmatpush1.msra.mxu0 0.0
        %8099 = vmatprep.subr.mxu0 0.0
        %8100 = vmatpush1.msra.mxu0 0.0
        %8101 = vmatprep.subr.mxu0 0.0
        %8102 = vmatpush1.msra.mxu0 0.0
        %8103 = vmatprep.subr.mxu0 0.0
        %8104 = vmatpush1.msra.mxu0 0.0
        %8105 = vmatprep.subr.mxu0 0.0
        %8106 = vmatpush1.msra.mxu0 0.0
        %8107 = vmatprep.subr.mxu0 0.0
        %8108 = vmatpush1.msra.mxu0 0.0
        %8109 = vmatprep.subr.mxu0 0.0
        %8110 = vmatpush1.msra.mxu0 0.0
        %8111 = vmatprep.subr.mxu0 0.0
        %8112 = vmatpush1.msra.mxu0 0.0
        %8113 = vmatprep.subr.mxu0 0.0
        %8114 = vmatpush1.msra.mxu0 0.0
        %8115 = vmatprep.subr.mxu0 0.0
        %8116 = vmatpush1.msra.mxu0 0.0
        %8117 = vmatprep.subr.mxu0 0.0
        %8118 = vmatpush1.msra.mxu0 0.0
        %8119 = vmatprep.subr.mxu0 0.0
        %8120 = vmatpush1.msra.mxu0 0.0
        %8121 = vmatprep.subr.mxu0 0.0
        %8122 = vmatpush1.msra.mxu0 0.0
        %8123 = vmatprep.subr.mxu0 0.0
        %8124 = vmatpush1.msra.mxu0 0.0
        %8125 = vmatprep.subr.mxu0 0.0
        %8126 = vmatpush1.msra.mxu0 0.0
        %8127 = vmatprep.subr.mxu0 0.0
        %8128 = vmatpush1.msra.mxu0 0.0
        %8129 = vmatprep.subr.mxu0 0.0
        %8130 = vmatpush1.msra.mxu0 0.0
        %8131 = vmatprep.subr.mxu0 0.0
        %8132 = vmatpush1.msra.mxu0 0.0
        %8133 = vmatprep.subr.mxu0 0.0
        %8134 = vmatpush1.msra.mxu0 0.0
        %8135 = vmatprep.subr.mxu0 0.0
        %8136 = vmatpush1.msra.mxu0 0.0
        %8137 = vmatprep.mubr.f32.mxu0 0.0
        %8138 = vmatmul.mubr.f32.gmra.mrb[0].mxu0 %v8071
        %v8139 = vpop.f32.mrb[0].mxu0
        %v8140 = vadd.f32 0.0, %v8139
        %v8141 = vpop.f32.mrb[0].mxu0
        %v8142 = vadd.f32 0.0, %v8141
        %8143 = vdwg.mxu0
        %8144 = vmatprep.subr.mxu0 %v8069
        %8145 = vmatpush1.msra.mxu0 %v8068
        %8146 = vmatprep.subr.mxu0 0.0
        %8147 = vmatpush1.msra.mxu0 0.0
        %8148 = vmatprep.subr.mxu0 0.0
        %8149 = vmatpush1.msra.mxu0 0.0
        %8150 = vmatprep.subr.mxu0 0.0
        %8151 = vmatpush1.msra.mxu0 0.0
        %8152 = vmatprep.subr.mxu0 0.0
        %8153 = vmatpush1.msra.mxu0 0.0
        %8154 = vmatprep.subr.mxu0 0.0
        %8155 = vmatpush1.msra.mxu0 0.0
        %8156 = vmatprep.subr.mxu0 0.0
        %8157 = vmatpush1.msra.mxu0 0.0
        %8158 = vmatprep.subr.mxu0 0.0
        %8159 = vmatpush1.msra.mxu0 0.0
        %8160 = vmatprep.subr.mxu0 0.0
        %8161 = vmatpush1.msra.mxu0 0.0
        %8162 = vmatprep.subr.mxu0 0.0
        %8163 = vmatpush1.msra.mxu0 0.0
        %8164 = vmatprep.subr.mxu0 0.0
        %8165 = vmatpush1.msra.mxu0 0.0
        %8166 = vmatprep.subr.mxu0 0.0
        %8167 = vmatpush1.msra.mxu0 0.0
        %8168 = vmatprep.subr.mxu0 0.0
        %8169 = vmatpush1.msra.mxu0 0.0
        %8170 = vmatprep.subr.mxu0 0.0
        %8171 = vmatpush1.msra.mxu0 0.0
        %8172 = vmatprep.subr.mxu0 0.0
        %8173 = vmatpush1.msra.mxu0 0.0
        %8174 = vmatprep.subr.mxu0 0.0
        %8175 = vmatpush1.msra.mxu0 0.0
        %8176 = vmatprep.subr.mxu0 0.0
        %8177 = vmatpush1.msra.mxu0 0.0
        %8178 = vmatprep.subr.mxu0 0.0
        %8179 = vmatpush1.msra.mxu0 0.0
        %8180 = vmatprep.subr.mxu0 0.0
        %8181 = vmatpush1.msra.mxu0 0.0
        %8182 = vmatprep.subr.mxu0 0.0
        %8183 = vmatpush1.msra.mxu0 0.0
        %8184 = vmatprep.subr.mxu0 0.0
        %8185 = vmatpush1.msra.mxu0 0.0
        %8186 = vmatprep.subr.mxu0 0.0
        %8187 = vmatpush1.msra.mxu0 0.0
        %8188 = vmatprep.subr.mxu0 0.0
        %8189 = vmatpush1.msra.mxu0 0.0
        %8190 = vmatprep.subr.mxu0 0.0
        %8191 = vmatpush1.msra.mxu0 0.0
        %8192 = vmatprep.subr.mxu0 0.0
        %8193 = vmatpush1.msra.mxu0 0.0
        %8194 = vmatprep.subr.mxu0 0.0
        %8195 = vmatpush1.msra.mxu0 0.0
        %8196 = vmatprep.subr.mxu0 0.0
        %8197 = vmatpush1.msra.mxu0 0.0
        %8198 = vmatprep.subr.mxu0 0.0
        %8199 = vmatpush1.msra.mxu0 0.0
        %8200 = vmatprep.subr.mxu0 0.0
        %8201 = vmatpush1.msra.mxu0 0.0
        %8202 = vmatprep.subr.mxu0 0.0
        %8203 = vmatpush1.msra.mxu0 0.0
        %8204 = vmatprep.subr.mxu0 0.0
        %8205 = vmatpush1.msra.mxu0 0.0
        %8206 = vmatprep.subr.mxu0 0.0
        %8207 = vmatpush1.msra.mxu0 0.0
        %8208 = vmatprep.mubr.f32.mxu0 0.0
        %8209 = vmatmul.mubr.f32.gmra.mrb[0].mxu0 %v8071
        %v8210 = vpop.f32.mrb[0].mxu0
        %v8211 = vadd.f32 0.0, %v8210
        %v8212 = vpop.f32.mrb[0].mxu0
        %v8213 = vadd.f32 0.0, %v8212
        %8214 = vdwg.mxu0
        %v8215 = vadd.f32 %v8048, %v8140
        %v8216 = vadd.f32 %v8049, %v8142
        %v8217 = vadd.f32 %v8050, %v8211
        %v8218 = vadd.f32 %v8051, %v8213
        %s8219 = scalar_lea.vmem %s2, 136
        %v8220 = vld [vmem:[%s8219] sm:$0xff]
        %8221 = vrot.lane.b32.xlu0 %v5247, 119
        %v8222 = vpop.permute.xlu0 %8221
        %8223 = vrot.lane.b32.xlu0 %v5248, 119
        %v8224 = vpop.permute.xlu0 %8223
        %8225 = vrot.lane.b32.xlu0 %v5249, 119
        %v8226 = vpop.permute.xlu0 %8225
        %8227 = vrot.lane.b32.xlu0 %v5250, 119
        %v8228 = vpop.permute.xlu0 %8227
        %v8229 = vsel %vm3464, %v8226, %v8228
        %v8230 = vsel %vm3464, %v8224, %v8226
        %v8231 = vsel %vm3464, %v8222, %v8224
        %v8232 = vsel %vm3464, %v8228, %v8222
        %v8233 = vmul.f32 %v8231, %v3475
        %v8234 = vmul.f32 %v8230, %v3479
        %v8235 = vmul.f32 %v8229, %v3483
        %v8236 = vmul.f32 %v8232, %v3487
        %v8238 = vsel %vm311, %v8220, 0
        %8240 = vmatprep.subr.mxu0 %v8234
        %8241 = vmatpush1.msra.mxu0 %v8233
        %8242 = vmatprep.subr.mxu0 0.0
        %8243 = vmatpush1.msra.mxu0 0.0
        %8244 = vmatprep.subr.mxu0 0.0
        %8245 = vmatpush1.msra.mxu0 0.0
        %8246 = vmatprep.subr.mxu0 0.0
        %8247 = vmatpush1.msra.mxu0 0.0
        %8248 = vmatprep.subr.mxu0 0.0
        %8249 = vmatpush1.msra.mxu0 0.0
        %8250 = vmatprep.subr.mxu0 0.0
        %8251 = vmatpush1.msra.mxu0 0.0
        %8252 = vmatprep.subr.mxu0 0.0
        %8253 = vmatpush1.msra.mxu0 0.0
        %8254 = vmatprep.subr.mxu0 0.0
        %8255 = vmatpush1.msra.mxu0 0.0
        %8256 = vmatprep.subr.mxu0 0.0
        %8257 = vmatpush1.msra.mxu0 0.0
        %8258 = vmatprep.subr.mxu0 0.0
        %8259 = vmatpush1.msra.mxu0 0.0
        %8260 = vmatprep.subr.mxu0 0.0
        %8261 = vmatpush1.msra.mxu0 0.0
        %8262 = vmatprep.subr.mxu0 0.0
        %8263 = vmatpush1.msra.mxu0 0.0
        %8264 = vmatprep.subr.mxu0 0.0
        %8265 = vmatpush1.msra.mxu0 0.0
        %8266 = vmatprep.subr.mxu0 0.0
        %8267 = vmatpush1.msra.mxu0 0.0
        %8268 = vmatprep.subr.mxu0 0.0
        %8269 = vmatpush1.msra.mxu0 0.0
        %8270 = vmatprep.subr.mxu0 0.0
        %8271 = vmatpush1.msra.mxu0 0.0
        %8272 = vmatprep.subr.mxu0 0.0
        %8273 = vmatpush1.msra.mxu0 0.0
        %8274 = vmatprep.subr.mxu0 0.0
        %8275 = vmatpush1.msra.mxu0 0.0
        %8276 = vmatprep.subr.mxu0 0.0
        %8277 = vmatpush1.msra.mxu0 0.0
        %8278 = vmatprep.subr.mxu0 0.0
        %8279 = vmatpush1.msra.mxu0 0.0
        %8280 = vmatprep.subr.mxu0 0.0
        %8281 = vmatpush1.msra.mxu0 0.0
        %8282 = vmatprep.subr.mxu0 0.0
        %8283 = vmatpush1.msra.mxu0 0.0
        %8284 = vmatprep.subr.mxu0 0.0
        %8285 = vmatpush1.msra.mxu0 0.0
        %8286 = vmatprep.subr.mxu0 0.0
        %8287 = vmatpush1.msra.mxu0 0.0
        %8288 = vmatprep.subr.mxu0 0.0
        %8289 = vmatpush1.msra.mxu0 0.0
        %8290 = vmatprep.subr.mxu0 0.0
        %8291 = vmatpush1.msra.mxu0 0.0
        %8292 = vmatprep.subr.mxu0 0.0
        %8293 = vmatpush1.msra.mxu0 0.0
        %8294 = vmatprep.subr.mxu0 0.0
        %8295 = vmatpush1.msra.mxu0 0.0
        %8296 = vmatprep.subr.mxu0 0.0
        %8297 = vmatpush1.msra.mxu0 0.0
        %8298 = vmatprep.subr.mxu0 0.0
        %8299 = vmatpush1.msra.mxu0 0.0
        %8300 = vmatprep.subr.mxu0 0.0
        %8301 = vmatpush1.msra.mxu0 0.0
        %8302 = vmatprep.subr.mxu0 0.0
        %8303 = vmatpush1.msra.mxu0 0.0
        %8304 = vmatprep.mubr.f32.mxu0 0.0
        %8305 = vmatmul.mubr.f32.gmra.mrb[0].mxu0 %v8238
        %v8306 = vpop.f32.mrb[0].mxu0
        %v8307 = vadd.f32 0.0, %v8306
        %v8308 = vpop.f32.mrb[0].mxu0
        %v8309 = vadd.f32 0.0, %v8308
        %8310 = vdwg.mxu0
        %8311 = vmatprep.subr.mxu0 %v8236
        %8312 = vmatpush1.msra.mxu0 %v8235
        %8313 = vmatprep.subr.mxu0 0.0
        %8314 = vmatpush1.msra.mxu0 0.0
        %8315 = vmatprep.subr.mxu0 0.0
        %8316 = vmatpush1.msra.mxu0 0.0
        %8317 = vmatprep.subr.mxu0 0.0
        %8318 = vmatpush1.msra.mxu0 0.0
        %8319 = vmatprep.subr.mxu0 0.0
        %8320 = vmatpush1.msra.mxu0 0.0
        %8321 = vmatprep.subr.mxu0 0.0
        %8322 = vmatpush1.msra.mxu0 0.0
        %8323 = vmatprep.subr.mxu0 0.0
        %8324 = vmatpush1.msra.mxu0 0.0
        %8325 = vmatprep.subr.mxu0 0.0
        %8326 = vmatpush1.msra.mxu0 0.0
        %8327 = vmatprep.subr.mxu0 0.0
        %8328 = vmatpush1.msra.mxu0 0.0
        %8329 = vmatprep.subr.mxu0 0.0
        %8330 = vmatpush1.msra.mxu0 0.0
        %8331 = vmatprep.subr.mxu0 0.0
        %8332 = vmatpush1.msra.mxu0 0.0
        %8333 = vmatprep.subr.mxu0 0.0
        %8334 = vmatpush1.msra.mxu0 0.0
        %8335 = vmatprep.subr.mxu0 0.0
        %8336 = vmatpush1.msra.mxu0 0.0
        %8337 = vmatprep.subr.mxu0 0.0
        %8338 = vmatpush1.msra.mxu0 0.0
        %8339 = vmatprep.subr.mxu0 0.0
        %8340 = vmatpush1.msra.mxu0 0.0
        %8341 = vmatprep.subr.mxu0 0.0
        %8342 = vmatpush1.msra.mxu0 0.0
        %8343 = vmatprep.subr.mxu0 0.0
        %8344 = vmatpush1.msra.mxu0 0.0
        %8345 = vmatprep.subr.mxu0 0.0
        %8346 = vmatpush1.msra.mxu0 0.0
        %8347 = vmatprep.subr.mxu0 0.0
        %8348 = vmatpush1.msra.mxu0 0.0
        %8349 = vmatprep.subr.mxu0 0.0
        %8350 = vmatpush1.msra.mxu0 0.0
        %8351 = vmatprep.subr.mxu0 0.0
        %8352 = vmatpush1.msra.mxu0 0.0
        %8353 = vmatprep.subr.mxu0 0.0
        %8354 = vmatpush1.msra.mxu0 0.0
        %8355 = vmatprep.subr.mxu0 0.0
        %8356 = vmatpush1.msra.mxu0 0.0
        %8357 = vmatprep.subr.mxu0 0.0
        %8358 = vmatpush1.msra.mxu0 0.0
        %8359 = vmatprep.subr.mxu0 0.0
        %8360 = vmatpush1.msra.mxu0 0.0
        %8361 = vmatprep.subr.mxu0 0.0
        %8362 = vmatpush1.msra.mxu0 0.0
        %8363 = vmatprep.subr.mxu0 0.0
        %8364 = vmatpush1.msra.mxu0 0.0
        %8365 = vmatprep.subr.mxu0 0.0
        %8366 = vmatpush1.msra.mxu0 0.0
        %8367 = vmatprep.subr.mxu0 0.0
        %8368 = vmatpush1.msra.mxu0 0.0
        %8369 = vmatprep.subr.mxu0 0.0
        %8370 = vmatpush1.msra.mxu0 0.0
        %8371 = vmatprep.subr.mxu0 0.0
        %8372 = vmatpush1.msra.mxu0 0.0
        %8373 = vmatprep.subr.mxu0 0.0
        %8374 = vmatpush1.msra.mxu0 0.0
        %8375 = vmatprep.mubr.f32.mxu0 0.0
        %8376 = vmatmul.mubr.f32.gmra.mrb[0].mxu0 %v8238
        %v8377 = vpop.f32.mrb[0].mxu0
        %v8378 = vadd.f32 0.0, %v8377
        %v8379 = vpop.f32.mrb[0].mxu0
        %v8380 = vadd.f32 0.0, %v8379
        %8381 = vdwg.mxu0
        %v8382 = vadd.f32 %v8215, %v8307
        %v8383 = vadd.f32 %v8216, %v8309
        %v8384 = vadd.f32 %v8217, %v8378
        %v8385 = vadd.f32 %v8218, %v8380
        %s8386 = scalar_lea.vmem %s2, 144
        %v8387 = vld [vmem:[%s8386] sm:$0xff]
        %v8388 = vmul.f32 %v5263, %v3653
        %v8389 = vmul.f32 %v5262, %v3657
        %v8390 = vmul.f32 %v5261, %v3661
        %v8391 = vmul.f32 %v5264, %v3665
        %v8393 = vsel %vm311, %v8387, 0
        %8395 = vmatprep.subr.mxu0 %v8389
        %8396 = vmatpush1.msra.mxu0 %v8388
        %8397 = vmatprep.subr.mxu0 0.0
        %8398 = vmatpush1.msra.mxu0 0.0
        %8399 = vmatprep.subr.mxu0 0.0
        %8400 = vmatpush1.msra.mxu0 0.0
        %8401 = vmatprep.subr.mxu0 0.0
        %8402 = vmatpush1.msra.mxu0 0.0
        %8403 = vmatprep.subr.mxu0 0.0
        %8404 = vmatpush1.msra.mxu0 0.0
        %8405 = vmatprep.subr.mxu0 0.0
        %8406 = vmatpush1.msra.mxu0 0.0
        %8407 = vmatprep.subr.mxu0 0.0
        %8408 = vmatpush1.msra.mxu0 0.0
        %8409 = vmatprep.subr.mxu0 0.0
        %8410 = vmatpush1.msra.mxu0 0.0
        %8411 = vmatprep.subr.mxu0 0.0
        %8412 = vmatpush1.msra.mxu0 0.0
        %8413 = vmatprep.subr.mxu0 0.0
        %8414 = vmatpush1.msra.mxu0 0.0
        %8415 = vmatprep.subr.mxu0 0.0
        %8416 = vmatpush1.msra.mxu0 0.0
        %8417 = vmatprep.subr.mxu0 0.0
        %8418 = vmatpush1.msra.mxu0 0.0
        %8419 = vmatprep.subr.mxu0 0.0
        %8420 = vmatpush1.msra.mxu0 0.0
        %8421 = vmatprep.subr.mxu0 0.0
        %8422 = vmatpush1.msra.mxu0 0.0
        %8423 = vmatprep.subr.mxu0 0.0
        %8424 = vmatpush1.msra.mxu0 0.0
        %8425 = vmatprep.subr.mxu0 0.0
        %8426 = vmatpush1.msra.mxu0 0.0
        %8427 = vmatprep.subr.mxu0 0.0
        %8428 = vmatpush1.msra.mxu0 0.0
        %8429 = vmatprep.subr.mxu0 0.0
        %8430 = vmatpush1.msra.mxu0 0.0
        %8431 = vmatprep.subr.mxu0 0.0
        %8432 = vmatpush1.msra.mxu0 0.0
        %8433 = vmatprep.subr.mxu0 0.0
        %8434 = vmatpush1.msra.mxu0 0.0
        %8435 = vmatprep.subr.mxu0 0.0
        %8436 = vmatpush1.msra.mxu0 0.0
        %8437 = vmatprep.subr.mxu0 0.0
        %8438 = vmatpush1.msra.mxu0 0.0
        %8439 = vmatprep.subr.mxu0 0.0
        %8440 = vmatpush1.msra.mxu0 0.0
        %8441 = vmatprep.subr.mxu0 0.0
        %8442 = vmatpush1.msra.mxu0 0.0
        %8443 = vmatprep.subr.mxu0 0.0
        %8444 = vmatpush1.msra.mxu0 0.0
        %8445 = vmatprep.subr.mxu0 0.0
        %8446 = vmatpush1.msra.mxu0 0.0
        %8447 = vmatprep.subr.mxu0 0.0
        %8448 = vmatpush1.msra.mxu0 0.0
        %8449 = vmatprep.subr.mxu0 0.0
        %8450 = vmatpush1.msra.mxu0 0.0
        %8451 = vmatprep.subr.mxu0 0.0
        %8452 = vmatpush1.msra.mxu0 0.0
        %8453 = vmatprep.subr.mxu0 0.0
        %8454 = vmatpush1.msra.mxu0 0.0
        %8455 = vmatprep.subr.mxu0 0.0
        %8456 = vmatpush1.msra.mxu0 0.0
        %8457 = vmatprep.subr.mxu0 0.0
        %8458 = vmatpush1.msra.mxu0 0.0
        %8459 = vmatprep.mubr.f32.mxu0 0.0
        %8460 = vmatmul.mubr.f32.gmra.mrb[0].mxu0 %v8393
        %v8461 = vpop.f32.mrb[0].mxu0
        %v8462 = vadd.f32 0.0, %v8461
        %v8463 = vpop.f32.mrb[0].mxu0
        %v8464 = vadd.f32 0.0, %v8463
        %8465 = vdwg.mxu0
        %8466 = vmatprep.subr.mxu0 %v8391
        %8467 = vmatpush1.msra.mxu0 %v8390
        %8468 = vmatprep.subr.mxu0 0.0
        %8469 = vmatpush1.msra.mxu0 0.0
        %8470 = vmatprep.subr.mxu0 0.0
        %8471 = vmatpush1.msra.mxu0 0.0
        %8472 = vmatprep.subr.mxu0 0.0
        %8473 = vmatpush1.msra.mxu0 0.0
        %8474 = vmatprep.subr.mxu0 0.0
        %8475 = vmatpush1.msra.mxu0 0.0
        %8476 = vmatprep.subr.mxu0 0.0
        %8477 = vmatpush1.msra.mxu0 0.0
        %8478 = vmatprep.subr.mxu0 0.0
        %8479 = vmatpush1.msra.mxu0 0.0
        %8480 = vmatprep.subr.mxu0 0.0
        %8481 = vmatpush1.msra.mxu0 0.0
        %8482 = vmatprep.subr.mxu0 0.0
        %8483 = vmatpush1.msra.mxu0 0.0
        %8484 = vmatprep.subr.mxu0 0.0
        %8485 = vmatpush1.msra.mxu0 0.0
        %8486 = vmatprep.subr.mxu0 0.0
        %8487 = vmatpush1.msra.mxu0 0.0
        %8488 = vmatprep.subr.mxu0 0.0
        %8489 = vmatpush1.msra.mxu0 0.0
        %8490 = vmatprep.subr.mxu0 0.0
        %8491 = vmatpush1.msra.mxu0 0.0
        %8492 = vmatprep.subr.mxu0 0.0
        %8493 = vmatpush1.msra.mxu0 0.0
        %8494 = vmatprep.subr.mxu0 0.0
        %8495 = vmatpush1.msra.mxu0 0.0
        %8496 = vmatprep.subr.mxu0 0.0
        %8497 = vmatpush1.msra.mxu0 0.0
        %8498 = vmatprep.subr.mxu0 0.0
        %8499 = vmatpush1.msra.mxu0 0.0
        %8500 = vmatprep.subr.mxu0 0.0
        %8501 = vmatpush1.msra.mxu0 0.0
        %8502 = vmatprep.subr.mxu0 0.0
        %8503 = vmatpush1.msra.mxu0 0.0
        %8504 = vmatprep.subr.mxu0 0.0
        %8505 = vmatpush1.msra.mxu0 0.0
        %8506 = vmatprep.subr.mxu0 0.0
        %8507 = vmatpush1.msra.mxu0 0.0
        %8508 = vmatprep.subr.mxu0 0.0
        %8509 = vmatpush1.msra.mxu0 0.0
        %8510 = vmatprep.subr.mxu0 0.0
        %8511 = vmatpush1.msra.mxu0 0.0
        %8512 = vmatprep.subr.mxu0 0.0
        %8513 = vmatpush1.msra.mxu0 0.0
        %8514 = vmatprep.subr.mxu0 0.0
        %8515 = vmatpush1.msra.mxu0 0.0
        %8516 = vmatprep.subr.mxu0 0.0
        %8517 = vmatpush1.msra.mxu0 0.0
        %8518 = vmatprep.subr.mxu0 0.0
        %8519 = vmatpush1.msra.mxu0 0.0
        %8520 = vmatprep.subr.mxu0 0.0
        %8521 = vmatpush1.msra.mxu0 0.0
        %8522 = vmatprep.subr.mxu0 0.0
        %8523 = vmatpush1.msra.mxu0 0.0
        %8524 = vmatprep.subr.mxu0 0.0
        %8525 = vmatpush1.msra.mxu0 0.0
        %8526 = vmatprep.subr.mxu0 0.0
        %8527 = vmatpush1.msra.mxu0 0.0
        %8528 = vmatprep.subr.mxu0 0.0
        %8529 = vmatpush1.msra.mxu0 0.0
        %8530 = vmatprep.mubr.f32.mxu0 0.0
        %8531 = vmatmul.mubr.f32.gmra.mrb[0].mxu0 %v8393
        %v8532 = vpop.f32.mrb[0].mxu0
        %v8533 = vadd.f32 0.0, %v8532
        %v8534 = vpop.f32.mrb[0].mxu0
        %v8535 = vadd.f32 0.0, %v8534
        %8536 = vdwg.mxu0
        %v8537 = vadd.f32 %v8382, %v8462
        %v8538 = vadd.f32 %v8383, %v8464
        %v8539 = vadd.f32 %v8384, %v8533
        %v8540 = vadd.f32 %v8385, %v8535
        %s8541 = scalar_lea.vmem %s2, 152
        %v8542 = vld [vmem:[%s8541] sm:$0xff]
        %v8543 = vmul.f32 %v5571, %v3831
        %v8544 = vmul.f32 %v5570, %v3835
        %v8545 = vmul.f32 %v5569, %v3839
        %v8546 = vmul.f32 %v5572, %v3843
        %v8548 = vsel %vm311, %v8542, 0
        %8550 = vmatprep.subr.mxu0 %v8544
        %8551 = vmatpush1.msra.mxu0 %v8543
        %8552 = vmatprep.subr.mxu0 0.0
        %8553 = vmatpush1.msra.mxu0 0.0
        %8554 = vmatprep.subr.mxu0 0.0
        %8555 = vmatpush1.msra.mxu0 0.0
        %8556 = vmatprep.subr.mxu0 0.0
        %8557 = vmatpush1.msra.mxu0 0.0
        %8558 = vmatprep.subr.mxu0 0.0
        %8559 = vmatpush1.msra.mxu0 0.0
        %8560 = vmatprep.subr.mxu0 0.0
        %8561 = vmatpush1.msra.mxu0 0.0
        %8562 = vmatprep.subr.mxu0 0.0
        %8563 = vmatpush1.msra.mxu0 0.0
        %8564 = vmatprep.subr.mxu0 0.0
        %8565 = vmatpush1.msra.mxu0 0.0
        %8566 = vmatprep.subr.mxu0 0.0
        %8567 = vmatpush1.msra.mxu0 0.0
        %8568 = vmatprep.subr.mxu0 0.0
        %8569 = vmatpush1.msra.mxu0 0.0
        %8570 = vmatprep.subr.mxu0 0.0
        %8571 = vmatpush1.msra.mxu0 0.0
        %8572 = vmatprep.subr.mxu0 0.0
        %8573 = vmatpush1.msra.mxu0 0.0
        %8574 = vmatprep.subr.mxu0 0.0
        %8575 = vmatpush1.msra.mxu0 0.0
        %8576 = vmatprep.subr.mxu0 0.0
        %8577 = vmatpush1.msra.mxu0 0.0
        %8578 = vmatprep.subr.mxu0 0.0
        %8579 = vmatpush1.msra.mxu0 0.0
        %8580 = vmatprep.subr.mxu0 0.0
        %8581 = vmatpush1.msra.mxu0 0.0
        %8582 = vmatprep.subr.mxu0 0.0
        %8583 = vmatpush1.msra.mxu0 0.0
        %8584 = vmatprep.subr.mxu0 0.0
        %8585 = vmatpush1.msra.mxu0 0.0
        %8586 = vmatprep.subr.mxu0 0.0
        %8587 = vmatpush1.msra.mxu0 0.0
        %8588 = vmatprep.subr.mxu0 0.0
        %8589 = vmatpush1.msra.mxu0 0.0
        %8590 = vmatprep.subr.mxu0 0.0
        %8591 = vmatpush1.msra.mxu0 0.0
        %8592 = vmatprep.subr.mxu0 0.0
        %8593 = vmatpush1.msra.mxu0 0.0
        %8594 = vmatprep.subr.mxu0 0.0
        %8595 = vmatpush1.msra.mxu0 0.0
        %8596 = vmatprep.subr.mxu0 0.0
        %8597 = vmatpush1.msra.mxu0 0.0
        %8598 = vmatprep.subr.mxu0 0.0
        %8599 = vmatpush1.msra.mxu0 0.0
        %8600 = vmatprep.subr.mxu0 0.0
        %8601 = vmatpush1.msra.mxu0 0.0
        %8602 = vmatprep.subr.mxu0 0.0
        %8603 = vmatpush1.msra.mxu0 0.0
        %8604 = vmatprep.subr.mxu0 0.0
        %8605 = vmatpush1.msra.mxu0 0.0
        %8606 = vmatprep.subr.mxu0 0.0
        %8607 = vmatpush1.msra.mxu0 0.0
        %8608 = vmatprep.subr.mxu0 0.0
        %8609 = vmatpush1.msra.mxu0 0.0
        %8610 = vmatprep.subr.mxu0 0.0
        %8611 = vmatpush1.msra.mxu0 0.0
        %8612 = vmatprep.subr.mxu0 0.0
        %8613 = vmatpush1.msra.mxu0 0.0
        %8614 = vmatprep.mubr.f32.mxu0 0.0
        %8615 = vmatmul.mubr.f32.gmra.mrb[0].mxu0 %v8548
        %v8616 = vpop.f32.mrb[0].mxu0
        %v8617 = vadd.f32 0.0, %v8616
        %v8618 = vpop.f32.mrb[0].mxu0
        %v8619 = vadd.f32 0.0, %v8618
        %8620 = vdwg.mxu0
        %8621 = vmatprep.subr.mxu0 %v8546
        %8622 = vmatpush1.msra.mxu0 %v8545
        %8623 = vmatprep.subr.mxu0 0.0
        %8624 = vmatpush1.msra.mxu0 0.0
        %8625 = vmatprep.subr.mxu0 0.0
        %8626 = vmatpush1.msra.mxu0 0.0
        %8627 = vmatprep.subr.mxu0 0.0
        %8628 = vmatpush1.msra.mxu0 0.0
        %8629 = vmatprep.subr.mxu0 0.0
        %8630 = vmatpush1.msra.mxu0 0.0
        %8631 = vmatprep.subr.mxu0 0.0
        %8632 = vmatpush1.msra.mxu0 0.0
        %8633 = vmatprep.subr.mxu0 0.0
        %8634 = vmatpush1.msra.mxu0 0.0
        %8635 = vmatprep.subr.mxu0 0.0
        %8636 = vmatpush1.msra.mxu0 0.0
        %8637 = vmatprep.subr.mxu0 0.0
        %8638 = vmatpush1.msra.mxu0 0.0
        %8639 = vmatprep.subr.mxu0 0.0
        %8640 = vmatpush1.msra.mxu0 0.0
        %8641 = vmatprep.subr.mxu0 0.0
        %8642 = vmatpush1.msra.mxu0 0.0
        %8643 = vmatprep.subr.mxu0 0.0
        %8644 = vmatpush1.msra.mxu0 0.0
        %8645 = vmatprep.subr.mxu0 0.0
        %8646 = vmatpush1.msra.mxu0 0.0
        %8647 = vmatprep.subr.mxu0 0.0
        %8648 = vmatpush1.msra.mxu0 0.0
        %8649 = vmatprep.subr.mxu0 0.0
        %8650 = vmatpush1.msra.mxu0 0.0
        %8651 = vmatprep.subr.mxu0 0.0
        %8652 = vmatpush1.msra.mxu0 0.0
        %8653 = vmatprep.subr.mxu0 0.0
        %8654 = vmatpush1.msra.mxu0 0.0
        %8655 = vmatprep.subr.mxu0 0.0
        %8656 = vmatpush1.msra.mxu0 0.0
        %8657 = vmatprep.subr.mxu0 0.0
        %8658 = vmatpush1.msra.mxu0 0.0
        %8659 = vmatprep.subr.mxu0 0.0
        %8660 = vmatpush1.msra.mxu0 0.0
        %8661 = vmatprep.subr.mxu0 0.0
        %8662 = vmatpush1.msra.mxu0 0.0
        %8663 = vmatprep.subr.mxu0 0.0
        %8664 = vmatpush1.msra.mxu0 0.0
        %8665 = vmatprep.subr.mxu0 0.0
        %8666 = vmatpush1.msra.mxu0 0.0
        %8667 = vmatprep.subr.mxu0 0.0
        %8668 = vmatpush1.msra.mxu0 0.0
        %8669 = vmatprep.subr.mxu0 0.0
        %8670 = vmatpush1.msra.mxu0 0.0
        %8671 = vmatprep.subr.mxu0 0.0
        %8672 = vmatpush1.msra.mxu0 0.0
        %8673 = vmatprep.subr.mxu0 0.0
        %8674 = vmatpush1.msra.mxu0 0.0
        %8675 = vmatprep.subr.mxu0 0.0
        %8676 = vmatpush1.msra.mxu0 0.0
        %8677 = vmatprep.subr.mxu0 0.0
        %8678 = vmatpush1.msra.mxu0 0.0
        %8679 = vmatprep.subr.mxu0 0.0
        %8680 = vmatpush1.msra.mxu0 0.0
        %8681 = vmatprep.subr.mxu0 0.0
        %8682 = vmatpush1.msra.mxu0 0.0
        %8683 = vmatprep.subr.mxu0 0.0
        %8684 = vmatpush1.msra.mxu0 0.0
        %8685 = vmatprep.mubr.f32.mxu0 0.0
        %8686 = vmatmul.mubr.f32.gmra.mrb[0].mxu0 %v8548
        %v8687 = vpop.f32.mrb[0].mxu0
        %v8688 = vadd.f32 0.0, %v8687
        %v8689 = vpop.f32.mrb[0].mxu0
        %v8690 = vadd.f32 0.0, %v8689
        %8691 = vdwg.mxu0
        %v8692 = vadd.f32 %v8537, %v8617
        %v8693 = vadd.f32 %v8538, %v8619
        %v8694 = vadd.f32 %v8539, %v8688
        %v8695 = vadd.f32 %v8540, %v8690
        %s8696 = scalar_lea.vmem %s2, 160
        %v8697 = vld [vmem:[%s8696] sm:$0xff]
        %v8698 = vmul.f32 %v5738, %v4009
        %v8699 = vmul.f32 %v5737, %v4013
        %v8700 = vmul.f32 %v5736, %v4017
        %v8701 = vmul.f32 %v5739, %v4021
        %v8703 = vsel %vm311, %v8697, 0
        %8705 = vmatprep.subr.mxu0 %v8699
        %8706 = vmatpush1.msra.mxu0 %v8698
        %8707 = vmatprep.subr.mxu0 0.0
        %8708 = vmatpush1.msra.mxu0 0.0
        %8709 = vmatprep.subr.mxu0 0.0
        %8710 = vmatpush1.msra.mxu0 0.0
        %8711 = vmatprep.subr.mxu0 0.0
        %8712 = vmatpush1.msra.mxu0 0.0
        %8713 = vmatprep.subr.mxu0 0.0
        %8714 = vmatpush1.msra.mxu0 0.0
        %8715 = vmatprep.subr.mxu0 0.0
        %8716 = vmatpush1.msra.mxu0 0.0
        %8717 = vmatprep.subr.mxu0 0.0
        %8718 = vmatpush1.msra.mxu0 0.0
        %8719 = vmatprep.subr.mxu0 0.0
        %8720 = vmatpush1.msra.mxu0 0.0
        %8721 = vmatprep.subr.mxu0 0.0
        %8722 = vmatpush1.msra.mxu0 0.0
        %8723 = vmatprep.subr.mxu0 0.0
        %8724 = vmatpush1.msra.mxu0 0.0
        %8725 = vmatprep.subr.mxu0 0.0
        %8726 = vmatpush1.msra.mxu0 0.0
        %8727 = vmatprep.subr.mxu0 0.0
        %8728 = vmatpush1.msra.mxu0 0.0
        %8729 = vmatprep.subr.mxu0 0.0
        %8730 = vmatpush1.msra.mxu0 0.0
        %8731 = vmatprep.subr.mxu0 0.0
        %8732 = vmatpush1.msra.mxu0 0.0
        %8733 = vmatprep.subr.mxu0 0.0
        %8734 = vmatpush1.msra.mxu0 0.0
        %8735 = vmatprep.subr.mxu0 0.0
        %8736 = vmatpush1.msra.mxu0 0.0
        %8737 = vmatprep.subr.mxu0 0.0
        %8738 = vmatpush1.msra.mxu0 0.0
        %8739 = vmatprep.subr.mxu0 0.0
        %8740 = vmatpush1.msra.mxu0 0.0
        %8741 = vmatprep.subr.mxu0 0.0
        %8742 = vmatpush1.msra.mxu0 0.0
        %8743 = vmatprep.subr.mxu0 0.0
        %8744 = vmatpush1.msra.mxu0 0.0
        %8745 = vmatprep.subr.mxu0 0.0
        %8746 = vmatpush1.msra.mxu0 0.0
        %8747 = vmatprep.subr.mxu0 0.0
        %8748 = vmatpush1.msra.mxu0 0.0
        %8749 = vmatprep.subr.mxu0 0.0
        %8750 = vmatpush1.msra.mxu0 0.0
        %8751 = vmatprep.subr.mxu0 0.0
        %8752 = vmatpush1.msra.mxu0 0.0
        %8753 = vmatprep.subr.mxu0 0.0
        %8754 = vmatpush1.msra.mxu0 0.0
        %8755 = vmatprep.subr.mxu0 0.0
        %8756 = vmatpush1.msra.mxu0 0.0
        %8757 = vmatprep.subr.mxu0 0.0
        %8758 = vmatpush1.msra.mxu0 0.0
        %8759 = vmatprep.subr.mxu0 0.0
        %8760 = vmatpush1.msra.mxu0 0.0
        %8761 = vmatprep.subr.mxu0 0.0
        %8762 = vmatpush1.msra.mxu0 0.0
        %8763 = vmatprep.subr.mxu0 0.0
        %8764 = vmatpush1.msra.mxu0 0.0
        %8765 = vmatprep.subr.mxu0 0.0
        %8766 = vmatpush1.msra.mxu0 0.0
        %8767 = vmatprep.subr.mxu0 0.0
        %8768 = vmatpush1.msra.mxu0 0.0
        %8769 = vmatprep.mubr.f32.mxu0 0.0
        %8770 = vmatmul.mubr.f32.gmra.mrb[0].mxu0 %v8703
        %v8771 = vpop.f32.mrb[0].mxu0
        %v8772 = vadd.f32 0.0, %v8771
        %v8773 = vpop.f32.mrb[0].mxu0
        %v8774 = vadd.f32 0.0, %v8773
        %8775 = vdwg.mxu0
        %8776 = vmatprep.subr.mxu0 %v8701
        %8777 = vmatpush1.msra.mxu0 %v8700
        %8778 = vmatprep.subr.mxu0 0.0
        %8779 = vmatpush1.msra.mxu0 0.0
        %8780 = vmatprep.subr.mxu0 0.0
        %8781 = vmatpush1.msra.mxu0 0.0
        %8782 = vmatprep.subr.mxu0 0.0
        %8783 = vmatpush1.msra.mxu0 0.0
        %8784 = vmatprep.subr.mxu0 0.0
        %8785 = vmatpush1.msra.mxu0 0.0
        %8786 = vmatprep.subr.mxu0 0.0
        %8787 = vmatpush1.msra.mxu0 0.0
        %8788 = vmatprep.subr.mxu0 0.0
        %8789 = vmatpush1.msra.mxu0 0.0
        %8790 = vmatprep.subr.mxu0 0.0
        %8791 = vmatpush1.msra.mxu0 0.0
        %8792 = vmatprep.subr.mxu0 0.0
        %8793 = vmatpush1.msra.mxu0 0.0
        %8794 = vmatprep.subr.mxu0 0.0
        %8795 = vmatpush1.msra.mxu0 0.0
        %8796 = vmatprep.subr.mxu0 0.0
        %8797 = vmatpush1.msra.mxu0 0.0
        %8798 = vmatprep.subr.mxu0 0.0
        %8799 = vmatpush1.msra.mxu0 0.0
        %8800 = vmatprep.subr.mxu0 0.0
        %8801 = vmatpush1.msra.mxu0 0.0
        %8802 = vmatprep.subr.mxu0 0.0
        %8803 = vmatpush1.msra.mxu0 0.0
        %8804 = vmatprep.subr.mxu0 0.0
        %8805 = vmatpush1.msra.mxu0 0.0
        %8806 = vmatprep.subr.mxu0 0.0
        %8807 = vmatpush1.msra.mxu0 0.0
        %8808 = vmatprep.subr.mxu0 0.0
        %8809 = vmatpush1.msra.mxu0 0.0
        %8810 = vmatprep.subr.mxu0 0.0
        %8811 = vmatpush1.msra.mxu0 0.0
        %8812 = vmatprep.subr.mxu0 0.0
        %8813 = vmatpush1.msra.mxu0 0.0
        %8814 = vmatprep.subr.mxu0 0.0
        %8815 = vmatpush1.msra.mxu0 0.0
        %8816 = vmatprep.subr.mxu0 0.0
        %8817 = vmatpush1.msra.mxu0 0.0
        %8818 = vmatprep.subr.mxu0 0.0
        %8819 = vmatpush1.msra.mxu0 0.0
        %8820 = vmatprep.subr.mxu0 0.0
        %8821 = vmatpush1.msra.mxu0 0.0
        %8822 = vmatprep.subr.mxu0 0.0
        %8823 = vmatpush1.msra.mxu0 0.0
        %8824 = vmatprep.subr.mxu0 0.0
        %8825 = vmatpush1.msra.mxu0 0.0
        %8826 = vmatprep.subr.mxu0 0.0
        %8827 = vmatpush1.msra.mxu0 0.0
        %8828 = vmatprep.subr.mxu0 0.0
        %8829 = vmatpush1.msra.mxu0 0.0
        %8830 = vmatprep.subr.mxu0 0.0
        %8831 = vmatpush1.msra.mxu0 0.0
        %8832 = vmatprep.subr.mxu0 0.0
        %8833 = vmatpush1.msra.mxu0 0.0
        %8834 = vmatprep.subr.mxu0 0.0
        %8835 = vmatpush1.msra.mxu0 0.0
        %8836 = vmatprep.subr.mxu0 0.0
        %8837 = vmatpush1.msra.mxu0 0.0
        %8838 = vmatprep.subr.mxu0 0.0
        %8839 = vmatpush1.msra.mxu0 0.0
        %8840 = vmatprep.mubr.f32.mxu0 0.0
        %8841 = vmatmul.mubr.f32.gmra.mrb[0].mxu0 %v8703
        %v8842 = vpop.f32.mrb[0].mxu0
        %v8843 = vadd.f32 0.0, %v8842
        %v8844 = vpop.f32.mrb[0].mxu0
        %v8845 = vadd.f32 0.0, %v8844
        %8846 = vdwg.mxu0
        %v8847 = vadd.f32 %v8692, %v8772
        %v8848 = vadd.f32 %v8693, %v8774
        %v8849 = vadd.f32 %v8694, %v8843
        %v8850 = vadd.f32 %v8695, %v8845
        %s8851 = scalar_lea.vmem %s2, 168
        %v8852 = vld [vmem:[%s8851] sm:$0xff]
        %v8853 = vmul.f32 %v5905, %v4187
        %v8854 = vmul.f32 %v5904, %v4191
        %v8855 = vmul.f32 %v5903, %v4195
        %v8856 = vmul.f32 %v5906, %v4199
        %v8858 = vsel %vm311, %v8852, 0
        %8860 = vmatprep.subr.mxu0 %v8854
        %8861 = vmatpush1.msra.mxu0 %v8853
        %8862 = vmatprep.subr.mxu0 0.0
        %8863 = vmatpush1.msra.mxu0 0.0
        %8864 = vmatprep.subr.mxu0 0.0
        %8865 = vmatpush1.msra.mxu0 0.0
        %8866 = vmatprep.subr.mxu0 0.0
        %8867 = vmatpush1.msra.mxu0 0.0
        %8868 = vmatprep.subr.mxu0 0.0
        %8869 = vmatpush1.msra.mxu0 0.0
        %8870 = vmatprep.subr.mxu0 0.0
        %8871 = vmatpush1.msra.mxu0 0.0
        %8872 = vmatprep.subr.mxu0 0.0
        %8873 = vmatpush1.msra.mxu0 0.0
        %8874 = vmatprep.subr.mxu0 0.0
        %8875 = vmatpush1.msra.mxu0 0.0
        %8876 = vmatprep.subr.mxu0 0.0
        %8877 = vmatpush1.msra.mxu0 0.0
        %8878 = vmatprep.subr.mxu0 0.0
        %8879 = vmatpush1.msra.mxu0 0.0
        %8880 = vmatprep.subr.mxu0 0.0
        %8881 = vmatpush1.msra.mxu0 0.0
        %8882 = vmatprep.subr.mxu0 0.0
        %8883 = vmatpush1.msra.mxu0 0.0
        %8884 = vmatprep.subr.mxu0 0.0
        %8885 = vmatpush1.msra.mxu0 0.0
        %8886 = vmatprep.subr.mxu0 0.0
        %8887 = vmatpush1.msra.mxu0 0.0
        %8888 = vmatprep.subr.mxu0 0.0
        %8889 = vmatpush1.msra.mxu0 0.0
        %8890 = vmatprep.subr.mxu0 0.0
        %8891 = vmatpush1.msra.mxu0 0.0
        %8892 = vmatprep.subr.mxu0 0.0
        %8893 = vmatpush1.msra.mxu0 0.0
        %8894 = vmatprep.subr.mxu0 0.0
        %8895 = vmatpush1.msra.mxu0 0.0
        %8896 = vmatprep.subr.mxu0 0.0
        %8897 = vmatpush1.msra.mxu0 0.0
        %8898 = vmatprep.subr.mxu0 0.0
        %8899 = vmatpush1.msra.mxu0 0.0
        %8900 = vmatprep.subr.mxu0 0.0
        %8901 = vmatpush1.msra.mxu0 0.0
        %8902 = vmatprep.subr.mxu0 0.0
        %8903 = vmatpush1.msra.mxu0 0.0
        %8904 = vmatprep.subr.mxu0 0.0
        %8905 = vmatpush1.msra.mxu0 0.0
        %8906 = vmatprep.subr.mxu0 0.0
        %8907 = vmatpush1.msra.mxu0 0.0
        %8908 = vmatprep.subr.mxu0 0.0
        %8909 = vmatpush1.msra.mxu0 0.0
        %8910 = vmatprep.subr.mxu0 0.0
        %8911 = vmatpush1.msra.mxu0 0.0
        %8912 = vmatprep.subr.mxu0 0.0
        %8913 = vmatpush1.msra.mxu0 0.0
        %8914 = vmatprep.subr.mxu0 0.0
        %8915 = vmatpush1.msra.mxu0 0.0
        %8916 = vmatprep.subr.mxu0 0.0
        %8917 = vmatpush1.msra.mxu0 0.0
        %8918 = vmatprep.subr.mxu0 0.0
        %8919 = vmatpush1.msra.mxu0 0.0
        %8920 = vmatprep.subr.mxu0 0.0
        %8921 = vmatpush1.msra.mxu0 0.0
        %8922 = vmatprep.subr.mxu0 0.0
        %8923 = vmatpush1.msra.mxu0 0.0
        %8924 = vmatprep.mubr.f32.mxu0 0.0
        %8925 = vmatmul.mubr.f32.gmra.mrb[0].mxu0 %v8858
        %v8926 = vpop.f32.mrb[0].mxu0
        %v8927 = vadd.f32 0.0, %v8926
        %v8928 = vpop.f32.mrb[0].mxu0
        %v8929 = vadd.f32 0.0, %v8928
        %8930 = vdwg.mxu0
        %8931 = vmatprep.subr.mxu0 %v8856
        %8932 = vmatpush1.msra.mxu0 %v8855
        %8933 = vmatprep.subr.mxu0 0.0
        %8934 = vmatpush1.msra.mxu0 0.0
        %8935 = vmatprep.subr.mxu0 0.0
        %8936 = vmatpush1.msra.mxu0 0.0
        %8937 = vmatprep.subr.mxu0 0.0
        %8938 = vmatpush1.msra.mxu0 0.0
        %8939 = vmatprep.subr.mxu0 0.0
        %8940 = vmatpush1.msra.mxu0 0.0
        %8941 = vmatprep.subr.mxu0 0.0
        %8942 = vmatpush1.msra.mxu0 0.0
        %8943 = vmatprep.subr.mxu0 0.0
        %8944 = vmatpush1.msra.mxu0 0.0
        %8945 = vmatprep.subr.mxu0 0.0
        %8946 = vmatpush1.msra.mxu0 0.0
        %8947 = vmatprep.subr.mxu0 0.0
        %8948 = vmatpush1.msra.mxu0 0.0
        %8949 = vmatprep.subr.mxu0 0.0
        %8950 = vmatpush1.msra.mxu0 0.0
        %8951 = vmatprep.subr.mxu0 0.0
        %8952 = vmatpush1.msra.mxu0 0.0
        %8953 = vmatprep.subr.mxu0 0.0
        %8954 = vmatpush1.msra.mxu0 0.0
        %8955 = vmatprep.subr.mxu0 0.0
        %8956 = vmatpush1.msra.mxu0 0.0
        %8957 = vmatprep.subr.mxu0 0.0
        %8958 = vmatpush1.msra.mxu0 0.0
        %8959 = vmatprep.subr.mxu0 0.0
        %8960 = vmatpush1.msra.mxu0 0.0
        %8961 = vmatprep.subr.mxu0 0.0
        %8962 = vmatpush1.msra.mxu0 0.0
        %8963 = vmatprep.subr.mxu0 0.0
        %8964 = vmatpush1.msra.mxu0 0.0
        %8965 = vmatprep.subr.mxu0 0.0
        %8966 = vmatpush1.msra.mxu0 0.0
        %8967 = vmatprep.subr.mxu0 0.0
        %8968 = vmatpush1.msra.mxu0 0.0
        %8969 = vmatprep.subr.mxu0 0.0
        %8970 = vmatpush1.msra.mxu0 0.0
        %8971 = vmatprep.subr.mxu0 0.0
        %8972 = vmatpush1.msra.mxu0 0.0
        %8973 = vmatprep.subr.mxu0 0.0
        %8974 = vmatpush1.msra.mxu0 0.0
        %8975 = vmatprep.subr.mxu0 0.0
        %8976 = vmatpush1.msra.mxu0 0.0
        %8977 = vmatprep.subr.mxu0 0.0
        %8978 = vmatpush1.msra.mxu0 0.0
        %8979 = vmatprep.subr.mxu0 0.0
        %8980 = vmatpush1.msra.mxu0 0.0
        %8981 = vmatprep.subr.mxu0 0.0
        %8982 = vmatpush1.msra.mxu0 0.0
        %8983 = vmatprep.subr.mxu0 0.0
        %8984 = vmatpush1.msra.mxu0 0.0
        %8985 = vmatprep.subr.mxu0 0.0
        %8986 = vmatpush1.msra.mxu0 0.0
        %8987 = vmatprep.subr.mxu0 0.0
        %8988 = vmatpush1.msra.mxu0 0.0
        %8989 = vmatprep.subr.mxu0 0.0
        %8990 = vmatpush1.msra.mxu0 0.0
        %8991 = vmatprep.subr.mxu0 0.0
        %8992 = vmatpush1.msra.mxu0 0.0
        %8993 = vmatprep.subr.mxu0 0.0
        %8994 = vmatpush1.msra.mxu0 0.0
        %8995 = vmatprep.mubr.f32.mxu0 0.0
        %8996 = vmatmul.mubr.f32.gmra.mrb[0].mxu0 %v8858
        %v8997 = vpop.f32.mrb[0].mxu0
        %v8998 = vadd.f32 0.0, %v8997
        %v8999 = vpop.f32.mrb[0].mxu0
        %v9000 = vadd.f32 0.0, %v8999
        %9001 = vdwg.mxu0
        %v9002 = vadd.f32 %v8847, %v8927
        %v9003 = vadd.f32 %v8848, %v8929
        %v9004 = vadd.f32 %v8849, %v8998
        %v9005 = vadd.f32 %v8850, %v9000
        %s9006 = scalar_lea.vmem %s2, 176
        %v9007 = vld [vmem:[%s9006] sm:$0xff]
        %v9008 = vmul.f32 %v6072, %v4365
        %v9009 = vmul.f32 %v6071, %v4369
        %v9010 = vmul.f32 %v6070, %v4373
        %v9011 = vmul.f32 %v6073, %v4377
        %v9013 = vsel %vm311, %v9007, 0
        %9015 = vmatprep.subr.mxu0 %v9009
        %9016 = vmatpush1.msra.mxu0 %v9008
        %9017 = vmatprep.subr.mxu0 0.0
        %9018 = vmatpush1.msra.mxu0 0.0
        %9019 = vmatprep.subr.mxu0 0.0
        %9020 = vmatpush1.msra.mxu0 0.0
        %9021 = vmatprep.subr.mxu0 0.0
        %9022 = vmatpush1.msra.mxu0 0.0
        %9023 = vmatprep.subr.mxu0 0.0
        %9024 = vmatpush1.msra.mxu0 0.0
        %9025 = vmatprep.subr.mxu0 0.0
        %9026 = vmatpush1.msra.mxu0 0.0
        %9027 = vmatprep.subr.mxu0 0.0
        %9028 = vmatpush1.msra.mxu0 0.0
        %9029 = vmatprep.subr.mxu0 0.0
        %9030 = vmatpush1.msra.mxu0 0.0
        %9031 = vmatprep.subr.mxu0 0.0
        %9032 = vmatpush1.msra.mxu0 0.0
        %9033 = vmatprep.subr.mxu0 0.0
        %9034 = vmatpush1.msra.mxu0 0.0
        %9035 = vmatprep.subr.mxu0 0.0
        %9036 = vmatpush1.msra.mxu0 0.0
        %9037 = vmatprep.subr.mxu0 0.0
        %9038 = vmatpush1.msra.mxu0 0.0
        %9039 = vmatprep.subr.mxu0 0.0
        %9040 = vmatpush1.msra.mxu0 0.0
        %9041 = vmatprep.subr.mxu0 0.0
        %9042 = vmatpush1.msra.mxu0 0.0
        %9043 = vmatprep.subr.mxu0 0.0
        %9044 = vmatpush1.msra.mxu0 0.0
        %9045 = vmatprep.subr.mxu0 0.0
        %9046 = vmatpush1.msra.mxu0 0.0
        %9047 = vmatprep.subr.mxu0 0.0
        %9048 = vmatpush1.msra.mxu0 0.0
        %9049 = vmatprep.subr.mxu0 0.0
        %9050 = vmatpush1.msra.mxu0 0.0
        %9051 = vmatprep.subr.mxu0 0.0
        %9052 = vmatpush1.msra.mxu0 0.0
        %9053 = vmatprep.subr.mxu0 0.0
        %9054 = vmatpush1.msra.mxu0 0.0
        %9055 = vmatprep.subr.mxu0 0.0
        %9056 = vmatpush1.msra.mxu0 0.0
        %9057 = vmatprep.subr.mxu0 0.0
        %9058 = vmatpush1.msra.mxu0 0.0
        %9059 = vmatprep.subr.mxu0 0.0
        %9060 = vmatpush1.msra.mxu0 0.0
        %9061 = vmatprep.subr.mxu0 0.0
        %9062 = vmatpush1.msra.mxu0 0.0
        %9063 = vmatprep.subr.mxu0 0.0
        %9064 = vmatpush1.msra.mxu0 0.0
        %9065 = vmatprep.subr.mxu0 0.0
        %9066 = vmatpush1.msra.mxu0 0.0
        %9067 = vmatprep.subr.mxu0 0.0
        %9068 = vmatpush1.msra.mxu0 0.0
        %9069 = vmatprep.subr.mxu0 0.0
        %9070 = vmatpush1.msra.mxu0 0.0
        %9071 = vmatprep.subr.mxu0 0.0
        %9072 = vmatpush1.msra.mxu0 0.0
        %9073 = vmatprep.subr.mxu0 0.0
        %9074 = vmatpush1.msra.mxu0 0.0
        %9075 = vmatprep.subr.mxu0 0.0
        %9076 = vmatpush1.msra.mxu0 0.0
        %9077 = vmatprep.subr.mxu0 0.0
        %9078 = vmatpush1.msra.mxu0 0.0
        %9079 = vmatprep.mubr.f32.mxu0 0.0
        %9080 = vmatmul.mubr.f32.gmra.mrb[0].mxu0 %v9013
        %v9081 = vpop.f32.mrb[0].mxu0
        %v9082 = vadd.f32 0.0, %v9081
        %v9083 = vpop.f32.mrb[0].mxu0
        %v9084 = vadd.f32 0.0, %v9083
        %9085 = vdwg.mxu0
        %9086 = vmatprep.subr.mxu0 %v9011
        %9087 = vmatpush1.msra.mxu0 %v9010
        %9088 = vmatprep.subr.mxu0 0.0
        %9089 = vmatpush1.msra.mxu0 0.0
        %9090 = vmatprep.subr.mxu0 0.0
        %9091 = vmatpush1.msra.mxu0 0.0
        %9092 = vmatprep.subr.mxu0 0.0
        %9093 = vmatpush1.msra.mxu0 0.0
        %9094 = vmatprep.subr.mxu0 0.0
        %9095 = vmatpush1.msra.mxu0 0.0
        %9096 = vmatprep.subr.mxu0 0.0
        %9097 = vmatpush1.msra.mxu0 0.0
        %9098 = vmatprep.subr.mxu0 0.0
        %9099 = vmatpush1.msra.mxu0 0.0
        %9100 = vmatprep.subr.mxu0 0.0
        %9101 = vmatpush1.msra.mxu0 0.0
        %9102 = vmatprep.subr.mxu0 0.0
        %9103 = vmatpush1.msra.mxu0 0.0
        %9104 = vmatprep.subr.mxu0 0.0
        %9105 = vmatpush1.msra.mxu0 0.0
        %9106 = vmatprep.subr.mxu0 0.0
        %9107 = vmatpush1.msra.mxu0 0.0
        %9108 = vmatprep.subr.mxu0 0.0
        %9109 = vmatpush1.msra.mxu0 0.0
        %9110 = vmatprep.subr.mxu0 0.0
        %9111 = vmatpush1.msra.mxu0 0.0
        %9112 = vmatprep.subr.mxu0 0.0
        %9113 = vmatpush1.msra.mxu0 0.0
        %9114 = vmatprep.subr.mxu0 0.0
        %9115 = vmatpush1.msra.mxu0 0.0
        %9116 = vmatprep.subr.mxu0 0.0
        %9117 = vmatpush1.msra.mxu0 0.0
        %9118 = vmatprep.subr.mxu0 0.0
        %9119 = vmatpush1.msra.mxu0 0.0
        %9120 = vmatprep.subr.mxu0 0.0
        %9121 = vmatpush1.msra.mxu0 0.0
        %9122 = vmatprep.subr.mxu0 0.0
        %9123 = vmatpush1.msra.mxu0 0.0
        %9124 = vmatprep.subr.mxu0 0.0
        %9125 = vmatpush1.msra.mxu0 0.0
        %9126 = vmatprep.subr.mxu0 0.0
        %9127 = vmatpush1.msra.mxu0 0.0
        %9128 = vmatprep.subr.mxu0 0.0
        %9129 = vmatpush1.msra.mxu0 0.0
        %9130 = vmatprep.subr.mxu0 0.0
        %9131 = vmatpush1.msra.mxu0 0.0
        %9132 = vmatprep.subr.mxu0 0.0
        %9133 = vmatpush1.msra.mxu0 0.0
        %9134 = vmatprep.subr.mxu0 0.0
        %9135 = vmatpush1.msra.mxu0 0.0
        %9136 = vmatprep.subr.mxu0 0.0
        %9137 = vmatpush1.msra.mxu0 0.0
        %9138 = vmatprep.subr.mxu0 0.0
        %9139 = vmatpush1.msra.mxu0 0.0
        %9140 = vmatprep.subr.mxu0 0.0
        %9141 = vmatpush1.msra.mxu0 0.0
        %9142 = vmatprep.subr.mxu0 0.0
        %9143 = vmatpush1.msra.mxu0 0.0
        %9144 = vmatprep.subr.mxu0 0.0
        %9145 = vmatpush1.msra.mxu0 0.0
        %9146 = vmatprep.subr.mxu0 0.0
        %9147 = vmatpush1.msra.mxu0 0.0
        %9148 = vmatprep.subr.mxu0 0.0
        %9149 = vmatpush1.msra.mxu0 0.0
        %9150 = vmatprep.mubr.f32.mxu0 0.0
        %9151 = vmatmul.mubr.f32.gmra.mrb[0].mxu0 %v9013
        %v9152 = vpop.f32.mrb[0].mxu0
        %v9153 = vadd.f32 0.0, %v9152
        %v9154 = vpop.f32.mrb[0].mxu0
        %v9155 = vadd.f32 0.0, %v9154
        %9156 = vdwg.mxu0
        %v9157 = vadd.f32 %v9002, %v9082
        %v9158 = vadd.f32 %v9003, %v9084
        %v9159 = vadd.f32 %v9004, %v9153
        %v9160 = vadd.f32 %v9005, %v9155
        %s9161 = scalar_lea.vmem %s2, 184
        %v9162 = vld [vmem:[%s9161] sm:$0xff]
        %v9163 = vmul.f32 %v6239, %v4543
        %v9164 = vmul.f32 %v6238, %v4547
        %v9165 = vmul.f32 %v6237, %v4551
        %v9166 = vmul.f32 %v6240, %v4555
        %v9168 = vsel %vm311, %v9162, 0
        %9170 = vmatprep.subr.mxu0 %v9164
        %9171 = vmatpush1.msra.mxu0 %v9163
        %9172 = vmatprep.subr.mxu0 0.0
        %9173 = vmatpush1.msra.mxu0 0.0
        %9174 = vmatprep.subr.mxu0 0.0
        %9175 = vmatpush1.msra.mxu0 0.0
        %9176 = vmatprep.subr.mxu0 0.0
        %9177 = vmatpush1.msra.mxu0 0.0
        %9178 = vmatprep.subr.mxu0 0.0
        %9179 = vmatpush1.msra.mxu0 0.0
        %9180 = vmatprep.subr.mxu0 0.0
        %9181 = vmatpush1.msra.mxu0 0.0
        %9182 = vmatprep.subr.mxu0 0.0
        %9183 = vmatpush1.msra.mxu0 0.0
        %9184 = vmatprep.subr.mxu0 0.0
        %9185 = vmatpush1.msra.mxu0 0.0
        %9186 = vmatprep.subr.mxu0 0.0
        %9187 = vmatpush1.msra.mxu0 0.0
        %9188 = vmatprep.subr.mxu0 0.0
        %9189 = vmatpush1.msra.mxu0 0.0
        %9190 = vmatprep.subr.mxu0 0.0
        %9191 = vmatpush1.msra.mxu0 0.0
        %9192 = vmatprep.subr.mxu0 0.0
        %9193 = vmatpush1.msra.mxu0 0.0
        %9194 = vmatprep.subr.mxu0 0.0
        %9195 = vmatpush1.msra.mxu0 0.0
        %9196 = vmatprep.subr.mxu0 0.0
        %9197 = vmatpush1.msra.mxu0 0.0
        %9198 = vmatprep.subr.mxu0 0.0
        %9199 = vmatpush1.msra.mxu0 0.0
        %9200 = vmatprep.subr.mxu0 0.0
        %9201 = vmatpush1.msra.mxu0 0.0
        %9202 = vmatprep.subr.mxu0 0.0
        %9203 = vmatpush1.msra.mxu0 0.0
        %9204 = vmatprep.subr.mxu0 0.0
        %9205 = vmatpush1.msra.mxu0 0.0
        %9206 = vmatprep.subr.mxu0 0.0
        %9207 = vmatpush1.msra.mxu0 0.0
        %9208 = vmatprep.subr.mxu0 0.0
        %9209 = vmatpush1.msra.mxu0 0.0
        %9210 = vmatprep.subr.mxu0 0.0
        %9211 = vmatpush1.msra.mxu0 0.0
        %9212 = vmatprep.subr.mxu0 0.0
        %9213 = vmatpush1.msra.mxu0 0.0
        %9214 = vmatprep.subr.mxu0 0.0
        %9215 = vmatpush1.msra.mxu0 0.0
        %9216 = vmatprep.subr.mxu0 0.0
        %9217 = vmatpush1.msra.mxu0 0.0
        %9218 = vmatprep.subr.mxu0 0.0
        %9219 = vmatpush1.msra.mxu0 0.0
        %9220 = vmatprep.subr.mxu0 0.0
        %9221 = vmatpush1.msra.mxu0 0.0
        %9222 = vmatprep.subr.mxu0 0.0
        %9223 = vmatpush1.msra.mxu0 0.0
        %9224 = vmatprep.subr.mxu0 0.0
        %9225 = vmatpush1.msra.mxu0 0.0
        %9226 = vmatprep.subr.mxu0 0.0
        %9227 = vmatpush1.msra.mxu0 0.0
        %9228 = vmatprep.subr.mxu0 0.0
        %9229 = vmatpush1.msra.mxu0 0.0
        %9230 = vmatprep.subr.mxu0 0.0
        %9231 = vmatpush1.msra.mxu0 0.0
        %9232 = vmatprep.subr.mxu0 0.0
        %9233 = vmatpush1.msra.mxu0 0.0
        %9234 = vmatprep.mubr.f32.mxu0 0.0
        %9235 = vmatmul.mubr.f32.gmra.mrb[0].mxu0 %v9168
        %v9236 = vpop.f32.mrb[0].mxu0
        %v9237 = vadd.f32 0.0, %v9236
        %v9238 = vpop.f32.mrb[0].mxu0
        %v9239 = vadd.f32 0.0, %v9238
        %9240 = vdwg.mxu0
        %9241 = vmatprep.subr.mxu0 %v9166
        %9242 = vmatpush1.msra.mxu0 %v9165
        %9243 = vmatprep.subr.mxu0 0.0
        %9244 = vmatpush1.msra.mxu0 0.0
        %9245 = vmatprep.subr.mxu0 0.0
        %9246 = vmatpush1.msra.mxu0 0.0
        %9247 = vmatprep.subr.mxu0 0.0
        %9248 = vmatpush1.msra.mxu0 0.0
        %9249 = vmatprep.subr.mxu0 0.0
        %9250 = vmatpush1.msra.mxu0 0.0
        %9251 = vmatprep.subr.mxu0 0.0
        %9252 = vmatpush1.msra.mxu0 0.0
        %9253 = vmatprep.subr.mxu0 0.0
        %9254 = vmatpush1.msra.mxu0 0.0
        %9255 = vmatprep.subr.mxu0 0.0
        %9256 = vmatpush1.msra.mxu0 0.0
        %9257 = vmatprep.subr.mxu0 0.0
        %9258 = vmatpush1.msra.mxu0 0.0
        %9259 = vmatprep.subr.mxu0 0.0
        %9260 = vmatpush1.msra.mxu0 0.0
        %9261 = vmatprep.subr.mxu0 0.0
        %9262 = vmatpush1.msra.mxu0 0.0
        %9263 = vmatprep.subr.mxu0 0.0
        %9264 = vmatpush1.msra.mxu0 0.0
        %9265 = vmatprep.subr.mxu0 0.0
        %9266 = vmatpush1.msra.mxu0 0.0
        %9267 = vmatprep.subr.mxu0 0.0
        %9268 = vmatpush1.msra.mxu0 0.0
        %9269 = vmatprep.subr.mxu0 0.0
        %9270 = vmatpush1.msra.mxu0 0.0
        %9271 = vmatprep.subr.mxu0 0.0
        %9272 = vmatpush1.msra.mxu0 0.0
        %9273 = vmatprep.subr.mxu0 0.0
        %9274 = vmatpush1.msra.mxu0 0.0
        %9275 = vmatprep.subr.mxu0 0.0
        %9276 = vmatpush1.msra.mxu0 0.0
        %9277 = vmatprep.subr.mxu0 0.0
        %9278 = vmatpush1.msra.mxu0 0.0
        %9279 = vmatprep.subr.mxu0 0.0
        %9280 = vmatpush1.msra.mxu0 0.0
        %9281 = vmatprep.subr.mxu0 0.0
        %9282 = vmatpush1.msra.mxu0 0.0
        %9283 = vmatprep.subr.mxu0 0.0
        %9284 = vmatpush1.msra.mxu0 0.0
        %9285 = vmatprep.subr.mxu0 0.0
        %9286 = vmatpush1.msra.mxu0 0.0
        %9287 = vmatprep.subr.mxu0 0.0
        %9288 = vmatpush1.msra.mxu0 0.0
        %9289 = vmatprep.subr.mxu0 0.0
        %9290 = vmatpush1.msra.mxu0 0.0
        %9291 = vmatprep.subr.mxu0 0.0
        %9292 = vmatpush1.msra.mxu0 0.0
        %9293 = vmatprep.subr.mxu0 0.0
        %9294 = vmatpush1.msra.mxu0 0.0
        %9295 = vmatprep.subr.mxu0 0.0
        %9296 = vmatpush1.msra.mxu0 0.0
        %9297 = vmatprep.subr.mxu0 0.0
        %9298 = vmatpush1.msra.mxu0 0.0
        %9299 = vmatprep.subr.mxu0 0.0
        %9300 = vmatpush1.msra.mxu0 0.0
        %9301 = vmatprep.subr.mxu0 0.0
        %9302 = vmatpush1.msra.mxu0 0.0
        %9303 = vmatprep.subr.mxu0 0.0
        %9304 = vmatpush1.msra.mxu0 0.0
        %9305 = vmatprep.mubr.f32.mxu0 0.0
        %9306 = vmatmul.mubr.f32.gmra.mrb[0].mxu0 %v9168
        %v9307 = vpop.f32.mrb[0].mxu0
        %v9308 = vadd.f32 0.0, %v9307
        %v9309 = vpop.f32.mrb[0].mxu0
        %v9310 = vadd.f32 0.0, %v9309
        %9311 = vdwg.mxu0
        %v9312 = vadd.f32 %v9157, %v9237
        %v9313 = vadd.f32 %v9158, %v9239
        %v9314 = vadd.f32 %v9159, %v9308
        %v9315 = vadd.f32 %v9160, %v9310
        %s9316 = scalar_lea.vmem %s2, 192
        %v9317 = vld [vmem:[%s9316] sm:$0xff]
        %v9318 = vmul.f32 %v6406, %v4721
        %v9319 = vmul.f32 %v6405, %v4725
        %v9320 = vmul.f32 %v6404, %v4729
        %v9321 = vmul.f32 %v6407, %v4733
        %v9323 = vsel %vm311, %v9317, 0
        %9325 = vmatprep.subr.mxu0 %v9319
        %9326 = vmatpush1.msra.mxu0 %v9318
        %9327 = vmatprep.subr.mxu0 0.0
        %9328 = vmatpush1.msra.mxu0 0.0
        %9329 = vmatprep.subr.mxu0 0.0
        %9330 = vmatpush1.msra.mxu0 0.0
        %9331 = vmatprep.subr.mxu0 0.0
        %9332 = vmatpush1.msra.mxu0 0.0
        %9333 = vmatprep.subr.mxu0 0.0
        %9334 = vmatpush1.msra.mxu0 0.0
        %9335 = vmatprep.subr.mxu0 0.0
        %9336 = vmatpush1.msra.mxu0 0.0
        %9337 = vmatprep.subr.mxu0 0.0
        %9338 = vmatpush1.msra.mxu0 0.0
        %9339 = vmatprep.subr.mxu0 0.0
        %9340 = vmatpush1.msra.mxu0 0.0
        %9341 = vmatprep.subr.mxu0 0.0
        %9342 = vmatpush1.msra.mxu0 0.0
        %9343 = vmatprep.subr.mxu0 0.0
        %9344 = vmatpush1.msra.mxu0 0.0
        %9345 = vmatprep.subr.mxu0 0.0
        %9346 = vmatpush1.msra.mxu0 0.0
        %9347 = vmatprep.subr.mxu0 0.0
        %9348 = vmatpush1.msra.mxu0 0.0
        %9349 = vmatprep.subr.mxu0 0.0
        %9350 = vmatpush1.msra.mxu0 0.0
        %9351 = vmatprep.subr.mxu0 0.0
        %9352 = vmatpush1.msra.mxu0 0.0
        %9353 = vmatprep.subr.mxu0 0.0
        %9354 = vmatpush1.msra.mxu0 0.0
        %9355 = vmatprep.subr.mxu0 0.0
        %9356 = vmatpush1.msra.mxu0 0.0
        %9357 = vmatprep.subr.mxu0 0.0
        %9358 = vmatpush1.msra.mxu0 0.0
        %9359 = vmatprep.subr.mxu0 0.0
        %9360 = vmatpush1.msra.mxu0 0.0
        %9361 = vmatprep.subr.mxu0 0.0
        %9362 = vmatpush1.msra.mxu0 0.0
        %9363 = vmatprep.subr.mxu0 0.0
        %9364 = vmatpush1.msra.mxu0 0.0
        %9365 = vmatprep.subr.mxu0 0.0
        %9366 = vmatpush1.msra.mxu0 0.0
        %9367 = vmatprep.subr.mxu0 0.0
        %9368 = vmatpush1.msra.mxu0 0.0
        %9369 = vmatprep.subr.mxu0 0.0
        %9370 = vmatpush1.msra.mxu0 0.0
        %9371 = vmatprep.subr.mxu0 0.0
        %9372 = vmatpush1.msra.mxu0 0.0
        %9373 = vmatprep.subr.mxu0 0.0
        %9374 = vmatpush1.msra.mxu0 0.0
        %9375 = vmatprep.subr.mxu0 0.0
        %9376 = vmatpush1.msra.mxu0 0.0
        %9377 = vmatprep.subr.mxu0 0.0
        %9378 = vmatpush1.msra.mxu0 0.0
        %9379 = vmatprep.subr.mxu0 0.0
        %9380 = vmatpush1.msra.mxu0 0.0
        %9381 = vmatprep.subr.mxu0 0.0
        %9382 = vmatpush1.msra.mxu0 0.0
        %9383 = vmatprep.subr.mxu0 0.0
        %9384 = vmatpush1.msra.mxu0 0.0
        %9385 = vmatprep.subr.mxu0 0.0
        %9386 = vmatpush1.msra.mxu0 0.0
        %9387 = vmatprep.subr.mxu0 0.0
        %9388 = vmatpush1.msra.mxu0 0.0
        %9389 = vmatprep.mubr.f32.mxu0 0.0
        %9390 = vmatmul.mubr.f32.gmra.mrb[0].mxu0 %v9323
        %v9391 = vpop.f32.mrb[0].mxu0
        %v9392 = vadd.f32 0.0, %v9391
        %v9393 = vpop.f32.mrb[0].mxu0
        %v9394 = vadd.f32 0.0, %v9393
        %9395 = vdwg.mxu0
        %9396 = vmatprep.subr.mxu0 %v9321
        %9397 = vmatpush1.msra.mxu0 %v9320
        %9398 = vmatprep.subr.mxu0 0.0
        %9399 = vmatpush1.msra.mxu0 0.0
        %9400 = vmatprep.subr.mxu0 0.0
        %9401 = vmatpush1.msra.mxu0 0.0
        %9402 = vmatprep.subr.mxu0 0.0
        %9403 = vmatpush1.msra.mxu0 0.0
        %9404 = vmatprep.subr.mxu0 0.0
        %9405 = vmatpush1.msra.mxu0 0.0
        %9406 = vmatprep.subr.mxu0 0.0
        %9407 = vmatpush1.msra.mxu0 0.0
        %9408 = vmatprep.subr.mxu0 0.0
        %9409 = vmatpush1.msra.mxu0 0.0
        %9410 = vmatprep.subr.mxu0 0.0
        %9411 = vmatpush1.msra.mxu0 0.0
        %9412 = vmatprep.subr.mxu0 0.0
        %9413 = vmatpush1.msra.mxu0 0.0
        %9414 = vmatprep.subr.mxu0 0.0
        %9415 = vmatpush1.msra.mxu0 0.0
        %9416 = vmatprep.subr.mxu0 0.0
        %9417 = vmatpush1.msra.mxu0 0.0
        %9418 = vmatprep.subr.mxu0 0.0
        %9419 = vmatpush1.msra.mxu0 0.0
        %9420 = vmatprep.subr.mxu0 0.0
        %9421 = vmatpush1.msra.mxu0 0.0
        %9422 = vmatprep.subr.mxu0 0.0
        %9423 = vmatpush1.msra.mxu0 0.0
        %9424 = vmatprep.subr.mxu0 0.0
        %9425 = vmatpush1.msra.mxu0 0.0
        %9426 = vmatprep.subr.mxu0 0.0
        %9427 = vmatpush1.msra.mxu0 0.0
        %9428 = vmatprep.subr.mxu0 0.0
        %9429 = vmatpush1.msra.mxu0 0.0
        %9430 = vmatprep.subr.mxu0 0.0
        %9431 = vmatpush1.msra.mxu0 0.0
        %9432 = vmatprep.subr.mxu0 0.0
        %9433 = vmatpush1.msra.mxu0 0.0
        %9434 = vmatprep.subr.mxu0 0.0
        %9435 = vmatpush1.msra.mxu0 0.0
        %9436 = vmatprep.subr.mxu0 0.0
        %9437 = vmatpush1.msra.mxu0 0.0
        %9438 = vmatprep.subr.mxu0 0.0
        %9439 = vmatpush1.msra.mxu0 0.0
        %9440 = vmatprep.subr.mxu0 0.0
        %9441 = vmatpush1.msra.mxu0 0.0
        %9442 = vmatprep.subr.mxu0 0.0
        %9443 = vmatpush1.msra.mxu0 0.0
        %9444 = vmatprep.subr.mxu0 0.0
        %9445 = vmatpush1.msra.mxu0 0.0
        %9446 = vmatprep.subr.mxu0 0.0
        %9447 = vmatpush1.msra.mxu0 0.0
        %9448 = vmatprep.subr.mxu0 0.0
        %9449 = vmatpush1.msra.mxu0 0.0
        %9450 = vmatprep.subr.mxu0 0.0
        %9451 = vmatpush1.msra.mxu0 0.0
        %9452 = vmatprep.subr.mxu0 0.0
        %9453 = vmatpush1.msra.mxu0 0.0
        %9454 = vmatprep.subr.mxu0 0.0
        %9455 = vmatpush1.msra.mxu0 0.0
        %9456 = vmatprep.subr.mxu0 0.0
        %9457 = vmatpush1.msra.mxu0 0.0
        %9458 = vmatprep.subr.mxu0 0.0
        %9459 = vmatpush1.msra.mxu0 0.0
        %9460 = vmatprep.mubr.f32.mxu0 0.0
        %9461 = vmatmul.mubr.f32.gmra.mrb[0].mxu0 %v9323
        %v9462 = vpop.f32.mrb[0].mxu0
        %v9463 = vadd.f32 0.0, %v9462
        %v9464 = vpop.f32.mrb[0].mxu0
        %v9465 = vadd.f32 0.0, %v9464
        %9466 = vdwg.mxu0
        %v9467 = vadd.f32 %v9312, %v9392
        %v9468 = vadd.f32 %v9313, %v9394
        %v9469 = vadd.f32 %v9314, %v9463
        %v9470 = vadd.f32 %v9315, %v9465
        %s9471 = scalar_lea.vmem %s2, 200
        %v9472 = vld [vmem:[%s9471] sm:$0xff]
        %v9473 = vmul.f32 %v6573, %v4899
        %v9474 = vmul.f32 %v6572, %v4903
        %v9475 = vmul.f32 %v6571, %v4907
        %v9476 = vmul.f32 %v6574, %v4911
        %v9478 = vsel %vm311, %v9472, 0
        %9480 = vmatprep.subr.mxu0 %v9474
        %9481 = vmatpush1.msra.mxu0 %v9473
        %9482 = vmatprep.subr.mxu0 0.0
        %9483 = vmatpush1.msra.mxu0 0.0
        %9484 = vmatprep.subr.mxu0 0.0
        %9485 = vmatpush1.msra.mxu0 0.0
        %9486 = vmatprep.subr.mxu0 0.0
        %9487 = vmatpush1.msra.mxu0 0.0
        %9488 = vmatprep.subr.mxu0 0.0
        %9489 = vmatpush1.msra.mxu0 0.0
        %9490 = vmatprep.subr.mxu0 0.0
        %9491 = vmatpush1.msra.mxu0 0.0
        %9492 = vmatprep.subr.mxu0 0.0
        %9493 = vmatpush1.msra.mxu0 0.0
        %9494 = vmatprep.subr.mxu0 0.0
        %9495 = vmatpush1.msra.mxu0 0.0
        %9496 = vmatprep.subr.mxu0 0.0
        %9497 = vmatpush1.msra.mxu0 0.0
        %9498 = vmatprep.subr.mxu0 0.0
        %9499 = vmatpush1.msra.mxu0 0.0
        %9500 = vmatprep.subr.mxu0 0.0
        %9501 = vmatpush1.msra.mxu0 0.0
        %9502 = vmatprep.subr.mxu0 0.0
        %9503 = vmatpush1.msra.mxu0 0.0
        %9504 = vmatprep.subr.mxu0 0.0
        %9505 = vmatpush1.msra.mxu0 0.0
        %9506 = vmatprep.subr.mxu0 0.0
        %9507 = vmatpush1.msra.mxu0 0.0
        %9508 = vmatprep.subr.mxu0 0.0
        %9509 = vmatpush1.msra.mxu0 0.0
        %9510 = vmatprep.subr.mxu0 0.0
        %9511 = vmatpush1.msra.mxu0 0.0
        %9512 = vmatprep.subr.mxu0 0.0
        %9513 = vmatpush1.msra.mxu0 0.0
        %9514 = vmatprep.subr.mxu0 0.0
        %9515 = vmatpush1.msra.mxu0 0.0
        %9516 = vmatprep.subr.mxu0 0.0
        %9517 = vmatpush1.msra.mxu0 0.0
        %9518 = vmatprep.subr.mxu0 0.0
        %9519 = vmatpush1.msra.mxu0 0.0
        %9520 = vmatprep.subr.mxu0 0.0
        %9521 = vmatpush1.msra.mxu0 0.0
        %9522 = vmatprep.subr.mxu0 0.0
        %9523 = vmatpush1.msra.mxu0 0.0
        %9524 = vmatprep.subr.mxu0 0.0
        %9525 = vmatpush1.msra.mxu0 0.0
        %9526 = vmatprep.subr.mxu0 0.0
        %9527 = vmatpush1.msra.mxu0 0.0
        %9528 = vmatprep.subr.mxu0 0.0
        %9529 = vmatpush1.msra.mxu0 0.0
        %9530 = vmatprep.subr.mxu0 0.0
        %9531 = vmatpush1.msra.mxu0 0.0
        %9532 = vmatprep.subr.mxu0 0.0
        %9533 = vmatpush1.msra.mxu0 0.0
        %9534 = vmatprep.subr.mxu0 0.0
        %9535 = vmatpush1.msra.mxu0 0.0
        %9536 = vmatprep.subr.mxu0 0.0
        %9537 = vmatpush1.msra.mxu0 0.0
        %9538 = vmatprep.subr.mxu0 0.0
        %9539 = vmatpush1.msra.mxu0 0.0
        %9540 = vmatprep.subr.mxu0 0.0
        %9541 = vmatpush1.msra.mxu0 0.0
        %9542 = vmatprep.subr.mxu0 0.0
        %9543 = vmatpush1.msra.mxu0 0.0
        %9544 = vmatprep.mubr.f32.mxu0 0.0
        %9545 = vmatmul.mubr.f32.gmra.mrb[0].mxu0 %v9478
        %v9546 = vpop.f32.mrb[0].mxu0
        %v9547 = vadd.f32 0.0, %v9546
        %v9548 = vpop.f32.mrb[0].mxu0
        %v9549 = vadd.f32 0.0, %v9548
        %9550 = vdwg.mxu0
        %9551 = vmatprep.subr.mxu0 %v9476
        %9552 = vmatpush1.msra.mxu0 %v9475
        %9553 = vmatprep.subr.mxu0 0.0
        %9554 = vmatpush1.msra.mxu0 0.0
        %9555 = vmatprep.subr.mxu0 0.0
        %9556 = vmatpush1.msra.mxu0 0.0
        %9557 = vmatprep.subr.mxu0 0.0
        %9558 = vmatpush1.msra.mxu0 0.0
        %9559 = vmatprep.subr.mxu0 0.0
        %9560 = vmatpush1.msra.mxu0 0.0
        %9561 = vmatprep.subr.mxu0 0.0
        %9562 = vmatpush1.msra.mxu0 0.0
        %9563 = vmatprep.subr.mxu0 0.0
        %9564 = vmatpush1.msra.mxu0 0.0
        %9565 = vmatprep.subr.mxu0 0.0
        %9566 = vmatpush1.msra.mxu0 0.0
        %9567 = vmatprep.subr.mxu0 0.0
        %9568 = vmatpush1.msra.mxu0 0.0
        %9569 = vmatprep.subr.mxu0 0.0
        %9570 = vmatpush1.msra.mxu0 0.0
        %9571 = vmatprep.subr.mxu0 0.0
        %9572 = vmatpush1.msra.mxu0 0.0
        %9573 = vmatprep.subr.mxu0 0.0
        %9574 = vmatpush1.msra.mxu0 0.0
        %9575 = vmatprep.subr.mxu0 0.0
        %9576 = vmatpush1.msra.mxu0 0.0
        %9577 = vmatprep.subr.mxu0 0.0
        %9578 = vmatpush1.msra.mxu0 0.0
        %9579 = vmatprep.subr.mxu0 0.0
        %9580 = vmatpush1.msra.mxu0 0.0
        %9581 = vmatprep.subr.mxu0 0.0
        %9582 = vmatpush1.msra.mxu0 0.0
        %9583 = vmatprep.subr.mxu0 0.0
        %9584 = vmatpush1.msra.mxu0 0.0
        %9585 = vmatprep.subr.mxu0 0.0
        %9586 = vmatpush1.msra.mxu0 0.0
        %9587 = vmatprep.subr.mxu0 0.0
        %9588 = vmatpush1.msra.mxu0 0.0
        %9589 = vmatprep.subr.mxu0 0.0
        %9590 = vmatpush1.msra.mxu0 0.0
        %9591 = vmatprep.subr.mxu0 0.0
        %9592 = vmatpush1.msra.mxu0 0.0
        %9593 = vmatprep.subr.mxu0 0.0
        %9594 = vmatpush1.msra.mxu0 0.0
        %9595 = vmatprep.subr.mxu0 0.0
        %9596 = vmatpush1.msra.mxu0 0.0
        %9597 = vmatprep.subr.mxu0 0.0
        %9598 = vmatpush1.msra.mxu0 0.0
        %9599 = vmatprep.subr.mxu0 0.0
        %9600 = vmatpush1.msra.mxu0 0.0
        %9601 = vmatprep.subr.mxu0 0.0
        %9602 = vmatpush1.msra.mxu0 0.0
        %9603 = vmatprep.subr.mxu0 0.0
        %9604 = vmatpush1.msra.mxu0 0.0
        %9605 = vmatprep.subr.mxu0 0.0
        %9606 = vmatpush1.msra.mxu0 0.0
        %9607 = vmatprep.subr.mxu0 0.0
        %9608 = vmatpush1.msra.mxu0 0.0
        %9609 = vmatprep.subr.mxu0 0.0
        %9610 = vmatpush1.msra.mxu0 0.0
        %9611 = vmatprep.subr.mxu0 0.0
        %9612 = vmatpush1.msra.mxu0 0.0
        %9613 = vmatprep.subr.mxu0 0.0
        %9614 = vmatpush1.msra.mxu0 0.0
        %9615 = vmatprep.mubr.f32.mxu0 0.0
        %9616 = vmatmul.mubr.f32.gmra.mrb[0].mxu0 %v9478
        %v9617 = vpop.f32.mrb[0].mxu0
        %v9618 = vadd.f32 0.0, %v9617
        %v9619 = vpop.f32.mrb[0].mxu0
        %v9620 = vadd.f32 0.0, %v9619
        %9621 = vdwg.mxu0
        %v9622 = vadd.f32 %v9467, %v9547
        %v9623 = vadd.f32 %v9468, %v9549
        %v9624 = vadd.f32 %v9469, %v9618
        %v9625 = vadd.f32 %v9470, %v9620
        %s9626 = scalar_lea.vmem %s2, 208
        %v9627 = vld [vmem:[%s9626] sm:$0xff]
        %v9628 = vmul.f32 %v6740, %v5077
        %v9629 = vmul.f32 %v6739, %v5081
        %v9630 = vmul.f32 %v6738, %v5085
        %v9631 = vmul.f32 %v6741, %v5089
        %v9633 = vsel %vm311, %v9627, 0
        %9635 = vmatprep.subr.mxu0 %v9629
        %9636 = vmatpush1.msra.mxu0 %v9628
        %9637 = vmatprep.subr.mxu0 0.0
        %9638 = vmatpush1.msra.mxu0 0.0
        %9639 = vmatprep.subr.mxu0 0.0
        %9640 = vmatpush1.msra.mxu0 0.0
        %9641 = vmatprep.subr.mxu0 0.0
        %9642 = vmatpush1.msra.mxu0 0.0
        %9643 = vmatprep.subr.mxu0 0.0
        %9644 = vmatpush1.msra.mxu0 0.0
        %9645 = vmatprep.subr.mxu0 0.0
        %9646 = vmatpush1.msra.mxu0 0.0
        %9647 = vmatprep.subr.mxu0 0.0
        %9648 = vmatpush1.msra.mxu0 0.0
        %9649 = vmatprep.subr.mxu0 0.0
        %9650 = vmatpush1.msra.mxu0 0.0
        %9651 = vmatprep.subr.mxu0 0.0
        %9652 = vmatpush1.msra.mxu0 0.0
        %9653 = vmatprep.subr.mxu0 0.0
        %9654 = vmatpush1.msra.mxu0 0.0
        %9655 = vmatprep.subr.mxu0 0.0
        %9656 = vmatpush1.msra.mxu0 0.0
        %9657 = vmatprep.subr.mxu0 0.0
        %9658 = vmatpush1.msra.mxu0 0.0
        %9659 = vmatprep.subr.mxu0 0.0
        %9660 = vmatpush1.msra.mxu0 0.0
        %9661 = vmatprep.subr.mxu0 0.0
        %9662 = vmatpush1.msra.mxu0 0.0
        %9663 = vmatprep.subr.mxu0 0.0
        %9664 = vmatpush1.msra.mxu0 0.0
        %9665 = vmatprep.subr.mxu0 0.0
        %9666 = vmatpush1.msra.mxu0 0.0
        %9667 = vmatprep.subr.mxu0 0.0
        %9668 = vmatpush1.msra.mxu0 0.0
        %9669 = vmatprep.subr.mxu0 0.0
        %9670 = vmatpush1.msra.mxu0 0.0
        %9671 = vmatprep.subr.mxu0 0.0
        %9672 = vmatpush1.msra.mxu0 0.0
        %9673 = vmatprep.subr.mxu0 0.0
        %9674 = vmatpush1.msra.mxu0 0.0
        %9675 = vmatprep.subr.mxu0 0.0
        %9676 = vmatpush1.msra.mxu0 0.0
        %9677 = vmatprep.subr.mxu0 0.0
        %9678 = vmatpush1.msra.mxu0 0.0
        %9679 = vmatprep.subr.mxu0 0.0
        %9680 = vmatpush1.msra.mxu0 0.0
        %9681 = vmatprep.subr.mxu0 0.0
        %9682 = vmatpush1.msra.mxu0 0.0
        %9683 = vmatprep.subr.mxu0 0.0
        %9684 = vmatpush1.msra.mxu0 0.0
        %9685 = vmatprep.subr.mxu0 0.0
        %9686 = vmatpush1.msra.mxu0 0.0
        %9687 = vmatprep.subr.mxu0 0.0
        %9688 = vmatpush1.msra.mxu0 0.0
        %9689 = vmatprep.subr.mxu0 0.0
        %9690 = vmatpush1.msra.mxu0 0.0
        %9691 = vmatprep.subr.mxu0 0.0
        %9692 = vmatpush1.msra.mxu0 0.0
        %9693 = vmatprep.subr.mxu0 0.0
        %9694 = vmatpush1.msra.mxu0 0.0
        %9695 = vmatprep.subr.mxu0 0.0
        %9696 = vmatpush1.msra.mxu0 0.0
        %9697 = vmatprep.subr.mxu0 0.0
        %9698 = vmatpush1.msra.mxu0 0.0
        %9699 = vmatprep.mubr.f32.mxu0 0.0
        %9700 = vmatmul.mubr.f32.gmra.mrb[0].mxu0 %v9633
        %v9701 = vpop.f32.mrb[0].mxu0
        %v9702 = vadd.f32 0.0, %v9701
        %v9703 = vpop.f32.mrb[0].mxu0
        %v9704 = vadd.f32 0.0, %v9703
        %9705 = vdwg.mxu0
        %9706 = vmatprep.subr.mxu0 %v9631
        %9707 = vmatpush1.msra.mxu0 %v9630
        %9708 = vmatprep.subr.mxu0 0.0
        %9709 = vmatpush1.msra.mxu0 0.0
        %9710 = vmatprep.subr.mxu0 0.0
        %9711 = vmatpush1.msra.mxu0 0.0
        %9712 = vmatprep.subr.mxu0 0.0
        %9713 = vmatpush1.msra.mxu0 0.0
        %9714 = vmatprep.subr.mxu0 0.0
        %9715 = vmatpush1.msra.mxu0 0.0
        %9716 = vmatprep.subr.mxu0 0.0
        %9717 = vmatpush1.msra.mxu0 0.0
        %9718 = vmatprep.subr.mxu0 0.0
        %9719 = vmatpush1.msra.mxu0 0.0
        %9720 = vmatprep.subr.mxu0 0.0
        %9721 = vmatpush1.msra.mxu0 0.0
        %9722 = vmatprep.subr.mxu0 0.0
        %9723 = vmatpush1.msra.mxu0 0.0
        %9724 = vmatprep.subr.mxu0 0.0
        %9725 = vmatpush1.msra.mxu0 0.0
        %9726 = vmatprep.subr.mxu0 0.0
        %9727 = vmatpush1.msra.mxu0 0.0
        %9728 = vmatprep.subr.mxu0 0.0
        %9729 = vmatpush1.msra.mxu0 0.0
        %9730 = vmatprep.subr.mxu0 0.0
        %9731 = vmatpush1.msra.mxu0 0.0
        %9732 = vmatprep.subr.mxu0 0.0
        %9733 = vmatpush1.msra.mxu0 0.0
        %9734 = vmatprep.subr.mxu0 0.0
        %9735 = vmatpush1.msra.mxu0 0.0
        %9736 = vmatprep.subr.mxu0 0.0
        %9737 = vmatpush1.msra.mxu0 0.0
        %9738 = vmatprep.subr.mxu0 0.0
        %9739 = vmatpush1.msra.mxu0 0.0
        %9740 = vmatprep.subr.mxu0 0.0
        %9741 = vmatpush1.msra.mxu0 0.0
        %9742 = vmatprep.subr.mxu0 0.0
        %9743 = vmatpush1.msra.mxu0 0.0
        %9744 = vmatprep.subr.mxu0 0.0
        %9745 = vmatpush1.msra.mxu0 0.0
        %9746 = vmatprep.subr.mxu0 0.0
        %9747 = vmatpush1.msra.mxu0 0.0
        %9748 = vmatprep.subr.mxu0 0.0
        %9749 = vmatpush1.msra.mxu0 0.0
        %9750 = vmatprep.subr.mxu0 0.0
        %9751 = vmatpush1.msra.mxu0 0.0
        %9752 = vmatprep.subr.mxu0 0.0
        %9753 = vmatpush1.msra.mxu0 0.0
        %9754 = vmatprep.subr.mxu0 0.0
        %9755 = vmatpush1.msra.mxu0 0.0
        %9756 = vmatprep.subr.mxu0 0.0
        %9757 = vmatpush1.msra.mxu0 0.0
        %9758 = vmatprep.subr.mxu0 0.0
        %9759 = vmatpush1.msra.mxu0 0.0
        %9760 = vmatprep.subr.mxu0 0.0
        %9761 = vmatpush1.msra.mxu0 0.0
        %9762 = vmatprep.subr.mxu0 0.0
        %9763 = vmatpush1.msra.mxu0 0.0
        %9764 = vmatprep.subr.mxu0 0.0
        %9765 = vmatpush1.msra.mxu0 0.0
        %9766 = vmatprep.subr.mxu0 0.0
        %9767 = vmatpush1.msra.mxu0 0.0
        %9768 = vmatprep.subr.mxu0 0.0
        %9769 = vmatpush1.msra.mxu0 0.0
        %9770 = vmatprep.mubr.f32.mxu0 0.0
        %9771 = vmatmul.mubr.f32.gmra.mrb[0].mxu0 %v9633
        %v9772 = vpop.f32.mrb[0].mxu0
        %v9773 = vadd.f32 0.0, %v9772
        %v9774 = vpop.f32.mrb[0].mxu0
        %v9775 = vadd.f32 0.0, %v9774
        %9776 = vdwg.mxu0
        %v9777 = vadd.f32 %v9622, %v9702
        %v9778 = vadd.f32 %v9623, %v9704
        %v9779 = vadd.f32 %v9624, %v9773
        %v9780 = vadd.f32 %v9625, %v9775
        %v9781 = vmax.f32 %v9777, 0.0
        %v9782 = vmax.f32 %v9778, 0.0
        %v9783 = vmax.f32 %v9779, 0.0
        %v9784 = vmax.f32 %v9780, 0.0
        %9785 = vst [vmem:[%s217] sm:$0xff] %v9781
        %9786 = vst [vmem:[%s217 + $0x8] sm:$0xff] %v9782
        %9787 = vst [vmem:[%s217 + $0x10] sm:$0xff] %v9783
        %9788 = vst [vmem:[%s217 + $0x18] sm:$0xff] %v9784
        %s9789 = sand.u32 %s137, 1
        %s9790 = scalar_lea.sflag [#allocation3], %s9789
        %s9791 = sand.u32 %s137, 1
        %s9792 = smul.addr %s9791, 32
        %s9793 = scalar_lea.vmem [#allocation2], %s9792
        // Predicated region
        $region41: #{tpu_custom_call.1} parent=39 // pred_check
          %p9794 = pneg %p147
        $region42: #{tpu_custom_call.1} parent=39 // pred_check_branch
          %9796 = sbr.rel (%p9794) target = $region44
        $region43: #{tpu_custom_call.1} parent=39 // pred_region
          %s9798 = ssub.s32 512, 512
          %9799 = vsyncadd %s9790, %s9798
          %s9800 = smul.addr %s19, 4
          %s9801 = smul.addr %s9800, 128
          %s9802 = scalar_lea.hbm %s5, %s9801
          %s9804 = sshll.u32 %s9793, 4
          %s9805 = int_to_ptr.vmem [resolvable:$true] %s9804
          %9807 = dma.vmem_to_hbm [thread:$0]  %s9805, 512, %s9802, %s9790
        $region44: #{tpu_custom_call.1} parent=39 // pred_fallthru
          _
      $region40: #{tpu_custom_call.1} parent=5 // pred_fallthru
        _
      %p9808 = scmp.le.s32.totalorder 2, %s14
      // Predicated region
      $region45: #{tpu_custom_call.1} parent=5 // pred_check
        %p9809 = pneg %p9808
      $region46: #{tpu_custom_call.1} parent=5 // pred_check_branch
        %9811 = sbr.rel (%p9809) target = $region48
      $region47: #{tpu_custom_call.1} parent=5 // pred_region
        %s9812 = ssub.s32 %s14, 2
        // Predicated region
        $region49: #{tpu_custom_call.1} parent=47 // pred_check
          %p9813 = pneg %p153
        $region50: #{tpu_custom_call.1} parent=47 // pred_check_branch
          %9815 = sbr.rel (%p9813) target = $region52
        $region51: #{tpu_custom_call.1} parent=47 // pred_region
          %s9816 = sand.u32 %s138, 1
          %s9817 = scalar_lea.sflag [#allocation3], %s9816
          %s9818 = sand.u32 %s138, 1
          %s9819 = smul.addr %s9818, 32
          %s9820 = scalar_lea.vmem [#allocation2], %s9819
          %9821 = dma.done %s9817, 512
        $region52: #{tpu_custom_call.1} parent=47 // pred_fallthru
          _
      $region48: #{tpu_custom_call.1} parent=5 // pred_fallthru
        _
    $region6: #{tpu_custom_call.1} parent=1 // loop_footer
      %s18 = sadd.s32 1, %s14
    $region7: #{tpu_custom_call.1} parent=1 // loop_footer_branch
      %13 = sbr.rel target = $region3
    $region8: #{tpu_custom_call.1} parent=1 // loop_exit
      _
    %9822 = vsyncpa [#allocation3], 1
    %s9823 = scalar_lea.sflag [#allocation3], 1
    %9824 = vsyncpa %s9823, 1

</llo_original>
